<compile_context>
chip_gen: v6e
topology: v6e:2x2x1
jax: 0.10.0
libtpu: 0.0.40
codegen_flags: <defaults>
</compile_context>

<pallas_src>
import jax
import jax.numpy as jnp
import numpy as np
from jax.experimental import pallas as pl
from jax.experimental.pallas import tpu as pltpu

EPS = 1e-5  # PyTorch GroupNorm default eps


# ----------------------------------------------------------------------------
# Fused single-kernel forward
# ----------------------------------------------------------------------------
def _make_cnn_kernel(N, H0, W0, c):
    # Static per-layer dims: (H, W, Cin, Cout). Pools follow layers 2 and 3;
    # layer 4 is followed by the fused global-max + linear head.
    L1 = (H0, W0, 3, c)
    L2 = (H0, W0, c, 2 * c)
    L3 = (H0 // 2, W0 // 2, 2 * c, 4 * c)
    L4 = (H0 // 4, W0 // 4, 4 * c, 8 * c)

    def conv_gn_relu(pad_ref, w_ref, aff_ref, dims):
        """3x3 conv (9 shifted block-diag matmuls) + GroupNorm(1) + ReLU.

        pad_ref: (N*H + 2, (W+2)*Cin) zero-padded input scratch (already filled).
        w_ref:   (9, W*Cin, W*Cout) per-tap block-diagonal weights kron(I_W, w[kh,kw]).
        aff_ref: (3, W*Cout) rows = (bias, gamma, beta), each tiled W times over lanes.
        Returns a list of N per-sample (H, W*Cout) activation values.
        """
        H, W, Cin, Cout = dims
        NH = N * H
        WCin, WCout = W * Cin, W * Cout

        # Masks: vertical taps must not read across the per-sample boundary rows.
        row = jax.lax.broadcasted_iota(jnp.int32, (NH, WCin), 0)
        h_idx = row % H
        top = h_idx == 0          # dh = -1 would read previous sample's last row
        bot = h_idx == H - 1      # dh = +1 would read next sample's first row

        acc = jnp.zeros((NH, WCout), jnp.float32)
        for kh in range(3):
            dh = kh - 1
            for kw in range(3):
                dw = kw - 1
                xs = pad_ref[1 + dh:1 + dh + NH,
                             (1 + dw) * Cin:(1 + dw) * Cin + WCin]
                if dh == -1:
                    xs = jnp.where(top, 0.0, xs)
                elif dh == 1:
                    xs = jnp.where(bot, 0.0, xs)
                acc = acc + jnp.dot(xs, w_ref[3 * kh + kw],
                                    preferred_element_type=jnp.float32)

        bias = aff_ref[0:1, :]
        gamma = aff_ref[1:2, :]
        beta = aff_ref[2:3, :]
        y = acc + bias                       # (NH, W*Cout)

        # GroupNorm(num_groups=1): per-sample stats over all of (H, W, C), single pass.
        segs = []
        inv_cnt = 1.0 / float(H * WCout)
        for n in range(N):
            seg = y[n * H:(n + 1) * H, :]
            s1 = jnp.sum(seg, axis=1, keepdims=True)
            mean = jnp.sum(s1, axis=0, keepdims=True) * inv_cnt              # (1, 1)
            q1 = jnp.sum(seg * seg, axis=1, keepdims=True)
            var = jnp.sum(q1, axis=0, keepdims=True) * inv_cnt - mean * mean  # biased
            scale = gamma * jax.lax.rsqrt(var + EPS)                         # (1, W*Cout)
            shift = beta - mean * scale
            segs.append(jnp.maximum(seg * scale + shift, 0.0))
        return segs

    def maxpool_into(src_ref, dst_pad_ref, dims):
        """2x2 / stride-2 max pool of src_ref ((N*H, W*C) activations), written
        directly into the interior of the next layer's padded scratch."""
        H, W, _, C = dims                    # dims of the layer that produced src
        NH = N * H
        even = src_ref[pl.ds(0, NH // 2, stride=2), :]   # rows h even
        odd = src_ref[pl.ds(1, NH // 2, stride=2), :]    # rows h odd
        vm = jnp.maximum(even, odd)                      # (N*H/2, W*C)
        for j in range(W // 2):                          # horizontal pairs of lane blocks
            a = vm[:, (2 * j) * C:(2 * j + 1) * C]
            b = vm[:, (2 * j + 1) * C:(2 * j + 2) * C]
            dst_pad_ref[1:1 + NH // 2, (1 + j) * C:(2 + j) * C] = jnp.maximum(a, b)

    def kernel(x_ref, w1_ref, w2_ref, w3_ref, w4_ref,
               aff1_ref, aff2_ref, aff3_ref, aff4_ref,
               hw_ref, hb_ref, o_ref,
               pad1, pad2, pad3, pad4, act2, act3):
        # Zero the padded scratches so the borders act as conv zero-padding.
        for pad in (pad1, pad2, pad3, pad4):
            pad[...] = jnp.zeros(pad.shape, pad.dtype)

        # ---- layer 1 (16x16, 3 -> c), no pool ----
        H1, W1, C1in, _ = L1
        pad1[1:1 + N * H1, C1in:(W1 + 1) * C1in] = x_ref[...]
        segs1 = conv_gn_relu(pad1, w1_ref, aff1_ref, L1)

        # ---- layer 2 (16x16, c -> 2c), then 2x2 pool ----
        H2, W2, C2in, _ = L2
        for n in range(N):
            pad2[1 + n * H2:1 + (n + 1) * H2, C2in:(W2 + 1) * C2in] = segs1[n]
        segs2 = conv_gn_relu(pad2, w2_ref, aff2_ref, L2)
        for n in range(N):
            act2[n * H2:(n + 1) * H2, :] = segs2[n]
        maxpool_into(act2, pad3, L2)

        # ---- layer 3 (8x8, 2c -> 4c), then 2x2 pool ----
        H3, _, _, _ = L3
        segs3 = conv_gn_relu(pad3, w3_ref, aff3_ref, L3)
        for n in range(N):
            act3[n * H3:(n + 1) * H3, :] = segs3[n]
        maxpool_into(act3, pad4, L3)

        # ---- layer 4 (4x4, 4c -> 8c) + global max pool + linear head ----
        # MaxPool2d(2) followed by AdaptiveMaxPool((1,1)) == global max over the 4x4 map.
        H4, W4, _, C4out = L4
        segs4 = conv_gn_relu(pad4, w4_ref, aff4_ref, L4)
        for n in range(N):
            seg = segs4[n]                              # (H4, W4*C4out)
            m = seg[:, 0:C4out]
            for wcol in range(1, W4):
                m = jnp.maximum(m, seg[:, wcol * C4out:(wcol + 1) * C4out])
            phi = jnp.max(m, axis=0, keepdims=True)     # (1, C4out) global max features
            logits = jnp.dot(phi, hw_ref[...],
                             preferred_element_type=jnp.float32) + hb_ref[...]
            o_ref[n:n + 1, :] = logits

    scratch_shapes = [
        pltpu.VMEM((N * H0 + 2, (W0 + 2) * 3), jnp.float32),                    # pad1
        pltpu.VMEM((N * H0 + 2, (W0 + 2) * c), jnp.float32),                    # pad2
        pltpu.VMEM((N * (H0 // 2) + 2, (W0 // 2 + 2) * 2 * c), jnp.float32),    # pad3
        pltpu.VMEM((N * (H0 // 4) + 2, (W0 // 4 + 2) * 4 * c), jnp.float32),    # pad4
        pltpu.VMEM((N * H0, W0 * 2 * c), jnp.float32),                          # act2
        pltpu.VMEM((N * (H0 // 2), (W0 // 2) * 4 * c), jnp.float32),            # act3
    ]
    return kernel, scratch_shapes


def cnn_ln_forward(x_nchw, params):
    N, Cin0, H0, W0 = x_nchw.shape
    assert Cin0 == 3 and H0 % 4 == 0 and W0 % 4 == 0
    c = params["l1"][0].shape[-1]
    num_classes = params["head_b"].shape[0]

    # NCHW -> NHWC -> lane-dense (N*H, W*C) slab (wrapper-side layout plumbing only).
    x2d = jnp.transpose(x_nchw, (0, 2, 3, 1)).reshape(N * H0, W0 * Cin0)

    def prep(layer, W):
        w, b, g, bt = layer                        # w: (3, 3, Cin, Cout)
        eye = jnp.eye(W, dtype=w.dtype)
        taps = jnp.stack([jnp.kron(eye, w[kh, kw])
                          for kh in range(3) for kw in range(3)])   # (9, W*Cin, W*Cout)
        aff = jnp.stack([jnp.tile(b, W), jnp.tile(g, W), jnp.tile(bt, W)])  # (3, W*Cout)
        return taps, aff

    w1, a1 = prep(params["l1"], W0)
    w2, a2 = prep(params["l2"], W0)
    w3, a3 = prep(params["l3"], W0 // 2)
    w4, a4 = prep(params["l4"], W0 // 4)

    kernel, scratch_shapes = _make_cnn_kernel(N, H0, W0, c)
    return pl.pallas_call(
        kernel,
        out_shape=jax.ShapeDtypeStruct((N, num_classes), jnp.float32),
        scratch_shapes=scratch_shapes,
    )(x2d, w1, w2, w3, w4, a1, a2, a3, a4,
      params["head_w"], params["head_b"].reshape(1, num_classes))


# ----------------------------------------------------------------------------
# Parameters (deterministic, synthetic)
# ----------------------------------------------------------------------------
def init_params(key, c, num_classes):
    ks = jax.random.split(key, 6)

    def conv_block(k, cin, cout):
        return (0.1 * jax.random.normal(k, (3, 3, cin, cout), jnp.float32),
                0.05 * jax.random.normal(jax.random.fold_in(k, 1), (cout,), jnp.float32),
                jnp.ones((cout,), jnp.float32),    # GroupNorm weight (PyTorch default)
                jnp.zeros((cout,), jnp.float32))   # GroupNorm bias

    return {
        "l1": conv_block(ks[0], 3, c),
        "l2": conv_block(ks[1], c, 2 * c),
        "l3": conv_block(ks[2], 2 * c, 4 * c),
        "l4": conv_block(ks[3], 4 * c, 8 * c),
        "head_w": 0.1 * jax.random.normal(ks[4], (8 * c, num_classes), jnp.float32),
        "head_b": 0.05 * jax.random.normal(ks[5], (num_classes,), jnp.float32),
    }


# Pure-JAX reference (correctness check only)
def _ref_forward(x_nchw, p):
    x = jnp.transpose(x_nchw, (0, 2, 3, 1))

    def block(x, w, b, g, bt):
        y = jax.lax.conv_general_dilated(
            x, w, (1, 1), "SAME", dimension_numbers=("NHWC", "HWIO", "NHWC")) + b
        m = y.mean(axis=(1, 2, 3), keepdims=True)
        v = ((y - m) ** 2).mean(axis=(1, 2, 3), keepdims=True)
        return jnp.maximum((y - m) * jax.lax.rsqrt(v + EPS) * g + bt, 0.0)

    def pool(x):
        N, H, W, C = x.shape
        return x.reshape(N, H // 2, 2, W // 2, 2, C).max(axis=(2, 4))

    x = block(x, *p["l1"])
    x = block(x, *p["l2"]); x = pool(x)
    x = block(x, *p["l3"]); x = pool(x)
    x = block(x, *p["l4"]); x = pool(x)
    phi = x.max(axis=(1, 2))
    return phi @ p["head_w"] + p["head_b"]


if __name__ == "__main__":
    key = jax.random.PRNGKey(0)
    kx, kp = jax.random.split(key)
    c, num_classes = 4, 10
    x = jax.random.normal(kx, (2, 3, 16, 16), jnp.float32)   # NCHW, like the PyTorch module
    params = init_params(kp, c, num_classes)

    fwd = jax.jit(cnn_ln_forward)
    out = jax.block_until_ready(fwd(x, params))
    assert out.shape == (2, num_classes)

    ref = _ref_forward(x, params)
    np.testing.assert_allclose(np.asarray(out), np.asarray(ref), rtol=2e-3, atol=2e-3)
    print("KERNEL_OK")
</pallas_src>

<mosaic_0001>
module attributes {stable_mosaic.version = 11 : i64} {
  func.func @kernel(%arg0: memref<32x48xf32, #tpu.memory_space<vmem>>, %arg1: memref<9x48x64xf32, #tpu.memory_space<vmem>>, %arg2: memref<9x64x128xf32, #tpu.memory_space<vmem>>, %arg3: memref<9x64x128xf32, #tpu.memory_space<vmem>>, %arg4: memref<9x64x128xf32, #tpu.memory_space<vmem>>, %arg5: memref<3x64xf32, #tpu.memory_space<vmem>>, %arg6: memref<3x128xf32, #tpu.memory_space<vmem>>, %arg7: memref<3x128xf32, #tpu.memory_space<vmem>>, %arg8: memref<3x128xf32, #tpu.memory_space<vmem>>, %arg9: memref<32x10xf32, #tpu.memory_space<vmem>>, %arg10: memref<1x10xf32, #tpu.memory_space<vmem>>, %arg11: memref<2x10xf32, #tpu.memory_space<vmem>>, %arg12: memref<34x54xf32, #tpu.memory_space<vmem>>, %arg13: memref<34x72xf32, #tpu.memory_space<vmem>>, %arg14: memref<18x80xf32, #tpu.memory_space<vmem>>, %arg15: memref<10x96xf32, #tpu.memory_space<vmem>>, %arg16: memref<32x128xf32, #tpu.memory_space<vmem>>, %arg17: memref<16x128xf32, #tpu.memory_space<vmem>>) attributes {dimension_semantics = [], scalar_prefetch = 0 : i64, scratch_operands = 6 : i64, tpu.core_type = #tpu.core_type<tc>} {
    %cst = arith.constant 0.000000e+00 : f32
    %0 = vector.broadcast %cst : f32 to vector<34x54xf32>
    %c0 = arith.constant 0 : index
    %c0_0 = arith.constant 0 : index
    %1 = vector.load %arg12[%c0, %c0_0] : memref<34x54xf32, #tpu.memory_space<vmem>>, vector<34x54xf32>
    tpu.vector_store %arg12[%c0, %c0_0], %0 {strides = array<i32>} : memref<34x54xf32, #tpu.memory_space<vmem>>, vector<34x54xf32>,
    %cst_1 = arith.constant 0.000000e+00 : f32
    %2 = vector.broadcast %cst_1 : f32 to vector<34x72xf32>
    %c0_2 = arith.constant 0 : index
    %c0_3 = arith.constant 0 : index
    %3 = vector.load %arg13[%c0_2, %c0_3] : memref<34x72xf32, #tpu.memory_space<vmem>>, vector<34x72xf32>
    tpu.vector_store %arg13[%c0_2, %c0_3], %2 {strides = array<i32>} : memref<34x72xf32, #tpu.memory_space<vmem>>, vector<34x72xf32>,
    %cst_4 = arith.constant 0.000000e+00 : f32
    %4 = vector.broadcast %cst_4 : f32 to vector<18x80xf32>
    %c0_5 = arith.constant 0 : index
    %c0_6 = arith.constant 0 : index
    %5 = vector.load %arg14[%c0_5, %c0_6] : memref<18x80xf32, #tpu.memory_space<vmem>>, vector<18x80xf32>
    tpu.vector_store %arg14[%c0_5, %c0_6], %4 {strides = array<i32>} : memref<18x80xf32, #tpu.memory_space<vmem>>, vector<18x80xf32>,
    %cst_7 = arith.constant 0.000000e+00 : f32
    %6 = vector.broadcast %cst_7 : f32 to vector<10x96xf32>
    %c0_8 = arith.constant 0 : index
    %c0_9 = arith.constant 0 : index
    %7 = vector.load %arg15[%c0_8, %c0_9] : memref<10x96xf32, #tpu.memory_space<vmem>>, vector<10x96xf32>
    tpu.vector_store %arg15[%c0_8, %c0_9], %6 {strides = array<i32>} : memref<10x96xf32, #tpu.memory_space<vmem>>, vector<10x96xf32>,
    %c0_10 = arith.constant 0 : index
    %c0_11 = arith.constant 0 : index
    %8 = vector.load %arg0[%c0_10, %c0_11] : memref<32x48xf32, #tpu.memory_space<vmem>>, vector<32x48xf32>
    %c1 = arith.constant 1 : index
    %c3 = arith.constant 3 : index
    %9 = vector.load %arg12[%c1, %c3] : memref<34x54xf32, #tpu.memory_space<vmem>>, vector<32x48xf32>
    tpu.vector_store %arg12[%c1, %c3], %8 {strides = array<i32>} : memref<34x54xf32, #tpu.memory_space<vmem>>, vector<32x48xf32>,
    %10 = tpu.iota {dimensions = array<i32: 0>} : vector<32x48xi32>
    %c16_i32 = arith.constant 16 : i32
    %c0_i32 = arith.constant 0 : i32
    %11 = arith.cmpi eq, %c16_i32, %c0_i32 : i32
    %c1_i32 = arith.constant 1 : i32
    %12 = arith.select %11, %c1_i32, %c16_i32 : i32
    %13 = vector.broadcast %12 : i32 to vector<32x48xi32>
    %14 = arith.remsi %10, %13 : vector<32x48xi32>
    %c0_i32_12 = arith.constant 0 : i32
    %15 = vector.broadcast %c0_i32_12 : i32 to vector<32x48xi32>
    %16 = arith.cmpi ne, %14, %15 : vector<32x48xi32>
    %c0_i32_13 = arith.constant 0 : i32
    %17 = vector.broadcast %c0_i32_13 : i32 to vector<32x48xi32>
    %18 = arith.cmpi slt, %14, %17 : vector<32x48xi32>
    %c0_i32_14 = arith.constant 0 : i32
    %19 = arith.cmpi slt, %12, %c0_i32_14 : i32
    %20 = vector.broadcast %19 : i1 to vector<32x48xi1>
    %21 = vector.broadcast %20 : vector<32x48xi1> to vector<32x48xi1>
    %22 = arith.xori %18, %21 : vector<32x48xi1>
    %23 = arith.andi %22, %16 : vector<32x48xi1>
    %24 = vector.broadcast %12 : i32 to vector<32x48xi32>
    %25 = arith.addi %14, %24 : vector<32x48xi32>
    %26 = arith.select %23, %25, %14 : vector<32x48xi1>, vector<32x48xi32>
    %c0_i32_15 = arith.constant 0 : i32
    %27 = vector.broadcast %c0_i32_15 : i32 to vector<32x48xi32>
    %28 = arith.cmpi eq, %26, %27 : vector<32x48xi32>
    %c15_i32 = arith.constant 15 : i32
    %29 = vector.broadcast %c15_i32 : i32 to vector<32x48xi32>
    %30 = arith.cmpi eq, %26, %29 : vector<32x48xi32>
    %cst_16 = arith.constant 0.000000e+00 : f32
    %31 = vector.broadcast %cst_16 : f32 to vector<32x64xf32>
    %c0_17 = arith.constant 0 : index
    %c0_18 = arith.constant 0 : index
    %32 = vector.load %arg12[%c0_17, %c0_18] : memref<34x54xf32, #tpu.memory_space<vmem>>, vector<32x48xf32>
    %cst_19 = arith.constant 0.000000e+00 : f32
    %33 = vector.broadcast %cst_19 : f32 to vector<32x48xf32>
    %34 = arith.select %28, %33, %32 : vector<32x48xi1>, vector<32x48xf32>
    %c0_20 = arith.constant 0 : index
    %c0_21 = arith.constant 0 : index
    %c0_22 = arith.constant 0 : index
    %35 = vector.load %arg1[%c0_20, %c0_21, %c0_22] : memref<9x48x64xf32, #tpu.memory_space<vmem>>, vector<1x48x64xf32>
    %36 = vector.shape_cast %35 : vector<1x48x64xf32> to vector<48x64xf32>
    %cst_23 = arith.constant dense<0.000000e+00> : vector<32x64xf32>
    %37 = tpu.matmul %34, %36, %cst_23 {dimension_numbers = #tpu.dot_dimension_numbers<[1], [0], [0], [1], [0, 0, 1, 1], [], []>} : vector<32x48xf32>, vector<48x64xf32>, vector<32x64xf32> -> vector<32x64xf32>
    %38 = arith.addf %31, %37 : vector<32x64xf32>
    %c0_24 = arith.constant 0 : index
    %c3_25 = arith.constant 3 : index
    %39 = vector.load %arg12[%c0_24, %c3_25] : memref<34x54xf32, #tpu.memory_space<vmem>>, vector<32x48xf32>
    %cst_26 = arith.constant 0.000000e+00 : f32
    %40 = vector.broadcast %cst_26 : f32 to vector<32x48xf32>
    %41 = arith.select %28, %40, %39 : vector<32x48xi1>, vector<32x48xf32>
    %c1_27 = arith.constant 1 : index
    %c0_28 = arith.constant 0 : index
    %c0_29 = arith.constant 0 : index
    %42 = vector.load %arg1[%c1_27, %c0_28, %c0_29] : memref<9x48x64xf32, #tpu.memory_space<vmem>>, vector<1x48x64xf32>
    %43 = vector.shape_cast %42 : vector<1x48x64xf32> to vector<48x64xf32>
    %cst_30 = arith.constant dense<0.000000e+00> : vector<32x64xf32>
    %44 = tpu.matmul %41, %43, %cst_30 {dimension_numbers = #tpu.dot_dimension_numbers<[1], [0], [0], [1], [0, 0, 1, 1], [], []>} : vector<32x48xf32>, vector<48x64xf32>, vector<32x64xf32> -> vector<32x64xf32>
    %45 = arith.addf %38, %44 : vector<32x64xf32>
    %c0_31 = arith.constant 0 : index
    %c6 = arith.constant 6 : index
    %46 = vector.load %arg12[%c0_31, %c6] : memref<34x54xf32, #tpu.memory_space<vmem>>, vector<32x48xf32>
    %cst_32 = arith.constant 0.000000e+00 : f32
    %47 = vector.broadcast %cst_32 : f32 to vector<32x48xf32>
    %48 = arith.select %28, %47, %46 : vector<32x48xi1>, vector<32x48xf32>
    %c2 = arith.constant 2 : index
    %c0_33 = arith.constant 0 : index
    %c0_34 = arith.constant 0 : index
    %49 = vector.load %arg1[%c2, %c0_33, %c0_34] : memref<9x48x64xf32, #tpu.memory_space<vmem>>, vector<1x48x64xf32>
    %50 = vector.shape_cast %49 : vector<1x48x64xf32> to vector<48x64xf32>
    %cst_35 = arith.constant dense<0.000000e+00> : vector<32x64xf32>
    %51 = tpu.matmul %48, %50, %cst_35 {dimension_numbers = #tpu.dot_dimension_numbers<[1], [0], [0], [1], [0, 0, 1, 1], [], []>} : vector<32x48xf32>, vector<48x64xf32>, vector<32x64xf32> -> vector<32x64xf32>
    %52 = arith.addf %45, %51 : vector<32x64xf32>
    %c1_36 = arith.constant 1 : index
    %c0_37 = arith.constant 0 : index
    %53 = vector.load %arg12[%c1_36, %c0_37] : memref<34x54xf32, #tpu.memory_space<vmem>>, vector<32x48xf32>
    %c3_38 = arith.constant 3 : index
    %c0_39 = arith.constant 0 : index
    %c0_40 = arith.constant 0 : index
    %54 = vector.load %arg1[%c3_38, %c0_39, %c0_40] : memref<9x48x64xf32, #tpu.memory_space<vmem>>, vector<1x48x64xf32>
    %55 = vector.shape_cast %54 : vector<1x48x64xf32> to vector<48x64xf32>
    %cst_41 = arith.constant dense<0.000000e+00> : vector<32x64xf32>
    %56 = tpu.matmul %53, %55, %cst_41 {dimension_numbers = #tpu.dot_dimension_numbers<[1], [0], [0], [1], [0, 0, 1, 1], [], []>} : vector<32x48xf32>, vector<48x64xf32>, vector<32x64xf32> -> vector<32x64xf32>
    %57 = arith.addf %52, %56 : vector<32x64xf32>
    %c1_42 = arith.constant 1 : index
    %c3_43 = arith.constant 3 : index
    %58 = vector.load %arg12[%c1_42, %c3_43] : memref<34x54xf32, #tpu.memory_space<vmem>>, vector<32x48xf32>
    %c4 = arith.constant 4 : index
    %c0_44 = arith.constant 0 : index
    %c0_45 = arith.constant 0 : index
    %59 = vector.load %arg1[%c4, %c0_44, %c0_45] : memref<9x48x64xf32, #tpu.memory_space<vmem>>, vector<1x48x64xf32>
    %60 = vector.shape_cast %59 : vector<1x48x64xf32> to vector<48x64xf32>
    %cst_46 = arith.constant dense<0.000000e+00> : vector<32x64xf32>
    %61 = tpu.matmul %58, %60, %cst_46 {dimension_numbers = #tpu.dot_dimension_numbers<[1], [0], [0], [1], [0, 0, 1, 1], [], []>} : vector<32x48xf32>, vector<48x64xf32>, vector<32x64xf32> -> vector<32x64xf32>
    %62 = arith.addf %57, %61 : vector<32x64xf32>
    %c1_47 = arith.constant 1 : index
    %c6_48 = arith.constant 6 : index
    %63 = vector.load %arg12[%c1_47, %c6_48] : memref<34x54xf32, #tpu.memory_space<vmem>>, vector<32x48xf32>
    %c5 = arith.constant 5 : index
    %c0_49 = arith.constant 0 : index
    %c0_50 = arith.constant 0 : index
    %64 = vector.load %arg1[%c5, %c0_49, %c0_50] : memref<9x48x64xf32, #tpu.memory_space<vmem>>, vector<1x48x64xf32>
    %65 = vector.shape_cast %64 : vector<1x48x64xf32> to vector<48x64xf32>
    %cst_51 = arith.constant dense<0.000000e+00> : vector<32x64xf32>
    %66 = tpu.matmul %63, %65, %cst_51 {dimension_numbers = #tpu.dot_dimension_numbers<[1], [0], [0], [1], [0, 0, 1, 1], [], []>} : vector<32x48xf32>, vector<48x64xf32>, vector<32x64xf32> -> vector<32x64xf32>
    %67 = arith.addf %62, %66 : vector<32x64xf32>
    %c2_52 = arith.constant 2 : index
    %c0_53 = arith.constant 0 : index
    %68 = vector.load %arg12[%c2_52, %c0_53] : memref<34x54xf32, #tpu.memory_space<vmem>>, vector<32x48xf32>
    %cst_54 = arith.constant 0.000000e+00 : f32
    %69 = vector.broadcast %cst_54 : f32 to vector<32x48xf32>
    %70 = arith.select %30, %69, %68 : vector<32x48xi1>, vector<32x48xf32>
    %c6_55 = arith.constant 6 : index
    %c0_56 = arith.constant 0 : index
    %c0_57 = arith.constant 0 : index
    %71 = vector.load %arg1[%c6_55, %c0_56, %c0_57] : memref<9x48x64xf32, #tpu.memory_space<vmem>>, vector<1x48x64xf32>
    %72 = vector.shape_cast %71 : vector<1x48x64xf32> to vector<48x64xf32>
    %cst_58 = arith.constant dense<0.000000e+00> : vector<32x64xf32>
    %73 = tpu.matmul %70, %72, %cst_58 {dimension_numbers = #tpu.dot_dimension_numbers<[1], [0], [0], [1], [0, 0, 1, 1], [], []>} : vector<32x48xf32>, vector<48x64xf32>, vector<32x64xf32> -> vector<32x64xf32>
    %74 = arith.addf %67, %73 : vector<32x64xf32>
    %c2_59 = arith.constant 2 : index
    %c3_60 = arith.constant 3 : index
    %75 = vector.load %arg12[%c2_59, %c3_60] : memref<34x54xf32, #tpu.memory_space<vmem>>, vector<32x48xf32>
    %cst_61 = arith.constant 0.000000e+00 : f32
    %76 = vector.broadcast %cst_61 : f32 to vector<32x48xf32>
    %77 = arith.select %30, %76, %75 : vector<32x48xi1>, vector<32x48xf32>
    %c7 = arith.constant 7 : index
    %c0_62 = arith.constant 0 : index
    %c0_63 = arith.constant 0 : index
    %78 = vector.load %arg1[%c7, %c0_62, %c0_63] : memref<9x48x64xf32, #tpu.memory_space<vmem>>, vector<1x48x64xf32>
    %79 = vector.shape_cast %78 : vector<1x48x64xf32> to vector<48x64xf32>
    %cst_64 = arith.constant dense<0.000000e+00> : vector<32x64xf32>
    %80 = tpu.matmul %77, %79, %cst_64 {dimension_numbers = #tpu.dot_dimension_numbers<[1], [0], [0], [1], [0, 0, 1, 1], [], []>} : vector<32x48xf32>, vector<48x64xf32>, vector<32x64xf32> -> vector<32x64xf32>
    %81 = arith.addf %74, %80 : vector<32x64xf32>
    %c2_65 = arith.constant 2 : index
    %c6_66 = arith.constant 6 : index
    %82 = vector.load %arg12[%c2_65, %c6_66] : memref<34x54xf32, #tpu.memory_space<vmem>>, vector<32x48xf32>
    %cst_67 = arith.constant 0.000000e+00 : f32
    %83 = vector.broadcast %cst_67 : f32 to vector<32x48xf32>
    %84 = arith.select %30, %83, %82 : vector<32x48xi1>, vector<32x48xf32>
    %c8 = arith.constant 8 : index
    %c0_68 = arith.constant 0 : index
    %c0_69 = arith.constant 0 : index
    %85 = vector.load %arg1[%c8, %c0_68, %c0_69] : memref<9x48x64xf32, #tpu.memory_space<vmem>>, vector<1x48x64xf32>
    %86 = vector.shape_cast %85 : vector<1x48x64xf32> to vector<48x64xf32>
    %cst_70 = arith.constant dense<0.000000e+00> : vector<32x64xf32>
    %87 = tpu.matmul %84, %86, %cst_70 {dimension_numbers = #tpu.dot_dimension_numbers<[1], [0], [0], [1], [0, 0, 1, 1], [], []>} : vector<32x48xf32>, vector<48x64xf32>, vector<32x64xf32> -> vector<32x64xf32>
    %88 = arith.addf %81, %87 : vector<32x64xf32>
    %c0_71 = arith.constant 0 : index
    %c0_72 = arith.constant 0 : index
    %89 = vector.load %arg5[%c0_71, %c0_72] : memref<3x64xf32, #tpu.memory_space<vmem>>, vector<1x64xf32>
    %c1_73 = arith.constant 1 : index
    %c0_74 = arith.constant 0 : index
    %90 = vector.load %arg5[%c1_73, %c0_74] : memref<3x64xf32, #tpu.memory_space<vmem>>, vector<1x64xf32>
    %c2_75 = arith.constant 2 : index
    %c0_76 = arith.constant 0 : index
    %91 = vector.load %arg5[%c2_75, %c0_76] : memref<3x64xf32, #tpu.memory_space<vmem>>, vector<1x64xf32>
    %92 = vector.broadcast %89 : vector<1x64xf32> to vector<32x64xf32>
    %93 = arith.addf %88, %92 : vector<32x64xf32>
    %94 = vector.extract_strided_slice %93 {offsets = [0, 0], sizes = [16, 64], strides = [1, 1]} : vector<32x64xf32> to vector<16x64xf32>
    %cst_77 = arith.constant dense<0.000000e+00> : vector<16xf32>
    %95 = vector.multi_reduction <add>, %94, %cst_77 [1] : vector<16x64xf32> to vector<16xf32>
    %96 = vector.shape_cast %95 : vector<16xf32> to vector<16x1xf32>
    %cst_78 = arith.constant dense<0.000000e+00> : vector<1xf32>
    %97 = vector.multi_reduction <add>, %96, %cst_78 [0] : vector<16x1xf32> to vector<1xf32>
    %98 = vector.shape_cast %97 : vector<1xf32> to vector<1x1xf32>
    %cst_79 = arith.constant 9.765625E-4 : f32
    %99 = vector.broadcast %cst_79 : f32 to vector<1x1xf32>
    %100 = arith.mulf %98, %99 : vector<1x1xf32>
    %101 = arith.mulf %94, %94 : vector<16x64xf32>
    %cst_80 = arith.constant dense<0.000000e+00> : vector<16xf32>
    %102 = vector.multi_reduction <add>, %101, %cst_80 [1] : vector<16x64xf32> to vector<16xf32>
    %103 = vector.shape_cast %102 : vector<16xf32> to vector<16x1xf32>
    %cst_81 = arith.constant dense<0.000000e+00> : vector<1xf32>
    %104 = vector.multi_reduction <add>, %103, %cst_81 [0] : vector<16x1xf32> to vector<1xf32>
    %105 = vector.shape_cast %104 : vector<1xf32> to vector<1x1xf32>
    %cst_82 = arith.constant 9.765625E-4 : f32
    %106 = vector.broadcast %cst_82 : f32 to vector<1x1xf32>
    %107 = arith.mulf %105, %106 : vector<1x1xf32>
    %108 = arith.mulf %100, %100 : vector<1x1xf32>
    %109 = arith.subf %107, %108 : vector<1x1xf32>
    %cst_83 = arith.constant 9.99999974E-6 : f32
    %110 = vector.broadcast %cst_83 : f32 to vector<1x1xf32>
    %111 = arith.addf %109, %110 : vector<1x1xf32>
    %112 = math.rsqrt %111 : vector<1x1xf32>
    %113 = vector.broadcast %112 : vector<1x1xf32> to vector<1x64xf32>
    %114 = arith.mulf %90, %113 : vector<1x64xf32>
    %115 = vector.broadcast %100 : vector<1x1xf32> to vector<1x64xf32>
    %116 = arith.mulf %115, %114 : vector<1x64xf32>
    %117 = arith.subf %91, %116 : vector<1x64xf32>
    %118 = vector.broadcast %114 : vector<1x64xf32> to vector<16x64xf32>
    %119 = arith.mulf %94, %118 : vector<16x64xf32>
    %120 = vector.broadcast %117 : vector<1x64xf32> to vector<16x64xf32>
    %121 = arith.addf %119, %120 : vector<16x64xf32>
    %cst_84 = arith.constant 0.000000e+00 : f32
    %122 = vector.broadcast %cst_84 : f32 to vector<16x64xf32>
    %123 = arith.maximumf %121, %122 : vector<16x64xf32>
    %124 = vector.extract_strided_slice %93 {offsets = [16, 0], sizes = [16, 64], strides = [1, 1]} : vector<32x64xf32> to vector<16x64xf32>
    %cst_85 = arith.constant dense<0.000000e+00> : vector<16xf32>
    %125 = vector.multi_reduction <add>, %124, %cst_85 [1] : vector<16x64xf32> to vector<16xf32>
    %126 = vector.shape_cast %125 : vector<16xf32> to vector<16x1xf32>
    %cst_86 = arith.constant dense<0.000000e+00> : vector<1xf32>
    %127 = vector.multi_reduction <add>, %126, %cst_86 [0] : vector<16x1xf32> to vector<1xf32>
    %128 = vector.shape_cast %127 : vector<1xf32> to vector<1x1xf32>
    %cst_87 = arith.constant 9.765625E-4 : f32
    %129 = vector.broadcast %cst_87 : f32 to vector<1x1xf32>
    %130 = arith.mulf %128, %129 : vector<1x1xf32>
    %131 = arith.mulf %124, %124 : vector<16x64xf32>
    %cst_88 = arith.constant dense<0.000000e+00> : vector<16xf32>
    %132 = vector.multi_reduction <add>, %131, %cst_88 [1] : vector<16x64xf32> to vector<16xf32>
    %133 = vector.shape_cast %132 : vector<16xf32> to vector<16x1xf32>
    %cst_89 = arith.constant dense<0.000000e+00> : vector<1xf32>
    %134 = vector.multi_reduction <add>, %133, %cst_89 [0] : vector<16x1xf32> to vector<1xf32>
    %135 = vector.shape_cast %134 : vector<1xf32> to vector<1x1xf32>
    %cst_90 = arith.constant 9.765625E-4 : f32
    %136 = vector.broadcast %cst_90 : f32 to vector<1x1xf32>
    %137 = arith.mulf %135, %136 : vector<1x1xf32>
    %138 = arith.mulf %130, %130 : vector<1x1xf32>
    %139 = arith.subf %137, %138 : vector<1x1xf32>
    %cst_91 = arith.constant 9.99999974E-6 : f32
    %140 = vector.broadcast %cst_91 : f32 to vector<1x1xf32>
    %141 = arith.addf %139, %140 : vector<1x1xf32>
    %142 = math.rsqrt %141 : vector<1x1xf32>
    %143 = vector.broadcast %142 : vector<1x1xf32> to vector<1x64xf32>
    %144 = arith.mulf %90, %143 : vector<1x64xf32>
    %145 = vector.broadcast %130 : vector<1x1xf32> to vector<1x64xf32>
    %146 = arith.mulf %145, %144 : vector<1x64xf32>
    %147 = arith.subf %91, %146 : vector<1x64xf32>
    %148 = vector.broadcast %144 : vector<1x64xf32> to vector<16x64xf32>
    %149 = arith.mulf %124, %148 : vector<16x64xf32>
    %150 = vector.broadcast %147 : vector<1x64xf32> to vector<16x64xf32>
    %151 = arith.addf %149, %150 : vector<16x64xf32>
    %cst_92 = arith.constant 0.000000e+00 : f32
    %152 = vector.broadcast %cst_92 : f32 to vector<16x64xf32>
    %153 = arith.maximumf %151, %152 : vector<16x64xf32>
    %c1_93 = arith.constant 1 : index
    %c4_94 = arith.constant 4 : index
    %154 = vector.load %arg13[%c1_93, %c4_94] : memref<34x72xf32, #tpu.memory_space<vmem>>, vector<16x64xf32>
    tpu.vector_store %arg13[%c1_93, %c4_94], %123 {strides = array<i32>} : memref<34x72xf32, #tpu.memory_space<vmem>>, vector<16x64xf32>,
    %c17 = arith.constant 17 : index
    %c4_95 = arith.constant 4 : index
    %155 = vector.load %arg13[%c17, %c4_95] : memref<34x72xf32, #tpu.memory_space<vmem>>, vector<16x64xf32>
    tpu.vector_store %arg13[%c17, %c4_95], %153 {strides = array<i32>} : memref<34x72xf32, #tpu.memory_space<vmem>>, vector<16x64xf32>,
    %156 = tpu.iota {dimensions = array<i32: 0>} : vector<32x64xi32>
    %c16_i32_96 = arith.constant 16 : i32
    %c0_i32_97 = arith.constant 0 : i32
    %157 = arith.cmpi eq, %c16_i32_96, %c0_i32_97 : i32
    %c1_i32_98 = arith.constant 1 : i32
    %158 = arith.select %157, %c1_i32_98, %c16_i32_96 : i32
    %159 = vector.broadcast %158 : i32 to vector<32x64xi32>
    %160 = arith.remsi %156, %159 : vector<32x64xi32>
    %c0_i32_99 = arith.constant 0 : i32
    %161 = vector.broadcast %c0_i32_99 : i32 to vector<32x64xi32>
    %162 = arith.cmpi ne, %160, %161 : vector<32x64xi32>
    %c0_i32_100 = arith.constant 0 : i32
    %163 = vector.broadcast %c0_i32_100 : i32 to vector<32x64xi32>
    %164 = arith.cmpi slt, %160, %163 : vector<32x64xi32>
    %c0_i32_101 = arith.constant 0 : i32
    %165 = arith.cmpi slt, %158, %c0_i32_101 : i32
    %166 = vector.broadcast %165 : i1 to vector<32x64xi1>
    %167 = vector.broadcast %166 : vector<32x64xi1> to vector<32x64xi1>
    %168 = arith.xori %164, %167 : vector<32x64xi1>
    %169 = arith.andi %168, %162 : vector<32x64xi1>
    %170 = vector.broadcast %158 : i32 to vector<32x64xi32>
    %171 = arith.addi %160, %170 : vector<32x64xi32>
    %172 = arith.select %169, %171, %160 : vector<32x64xi1>, vector<32x64xi32>
    %c0_i32_102 = arith.constant 0 : i32
    %173 = vector.broadcast %c0_i32_102 : i32 to vector<32x64xi32>
    %174 = arith.cmpi eq, %172, %173 : vector<32x64xi32>
    %c15_i32_103 = arith.constant 15 : i32
    %175 = vector.broadcast %c15_i32_103 : i32 to vector<32x64xi32>
    %176 = arith.cmpi eq, %172, %175 : vector<32x64xi32>
    %cst_104 = arith.constant 0.000000e+00 : f32
    %177 = vector.broadcast %cst_104 : f32 to vector<32x128xf32>
    %c0_105 = arith.constant 0 : index
    %c0_106 = arith.constant 0 : index
    %178 = vector.load %arg13[%c0_105, %c0_106] : memref<34x72xf32, #tpu.memory_space<vmem>>, vector<32x64xf32>
    %cst_107 = arith.constant 0.000000e+00 : f32
    %179 = vector.broadcast %cst_107 : f32 to vector<32x64xf32>
    %180 = arith.select %174, %179, %178 : vector<32x64xi1>, vector<32x64xf32>
    %c0_108 = arith.constant 0 : index
    %c0_109 = arith.constant 0 : index
    %c0_110 = arith.constant 0 : index
    %181 = vector.load %arg2[%c0_108, %c0_109, %c0_110] : memref<9x64x128xf32, #tpu.memory_space<vmem>>, vector<1x64x128xf32>
    %182 = vector.shape_cast %181 : vector<1x64x128xf32> to vector<64x128xf32>
    %cst_111 = arith.constant dense<0.000000e+00> : vector<32x128xf32>
    %183 = tpu.matmul %180, %182, %cst_111 {dimension_numbers = #tpu.dot_dimension_numbers<[1], [0], [0], [1], [0, 0, 1, 1], [], []>} : vector<32x64xf32>, vector<64x128xf32>, vector<32x128xf32> -> vector<32x128xf32>
    %184 = arith.addf %177, %183 : vector<32x128xf32>
    %c0_112 = arith.constant 0 : index
    %c4_113 = arith.constant 4 : index
    %185 = vector.load %arg13[%c0_112, %c4_113] : memref<34x72xf32, #tpu.memory_space<vmem>>, vector<32x64xf32>
    %cst_114 = arith.constant 0.000000e+00 : f32
    %186 = vector.broadcast %cst_114 : f32 to vector<32x64xf32>
    %187 = arith.select %174, %186, %185 : vector<32x64xi1>, vector<32x64xf32>
    %c1_115 = arith.constant 1 : index
    %c0_116 = arith.constant 0 : index
    %c0_117 = arith.constant 0 : index
    %188 = vector.load %arg2[%c1_115, %c0_116, %c0_117] : memref<9x64x128xf32, #tpu.memory_space<vmem>>, vector<1x64x128xf32>
    %189 = vector.shape_cast %188 : vector<1x64x128xf32> to vector<64x128xf32>
    %cst_118 = arith.constant dense<0.000000e+00> : vector<32x128xf32>
    %190 = tpu.matmul %187, %189, %cst_118 {dimension_numbers = #tpu.dot_dimension_numbers<[1], [0], [0], [1], [0, 0, 1, 1], [], []>} : vector<32x64xf32>, vector<64x128xf32>, vector<32x128xf32> -> vector<32x128xf32>
    %191 = arith.addf %184, %190 : vector<32x128xf32>
    %c0_119 = arith.constant 0 : index
    %c8_120 = arith.constant 8 : index
    %192 = vector.load %arg13[%c0_119, %c8_120] : memref<34x72xf32, #tpu.memory_space<vmem>>, vector<32x64xf32>
    %cst_121 = arith.constant 0.000000e+00 : f32
    %193 = vector.broadcast %cst_121 : f32 to vector<32x64xf32>
    %194 = arith.select %174, %193, %192 : vector<32x64xi1>, vector<32x64xf32>
    %c2_122 = arith.constant 2 : index
    %c0_123 = arith.constant 0 : index
    %c0_124 = arith.constant 0 : index
    %195 = vector.load %arg2[%c2_122, %c0_123, %c0_124] : memref<9x64x128xf32, #tpu.memory_space<vmem>>, vector<1x64x128xf32>
    %196 = vector.shape_cast %195 : vector<1x64x128xf32> to vector<64x128xf32>
    %cst_125 = arith.constant dense<0.000000e+00> : vector<32x128xf32>
    %197 = tpu.matmul %194, %196, %cst_125 {dimension_numbers = #tpu.dot_dimension_numbers<[1], [0], [0], [1], [0, 0, 1, 1], [], []>} : vector<32x64xf32>, vector<64x128xf32>, vector<32x128xf32> -> vector<32x128xf32>
    %198 = arith.addf %191, %197 : vector<32x128xf32>
    %c1_126 = arith.constant 1 : index
    %c0_127 = arith.constant 0 : index
    %199 = vector.load %arg13[%c1_126, %c0_127] : memref<34x72xf32, #tpu.memory_space<vmem>>, vector<32x64xf32>
    %c3_128 = arith.constant 3 : index
    %c0_129 = arith.constant 0 : index
    %c0_130 = arith.constant 0 : index
    %200 = vector.load %arg2[%c3_128, %c0_129, %c0_130] : memref<9x64x128xf32, #tpu.memory_space<vmem>>, vector<1x64x128xf32>
    %201 = vector.shape_cast %200 : vector<1x64x128xf32> to vector<64x128xf32>
    %cst_131 = arith.constant dense<0.000000e+00> : vector<32x128xf32>
    %202 = tpu.matmul %199, %201, %cst_131 {dimension_numbers = #tpu.dot_dimension_numbers<[1], [0], [0], [1], [0, 0, 1, 1], [], []>} : vector<32x64xf32>, vector<64x128xf32>, vector<32x128xf32> -> vector<32x128xf32>
    %203 = arith.addf %198, %202 : vector<32x128xf32>
    %c1_132 = arith.constant 1 : index
    %c4_133 = arith.constant 4 : index
    %204 = vector.load %arg13[%c1_132, %c4_133] : memref<34x72xf32, #tpu.memory_space<vmem>>, vector<32x64xf32>
    %c4_134 = arith.constant 4 : index
    %c0_135 = arith.constant 0 : index
    %c0_136 = arith.constant 0 : index
    %205 = vector.load %arg2[%c4_134, %c0_135, %c0_136] : memref<9x64x128xf32, #tpu.memory_space<vmem>>, vector<1x64x128xf32>
    %206 = vector.shape_cast %205 : vector<1x64x128xf32> to vector<64x128xf32>
    %cst_137 = arith.constant dense<0.000000e+00> : vector<32x128xf32>
    %207 = tpu.matmul %204, %206, %cst_137 {dimension_numbers = #tpu.dot_dimension_numbers<[1], [0], [0], [1], [0, 0, 1, 1], [], []>} : vector<32x64xf32>, vector<64x128xf32>, vector<32x128xf32> -> vector<32x128xf32>
    %208 = arith.addf %203, %207 : vector<32x128xf32>
    %c1_138 = arith.constant 1 : index
    %c8_139 = arith.constant 8 : index
    %209 = vector.load %arg13[%c1_138, %c8_139] : memref<34x72xf32, #tpu.memory_space<vmem>>, vector<32x64xf32>
    %c5_140 = arith.constant 5 : index
    %c0_141 = arith.constant 0 : index
    %c0_142 = arith.constant 0 : index
    %210 = vector.load %arg2[%c5_140, %c0_141, %c0_142] : memref<9x64x128xf32, #tpu.memory_space<vmem>>, vector<1x64x128xf32>
    %211 = vector.shape_cast %210 : vector<1x64x128xf32> to vector<64x128xf32>
    %cst_143 = arith.constant dense<0.000000e+00> : vector<32x128xf32>
    %212 = tpu.matmul %209, %211, %cst_143 {dimension_numbers = #tpu.dot_dimension_numbers<[1], [0], [0], [1], [0, 0, 1, 1], [], []>} : vector<32x64xf32>, vector<64x128xf32>, vector<32x128xf32> -> vector<32x128xf32>
    %213 = arith.addf %208, %212 : vector<32x128xf32>
    %c2_144 = arith.constant 2 : index
    %c0_145 = arith.constant 0 : index
    %214 = vector.load %arg13[%c2_144, %c0_145] : memref<34x72xf32, #tpu.memory_space<vmem>>, vector<32x64xf32>
    %cst_146 = arith.constant 0.000000e+00 : f32
    %215 = vector.broadcast %cst_146 : f32 to vector<32x64xf32>
    %216 = arith.select %176, %215, %214 : vector<32x64xi1>, vector<32x64xf32>
    %c6_147 = arith.constant 6 : index
    %c0_148 = arith.constant 0 : index
    %c0_149 = arith.constant 0 : index
    %217 = vector.load %arg2[%c6_147, %c0_148, %c0_149] : memref<9x64x128xf32, #tpu.memory_space<vmem>>, vector<1x64x128xf32>
    %218 = vector.shape_cast %217 : vector<1x64x128xf32> to vector<64x128xf32>
    %cst_150 = arith.constant dense<0.000000e+00> : vector<32x128xf32>
    %219 = tpu.matmul %216, %218, %cst_150 {dimension_numbers = #tpu.dot_dimension_numbers<[1], [0], [0], [1], [0, 0, 1, 1], [], []>} : vector<32x64xf32>, vector<64x128xf32>, vector<32x128xf32> -> vector<32x128xf32>
    %220 = arith.addf %213, %219 : vector<32x128xf32>
    %c2_151 = arith.constant 2 : index
    %c4_152 = arith.constant 4 : index
    %221 = vector.load %arg13[%c2_151, %c4_152] : memref<34x72xf32, #tpu.memory_space<vmem>>, vector<32x64xf32>
    %cst_153 = arith.constant 0.000000e+00 : f32
    %222 = vector.broadcast %cst_153 : f32 to vector<32x64xf32>
    %223 = arith.select %176, %222, %221 : vector<32x64xi1>, vector<32x64xf32>
    %c7_154 = arith.constant 7 : index
    %c0_155 = arith.constant 0 : index
    %c0_156 = arith.constant 0 : index
    %224 = vector.load %arg2[%c7_154, %c0_155, %c0_156] : memref<9x64x128xf32, #tpu.memory_space<vmem>>, vector<1x64x128xf32>
    %225 = vector.shape_cast %224 : vector<1x64x128xf32> to vector<64x128xf32>
    %cst_157 = arith.constant dense<0.000000e+00> : vector<32x128xf32>
    %226 = tpu.matmul %223, %225, %cst_157 {dimension_numbers = #tpu.dot_dimension_numbers<[1], [0], [0], [1], [0, 0, 1, 1], [], []>} : vector<32x64xf32>, vector<64x128xf32>, vector<32x128xf32> -> vector<32x128xf32>
    %227 = arith.addf %220, %226 : vector<32x128xf32>
    %c2_158 = arith.constant 2 : index
    %c8_159 = arith.constant 8 : index
    %228 = vector.load %arg13[%c2_158, %c8_159] : memref<34x72xf32, #tpu.memory_space<vmem>>, vector<32x64xf32>
    %cst_160 = arith.constant 0.000000e+00 : f32
    %229 = vector.broadcast %cst_160 : f32 to vector<32x64xf32>
    %230 = arith.select %176, %229, %228 : vector<32x64xi1>, vector<32x64xf32>
    %c8_161 = arith.constant 8 : index
    %c0_162 = arith.constant 0 : index
    %c0_163 = arith.constant 0 : index
    %231 = vector.load %arg2[%c8_161, %c0_162, %c0_163] : memref<9x64x128xf32, #tpu.memory_space<vmem>>, vector<1x64x128xf32>
    %232 = vector.shape_cast %231 : vector<1x64x128xf32> to vector<64x128xf32>
    %cst_164 = arith.constant dense<0.000000e+00> : vector<32x128xf32>
    %233 = tpu.matmul %230, %232, %cst_164 {dimension_numbers = #tpu.dot_dimension_numbers<[1], [0], [0], [1], [0, 0, 1, 1], [], []>} : vector<32x64xf32>, vector<64x128xf32>, vector<32x128xf32> -> vector<32x128xf32>
    %234 = arith.addf %227, %233 : vector<32x128xf32>
    %c0_165 = arith.constant 0 : index
    %c0_166 = arith.constant 0 : index
    %235 = vector.load %arg6[%c0_165, %c0_166] : memref<3x128xf32, #tpu.memory_space<vmem>>, vector<1x128xf32>
    %c1_167 = arith.constant 1 : index
    %c0_168 = arith.constant 0 : index
    %236 = vector.load %arg6[%c1_167, %c0_168] : memref<3x128xf32, #tpu.memory_space<vmem>>, vector<1x128xf32>
    %c2_169 = arith.constant 2 : index
    %c0_170 = arith.constant 0 : index
    %237 = vector.load %arg6[%c2_169, %c0_170] : memref<3x128xf32, #tpu.memory_space<vmem>>, vector<1x128xf32>
    %238 = vector.broadcast %235 : vector<1x128xf32> to vector<32x128xf32>
    %239 = arith.addf %234, %238 : vector<32x128xf32>
    %240 = vector.extract_strided_slice %239 {offsets = [0, 0], sizes = [16, 128], strides = [1, 1]} : vector<32x128xf32> to vector<16x128xf32>
    %cst_171 = arith.constant dense<0.000000e+00> : vector<16xf32>
    %241 = vector.multi_reduction <add>, %240, %cst_171 [1] : vector<16x128xf32> to vector<16xf32>
    %242 = vector.shape_cast %241 : vector<16xf32> to vector<16x1xf32>
    %cst_172 = arith.constant dense<0.000000e+00> : vector<1xf32>
    %243 = vector.multi_reduction <add>, %242, %cst_172 [0] : vector<16x1xf32> to vector<1xf32>
    %244 = vector.shape_cast %243 : vector<1xf32> to vector<1x1xf32>
    %cst_173 = arith.constant 4.8828125E-4 : f32
    %245 = vector.broadcast %cst_173 : f32 to vector<1x1xf32>
    %246 = arith.mulf %244, %245 : vector<1x1xf32>
    %247 = arith.mulf %240, %240 : vector<16x128xf32>
    %cst_174 = arith.constant dense<0.000000e+00> : vector<16xf32>
    %248 = vector.multi_reduction <add>, %247, %cst_174 [1] : vector<16x128xf32> to vector<16xf32>
    %249 = vector.shape_cast %248 : vector<16xf32> to vector<16x1xf32>
    %cst_175 = arith.constant dense<0.000000e+00> : vector<1xf32>
    %250 = vector.multi_reduction <add>, %249, %cst_175 [0] : vector<16x1xf32> to vector<1xf32>
    %251 = vector.shape_cast %250 : vector<1xf32> to vector<1x1xf32>
    %cst_176 = arith.constant 4.8828125E-4 : f32
    %252 = vector.broadcast %cst_176 : f32 to vector<1x1xf32>
    %253 = arith.mulf %251, %252 : vector<1x1xf32>
    %254 = arith.mulf %246, %246 : vector<1x1xf32>
    %255 = arith.subf %253, %254 : vector<1x1xf32>
    %cst_177 = arith.constant 9.99999974E-6 : f32
    %256 = vector.broadcast %cst_177 : f32 to vector<1x1xf32>
    %257 = arith.addf %255, %256 : vector<1x1xf32>
    %258 = math.rsqrt %257 : vector<1x1xf32>
    %259 = vector.broadcast %258 : vector<1x1xf32> to vector<1x128xf32>
    %260 = arith.mulf %236, %259 : vector<1x128xf32>
    %261 = vector.broadcast %246 : vector<1x1xf32> to vector<1x128xf32>
    %262 = arith.mulf %261, %260 : vector<1x128xf32>
    %263 = arith.subf %237, %262 : vector<1x128xf32>
    %264 = vector.broadcast %260 : vector<1x128xf32> to vector<16x128xf32>
    %265 = arith.mulf %240, %264 : vector<16x128xf32>
    %266 = vector.broadcast %263 : vector<1x128xf32> to vector<16x128xf32>
    %267 = arith.addf %265, %266 : vector<16x128xf32>
    %cst_178 = arith.constant 0.000000e+00 : f32
    %268 = vector.broadcast %cst_178 : f32 to vector<16x128xf32>
    %269 = arith.maximumf %267, %268 : vector<16x128xf32>
    %270 = vector.extract_strided_slice %239 {offsets = [16, 0], sizes = [16, 128], strides = [1, 1]} : vector<32x128xf32> to vector<16x128xf32>
    %cst_179 = arith.constant dense<0.000000e+00> : vector<16xf32>
    %271 = vector.multi_reduction <add>, %270, %cst_179 [1] : vector<16x128xf32> to vector<16xf32>
    %272 = vector.shape_cast %271 : vector<16xf32> to vector<16x1xf32>
    %cst_180 = arith.constant dense<0.000000e+00> : vector<1xf32>
    %273 = vector.multi_reduction <add>, %272, %cst_180 [0] : vector<16x1xf32> to vector<1xf32>
    %274 = vector.shape_cast %273 : vector<1xf32> to vector<1x1xf32>
    %cst_181 = arith.constant 4.8828125E-4 : f32
    %275 = vector.broadcast %cst_181 : f32 to vector<1x1xf32>
    %276 = arith.mulf %274, %275 : vector<1x1xf32>
    %277 = arith.mulf %270, %270 : vector<16x128xf32>
    %cst_182 = arith.constant dense<0.000000e+00> : vector<16xf32>
    %278 = vector.multi_reduction <add>, %277, %cst_182 [1] : vector<16x128xf32> to vector<16xf32>
    %279 = vector.shape_cast %278 : vector<16xf32> to vector<16x1xf32>
    %cst_183 = arith.constant dense<0.000000e+00> : vector<1xf32>
    %280 = vector.multi_reduction <add>, %279, %cst_183 [0] : vector<16x1xf32> to vector<1xf32>
    %281 = vector.shape_cast %280 : vector<1xf32> to vector<1x1xf32>
    %cst_184 = arith.constant 4.8828125E-4 : f32
    %282 = vector.broadcast %cst_184 : f32 to vector<1x1xf32>
    %283 = arith.mulf %281, %282 : vector<1x1xf32>
    %284 = arith.mulf %276, %276 : vector<1x1xf32>
    %285 = arith.subf %283, %284 : vector<1x1xf32>
    %cst_185 = arith.constant 9.99999974E-6 : f32
    %286 = vector.broadcast %cst_185 : f32 to vector<1x1xf32>
    %287 = arith.addf %285, %286 : vector<1x1xf32>
    %288 = math.rsqrt %287 : vector<1x1xf32>
    %289 = vector.broadcast %288 : vector<1x1xf32> to vector<1x128xf32>
    %290 = arith.mulf %236, %289 : vector<1x128xf32>
    %291 = vector.broadcast %276 : vector<1x1xf32> to vector<1x128xf32>
    %292 = arith.mulf %291, %290 : vector<1x128xf32>
    %293 = arith.subf %237, %292 : vector<1x128xf32>
    %294 = vector.broadcast %290 : vector<1x128xf32> to vector<16x128xf32>
    %295 = arith.mulf %270, %294 : vector<16x128xf32>
    %296 = vector.broadcast %293 : vector<1x128xf32> to vector<16x128xf32>
    %297 = arith.addf %295, %296 : vector<16x128xf32>
    %cst_186 = arith.constant 0.000000e+00 : f32
    %298 = vector.broadcast %cst_186 : f32 to vector<16x128xf32>
    %299 = arith.maximumf %297, %298 : vector<16x128xf32>
    %c0_187 = arith.constant 0 : index
    %c0_188 = arith.constant 0 : index
    %300 = vector.load %arg16[%c0_187, %c0_188] : memref<32x128xf32, #tpu.memory_space<vmem>>, vector<16x128xf32>
    tpu.vector_store %arg16[%c0_187, %c0_188], %269 {strides = array<i32>} : memref<32x128xf32, #tpu.memory_space<vmem>>, vector<16x128xf32>,
    %c16 = arith.constant 16 : index
    %c0_189 = arith.constant 0 : index
    %301 = vector.load %arg16[%c16, %c0_189] : memref<32x128xf32, #tpu.memory_space<vmem>>, vector<16x128xf32>
    tpu.vector_store %arg16[%c16, %c0_189], %299 {strides = array<i32>} : memref<32x128xf32, #tpu.memory_space<vmem>>, vector<16x128xf32>,
    %c0_190 = arith.constant 0 : index
    %c0_191 = arith.constant 0 : index
    %302 = tpu.strided_load %arg16[%c0_190, %c0_191] {strides = array<i32: 2, 1>} : memref<32x128xf32, #tpu.memory_space<vmem>>, vector<16x128xf32>
    %c1_192 = arith.constant 1 : index
    %c0_193 = arith.constant 0 : index
    %303 = tpu.strided_load %arg16[%c1_192, %c0_193] {strides = array<i32: 2, 1>} : memref<32x128xf32, #tpu.memory_space<vmem>>, vector<16x128xf32>
    %304 = arith.maximumf %302, %303 : vector<16x128xf32>
    %305 = vector.extract_strided_slice %304 {offsets = [0, 0], sizes = [16, 8], strides = [1, 1]} : vector<16x128xf32> to vector<16x8xf32>
    %306 = vector.extract_strided_slice %304 {offsets = [0, 8], sizes = [16, 8], strides = [1, 1]} : vector<16x128xf32> to vector<16x8xf32>
    %307 = arith.maximumf %305, %306 : vector<16x8xf32>
    %c1_194 = arith.constant 1 : index
    %c8_195 = arith.constant 8 : index
    %308 = vector.load %arg14[%c1_194, %c8_195] : memref<18x80xf32, #tpu.memory_space<vmem>>, vector<16x8xf32>
    tpu.vector_store %arg14[%c1_194, %c8_195], %307 {strides = array<i32>} : memref<18x80xf32, #tpu.memory_space<vmem>>, vector<16x8xf32>,
    %309 = vector.extract_strided_slice %304 {offsets = [0, 16], sizes = [16, 8], strides = [1, 1]} : vector<16x128xf32> to vector<16x8xf32>
    %310 = vector.extract_strided_slice %304 {offsets = [0, 24], sizes = [16, 8], strides = [1, 1]} : vector<16x128xf32> to vector<16x8xf32>
    %311 = arith.maximumf %309, %310 : vector<16x8xf32>
    %c1_196 = arith.constant 1 : index
    %c16_197 = arith.constant 16 : index
    %312 = vector.load %arg14[%c1_196, %c16_197] : memref<18x80xf32, #tpu.memory_space<vmem>>, vector<16x8xf32>
    tpu.vector_store %arg14[%c1_196, %c16_197], %311 {strides = array<i32>} : memref<18x80xf32, #tpu.memory_space<vmem>>, vector<16x8xf32>,
    %313 = vector.extract_strided_slice %304 {offsets = [0, 32], sizes = [16, 8], strides = [1, 1]} : vector<16x128xf32> to vector<16x8xf32>
    %314 = vector.extract_strided_slice %304 {offsets = [0, 40], sizes = [16, 8], strides = [1, 1]} : vector<16x128xf32> to vector<16x8xf32>
    %315 = arith.maximumf %313, %314 : vector<16x8xf32>
    %c1_198 = arith.constant 1 : index
    %c24 = arith.constant 24 : index
    %316 = vector.load %arg14[%c1_198, %c24] : memref<18x80xf32, #tpu.memory_space<vmem>>, vector<16x8xf32>
    tpu.vector_store %arg14[%c1_198, %c24], %315 {strides = array<i32>} : memref<18x80xf32, #tpu.memory_space<vmem>>, vector<16x8xf32>,
    %317 = vector.extract_strided_slice %304 {offsets = [0, 48], sizes = [16, 8], strides = [1, 1]} : vector<16x128xf32> to vector<16x8xf32>
    %318 = vector.extract_strided_slice %304 {offsets = [0, 56], sizes = [16, 8], strides = [1, 1]} : vector<16x128xf32> to vector<16x8xf32>
    %319 = arith.maximumf %317, %318 : vector<16x8xf32>
    %c1_199 = arith.constant 1 : index
    %c32 = arith.constant 32 : index
    %320 = vector.load %arg14[%c1_199, %c32] : memref<18x80xf32, #tpu.memory_space<vmem>>, vector<16x8xf32>
    tpu.vector_store %arg14[%c1_199, %c32], %319 {strides = array<i32>} : memref<18x80xf32, #tpu.memory_space<vmem>>, vector<16x8xf32>,
    %321 = vector.extract_strided_slice %304 {offsets = [0, 64], sizes = [16, 8], strides = [1, 1]} : vector<16x128xf32> to vector<16x8xf32>
    %322 = vector.extract_strided_slice %304 {offsets = [0, 72], sizes = [16, 8], strides = [1, 1]} : vector<16x128xf32> to vector<16x8xf32>
    %323 = arith.maximumf %321, %322 : vector<16x8xf32>
    %c1_200 = arith.constant 1 : index
    %c40 = arith.constant 40 : index
    %324 = vector.load %arg14[%c1_200, %c40] : memref<18x80xf32, #tpu.memory_space<vmem>>, vector<16x8xf32>
    tpu.vector_store %arg14[%c1_200, %c40], %323 {strides = array<i32>} : memref<18x80xf32, #tpu.memory_space<vmem>>, vector<16x8xf32>,
    %325 = vector.extract_strided_slice %304 {offsets = [0, 80], sizes = [16, 8], strides = [1, 1]} : vector<16x128xf32> to vector<16x8xf32>
    %326 = vector.extract_strided_slice %304 {offsets = [0, 88], sizes = [16, 8], strides = [1, 1]} : vector<16x128xf32> to vector<16x8xf32>
    %327 = arith.maximumf %325, %326 : vector<16x8xf32>
    %c1_201 = arith.constant 1 : index
    %c48 = arith.constant 48 : index
    %328 = vector.load %arg14[%c1_201, %c48] : memref<18x80xf32, #tpu.memory_space<vmem>>, vector<16x8xf32>
    tpu.vector_store %arg14[%c1_201, %c48], %327 {strides = array<i32>} : memref<18x80xf32, #tpu.memory_space<vmem>>, vector<16x8xf32>,
    %329 = vector.extract_strided_slice %304 {offsets = [0, 96], sizes = [16, 8], strides = [1, 1]} : vector<16x128xf32> to vector<16x8xf32>
    %330 = vector.extract_strided_slice %304 {offsets = [0, 104], sizes = [16, 8], strides = [1, 1]} : vector<16x128xf32> to vector<16x8xf32>
    %331 = arith.maximumf %329, %330 : vector<16x8xf32>
    %c1_202 = arith.constant 1 : index
    %c56 = arith.constant 56 : index
    %332 = vector.load %arg14[%c1_202, %c56] : memref<18x80xf32, #tpu.memory_space<vmem>>, vector<16x8xf32>
    tpu.vector_store %arg14[%c1_202, %c56], %331 {strides = array<i32>} : memref<18x80xf32, #tpu.memory_space<vmem>>, vector<16x8xf32>,
    %333 = vector.extract_strided_slice %304 {offsets = [0, 112], sizes = [16, 8], strides = [1, 1]} : vector<16x128xf32> to vector<16x8xf32>
    %334 = vector.extract_strided_slice %304 {offsets = [0, 120], sizes = [16, 8], strides = [1, 1]} : vector<16x128xf32> to vector<16x8xf32>
    %335 = arith.maximumf %333, %334 : vector<16x8xf32>
    %c1_203 = arith.constant 1 : index
    %c64 = arith.constant 64 : index
    %336 = vector.load %arg14[%c1_203, %c64] : memref<18x80xf32, #tpu.memory_space<vmem>>, vector<16x8xf32>
    tpu.vector_store %arg14[%c1_203, %c64], %335 {strides = array<i32>} : memref<18x80xf32, #tpu.memory_space<vmem>>, vector<16x8xf32>,
    %337 = tpu.iota {dimensions = array<i32: 0>} : vector<16x64xi32>
    %c8_i32 = arith.constant 8 : i32
    %c0_i32_204 = arith.constant 0 : i32
    %338 = arith.cmpi eq, %c8_i32, %c0_i32_204 : i32
    %c1_i32_205 = arith.constant 1 : i32
    %339 = arith.select %338, %c1_i32_205, %c8_i32 : i32
    %340 = vector.broadcast %339 : i32 to vector<16x64xi32>
    %341 = arith.remsi %337, %340 : vector<16x64xi32>
    %c0_i32_206 = arith.constant 0 : i32
    %342 = vector.broadcast %c0_i32_206 : i32 to vector<16x64xi32>
    %343 = arith.cmpi ne, %341, %342 : vector<16x64xi32>
    %c0_i32_207 = arith.constant 0 : i32
    %344 = vector.broadcast %c0_i32_207 : i32 to vector<16x64xi32>
    %345 = arith.cmpi slt, %341, %344 : vector<16x64xi32>
    %c0_i32_208 = arith.constant 0 : i32
    %346 = arith.cmpi slt, %339, %c0_i32_208 : i32
    %347 = vector.broadcast %346 : i1 to vector<16x64xi1>
    %348 = vector.broadcast %347 : vector<16x64xi1> to vector<16x64xi1>
    %349 = arith.xori %345, %348 : vector<16x64xi1>
    %350 = arith.andi %349, %343 : vector<16x64xi1>
    %351 = vector.broadcast %339 : i32 to vector<16x64xi32>
    %352 = arith.addi %341, %351 : vector<16x64xi32>
    %353 = arith.select %350, %352, %341 : vector<16x64xi1>, vector<16x64xi32>
    %c0_i32_209 = arith.constant 0 : i32
    %354 = vector.broadcast %c0_i32_209 : i32 to vector<16x64xi32>
    %355 = arith.cmpi eq, %353, %354 : vector<16x64xi32>
    %c7_i32 = arith.constant 7 : i32
    %356 = vector.broadcast %c7_i32 : i32 to vector<16x64xi32>
    %357 = arith.cmpi eq, %353, %356 : vector<16x64xi32>
    %cst_210 = arith.constant 0.000000e+00 : f32
    %358 = vector.broadcast %cst_210 : f32 to vector<16x128xf32>
    %c0_211 = arith.constant 0 : index
    %c0_212 = arith.constant 0 : index
    %359 = vector.load %arg14[%c0_211, %c0_212] : memref<18x80xf32, #tpu.memory_space<vmem>>, vector<16x64xf32>
    %cst_213 = arith.constant 0.000000e+00 : f32
    %360 = vector.broadcast %cst_213 : f32 to vector<16x64xf32>
    %361 = arith.select %355, %360, %359 : vector<16x64xi1>, vector<16x64xf32>
    %c0_214 = arith.constant 0 : index
    %c0_215 = arith.constant 0 : index
    %c0_216 = arith.constant 0 : index
    %362 = vector.load %arg3[%c0_214, %c0_215, %c0_216] : memref<9x64x128xf32, #tpu.memory_space<vmem>>, vector<1x64x128xf32>
    %363 = vector.shape_cast %362 : vector<1x64x128xf32> to vector<64x128xf32>
    %cst_217 = arith.constant dense<0.000000e+00> : vector<16x128xf32>
    %364 = tpu.matmul %361, %363, %cst_217 {dimension_numbers = #tpu.dot_dimension_numbers<[1], [0], [0], [1], [0, 0, 1, 1], [], []>} : vector<16x64xf32>, vector<64x128xf32>, vector<16x128xf32> -> vector<16x128xf32>
    %365 = arith.addf %358, %364 : vector<16x128xf32>
    %c0_218 = arith.constant 0 : index
    %c8_219 = arith.constant 8 : index
    %366 = vector.load %arg14[%c0_218, %c8_219] : memref<18x80xf32, #tpu.memory_space<vmem>>, vector<16x64xf32>
    %cst_220 = arith.constant 0.000000e+00 : f32
    %367 = vector.broadcast %cst_220 : f32 to vector<16x64xf32>
    %368 = arith.select %355, %367, %366 : vector<16x64xi1>, vector<16x64xf32>
    %c1_221 = arith.constant 1 : index
    %c0_222 = arith.constant 0 : index
    %c0_223 = arith.constant 0 : index
    %369 = vector.load %arg3[%c1_221, %c0_222, %c0_223] : memref<9x64x128xf32, #tpu.memory_space<vmem>>, vector<1x64x128xf32>
    %370 = vector.shape_cast %369 : vector<1x64x128xf32> to vector<64x128xf32>
    %cst_224 = arith.constant dense<0.000000e+00> : vector<16x128xf32>
    %371 = tpu.matmul %368, %370, %cst_224 {dimension_numbers = #tpu.dot_dimension_numbers<[1], [0], [0], [1], [0, 0, 1, 1], [], []>} : vector<16x64xf32>, vector<64x128xf32>, vector<16x128xf32> -> vector<16x128xf32>
    %372 = arith.addf %365, %371 : vector<16x128xf32>
    %c0_225 = arith.constant 0 : index
    %c16_226 = arith.constant 16 : index
    %373 = vector.load %arg14[%c0_225, %c16_226] : memref<18x80xf32, #tpu.memory_space<vmem>>, vector<16x64xf32>
    %cst_227 = arith.constant 0.000000e+00 : f32
    %374 = vector.broadcast %cst_227 : f32 to vector<16x64xf32>
    %375 = arith.select %355, %374, %373 : vector<16x64xi1>, vector<16x64xf32>
    %c2_228 = arith.constant 2 : index
    %c0_229 = arith.constant 0 : index
    %c0_230 = arith.constant 0 : index
    %376 = vector.load %arg3[%c2_228, %c0_229, %c0_230] : memref<9x64x128xf32, #tpu.memory_space<vmem>>, vector<1x64x128xf32>
    %377 = vector.shape_cast %376 : vector<1x64x128xf32> to vector<64x128xf32>
    %cst_231 = arith.constant dense<0.000000e+00> : vector<16x128xf32>
    %378 = tpu.matmul %375, %377, %cst_231 {dimension_numbers = #tpu.dot_dimension_numbers<[1], [0], [0], [1], [0, 0, 1, 1], [], []>} : vector<16x64xf32>, vector<64x128xf32>, vector<16x128xf32> -> vector<16x128xf32>
    %379 = arith.addf %372, %378 : vector<16x128xf32>
    %c1_232 = arith.constant 1 : index
    %c0_233 = arith.constant 0 : index
    %380 = vector.load %arg14[%c1_232, %c0_233] : memref<18x80xf32, #tpu.memory_space<vmem>>, vector<16x64xf32>
    %c3_234 = arith.constant 3 : index
    %c0_235 = arith.constant 0 : index
    %c0_236 = arith.constant 0 : index
    %381 = vector.load %arg3[%c3_234, %c0_235, %c0_236] : memref<9x64x128xf32, #tpu.memory_space<vmem>>, vector<1x64x128xf32>
    %382 = vector.shape_cast %381 : vector<1x64x128xf32> to vector<64x128xf32>
    %cst_237 = arith.constant dense<0.000000e+00> : vector<16x128xf32>
    %383 = tpu.matmul %380, %382, %cst_237 {dimension_numbers = #tpu.dot_dimension_numbers<[1], [0], [0], [1], [0, 0, 1, 1], [], []>} : vector<16x64xf32>, vector<64x128xf32>, vector<16x128xf32> -> vector<16x128xf32>
    %384 = arith.addf %379, %383 : vector<16x128xf32>
    %c1_238 = arith.constant 1 : index
    %c8_239 = arith.constant 8 : index
    %385 = vector.load %arg14[%c1_238, %c8_239] : memref<18x80xf32, #tpu.memory_space<vmem>>, vector<16x64xf32>
    %c4_240 = arith.constant 4 : index
    %c0_241 = arith.constant 0 : index
    %c0_242 = arith.constant 0 : index
    %386 = vector.load %arg3[%c4_240, %c0_241, %c0_242] : memref<9x64x128xf32, #tpu.memory_space<vmem>>, vector<1x64x128xf32>
    %387 = vector.shape_cast %386 : vector<1x64x128xf32> to vector<64x128xf32>
    %cst_243 = arith.constant dense<0.000000e+00> : vector<16x128xf32>
    %388 = tpu.matmul %385, %387, %cst_243 {dimension_numbers = #tpu.dot_dimension_numbers<[1], [0], [0], [1], [0, 0, 1, 1], [], []>} : vector<16x64xf32>, vector<64x128xf32>, vector<16x128xf32> -> vector<16x128xf32>
    %389 = arith.addf %384, %388 : vector<16x128xf32>
    %c1_244 = arith.constant 1 : index
    %c16_245 = arith.constant 16 : index
    %390 = vector.load %arg14[%c1_244, %c16_245] : memref<18x80xf32, #tpu.memory_space<vmem>>, vector<16x64xf32>
    %c5_246 = arith.constant 5 : index
    %c0_247 = arith.constant 0 : index
    %c0_248 = arith.constant 0 : index
    %391 = vector.load %arg3[%c5_246, %c0_247, %c0_248] : memref<9x64x128xf32, #tpu.memory_space<vmem>>, vector<1x64x128xf32>
    %392 = vector.shape_cast %391 : vector<1x64x128xf32> to vector<64x128xf32>
    %cst_249 = arith.constant dense<0.000000e+00> : vector<16x128xf32>
    %393 = tpu.matmul %390, %392, %cst_249 {dimension_numbers = #tpu.dot_dimension_numbers<[1], [0], [0], [1], [0, 0, 1, 1], [], []>} : vector<16x64xf32>, vector<64x128xf32>, vector<16x128xf32> -> vector<16x128xf32>
    %394 = arith.addf %389, %393 : vector<16x128xf32>
    %c2_250 = arith.constant 2 : index
    %c0_251 = arith.constant 0 : index
    %395 = vector.load %arg14[%c2_250, %c0_251] : memref<18x80xf32, #tpu.memory_space<vmem>>, vector<16x64xf32>
    %cst_252 = arith.constant 0.000000e+00 : f32
    %396 = vector.broadcast %cst_252 : f32 to vector<16x64xf32>
    %397 = arith.select %357, %396, %395 : vector<16x64xi1>, vector<16x64xf32>
    %c6_253 = arith.constant 6 : index
    %c0_254 = arith.constant 0 : index
    %c0_255 = arith.constant 0 : index
    %398 = vector.load %arg3[%c6_253, %c0_254, %c0_255] : memref<9x64x128xf32, #tpu.memory_space<vmem>>, vector<1x64x128xf32>
    %399 = vector.shape_cast %398 : vector<1x64x128xf32> to vector<64x128xf32>
    %cst_256 = arith.constant dense<0.000000e+00> : vector<16x128xf32>
    %400 = tpu.matmul %397, %399, %cst_256 {dimension_numbers = #tpu.dot_dimension_numbers<[1], [0], [0], [1], [0, 0, 1, 1], [], []>} : vector<16x64xf32>, vector<64x128xf32>, vector<16x128xf32> -> vector<16x128xf32>
    %401 = arith.addf %394, %400 : vector<16x128xf32>
    %c2_257 = arith.constant 2 : index
    %c8_258 = arith.constant 8 : index
    %402 = vector.load %arg14[%c2_257, %c8_258] : memref<18x80xf32, #tpu.memory_space<vmem>>, vector<16x64xf32>
    %cst_259 = arith.constant 0.000000e+00 : f32
    %403 = vector.broadcast %cst_259 : f32 to vector<16x64xf32>
    %404 = arith.select %357, %403, %402 : vector<16x64xi1>, vector<16x64xf32>
    %c7_260 = arith.constant 7 : index
    %c0_261 = arith.constant 0 : index
    %c0_262 = arith.constant 0 : index
    %405 = vector.load %arg3[%c7_260, %c0_261, %c0_262] : memref<9x64x128xf32, #tpu.memory_space<vmem>>, vector<1x64x128xf32>
    %406 = vector.shape_cast %405 : vector<1x64x128xf32> to vector<64x128xf32>
    %cst_263 = arith.constant dense<0.000000e+00> : vector<16x128xf32>
    %407 = tpu.matmul %404, %406, %cst_263 {dimension_numbers = #tpu.dot_dimension_numbers<[1], [0], [0], [1], [0, 0, 1, 1], [], []>} : vector<16x64xf32>, vector<64x128xf32>, vector<16x128xf32> -> vector<16x128xf32>
    %408 = arith.addf %401, %407 : vector<16x128xf32>
    %c2_264 = arith.constant 2 : index
    %c16_265 = arith.constant 16 : index
    %409 = vector.load %arg14[%c2_264, %c16_265] : memref<18x80xf32, #tpu.memory_space<vmem>>, vector<16x64xf32>
    %cst_266 = arith.constant 0.000000e+00 : f32
    %410 = vector.broadcast %cst_266 : f32 to vector<16x64xf32>
    %411 = arith.select %357, %410, %409 : vector<16x64xi1>, vector<16x64xf32>
    %c8_267 = arith.constant 8 : index
    %c0_268 = arith.constant 0 : index
    %c0_269 = arith.constant 0 : index
    %412 = vector.load %arg3[%c8_267, %c0_268, %c0_269] : memref<9x64x128xf32, #tpu.memory_space<vmem>>, vector<1x64x128xf32>
    %413 = vector.shape_cast %412 : vector<1x64x128xf32> to vector<64x128xf32>
    %cst_270 = arith.constant dense<0.000000e+00> : vector<16x128xf32>
    %414 = tpu.matmul %411, %413, %cst_270 {dimension_numbers = #tpu.dot_dimension_numbers<[1], [0], [0], [1], [0, 0, 1, 1], [], []>} : vector<16x64xf32>, vector<64x128xf32>, vector<16x128xf32> -> vector<16x128xf32>
    %415 = arith.addf %408, %414 : vector<16x128xf32>
    %c0_271 = arith.constant 0 : index
    %c0_272 = arith.constant 0 : index
    %416 = vector.load %arg7[%c0_271, %c0_272] : memref<3x128xf32, #tpu.memory_space<vmem>>, vector<1x128xf32>
    %c1_273 = arith.constant 1 : index
    %c0_274 = arith.constant 0 : index
    %417 = vector.load %arg7[%c1_273, %c0_274] : memref<3x128xf32, #tpu.memory_space<vmem>>, vector<1x128xf32>
    %c2_275 = arith.constant 2 : index
    %c0_276 = arith.constant 0 : index
    %418 = vector.load %arg7[%c2_275, %c0_276] : memref<3x128xf32, #tpu.memory_space<vmem>>, vector<1x128xf32>
    %419 = vector.broadcast %416 : vector<1x128xf32> to vector<16x128xf32>
    %420 = arith.addf %415, %419 : vector<16x128xf32>
    %421 = vector.extract_strided_slice %420 {offsets = [0, 0], sizes = [8, 128], strides = [1, 1]} : vector<16x128xf32> to vector<8x128xf32>
    %cst_277 = arith.constant dense<0.000000e+00> : vector<8xf32>
    %422 = vector.multi_reduction <add>, %421, %cst_277 [1] : vector<8x128xf32> to vector<8xf32>
    %423 = vector.shape_cast %422 : vector<8xf32> to vector<8x1xf32>
    %cst_278 = arith.constant dense<0.000000e+00> : vector<1xf32>
    %424 = vector.multi_reduction <add>, %423, %cst_278 [0] : vector<8x1xf32> to vector<1xf32>
    %425 = vector.shape_cast %424 : vector<1xf32> to vector<1x1xf32>
    %cst_279 = arith.constant 9.765625E-4 : f32
    %426 = vector.broadcast %cst_279 : f32 to vector<1x1xf32>
    %427 = arith.mulf %425, %426 : vector<1x1xf32>
    %428 = arith.mulf %421, %421 : vector<8x128xf32>
    %cst_280 = arith.constant dense<0.000000e+00> : vector<8xf32>
    %429 = vector.multi_reduction <add>, %428, %cst_280 [1] : vector<8x128xf32> to vector<8xf32>
    %430 = vector.shape_cast %429 : vector<8xf32> to vector<8x1xf32>
    %cst_281 = arith.constant dense<0.000000e+00> : vector<1xf32>
    %431 = vector.multi_reduction <add>, %430, %cst_281 [0] : vector<8x1xf32> to vector<1xf32>
    %432 = vector.shape_cast %431 : vector<1xf32> to vector<1x1xf32>
    %cst_282 = arith.constant 9.765625E-4 : f32
    %433 = vector.broadcast %cst_282 : f32 to vector<1x1xf32>
    %434 = arith.mulf %432, %433 : vector<1x1xf32>
    %435 = arith.mulf %427, %427 : vector<1x1xf32>
    %436 = arith.subf %434, %435 : vector<1x1xf32>
    %cst_283 = arith.constant 9.99999974E-6 : f32
    %437 = vector.broadcast %cst_283 : f32 to vector<1x1xf32>
    %438 = arith.addf %436, %437 : vector<1x1xf32>
    %439 = math.rsqrt %438 : vector<1x1xf32>
    %440 = vector.broadcast %439 : vector<1x1xf32> to vector<1x128xf32>
    %441 = arith.mulf %417, %440 : vector<1x128xf32>
    %442 = vector.broadcast %427 : vector<1x1xf32> to vector<1x128xf32>
    %443 = arith.mulf %442, %441 : vector<1x128xf32>
    %444 = arith.subf %418, %443 : vector<1x128xf32>
    %445 = vector.broadcast %441 : vector<1x128xf32> to vector<8x128xf32>
    %446 = arith.mulf %421, %445 : vector<8x128xf32>
    %447 = vector.broadcast %444 : vector<1x128xf32> to vector<8x128xf32>
    %448 = arith.addf %446, %447 : vector<8x128xf32>
    %cst_284 = arith.constant 0.000000e+00 : f32
    %449 = vector.broadcast %cst_284 : f32 to vector<8x128xf32>
    %450 = arith.maximumf %448, %449 : vector<8x128xf32>
    %451 = vector.extract_strided_slice %420 {offsets = [8, 0], sizes = [8, 128], strides = [1, 1]} : vector<16x128xf32> to vector<8x128xf32>
    %cst_285 = arith.constant dense<0.000000e+00> : vector<8xf32>
    %452 = vector.multi_reduction <add>, %451, %cst_285 [1] : vector<8x128xf32> to vector<8xf32>
    %453 = vector.shape_cast %452 : vector<8xf32> to vector<8x1xf32>
    %cst_286 = arith.constant dense<0.000000e+00> : vector<1xf32>
    %454 = vector.multi_reduction <add>, %453, %cst_286 [0] : vector<8x1xf32> to vector<1xf32>
    %455 = vector.shape_cast %454 : vector<1xf32> to vector<1x1xf32>
    %cst_287 = arith.constant 9.765625E-4 : f32
    %456 = vector.broadcast %cst_287 : f32 to vector<1x1xf32>
    %457 = arith.mulf %455, %456 : vector<1x1xf32>
    %458 = arith.mulf %451, %451 : vector<8x128xf32>
    %cst_288 = arith.constant dense<0.000000e+00> : vector<8xf32>
    %459 = vector.multi_reduction <add>, %458, %cst_288 [1] : vector<8x128xf32> to vector<8xf32>
    %460 = vector.shape_cast %459 : vector<8xf32> to vector<8x1xf32>
    %cst_289 = arith.constant dense<0.000000e+00> : vector<1xf32>
    %461 = vector.multi_reduction <add>, %460, %cst_289 [0] : vector<8x1xf32> to vector<1xf32>
    %462 = vector.shape_cast %461 : vector<1xf32> to vector<1x1xf32>
    %cst_290 = arith.constant 9.765625E-4 : f32
    %463 = vector.broadcast %cst_290 : f32 to vector<1x1xf32>
    %464 = arith.mulf %462, %463 : vector<1x1xf32>
    %465 = arith.mulf %457, %457 : vector<1x1xf32>
    %466 = arith.subf %464, %465 : vector<1x1xf32>
    %cst_291 = arith.constant 9.99999974E-6 : f32
    %467 = vector.broadcast %cst_291 : f32 to vector<1x1xf32>
    %468 = arith.addf %466, %467 : vector<1x1xf32>
    %469 = math.rsqrt %468 : vector<1x1xf32>
    %470 = vector.broadcast %469 : vector<1x1xf32> to vector<1x128xf32>
    %471 = arith.mulf %417, %470 : vector<1x128xf32>
    %472 = vector.broadcast %457 : vector<1x1xf32> to vector<1x128xf32>
    %473 = arith.mulf %472, %471 : vector<1x128xf32>
    %474 = arith.subf %418, %473 : vector<1x128xf32>
    %475 = vector.broadcast %471 : vector<1x128xf32> to vector<8x128xf32>
    %476 = arith.mulf %451, %475 : vector<8x128xf32>
    %477 = vector.broadcast %474 : vector<1x128xf32> to vector<8x128xf32>
    %478 = arith.addf %476, %477 : vector<8x128xf32>
    %cst_292 = arith.constant 0.000000e+00 : f32
    %479 = vector.broadcast %cst_292 : f32 to vector<8x128xf32>
    %480 = arith.maximumf %478, %479 : vector<8x128xf32>
    %c0_293 = arith.constant 0 : index
    %c0_294 = arith.constant 0 : index
    %481 = vector.load %arg17[%c0_293, %c0_294] : memref<16x128xf32, #tpu.memory_space<vmem>>, vector<8x128xf32>
    tpu.vector_store %arg17[%c0_293, %c0_294], %450 {strides = array<i32>} : memref<16x128xf32, #tpu.memory_space<vmem>>, vector<8x128xf32>,
    %c8_295 = arith.constant 8 : index
    %c0_296 = arith.constant 0 : index
    %482 = vector.load %arg17[%c8_295, %c0_296] : memref<16x128xf32, #tpu.memory_space<vmem>>, vector<8x128xf32>
    tpu.vector_store %arg17[%c8_295, %c0_296], %480 {strides = array<i32>} : memref<16x128xf32, #tpu.memory_space<vmem>>, vector<8x128xf32>,
    %c0_297 = arith.constant 0 : index
    %c0_298 = arith.constant 0 : index
    %483 = tpu.strided_load %arg17[%c0_297, %c0_298] {strides = array<i32: 2, 1>} : memref<16x128xf32, #tpu.memory_space<vmem>>, vector<8x128xf32>
    %c1_299 = arith.constant 1 : index
    %c0_300 = arith.constant 0 : index
    %484 = tpu.strided_load %arg17[%c1_299, %c0_300] {strides = array<i32: 2, 1>} : memref<16x128xf32, #tpu.memory_space<vmem>>, vector<8x128xf32>
    %485 = arith.maximumf %483, %484 : vector<8x128xf32>
    %486 = vector.extract_strided_slice %485 {offsets = [0, 0], sizes = [8, 16], strides = [1, 1]} : vector<8x128xf32> to vector<8x16xf32>
    %487 = vector.extract_strided_slice %485 {offsets = [0, 16], sizes = [8, 16], strides = [1, 1]} : vector<8x128xf32> to vector<8x16xf32>
    %488 = arith.maximumf %486, %487 : vector<8x16xf32>
    %c1_301 = arith.constant 1 : index
    %c16_302 = arith.constant 16 : index
    %489 = vector.load %arg15[%c1_301, %c16_302] : memref<10x96xf32, #tpu.memory_space<vmem>>, vector<8x16xf32>
    tpu.vector_store %arg15[%c1_301, %c16_302], %488 {strides = array<i32>} : memref<10x96xf32, #tpu.memory_space<vmem>>, vector<8x16xf32>,
    %490 = vector.extract_strided_slice %485 {offsets = [0, 32], sizes = [8, 16], strides = [1, 1]} : vector<8x128xf32> to vector<8x16xf32>
    %491 = vector.extract_strided_slice %485 {offsets = [0, 48], sizes = [8, 16], strides = [1, 1]} : vector<8x128xf32> to vector<8x16xf32>
    %492 = arith.maximumf %490, %491 : vector<8x16xf32>
    %c1_303 = arith.constant 1 : index
    %c32_304 = arith.constant 32 : index
    %493 = vector.load %arg15[%c1_303, %c32_304] : memref<10x96xf32, #tpu.memory_space<vmem>>, vector<8x16xf32>
    tpu.vector_store %arg15[%c1_303, %c32_304], %492 {strides = array<i32>} : memref<10x96xf32, #tpu.memory_space<vmem>>, vector<8x16xf32>,
    %494 = vector.extract_strided_slice %485 {offsets = [0, 64], sizes = [8, 16], strides = [1, 1]} : vector<8x128xf32> to vector<8x16xf32>
    %495 = vector.extract_strided_slice %485 {offsets = [0, 80], sizes = [8, 16], strides = [1, 1]} : vector<8x128xf32> to vector<8x16xf32>
    %496 = arith.maximumf %494, %495 : vector<8x16xf32>
    %c1_305 = arith.constant 1 : index
    %c48_306 = arith.constant 48 : index
    %497 = vector.load %arg15[%c1_305, %c48_306] : memref<10x96xf32, #tpu.memory_space<vmem>>, vector<8x16xf32>
    tpu.vector_store %arg15[%c1_305, %c48_306], %496 {strides = array<i32>} : memref<10x96xf32, #tpu.memory_space<vmem>>, vector<8x16xf32>,
    %498 = vector.extract_strided_slice %485 {offsets = [0, 96], sizes = [8, 16], strides = [1, 1]} : vector<8x128xf32> to vector<8x16xf32>
    %499 = vector.extract_strided_slice %485 {offsets = [0, 112], sizes = [8, 16], strides = [1, 1]} : vector<8x128xf32> to vector<8x16xf32>
    %500 = arith.maximumf %498, %499 : vector<8x16xf32>
    %c1_307 = arith.constant 1 : index
    %c64_308 = arith.constant 64 : index
    %501 = vector.load %arg15[%c1_307, %c64_308] : memref<10x96xf32, #tpu.memory_space<vmem>>, vector<8x16xf32>
    tpu.vector_store %arg15[%c1_307, %c64_308], %500 {strides = array<i32>} : memref<10x96xf32, #tpu.memory_space<vmem>>, vector<8x16xf32>,
    %502 = tpu.iota {dimensions = array<i32: 0>} : vector<8x64xi32>
    %c4_i32 = arith.constant 4 : i32
    %c0_i32_309 = arith.constant 0 : i32
    %503 = arith.cmpi eq, %c4_i32, %c0_i32_309 : i32
    %c1_i32_310 = arith.constant 1 : i32
    %504 = arith.select %503, %c1_i32_310, %c4_i32 : i32
    %505 = vector.broadcast %504 : i32 to vector<8x64xi32>
    %506 = arith.remsi %502, %505 : vector<8x64xi32>
    %c0_i32_311 = arith.constant 0 : i32
    %507 = vector.broadcast %c0_i32_311 : i32 to vector<8x64xi32>
    %508 = arith.cmpi ne, %506, %507 : vector<8x64xi32>
    %c0_i32_312 = arith.constant 0 : i32
    %509 = vector.broadcast %c0_i32_312 : i32 to vector<8x64xi32>
    %510 = arith.cmpi slt, %506, %509 : vector<8x64xi32>
    %c0_i32_313 = arith.constant 0 : i32
    %511 = arith.cmpi slt, %504, %c0_i32_313 : i32
    %512 = vector.broadcast %511 : i1 to vector<8x64xi1>
    %513 = vector.broadcast %512 : vector<8x64xi1> to vector<8x64xi1>
    %514 = arith.xori %510, %513 : vector<8x64xi1>
    %515 = arith.andi %514, %508 : vector<8x64xi1>
    %516 = vector.broadcast %504 : i32 to vector<8x64xi32>
    %517 = arith.addi %506, %516 : vector<8x64xi32>
    %518 = arith.select %515, %517, %506 : vector<8x64xi1>, vector<8x64xi32>
    %c0_i32_314 = arith.constant 0 : i32
    %519 = vector.broadcast %c0_i32_314 : i32 to vector<8x64xi32>
    %520 = arith.cmpi eq, %518, %519 : vector<8x64xi32>
    %c3_i32 = arith.constant 3 : i32
    %521 = vector.broadcast %c3_i32 : i32 to vector<8x64xi32>
    %522 = arith.cmpi eq, %518, %521 : vector<8x64xi32>
    %cst_315 = arith.constant 0.000000e+00 : f32
    %523 = vector.broadcast %cst_315 : f32 to vector<8x128xf32>
    %c0_316 = arith.constant 0 : index
    %c0_317 = arith.constant 0 : index
    %524 = vector.load %arg15[%c0_316, %c0_317] : memref<10x96xf32, #tpu.memory_space<vmem>>, vector<8x64xf32>
    %cst_318 = arith.constant 0.000000e+00 : f32
    %525 = vector.broadcast %cst_318 : f32 to vector<8x64xf32>
    %526 = arith.select %520, %525, %524 : vector<8x64xi1>, vector<8x64xf32>
    %c0_319 = arith.constant 0 : index
    %c0_320 = arith.constant 0 : index
    %c0_321 = arith.constant 0 : index
    %527 = vector.load %arg4[%c0_319, %c0_320, %c0_321] : memref<9x64x128xf32, #tpu.memory_space<vmem>>, vector<1x64x128xf32>
    %528 = vector.shape_cast %527 : vector<1x64x128xf32> to vector<64x128xf32>
    %cst_322 = arith.constant dense<0.000000e+00> : vector<8x128xf32>
    %529 = tpu.matmul %526, %528, %cst_322 {dimension_numbers = #tpu.dot_dimension_numbers<[1], [0], [0], [1], [0, 0, 1, 1], [], []>} : vector<8x64xf32>, vector<64x128xf32>, vector<8x128xf32> -> vector<8x128xf32>
    %530 = arith.addf %523, %529 : vector<8x128xf32>
    %c0_323 = arith.constant 0 : index
    %c16_324 = arith.constant 16 : index
    %531 = vector.load %arg15[%c0_323, %c16_324] : memref<10x96xf32, #tpu.memory_space<vmem>>, vector<8x64xf32>
    %cst_325 = arith.constant 0.000000e+00 : f32
    %532 = vector.broadcast %cst_325 : f32 to vector<8x64xf32>
    %533 = arith.select %520, %532, %531 : vector<8x64xi1>, vector<8x64xf32>
    %c1_326 = arith.constant 1 : index
    %c0_327 = arith.constant 0 : index
    %c0_328 = arith.constant 0 : index
    %534 = vector.load %arg4[%c1_326, %c0_327, %c0_328] : memref<9x64x128xf32, #tpu.memory_space<vmem>>, vector<1x64x128xf32>
    %535 = vector.shape_cast %534 : vector<1x64x128xf32> to vector<64x128xf32>
    %cst_329 = arith.constant dense<0.000000e+00> : vector<8x128xf32>
    %536 = tpu.matmul %533, %535, %cst_329 {dimension_numbers = #tpu.dot_dimension_numbers<[1], [0], [0], [1], [0, 0, 1, 1], [], []>} : vector<8x64xf32>, vector<64x128xf32>, vector<8x128xf32> -> vector<8x128xf32>
    %537 = arith.addf %530, %536 : vector<8x128xf32>
    %c0_330 = arith.constant 0 : index
    %c32_331 = arith.constant 32 : index
    %538 = vector.load %arg15[%c0_330, %c32_331] : memref<10x96xf32, #tpu.memory_space<vmem>>, vector<8x64xf32>
    %cst_332 = arith.constant 0.000000e+00 : f32
    %539 = vector.broadcast %cst_332 : f32 to vector<8x64xf32>
    %540 = arith.select %520, %539, %538 : vector<8x64xi1>, vector<8x64xf32>
    %c2_333 = arith.constant 2 : index
    %c0_334 = arith.constant 0 : index
    %c0_335 = arith.constant 0 : index
    %541 = vector.load %arg4[%c2_333, %c0_334, %c0_335] : memref<9x64x128xf32, #tpu.memory_space<vmem>>, vector<1x64x128xf32>
    %542 = vector.shape_cast %541 : vector<1x64x128xf32> to vector<64x128xf32>
    %cst_336 = arith.constant dense<0.000000e+00> : vector<8x128xf32>
    %543 = tpu.matmul %540, %542, %cst_336 {dimension_numbers = #tpu.dot_dimension_numbers<[1], [0], [0], [1], [0, 0, 1, 1], [], []>} : vector<8x64xf32>, vector<64x128xf32>, vector<8x128xf32> -> vector<8x128xf32>
    %544 = arith.addf %537, %543 : vector<8x128xf32>
    %c1_337 = arith.constant 1 : index
    %c0_338 = arith.constant 0 : index
    %545 = vector.load %arg15[%c1_337, %c0_338] : memref<10x96xf32, #tpu.memory_space<vmem>>, vector<8x64xf32>
    %c3_339 = arith.constant 3 : index
    %c0_340 = arith.constant 0 : index
    %c0_341 = arith.constant 0 : index
    %546 = vector.load %arg4[%c3_339, %c0_340, %c0_341] : memref<9x64x128xf32, #tpu.memory_space<vmem>>, vector<1x64x128xf32>
    %547 = vector.shape_cast %546 : vector<1x64x128xf32> to vector<64x128xf32>
    %cst_342 = arith.constant dense<0.000000e+00> : vector<8x128xf32>
    %548 = tpu.matmul %545, %547, %cst_342 {dimension_numbers = #tpu.dot_dimension_numbers<[1], [0], [0], [1], [0, 0, 1, 1], [], []>} : vector<8x64xf32>, vector<64x128xf32>, vector<8x128xf32> -> vector<8x128xf32>
    %549 = arith.addf %544, %548 : vector<8x128xf32>
    %c1_343 = arith.constant 1 : index
    %c16_344 = arith.constant 16 : index
    %550 = vector.load %arg15[%c1_343, %c16_344] : memref<10x96xf32, #tpu.memory_space<vmem>>, vector<8x64xf32>
    %c4_345 = arith.constant 4 : index
    %c0_346 = arith.constant 0 : index
    %c0_347 = arith.constant 0 : index
    %551 = vector.load %arg4[%c4_345, %c0_346, %c0_347] : memref<9x64x128xf32, #tpu.memory_space<vmem>>, vector<1x64x128xf32>
    %552 = vector.shape_cast %551 : vector<1x64x128xf32> to vector<64x128xf32>
    %cst_348 = arith.constant dense<0.000000e+00> : vector<8x128xf32>
    %553 = tpu.matmul %550, %552, %cst_348 {dimension_numbers = #tpu.dot_dimension_numbers<[1], [0], [0], [1], [0, 0, 1, 1], [], []>} : vector<8x64xf32>, vector<64x128xf32>, vector<8x128xf32> -> vector<8x128xf32>
    %554 = arith.addf %549, %553 : vector<8x128xf32>
    %c1_349 = arith.constant 1 : index
    %c32_350 = arith.constant 32 : index
    %555 = vector.load %arg15[%c1_349, %c32_350] : memref<10x96xf32, #tpu.memory_space<vmem>>, vector<8x64xf32>
    %c5_351 = arith.constant 5 : index
    %c0_352 = arith.constant 0 : index
    %c0_353 = arith.constant 0 : index
    %556 = vector.load %arg4[%c5_351, %c0_352, %c0_353] : memref<9x64x128xf32, #tpu.memory_space<vmem>>, vector<1x64x128xf32>
    %557 = vector.shape_cast %556 : vector<1x64x128xf32> to vector<64x128xf32>
    %cst_354 = arith.constant dense<0.000000e+00> : vector<8x128xf32>
    %558 = tpu.matmul %555, %557, %cst_354 {dimension_numbers = #tpu.dot_dimension_numbers<[1], [0], [0], [1], [0, 0, 1, 1], [], []>} : vector<8x64xf32>, vector<64x128xf32>, vector<8x128xf32> -> vector<8x128xf32>
    %559 = arith.addf %554, %558 : vector<8x128xf32>
    %c2_355 = arith.constant 2 : index
    %c0_356 = arith.constant 0 : index
    %560 = vector.load %arg15[%c2_355, %c0_356] : memref<10x96xf32, #tpu.memory_space<vmem>>, vector<8x64xf32>
    %cst_357 = arith.constant 0.000000e+00 : f32
    %561 = vector.broadcast %cst_357 : f32 to vector<8x64xf32>
    %562 = arith.select %522, %561, %560 : vector<8x64xi1>, vector<8x64xf32>
    %c6_358 = arith.constant 6 : index
    %c0_359 = arith.constant 0 : index
    %c0_360 = arith.constant 0 : index
    %563 = vector.load %arg4[%c6_358, %c0_359, %c0_360] : memref<9x64x128xf32, #tpu.memory_space<vmem>>, vector<1x64x128xf32>
    %564 = vector.shape_cast %563 : vector<1x64x128xf32> to vector<64x128xf32>
    %cst_361 = arith.constant dense<0.000000e+00> : vector<8x128xf32>
    %565 = tpu.matmul %562, %564, %cst_361 {dimension_numbers = #tpu.dot_dimension_numbers<[1], [0], [0], [1], [0, 0, 1, 1], [], []>} : vector<8x64xf32>, vector<64x128xf32>, vector<8x128xf32> -> vector<8x128xf32>
    %566 = arith.addf %559, %565 : vector<8x128xf32>
    %c2_362 = arith.constant 2 : index
    %c16_363 = arith.constant 16 : index
    %567 = vector.load %arg15[%c2_362, %c16_363] : memref<10x96xf32, #tpu.memory_space<vmem>>, vector<8x64xf32>
    %cst_364 = arith.constant 0.000000e+00 : f32
    %568 = vector.broadcast %cst_364 : f32 to vector<8x64xf32>
    %569 = arith.select %522, %568, %567 : vector<8x64xi1>, vector<8x64xf32>
    %c7_365 = arith.constant 7 : index
    %c0_366 = arith.constant 0 : index
    %c0_367 = arith.constant 0 : index
    %570 = vector.load %arg4[%c7_365, %c0_366, %c0_367] : memref<9x64x128xf32, #tpu.memory_space<vmem>>, vector<1x64x128xf32>
    %571 = vector.shape_cast %570 : vector<1x64x128xf32> to vector<64x128xf32>
    %cst_368 = arith.constant dense<0.000000e+00> : vector<8x128xf32>
    %572 = tpu.matmul %569, %571, %cst_368 {dimension_numbers = #tpu.dot_dimension_numbers<[1], [0], [0], [1], [0, 0, 1, 1], [], []>} : vector<8x64xf32>, vector<64x128xf32>, vector<8x128xf32> -> vector<8x128xf32>
    %573 = arith.addf %566, %572 : vector<8x128xf32>
    %c2_369 = arith.constant 2 : index
    %c32_370 = arith.constant 32 : index
    %574 = vector.load %arg15[%c2_369, %c32_370] : memref<10x96xf32, #tpu.memory_space<vmem>>, vector<8x64xf32>
    %cst_371 = arith.constant 0.000000e+00 : f32
    %575 = vector.broadcast %cst_371 : f32 to vector<8x64xf32>
    %576 = arith.select %522, %575, %574 : vector<8x64xi1>, vector<8x64xf32>
    %c8_372 = arith.constant 8 : index
    %c0_373 = arith.constant 0 : index
    %c0_374 = arith.constant 0 : index
    %577 = vector.load %arg4[%c8_372, %c0_373, %c0_374] : memref<9x64x128xf32, #tpu.memory_space<vmem>>, vector<1x64x128xf32>
    %578 = vector.shape_cast %577 : vector<1x64x128xf32> to vector<64x128xf32>
    %cst_375 = arith.constant dense<0.000000e+00> : vector<8x128xf32>
    %579 = tpu.matmul %576, %578, %cst_375 {dimension_numbers = #tpu.dot_dimension_numbers<[1], [0], [0], [1], [0, 0, 1, 1], [], []>} : vector<8x64xf32>, vector<64x128xf32>, vector<8x128xf32> -> vector<8x128xf32>
    %580 = arith.addf %573, %579 : vector<8x128xf32>
    %c0_376 = arith.constant 0 : index
    %c0_377 = arith.constant 0 : index
    %581 = vector.load %arg8[%c0_376, %c0_377] : memref<3x128xf32, #tpu.memory_space<vmem>>, vector<1x128xf32>
    %c1_378 = arith.constant 1 : index
    %c0_379 = arith.constant 0 : index
    %582 = vector.load %arg8[%c1_378, %c0_379] : memref<3x128xf32, #tpu.memory_space<vmem>>, vector<1x128xf32>
    %c2_380 = arith.constant 2 : index
    %c0_381 = arith.constant 0 : index
    %583 = vector.load %arg8[%c2_380, %c0_381] : memref<3x128xf32, #tpu.memory_space<vmem>>, vector<1x128xf32>
    %584 = vector.broadcast %581 : vector<1x128xf32> to vector<8x128xf32>
    %585 = arith.addf %580, %584 : vector<8x128xf32>
    %586 = vector.extract_strided_slice %585 {offsets = [0, 0], sizes = [4, 128], strides = [1, 1]} : vector<8x128xf32> to vector<4x128xf32>
    %cst_382 = arith.constant dense<0.000000e+00> : vector<4xf32>
    %587 = vector.multi_reduction <add>, %586, %cst_382 [1] : vector<4x128xf32> to vector<4xf32>
    %588 = vector.shape_cast %587 : vector<4xf32> to vector<4x1xf32>
    %cst_383 = arith.constant dense<0.000000e+00> : vector<1xf32>
    %589 = vector.multi_reduction <add>, %588, %cst_383 [0] : vector<4x1xf32> to vector<1xf32>
    %590 = vector.shape_cast %589 : vector<1xf32> to vector<1x1xf32>
    %cst_384 = arith.constant 0.001953125 : f32
    %591 = vector.broadcast %cst_384 : f32 to vector<1x1xf32>
    %592 = arith.mulf %590, %591 : vector<1x1xf32>
    %593 = arith.mulf %586, %586 : vector<4x128xf32>
    %cst_385 = arith.constant dense<0.000000e+00> : vector<4xf32>
    %594 = vector.multi_reduction <add>, %593, %cst_385 [1] : vector<4x128xf32> to vector<4xf32>
    %595 = vector.shape_cast %594 : vector<4xf32> to vector<4x1xf32>
    %cst_386 = arith.constant dense<0.000000e+00> : vector<1xf32>
    %596 = vector.multi_reduction <add>, %595, %cst_386 [0] : vector<4x1xf32> to vector<1xf32>
    %597 = vector.shape_cast %596 : vector<1xf32> to vector<1x1xf32>
    %cst_387 = arith.constant 0.001953125 : f32
    %598 = vector.broadcast %cst_387 : f32 to vector<1x1xf32>
    %599 = arith.mulf %597, %598 : vector<1x1xf32>
    %600 = arith.mulf %592, %592 : vector<1x1xf32>
    %601 = arith.subf %599, %600 : vector<1x1xf32>
    %cst_388 = arith.constant 9.99999974E-6 : f32
    %602 = vector.broadcast %cst_388 : f32 to vector<1x1xf32>
    %603 = arith.addf %601, %602 : vector<1x1xf32>
    %604 = math.rsqrt %603 : vector<1x1xf32>
    %605 = vector.broadcast %604 : vector<1x1xf32> to vector<1x128xf32>
    %606 = arith.mulf %582, %605 : vector<1x128xf32>
    %607 = vector.broadcast %592 : vector<1x1xf32> to vector<1x128xf32>
    %608 = arith.mulf %607, %606 : vector<1x128xf32>
    %609 = arith.subf %583, %608 : vector<1x128xf32>
    %610 = vector.broadcast %606 : vector<1x128xf32> to vector<4x128xf32>
    %611 = arith.mulf %586, %610 : vector<4x128xf32>
    %612 = vector.broadcast %609 : vector<1x128xf32> to vector<4x128xf32>
    %613 = arith.addf %611, %612 : vector<4x128xf32>
    %cst_389 = arith.constant 0.000000e+00 : f32
    %614 = vector.broadcast %cst_389 : f32 to vector<4x128xf32>
    %615 = arith.maximumf %613, %614 : vector<4x128xf32>
    %616 = vector.extract_strided_slice %585 {offsets = [4, 0], sizes = [4, 128], strides = [1, 1]} : vector<8x128xf32> to vector<4x128xf32>
    %cst_390 = arith.constant dense<0.000000e+00> : vector<4xf32>
    %617 = vector.multi_reduction <add>, %616, %cst_390 [1] : vector<4x128xf32> to vector<4xf32>
    %618 = vector.shape_cast %617 : vector<4xf32> to vector<4x1xf32>
    %cst_391 = arith.constant dense<0.000000e+00> : vector<1xf32>
    %619 = vector.multi_reduction <add>, %618, %cst_391 [0] : vector<4x1xf32> to vector<1xf32>
    %620 = vector.shape_cast %619 : vector<1xf32> to vector<1x1xf32>
    %cst_392 = arith.constant 0.001953125 : f32
    %621 = vector.broadcast %cst_392 : f32 to vector<1x1xf32>
    %622 = arith.mulf %620, %621 : vector<1x1xf32>
    %623 = arith.mulf %616, %616 : vector<4x128xf32>
    %cst_393 = arith.constant dense<0.000000e+00> : vector<4xf32>
    %624 = vector.multi_reduction <add>, %623, %cst_393 [1] : vector<4x128xf32> to vector<4xf32>
    %625 = vector.shape_cast %624 : vector<4xf32> to vector<4x1xf32>
    %cst_394 = arith.constant dense<0.000000e+00> : vector<1xf32>
    %626 = vector.multi_reduction <add>, %625, %cst_394 [0] : vector<4x1xf32> to vector<1xf32>
    %627 = vector.shape_cast %626 : vector<1xf32> to vector<1x1xf32>
    %cst_395 = arith.constant 0.001953125 : f32
    %628 = vector.broadcast %cst_395 : f32 to vector<1x1xf32>
    %629 = arith.mulf %627, %628 : vector<1x1xf32>
    %630 = arith.mulf %622, %622 : vector<1x1xf32>
    %631 = arith.subf %629, %630 : vector<1x1xf32>
    %cst_396 = arith.constant 9.99999974E-6 : f32
    %632 = vector.broadcast %cst_396 : f32 to vector<1x1xf32>
    %633 = arith.addf %631, %632 : vector<1x1xf32>
    %634 = math.rsqrt %633 : vector<1x1xf32>
    %635 = vector.broadcast %634 : vector<1x1xf32> to vector<1x128xf32>
    %636 = arith.mulf %582, %635 : vector<1x128xf32>
    %637 = vector.broadcast %622 : vector<1x1xf32> to vector<1x128xf32>
    %638 = arith.mulf %637, %636 : vector<1x128xf32>
    %639 = arith.subf %583, %638 : vector<1x128xf32>
    %640 = vector.broadcast %636 : vector<1x128xf32> to vector<4x128xf32>
    %641 = arith.mulf %616, %640 : vector<4x128xf32>
    %642 = vector.broadcast %639 : vector<1x128xf32> to vector<4x128xf32>
    %643 = arith.addf %641, %642 : vector<4x128xf32>
    %cst_397 = arith.constant 0.000000e+00 : f32
    %644 = vector.broadcast %cst_397 : f32 to vector<4x128xf32>
    %645 = arith.maximumf %643, %644 : vector<4x128xf32>
    %646 = vector.extract_strided_slice %615 {offsets = [0, 0], sizes = [4, 32], strides = [1, 1]} : vector<4x128xf32> to vector<4x32xf32>
    %647 = vector.extract_strided_slice %615 {offsets = [0, 32], sizes = [4, 32], strides = [1, 1]} : vector<4x128xf32> to vector<4x32xf32>
    %648 = arith.maximumf %646, %647 : vector<4x32xf32>
    %649 = vector.extract_strided_slice %615 {offsets = [0, 64], sizes = [4, 32], strides = [1, 1]} : vector<4x128xf32> to vector<4x32xf32>
    %650 = arith.maximumf %648, %649 : vector<4x32xf32>
    %651 = vector.extract_strided_slice %615 {offsets = [0, 96], sizes = [4, 32], strides = [1, 1]} : vector<4x128xf32> to vector<4x32xf32>
    %652 = arith.maximumf %650, %651 : vector<4x32xf32>
    %cst_398 = arith.constant dense<0xFF800000> : vector<32xf32>
    %653 = vector.multi_reduction <maximumf>, %652, %cst_398 [0] : vector<4x32xf32> to vector<32xf32>
    %654 = vector.shape_cast %653 : vector<32xf32> to vector<1x32xf32>
    %c0_399 = arith.constant 0 : index
    %c0_400 = arith.constant 0 : index
    %655 = vector.load %arg9[%c0_399, %c0_400] : memref<32x10xf32, #tpu.memory_space<vmem>>, vector<32x10xf32>
    %cst_401 = arith.constant dense<0.000000e+00> : vector<1x10xf32>
    %656 = tpu.matmul %654, %655, %cst_401 {dimension_numbers = #tpu.dot_dimension_numbers<[1], [0], [0], [1], [0, 0, 1, 1], [], []>} : vector<1x32xf32>, vector<32x10xf32>, vector<1x10xf32> -> vector<1x10xf32>
    %c0_402 = arith.constant 0 : index
    %c0_403 = arith.constant 0 : index
    %657 = vector.load %arg10[%c0_402, %c0_403] : memref<1x10xf32, #tpu.memory_space<vmem>>, vector<1x10xf32>
    %658 = arith.addf %656, %657 : vector<1x10xf32>
    %c0_404 = arith.constant 0 : index
    %c0_405 = arith.constant 0 : index
    %659 = vector.load %arg11[%c0_404, %c0_405] : memref<2x10xf32, #tpu.memory_space<vmem>>, vector<1x10xf32>
    tpu.vector_store %arg11[%c0_404, %c0_405], %658 {strides = array<i32>} : memref<2x10xf32, #tpu.memory_space<vmem>>, vector<1x10xf32>,
    %660 = vector.extract_strided_slice %645 {offsets = [0, 0], sizes = [4, 32], strides = [1, 1]} : vector<4x128xf32> to vector<4x32xf32>
    %661 = vector.extract_strided_slice %645 {offsets = [0, 32], sizes = [4, 32], strides = [1, 1]} : vector<4x128xf32> to vector<4x32xf32>
    %662 = arith.maximumf %660, %661 : vector<4x32xf32>
    %663 = vector.extract_strided_slice %645 {offsets = [0, 64], sizes = [4, 32], strides = [1, 1]} : vector<4x128xf32> to vector<4x32xf32>
    %664 = arith.maximumf %662, %663 : vector<4x32xf32>
    %665 = vector.extract_strided_slice %645 {offsets = [0, 96], sizes = [4, 32], strides = [1, 1]} : vector<4x128xf32> to vector<4x32xf32>
    %666 = arith.maximumf %664, %665 : vector<4x32xf32>
    %cst_406 = arith.constant dense<0xFF800000> : vector<32xf32>
    %667 = vector.multi_reduction <maximumf>, %666, %cst_406 [0] : vector<4x32xf32> to vector<32xf32>
    %668 = vector.shape_cast %667 : vector<32xf32> to vector<1x32xf32>
    %c0_407 = arith.constant 0 : index
    %c0_408 = arith.constant 0 : index
    %669 = vector.load %arg9[%c0_407, %c0_408] : memref<32x10xf32, #tpu.memory_space<vmem>>, vector<32x10xf32>
    %cst_409 = arith.constant dense<0.000000e+00> : vector<1x10xf32>
    %670 = tpu.matmul %668, %669, %cst_409 {dimension_numbers = #tpu.dot_dimension_numbers<[1], [0], [0], [1], [0, 0, 1, 1], [], []>} : vector<1x32xf32>, vector<32x10xf32>, vector<1x10xf32> -> vector<1x10xf32>
    %c0_410 = arith.constant 0 : index
    %c0_411 = arith.constant 0 : index
    %671 = vector.load %arg10[%c0_410, %c0_411] : memref<1x10xf32, #tpu.memory_space<vmem>>, vector<1x10xf32>
    %672 = arith.addf %670, %671 : vector<1x10xf32>
    %c1_412 = arith.constant 1 : index
    %c0_413 = arith.constant 0 : index
    %673 = vector.load %arg11[%c1_412, %c0_413] : memref<2x10xf32, #tpu.memory_space<vmem>>, vector<1x10xf32>
    tpu.vector_store %arg11[%c1_412, %c0_413], %672 {strides = array<i32>} : memref<2x10xf32, #tpu.memory_space<vmem>>, vector<1x10xf32>,
    return
  }
}

</mosaic_0001>

<llo_original>
// kernel: tile.71
$region0: #{tile.71}
  #allocation0 [shape = 's32[1]{0}', space=sflag, size = 0x4, scoped, tag = 'scoped memory for tile.71']
  %s0 = inlined_call_operand.vmem [shape: f32[4], index: 0, kind: input, shape index: {}]
  %s1 = inlined_call_operand.vmem [shape: f32[16,4], index: 1, kind: output, shape index: {}]
  // Predicated region
  $region2: #{tile.71} parent=0 // pred_check
    _
  $region3: #{tile.71} parent=0 // pred_check_branch
    %3 = sbr.rel (0) target = $region5
  $region4: #{tile.71} parent=0 // pred_region
    _
  $region5: #{tile.71} parent=0 // pred_fallthru
    _
  %v4 = vld [vmem:[%s0] ss:$0 sm:$0xff]
  %5 = vst [vmem:[%s1] sm:$0xff] %v4
  %s6 = scalar_lea.vmem %s1, 8
  %7 = vst [vmem:[%s6] sm:$0xff] %v4

// kernel: tile.74
$region0: #{tile.74}
  %s0 = inlined_call_operand.vmem [shape: f32[16,4], index: 0, kind: input, shape index: {}]
  %s1 = inlined_call_operand.vmem [shape: f32[1,64], index: 1, kind: output, shape index: {}]
  $region1: #{tile.74} parent=0
    #allocation0 [shape = 'u8[4096]{0}', space=vmem, size = 0x1000, scoped, tag = 'scoped mem for output reshape']
    %v2 = vld [vmem:[%s0] sm:$0x1]
    %vm3 = vcmask 31744
    %4 = vst.msk [vmem:[#allocation0] sm:$0x1] %vm3, %v2
    %s5 = scalar_lea.vmem %s0, 15
    %v6 = vld [vmem:[%s5] sm:$0x1]
    %7 = vrot.lane.b32.xlu0 %v6, 60
    %v8 = vpop.permute.xlu0 %7
    %vm9 = vcmask 523744
    %10 = vst.msk [vmem:[#allocation0] sm:$0x1] %vm9, %v8
    %s11 = scalar_lea.vmem %s0, 14
    %v12 = vld [vmem:[%s11] sm:$0x1]
    %13 = vrot.lane.b32.xlu0 %v12, 56
    %v14 = vpop.permute.xlu0 %13
    %vm15 = vcmask 490944
    %16 = vst.msk [vmem:[#allocation0] sm:$0x1] %vm15, %v14
    %s17 = scalar_lea.vmem %s0, 13
    %v18 = vld [vmem:[%s17] sm:$0x1]
    %19 = vrot.lane.b32.xlu0 %v18, 52
    %v20 = vpop.permute.xlu0 %19
    %vm21 = vcmask 458144
    %22 = vst.msk [vmem:[#allocation0] sm:$0x1] %vm21, %v20
    %s23 = scalar_lea.vmem %s0, 12
    %v24 = vld [vmem:[%s23] sm:$0x1]
    %25 = vrot.lane.b32.xlu0 %v24, 48
    %v26 = vpop.permute.xlu0 %25
    %vm27 = vcmask 425344
    %28 = vst.msk [vmem:[#allocation0] sm:$0x1] %vm27, %v26
    %s29 = scalar_lea.vmem %s0, 11
    %v30 = vld [vmem:[%s29] sm:$0x1]
    %31 = vrot.lane.b32.xlu0 %v30, 44
    %v32 = vpop.permute.xlu0 %31
    %vm33 = vcmask 392544
    %34 = vst.msk [vmem:[#allocation0] sm:$0x1] %vm33, %v32
    %s35 = scalar_lea.vmem %s0, 10
    %v36 = vld [vmem:[%s35] sm:$0x1]
    %37 = vrot.lane.b32.xlu0 %v36, 40
    %v38 = vpop.permute.xlu0 %37
    %vm39 = vcmask 359744
    %40 = vst.msk [vmem:[#allocation0] sm:$0x1] %vm39, %v38
    %s41 = scalar_lea.vmem %s0, 9
    %v42 = vld [vmem:[%s41] sm:$0x1]
    %43 = vrot.lane.b32.xlu0 %v42, 36
    %v44 = vpop.permute.xlu0 %43
    %vm45 = vcmask 326944
    %46 = vst.msk [vmem:[#allocation0] sm:$0x1] %vm45, %v44
    %s47 = scalar_lea.vmem %s0, 8
    %v48 = vld [vmem:[%s47] sm:$0x1]
    %49 = vrot.lane.b32.xlu0 %v48, 32
    %v50 = vpop.permute.xlu0 %49
    %vm51 = vcmask 294144
    %52 = vst.msk [vmem:[#allocation0] sm:$0x1] %vm51, %v50
    %s53 = scalar_lea.vmem %s0, 7
    %v54 = vld [vmem:[%s53] sm:$0x1]
    %55 = vrot.lane.b32.xlu0 %v54, 28
    %v56 = vpop.permute.xlu0 %55
    %vm57 = vcmask 261344
    %58 = vst.msk [vmem:[#allocation0] sm:$0x1] %vm57, %v56
    %s59 = scalar_lea.vmem %s0, 6
    %v60 = vld [vmem:[%s59] sm:$0x1]
    %61 = vrot.lane.b32.xlu0 %v60, 24
    %v62 = vpop.permute.xlu0 %61
    %vm63 = vcmask 228544
    %64 = vst.msk [vmem:[#allocation0] sm:$0x1] %vm63, %v62
    %s65 = scalar_lea.vmem %s0, 5
    %v66 = vld [vmem:[%s65] sm:$0x1]
    %67 = vrot.lane.b32.xlu0 %v66, 20
    %v68 = vpop.permute.xlu0 %67
    %vm69 = vcmask 195744
    %70 = vst.msk [vmem:[#allocation0] sm:$0x1] %vm69, %v68
    %s71 = scalar_lea.vmem %s0, 4
    %v72 = vld [vmem:[%s71] sm:$0x1]
    %73 = vrot.lane.b32.xlu0 %v72, 16
    %v74 = vpop.permute.xlu0 %73
    %vm75 = vcmask 162944
    %76 = vst.msk [vmem:[#allocation0] sm:$0x1] %vm75, %v74
    %s77 = scalar_lea.vmem %s0, 3
    %v78 = vld [vmem:[%s77] sm:$0x1]
    %79 = vrot.lane.b32.xlu0 %v78, 12
    %v80 = vpop.permute.xlu0 %79
    %vm81 = vcmask 130144
    %82 = vst.msk [vmem:[#allocation0] sm:$0x1] %vm81, %v80
    %s83 = scalar_lea.vmem %s0, 2
    %v84 = vld [vmem:[%s83] sm:$0x1]
    %85 = vrot.lane.b32.xlu0 %v84, 8
    %v86 = vpop.permute.xlu0 %85
    %vm87 = vcmask 97344
    %88 = vst.msk [vmem:[#allocation0] sm:$0x1] %vm87, %v86
    %s89 = scalar_lea.vmem %s0, 1
    %v90 = vld [vmem:[%s89] sm:$0x1]
    %91 = vrot.lane.b32.xlu0 %v90, 4
    %v92 = vpop.permute.xlu0 %91
    %vm93 = vcmask 64544
    %94 = vst.msk [vmem:[#allocation0] sm:$0x1] %vm93, %v92
    %s96 = sshll.u32 1, 1
    %s97 = ssub.s32 %s96, 1
    %v99 = vld [vmem:[#allocation0] sm:%s97]
    %s100 = sshll.u32 1, 1
    %s101 = ssub.s32 %s100, 1
    %102 = vst [vmem:[%s1] sm:%s101] %v99

// kernel: tile.86
$region0: #{tile.86}
  #allocation0 [shape = 's32[1]{0}', space=sflag, size = 0x4, scoped, tag = 'scoped memory for tile.86']
  %s0 = inlined_call_operand.vmem [shape: f32[8], index: 0, kind: input, shape index: {}]
  %s1 = inlined_call_operand.vmem [shape: f32[16,8], index: 1, kind: output, shape index: {}]
  // Predicated region
  $region2: #{tile.86} parent=0 // pred_check
    _
  $region3: #{tile.86} parent=0 // pred_check_branch
    %3 = sbr.rel (0) target = $region5
  $region4: #{tile.86} parent=0 // pred_region
    _
  $region5: #{tile.86} parent=0 // pred_fallthru
    _
  %v4 = vld [vmem:[%s0] ss:$0 sm:$0xff]
  %5 = vst [vmem:[%s1] sm:$0xff] %v4
  %s6 = scalar_lea.vmem %s1, 8
  %7 = vst [vmem:[%s6] sm:$0xff] %v4

// kernel: tile.89
$region0: #{tile.89}
  %s0 = inlined_call_operand.vmem [shape: f32[16,8], index: 0, kind: input, shape index: {}]
  %s1 = inlined_call_operand.vmem [shape: f32[1,128], index: 1, kind: output, shape index: {}]
  $region1: #{tile.89} parent=0
    #allocation0 [shape = 'u8[4096]{0}', space=vmem, size = 0x1000, scoped, tag = 'scoped mem for output reshape']
    %v2 = vld [vmem:[%s0] sm:$0x1]
    %vm3 = vcmask 64512
    %4 = vst.msk [vmem:[#allocation0] sm:$0x1] %vm3, %v2
    %s5 = scalar_lea.vmem %s0, 15
    %v6 = vld [vmem:[%s5] sm:$0x1]
    %7 = vrot.lane.b32.xlu0 %v6, 120
    %v8 = vpop.permute.xlu0 %7
    %vm9 = vcmask 1048512
    %10 = vst.msk [vmem:[#allocation0] sm:$0x1] %vm9, %v8
    %s11 = scalar_lea.vmem %s0, 14
    %v12 = vld [vmem:[%s11] sm:$0x1]
    %13 = vrot.lane.b32.xlu0 %v12, 112
    %v14 = vpop.permute.xlu0 %13
    %vm15 = vcmask 982912
    %16 = vst.msk [vmem:[#allocation0] sm:$0x1] %vm15, %v14
    %s17 = scalar_lea.vmem %s0, 13
    %v18 = vld [vmem:[%s17] sm:$0x1]
    %19 = vrot.lane.b32.xlu0 %v18, 104
    %v20 = vpop.permute.xlu0 %19
    %vm21 = vcmask 917312
    %22 = vst.msk [vmem:[#allocation0] sm:$0x1] %vm21, %v20
    %s23 = scalar_lea.vmem %s0, 12
    %v24 = vld [vmem:[%s23] sm:$0x1]
    %25 = vrot.lane.b32.xlu0 %v24, 96
    %v26 = vpop.permute.xlu0 %25
    %vm27 = vcmask 851712
    %28 = vst.msk [vmem:[#allocation0] sm:$0x1] %vm27, %v26
    %s29 = scalar_lea.vmem %s0, 11
    %v30 = vld [vmem:[%s29] sm:$0x1]
    %31 = vrot.lane.b32.xlu0 %v30, 88
    %v32 = vpop.permute.xlu0 %31
    %vm33 = vcmask 786112
    %34 = vst.msk [vmem:[#allocation0] sm:$0x1] %vm33, %v32
    %s35 = scalar_lea.vmem %s0, 10
    %v36 = vld [vmem:[%s35] sm:$0x1]
    %37 = vrot.lane.b32.xlu0 %v36, 80
    %v38 = vpop.permute.xlu0 %37
    %vm39 = vcmask 720512
    %40 = vst.msk [vmem:[#allocation0] sm:$0x1] %vm39, %v38
    %s41 = scalar_lea.vmem %s0, 9
    %v42 = vld [vmem:[%s41] sm:$0x1]
    %43 = vrot.lane.b32.xlu0 %v42, 72
    %v44 = vpop.permute.xlu0 %43
    %vm45 = vcmask 654912
    %46 = vst.msk [vmem:[#allocation0] sm:$0x1] %vm45, %v44
    %s47 = scalar_lea.vmem %s0, 8
    %v48 = vld [vmem:[%s47] sm:$0x1]
    %49 = vrot.lane.b32.xlu0 %v48, 64
    %v50 = vpop.permute.xlu0 %49
    %vm51 = vcmask 589312
    %52 = vst.msk [vmem:[#allocation0] sm:$0x1] %vm51, %v50
    %s53 = scalar_lea.vmem %s0, 7
    %v54 = vld [vmem:[%s53] sm:$0x1]
    %55 = vrot.lane.b32.xlu0 %v54, 56
    %v56 = vpop.permute.xlu0 %55
    %vm57 = vcmask 523712
    %58 = vst.msk [vmem:[#allocation0] sm:$0x1] %vm57, %v56
    %s59 = scalar_lea.vmem %s0, 6
    %v60 = vld [vmem:[%s59] sm:$0x1]
    %61 = vrot.lane.b32.xlu0 %v60, 48
    %v62 = vpop.permute.xlu0 %61
    %vm63 = vcmask 458112
    %64 = vst.msk [vmem:[#allocation0] sm:$0x1] %vm63, %v62
    %s65 = scalar_lea.vmem %s0, 5
    %v66 = vld [vmem:[%s65] sm:$0x1]
    %67 = vrot.lane.b32.xlu0 %v66, 40
    %v68 = vpop.permute.xlu0 %67
    %vm69 = vcmask 392512
    %70 = vst.msk [vmem:[#allocation0] sm:$0x1] %vm69, %v68
    %s71 = scalar_lea.vmem %s0, 4
    %v72 = vld [vmem:[%s71] sm:$0x1]
    %73 = vrot.lane.b32.xlu0 %v72, 32
    %v74 = vpop.permute.xlu0 %73
    %vm75 = vcmask 326912
    %76 = vst.msk [vmem:[#allocation0] sm:$0x1] %vm75, %v74
    %s77 = scalar_lea.vmem %s0, 3
    %v78 = vld [vmem:[%s77] sm:$0x1]
    %79 = vrot.lane.b32.xlu0 %v78, 24
    %v80 = vpop.permute.xlu0 %79
    %vm81 = vcmask 261312
    %82 = vst.msk [vmem:[#allocation0] sm:$0x1] %vm81, %v80
    %s83 = scalar_lea.vmem %s0, 2
    %v84 = vld [vmem:[%s83] sm:$0x1]
    %85 = vrot.lane.b32.xlu0 %v84, 16
    %v86 = vpop.permute.xlu0 %85
    %vm87 = vcmask 195712
    %88 = vst.msk [vmem:[#allocation0] sm:$0x1] %vm87, %v86
    %s89 = scalar_lea.vmem %s0, 1
    %v90 = vld [vmem:[%s89] sm:$0x1]
    %91 = vrot.lane.b32.xlu0 %v90, 8
    %v92 = vpop.permute.xlu0 %91
    %vm93 = vcmask 130112
    %94 = vst.msk [vmem:[#allocation0] sm:$0x1] %vm93, %v92
    %s96 = sshll.u32 1, 1
    %s97 = ssub.s32 %s96, 1
    %v99 = vld [vmem:[#allocation0] sm:%s97]
    %s100 = sshll.u32 1, 1
    %s101 = ssub.s32 %s100, 1
    %102 = vst [vmem:[%s1] sm:%s101] %v99

// kernel: tile.101
$region0: #{tile.101}
  #allocation0 [shape = 's32[1]{0}', space=sflag, size = 0x4, scoped, tag = 'scoped memory for tile.101']
  %s0 = inlined_call_operand.vmem [shape: f32[16], index: 0, kind: input, shape index: {}]
  %s1 = inlined_call_operand.vmem [shape: f32[8,16], index: 1, kind: output, shape index: {}]
  // Predicated region
  $region2: #{tile.101} parent=0 // pred_check
    _
  $region3: #{tile.101} parent=0 // pred_check_branch
    %3 = sbr.rel (0) target = $region5
  $region4: #{tile.101} parent=0 // pred_region
    _
  $region5: #{tile.101} parent=0 // pred_fallthru
    _
  %v4 = vld [vmem:[%s0] ss:$0 sm:$0xff]
  %5 = vst [vmem:[%s1] sm:$0xff] %v4

// kernel: tile.104
$region0: #{tile.104}
  %s0 = inlined_call_operand.vmem [shape: f32[8,16], index: 0, kind: input, shape index: {}]
  %s1 = inlined_call_operand.vmem [shape: f32[1,128], index: 1, kind: output, shape index: {}]
  $region1: #{tile.104} parent=0
    #allocation0 [shape = 'u8[4096]{0}', space=vmem, size = 0x1000, scoped, tag = 'scoped mem for output reshape']
    %v2 = vld [vmem:[%s0] sm:$0x1]
    %vm3 = vcmask 130048
    %4 = vst.msk [vmem:[#allocation0] sm:$0x1] %vm3, %v2
    %s5 = scalar_lea.vmem %s0, 7
    %v6 = vld [vmem:[%s5] sm:$0x1]
    %7 = vrot.lane.b32.xlu0 %v6, 112
    %v8 = vpop.permute.xlu0 %7
    %vm9 = vcmask 1048448
    %10 = vst.msk [vmem:[#allocation0] sm:$0x1] %vm9, %v8
    %s11 = scalar_lea.vmem %s0, 6
    %v12 = vld [vmem:[%s11] sm:$0x1]
    %13 = vrot.lane.b32.xlu0 %v12, 96
    %v14 = vpop.permute.xlu0 %13
    %vm15 = vcmask 917248
    %16 = vst.msk [vmem:[#allocation0] sm:$0x1] %vm15, %v14
    %s17 = scalar_lea.vmem %s0, 5
    %v18 = vld [vmem:[%s17] sm:$0x1]
    %19 = vrot.lane.b32.xlu0 %v18, 80
    %v20 = vpop.permute.xlu0 %19
    %vm21 = vcmask 786048
    %22 = vst.msk [vmem:[#allocation0] sm:$0x1] %vm21, %v20
    %s23 = scalar_lea.vmem %s0, 4
    %v24 = vld [vmem:[%s23] sm:$0x1]
    %25 = vrot.lane.b32.xlu0 %v24, 64
    %v26 = vpop.permute.xlu0 %25
    %vm27 = vcmask 654848
    %28 = vst.msk [vmem:[#allocation0] sm:$0x1] %vm27, %v26
    %s29 = scalar_lea.vmem %s0, 3
    %v30 = vld [vmem:[%s29] sm:$0x1]
    %31 = vrot.lane.b32.xlu0 %v30, 48
    %v32 = vpop.permute.xlu0 %31
    %vm33 = vcmask 523648
    %34 = vst.msk [vmem:[#allocation0] sm:$0x1] %vm33, %v32
    %s35 = scalar_lea.vmem %s0, 2
    %v36 = vld [vmem:[%s35] sm:$0x1]
    %37 = vrot.lane.b32.xlu0 %v36, 32
    %v38 = vpop.permute.xlu0 %37
    %vm39 = vcmask 392448
    %40 = vst.msk [vmem:[#allocation0] sm:$0x1] %vm39, %v38
    %s41 = scalar_lea.vmem %s0, 1
    %v42 = vld [vmem:[%s41] sm:$0x1]
    %43 = vrot.lane.b32.xlu0 %v42, 16
    %v44 = vpop.permute.xlu0 %43
    %vm45 = vcmask 261248
    %46 = vst.msk [vmem:[#allocation0] sm:$0x1] %vm45, %v44
    %s48 = sshll.u32 1, 1
    %s49 = ssub.s32 %s48, 1
    %v51 = vld [vmem:[#allocation0] sm:%s49]
    %s52 = sshll.u32 1, 1
    %s53 = ssub.s32 %s52, 1
    %54 = vst [vmem:[%s1] sm:%s53] %v51

// kernel: tile.116
$region0: #{tile.116}
  #allocation0 [shape = 's32[1]{0}', space=sflag, size = 0x4, scoped, tag = 'scoped memory for tile.116']
  %s0 = inlined_call_operand.vmem [shape: f32[32], index: 0, kind: input, shape index: {}]
  %s1 = inlined_call_operand.vmem [shape: f32[4,32], index: 1, kind: output, shape index: {}]
  // Predicated region
  $region2: #{tile.116} parent=0 // pred_check
    _
  $region3: #{tile.116} parent=0 // pred_check_branch
    %3 = sbr.rel (0) target = $region5
  $region4: #{tile.116} parent=0 // pred_region
    _
  $region5: #{tile.116} parent=0 // pred_fallthru
    _
  %v4 = vld [vmem:[%s0] ss:$0 sm:$0xff]
  %5 = vst [vmem:[%s1] sm:$0xf] %v4

// kernel: tile.119
$region0: #{tile.119}
  %s0 = inlined_call_operand.vmem [shape: f32[4,32], index: 0, kind: input, shape index: {}]
  %s1 = inlined_call_operand.vmem [shape: f32[1,128], index: 1, kind: output, shape index: {}]
  $region1: #{tile.119} parent=0
    #allocation0 [shape = 'u8[4096]{0}', space=vmem, size = 0x1000, scoped, tag = 'scoped mem for output reshape']
    #allocation1 [shape = 'u8[4096]{0}', space=vmem, size = 0x1000, scoped, tag = 'scoped mem for input reshape']
    %s3 = sshll.u32 1, 4
    %s4 = ssub.s32 %s3, 1
    %v5 = vld [vmem:[%s0] sm:%s4]
    %6 = vst [vmem:[#allocation1] sm:%s4] %v5
    %v7 = vld [vmem:[#allocation1] sm:$0x1]
    %vm8 = vcmask 261120
    %9 = vst.msk [vmem:[#allocation0] sm:$0x1] %vm8, %v7
    %s10 = scalar_lea.vmem [#allocation1], 3
    %v11 = vld [vmem:[%s10] sm:$0x1]
    %12 = vrot.lane.b32.xlu0 %v11, 96
    %v13 = vpop.permute.xlu0 %12
    %vm14 = vcmask 1048320
    %15 = vst.msk [vmem:[#allocation0] sm:$0x1] %vm14, %v13
    %s16 = scalar_lea.vmem [#allocation1], 2
    %v17 = vld [vmem:[%s16] sm:$0x1]
    %18 = vrot.lane.b32.xlu0 %v17, 64
    %v19 = vpop.permute.xlu0 %18
    %vm20 = vcmask 785920
    %21 = vst.msk [vmem:[#allocation0] sm:$0x1] %vm20, %v19
    %s22 = scalar_lea.vmem [#allocation1], 1
    %v23 = vld [vmem:[%s22] sm:$0x1]
    %24 = vrot.lane.b32.xlu0 %v23, 32
    %v25 = vpop.permute.xlu0 %24
    %vm26 = vcmask 523520
    %27 = vst.msk [vmem:[#allocation0] sm:$0x1] %vm26, %v25
    %s29 = sshll.u32 1, 1
    %s30 = ssub.s32 %s29, 1
    %v32 = vld [vmem:[#allocation0] sm:%s30]
    %s33 = sshll.u32 1, 1
    %s34 = ssub.s32 %s33, 1
    %35 = vst [vmem:[%s1] sm:%s34] %v32

// kernel: cnn_ln_forward.1
$region0: #{cnn_ln_forward.1}
  #allocation0 [shape = 'u32[]', space=smem, size = 0x4, offset = 0x4, fixed_abs, tag = 'smem constant byte address 0x4 - core index']
  #allocation1 [shape = 'u32[144,128]{1,0:T(1,128)}', space=vmem, size = 0x12000, scoped, tag = 'internal scratch']
  #allocation2 [shape = 'f32[34,54]{1,0:T(8,128)}', space=vmem, size = 0x5000, scoped, tag = 'scratch operand']
  #allocation3 [shape = 'f32[34,72]{1,0:T(8,128)}', space=vmem, size = 0x5000, scoped, tag = 'scratch operand']
  #allocation4 [shape = 'f32[18,80]{1,0:T(8,128)}', space=vmem, size = 0x3000, scoped, tag = 'scratch operand']
  #allocation5 [shape = 'f32[10,96]{1,0:T(8,128)}', space=vmem, size = 0x2000, scoped, tag = 'scratch operand']
  #allocation6 [shape = 'f32[32,128]{1,0:T(8,128)}', space=vmem, size = 0x4000, scoped, tag = 'scratch operand']
  #allocation7 [shape = 'f32[16,128]{1,0:T(8,128)}', space=vmem, size = 0x2000, scoped, tag = 'scratch operand']
  %s0 = inlined_call_operand.vmem [shape: f32[32,48], index: 0, kind: input, shape index: {}]
  %s1 = inlined_call_operand.vmem [shape: f32[9,48,64], index: 1, kind: input, shape index: {}]
  %s2 = inlined_call_operand.vmem [shape: f32[9,64,128], index: 2, kind: input, shape index: {}]
  %s3 = inlined_call_operand.vmem [shape: f32[9,64,128], index: 3, kind: input, shape index: {}]
  %s4 = inlined_call_operand.vmem [shape: f32[9,64,128], index: 4, kind: input, shape index: {}]
  %s5 = inlined_call_operand.vmem [shape: f32[3,64], index: 5, kind: input, shape index: {}]
  %s6 = inlined_call_operand.vmem [shape: f32[3,128], index: 6, kind: input, shape index: {}]
  %s7 = inlined_call_operand.vmem [shape: f32[3,128], index: 7, kind: input, shape index: {}]
  %s8 = inlined_call_operand.vmem [shape: f32[3,128], index: 8, kind: input, shape index: {}]
  %s9 = inlined_call_operand.vmem [shape: f32[32,10], index: 9, kind: input, shape index: {}]
  %s10 = inlined_call_operand.vmem [shape: f32[1,10], index: 10, kind: input, shape index: {}]
  %s11 = inlined_call_operand.hbm [shape: f32[2,10], index: 11, kind: output, shape index: {}]
  %s12 = sld [smem:[#allocation0]]
  $region54: #{cnn_ln_forward.1} parent=0
    _
  %s14 = ssub.s32 1, %s12
  %s15 = scalar_select 0, %s14, %s12
  $region1: #{cnn_ln_forward.1} parent=0
    #allocation8 [shape = 'u8[1024]{0}', space=vmem, size = 0x400, scoped, tag = 'output window, operand 0, single buffered']
    #allocation9 [shape = 's32[1]{0}', space=sflag, size = 0x4, scoped, tag = 'scoped memory for cnn_ln_forward.1']
    %16 = vsyncpa [#allocation9], 0
    // Predicated region
    $region2: #{cnn_ln_forward.1} parent=1 // pred_check
      _
    $region3: #{cnn_ln_forward.1} parent=1 // pred_check_branch
      %18 = sbr.rel (0) target = $region5
    $region4: #{cnn_ln_forward.1} parent=1 // pred_region
      _
    $region5: #{cnn_ln_forward.1} parent=1 // pred_fallthru
      _
    // Predicated region
    $region6: #{cnn_ln_forward.1} parent=1 // pred_check
      _
    $region7: #{cnn_ln_forward.1} parent=1 // pred_check_branch
      %20 = sbr.rel (0) target = $region9
    $region8: #{cnn_ln_forward.1} parent=1 // pred_region
      _
    $region9: #{cnn_ln_forward.1} parent=1 // pred_fallthru
      _
    // Predicated region
    $region10: #{cnn_ln_forward.1} parent=1 // pred_check
      _
    $region11: #{cnn_ln_forward.1} parent=1 // pred_check_branch
      %22 = sbr.rel (0) target = $region13
    $region12: #{cnn_ln_forward.1} parent=1 // pred_region
      _
    $region13: #{cnn_ln_forward.1} parent=1 // pred_fallthru
      _
    // Predicated region
    $region14: #{cnn_ln_forward.1} parent=1 // pred_check
      _
    $region15: #{cnn_ln_forward.1} parent=1 // pred_check_branch
      %24 = sbr.rel (0) target = $region17
    $region16: #{cnn_ln_forward.1} parent=1 // pred_region
      _
    $region17: #{cnn_ln_forward.1} parent=1 // pred_fallthru
      _
    // Predicated region
    $region18: #{cnn_ln_forward.1} parent=1 // pred_check
      _
    $region19: #{cnn_ln_forward.1} parent=1 // pred_check_branch
      %26 = sbr.rel (0) target = $region21
    $region20: #{cnn_ln_forward.1} parent=1 // pred_region
      _
    $region21: #{cnn_ln_forward.1} parent=1 // pred_fallthru
      _
    // Predicated region
    $region22: #{cnn_ln_forward.1} parent=1 // pred_check
      _
    $region23: #{cnn_ln_forward.1} parent=1 // pred_check_branch
      %28 = sbr.rel (0) target = $region25
    $region24: #{cnn_ln_forward.1} parent=1 // pred_region
      _
    $region25: #{cnn_ln_forward.1} parent=1 // pred_fallthru
      _
    // Predicated region
    $region26: #{cnn_ln_forward.1} parent=1 // pred_check
      _
    $region27: #{cnn_ln_forward.1} parent=1 // pred_check_branch
      %30 = sbr.rel (0) target = $region29
    $region28: #{cnn_ln_forward.1} parent=1 // pred_region
      _
    $region29: #{cnn_ln_forward.1} parent=1 // pred_fallthru
      _
    // Predicated region
    $region30: #{cnn_ln_forward.1} parent=1 // pred_check
      _
    $region31: #{cnn_ln_forward.1} parent=1 // pred_check_branch
      %32 = sbr.rel (0) target = $region33
    $region32: #{cnn_ln_forward.1} parent=1 // pred_region
      _
    $region33: #{cnn_ln_forward.1} parent=1 // pred_fallthru
      _
    // Predicated region
    $region34: #{cnn_ln_forward.1} parent=1 // pred_check
      _
    $region35: #{cnn_ln_forward.1} parent=1 // pred_check_branch
      %34 = sbr.rel (0) target = $region37
    $region36: #{cnn_ln_forward.1} parent=1 // pred_region
      _
    $region37: #{cnn_ln_forward.1} parent=1 // pred_fallthru
      _
    // Predicated region
    $region38: #{cnn_ln_forward.1} parent=1 // pred_check
      _
    $region39: #{cnn_ln_forward.1} parent=1 // pred_check_branch
      %36 = sbr.rel (0) target = $region41
    $region40: #{cnn_ln_forward.1} parent=1 // pred_region
      _
    $region41: #{cnn_ln_forward.1} parent=1 // pred_fallthru
      _
    // Predicated region
    $region42: #{cnn_ln_forward.1} parent=1 // pred_check
      _
    $region43: #{cnn_ln_forward.1} parent=1 // pred_check_branch
      %38 = sbr.rel (0) target = $region45
    $region44: #{cnn_ln_forward.1} parent=1 // pred_region
      _
    $region45: #{cnn_ln_forward.1} parent=1 // pred_fallthru
      _
    %vm39 = vcmask 441344
    %40 = vst.msk [vmem:[#allocation2] sm:$0xff] %vm39, 0.0
    %41 = vst.msk [vmem:[#allocation2 + $0x8] sm:$0xff] %vm39, 0.0
    %42 = vst.msk [vmem:[#allocation2 + $0x10] sm:$0xff] %vm39, 0.0
    %43 = vst.msk [vmem:[#allocation2 + $0x18] sm:$0xff] %vm39, 0.0
    %vm44 = vcmask 435200
    %45 = vst.msk [vmem:[#allocation2 + $0x20] sm:$0x3] %vm44, 0.0
    %vm46 = vcmask 588800
    %47 = vst.msk [vmem:[#allocation3] sm:$0xff] %vm46, 0.0
    %48 = vst.msk [vmem:[#allocation3 + $0x8] sm:$0xff] %vm46, 0.0
    %49 = vst.msk [vmem:[#allocation3 + $0x10] sm:$0xff] %vm46, 0.0
    %50 = vst.msk [vmem:[#allocation3 + $0x18] sm:$0xff] %vm46, 0.0
    %vm51 = vcmask 582656
    %52 = vst.msk [vmem:[#allocation3 + $0x20] sm:$0x3] %vm51, 0.0
    %vm53 = vcmask 654336
    %54 = vst.msk [vmem:[#allocation4] sm:$0xff] %vm53, 0.0
    %55 = vst.msk [vmem:[#allocation4 + $0x8] sm:$0xff] %vm53, 0.0
    %vm56 = vcmask 648192
    %57 = vst.msk [vmem:[#allocation4 + $0x10] sm:$0x3] %vm56, 0.0
    %vm58 = vcmask 785408
    %59 = vst.msk [vmem:[#allocation5] sm:$0xff] %vm58, 0.0
    %vm60 = vcmask 779264
    %61 = vst.msk [vmem:[#allocation5 + $0x8] sm:$0x3] %vm60, 0.0
    %v62 = vld [vmem:[%s0] sm:$0xff]
    %v63 = vld [vmem:[%s0 + $0x8] sm:$0xff]
    %v64 = vld [vmem:[%s0 + $0x10] sm:$0xff]
    %v65 = vld [vmem:[%s0 + $0x18] sm:$0xff]
    %70 = vrot.lane.b32.xlu0 %v62, 3
    %v71 = vpop.permute.xlu0 %70
    %72 = vrot.lane.b32.xlu0 %v63, 3
    %v73 = vpop.permute.xlu0 %72
    %74 = vrot.lane.b32.xlu0 %v64, 3
    %v75 = vpop.permute.xlu0 %74
    %76 = vrot.lane.b32.xlu0 %v65, 3
    %v77 = vpop.permute.xlu0 %76
    %vm82 = vcmask 416792
    %83 = vst.msk [vmem:[#allocation2 + $0x1] sm:$0xff] %vm82, %v71
    %84 = vst.msk [vmem:[#allocation2 + $0x9] sm:$0xff] %vm82, %v73
    %85 = vst.msk [vmem:[#allocation2 + $0x11] sm:$0xff] %vm82, %v75
    %86 = vst.msk [vmem:[#allocation2 + $0x19] sm:$0xff] %vm82, %v77
    %v87 = vlaneseq
    %v88 = vshrl.u32 %v87, 7
    %v89 = vadd.s32 %v88, 8
    %v90 = vadd.s32 %v88, 16
    %v91 = vadd.s32 %v88, 24
    %vm92 = vcmp.lt.s32.totalorder %v88, 0
    %v93 = vsub.s32 0, %v88
    %v94 = vsel %vm92, %v93, %v88
    %v95 = vshrl.u32 %v94, 4
    %v96 = vand.u32 %v94, 15
    %v97 = vsub.s32 0, %v96
    %v98 = vsel %vm92, %v97, %v96
    %vm99 = vcmp.lt.s32.totalorder %v89, 0
    %v100 = vsub.s32 0, %v89
    %v101 = vsel %vm99, %v100, %v89
    %v102 = vshrl.u32 %v101, 4
    %v103 = vand.u32 %v101, 15
    %v104 = vsub.s32 0, %v103
    %v105 = vsel %vm99, %v104, %v103
    %vm106 = vcmp.lt.s32.totalorder %v90, 0
    %v107 = vsub.s32 0, %v90
    %v108 = vsel %vm106, %v107, %v90
    %v109 = vshrl.u32 %v108, 4
    %v110 = vand.u32 %v108, 15
    %v111 = vsub.s32 0, %v110
    %v112 = vsel %vm106, %v111, %v110
    %vm113 = vcmp.lt.s32.totalorder %v91, 0
    %v114 = vsub.s32 0, %v91
    %v115 = vsel %vm113, %v114, %v91
    %v116 = vshrl.u32 %v115, 4
    %v117 = vand.u32 %v115, 15
    %v118 = vsub.s32 0, %v117
    %v119 = vsel %vm113, %v118, %v117
    %vm120 = vcmp.ne.s32.totalorder %v98, 0
    %vm121 = vcmp.ne.s32.totalorder %v105, 0
    %vm122 = vcmp.ne.s32.totalorder %v112, 0
    %vm123 = vcmp.ne.s32.totalorder %v119, 0
    %vm124 = vcmp.lt.s32.totalorder %v98, 0
    %vm125 = vcmp.lt.s32.totalorder %v105, 0
    %vm126 = vcmp.lt.s32.totalorder %v112, 0
    %vm127 = vcmp.lt.s32.totalorder %v119, 0
    %vm128 = vmand %vm124, %vm120
    %vm129 = vmand %vm125, %vm121
    %vm130 = vmand %vm126, %vm122
    %vm131 = vmand %vm127, %vm123
    %v132 = vadd.s32 %v98, 16
    %v133 = vadd.s32 %v105, 16
    %v134 = vadd.s32 %v112, 16
    %v135 = vadd.s32 %v119, 16
    %v136 = vsel %vm128, %v132, %v98
    %v137 = vsel %vm129, %v133, %v105
    %v138 = vsel %vm130, %v134, %v112
    %v139 = vsel %vm131, %v135, %v119
    %vm140 = vcmp.eq.s32.totalorder %v136, 0
    %vm141 = vcmp.eq.s32.totalorder %v137, 0
    %vm142 = vcmp.eq.s32.totalorder %v138, 0
    %vm143 = vcmp.eq.s32.totalorder %v139, 0
    %vm144 = vcmp.eq.s32.totalorder %v136, 15
    %vm145 = vcmp.eq.s32.totalorder %v137, 15
    %vm146 = vcmp.eq.s32.totalorder %v138, 15
    %vm147 = vcmp.eq.s32.totalorder %v139, 15
    %v148 = vld [vmem:[#allocation2] sm:$0xff]
    %v149 = vld [vmem:[#allocation2 + $0x8] sm:$0xff]
    %v150 = vld [vmem:[#allocation2 + $0x10] sm:$0xff]
    %v151 = vld [vmem:[#allocation2 + $0x18] sm:$0xff]
    %v152 = vsel %vm140, 0.0, %v148
    %v153 = vsel %vm141, 0.0, %v149
    %v154 = vsel %vm142, 0.0, %v150
    %v155 = vsel %vm143, 0.0, %v151
    %v156 = vld [vmem:[%s1] sm:$0xff]
    %v157 = vld [vmem:[%s1 + $0x8] sm:$0xff]
    %v158 = vld [vmem:[%s1 + $0x10] sm:$0xff]
    %v159 = vld [vmem:[%s1 + $0x18] sm:$0xff]
    %v160 = vld [vmem:[%s1 + $0x20] sm:$0xff]
    %v161 = vld [vmem:[%s1 + $0x28] sm:$0xff]
    %s162 = scalar_lea.vmem %s1, 48
    %v163 = vld [vmem:[%s162] sm:$0xff]
    %v164 = vld [vmem:[%s162 + $0x8] sm:$0xff]
    %v165 = vld [vmem:[%s162 + $0x10] sm:$0xff]
    %v166 = vld [vmem:[%s162 + $0x18] sm:$0xff]
    %v167 = vld [vmem:[%s162 + $0x20] sm:$0xff]
    %v168 = vld [vmem:[%s162 + $0x28] sm:$0xff]
    %173 = vrot.lane.b32.xlu0 %v152, 125
    %v174 = vpop.permute.xlu0 %173
    %175 = vrot.lane.b32.xlu0 %v153, 125
    %v176 = vpop.permute.xlu0 %175
    %177 = vrot.lane.b32.xlu0 %v154, 125
    %v178 = vpop.permute.xlu0 %177
    %179 = vrot.lane.b32.xlu0 %v155, 125
    %v180 = vpop.permute.xlu0 %179
    %vm181 = vcmask 392192
    %v182 = vsel %vm181, %v174, 0
    %v184 = vsel %vm181, %v176, 0
    %v186 = vsel %vm181, %v178, 0
    %v188 = vsel %vm181, %v180, 0
    %190 = vmatprep.subr.mxu0 0.0
    %191 = vmatpush1.msra.mxu0 0.0
    %192 = vmatprep.subr.mxu0 0.0
    %193 = vmatpush1.msra.mxu0 0.0
    %194 = vmatprep.subr.mxu0 0.0
    %195 = vmatpush1.msra.mxu0 0.0
    %196 = vmatprep.subr.mxu0 0.0
    %197 = vmatpush1.msra.mxu0 0.0
    %198 = vmatprep.subr.mxu0 0.0
    %199 = vmatpush1.msra.mxu0 0.0
    %200 = vmatprep.subr.mxu0 0.0
    %201 = vmatpush1.msra.mxu0 0.0
    %202 = vmatprep.subr.mxu0 0.0
    %203 = vmatpush1.msra.mxu0 0.0
    %204 = vmatprep.subr.mxu0 0.0
    %205 = vmatpush1.msra.mxu0 0.0
    %206 = vmatprep.subr.mxu0 0.0
    %207 = vmatpush1.msra.mxu0 0.0
    %208 = vmatprep.subr.mxu0 0.0
    %209 = vmatpush1.msra.mxu0 0.0
    %210 = vmatprep.subr.mxu0 0.0
    %211 = vmatpush1.msra.mxu0 %v168
    %212 = vmatprep.subr.mxu0 0.0
    %213 = vmatpush1.msra.mxu0 %v167
    %214 = vmatprep.subr.mxu0 0.0
    %215 = vmatpush1.msra.mxu0 %v166
    %216 = vmatprep.subr.mxu0 0.0
    %217 = vmatpush1.msra.mxu0 %v165
    %218 = vmatprep.subr.mxu0 0.0
    %219 = vmatpush1.msra.mxu0 %v164
    %220 = vmatprep.subr.mxu0 0.0
    %221 = vmatpush1.msra.mxu0 %v163
    %222 = vmatprep.subr.mxu0 0.0
    %223 = vmatpush2.msra.mxu0 0.0
    %224 = vmatprep.subr.mxu0 0.0
    %225 = vmatpush2.msra.mxu0 0.0
    %226 = vmatprep.subr.mxu0 0.0
    %227 = vmatpush2.msra.mxu0 0.0
    %228 = vmatprep.subr.mxu0 0.0
    %229 = vmatpush2.msra.mxu0 0.0
    %230 = vmatprep.subr.mxu0 0.0
    %231 = vmatpush2.msra.mxu0 0.0
    %232 = vmatprep.subr.mxu0 0.0
    %233 = vmatpush2.msra.mxu0 0.0
    %234 = vmatprep.subr.mxu0 0.0
    %235 = vmatpush2.msra.mxu0 0.0
    %236 = vmatprep.subr.mxu0 0.0
    %237 = vmatpush2.msra.mxu0 0.0
    %238 = vmatprep.subr.mxu0 0.0
    %239 = vmatpush2.msra.mxu0 0.0
    %240 = vmatprep.subr.mxu0 0.0
    %241 = vmatpush2.msra.mxu0 0.0
    %242 = vmatprep.subr.mxu0 0.0
    %243 = vmatpush2.msra.mxu0 0.0
    %244 = vmatprep.subr.mxu0 0.0
    %245 = vmatpush2.msra.mxu0 0.0
    %246 = vmatprep.subr.mxu0 0.0
    %247 = vmatpush2.msra.mxu0 0.0
    %248 = vmatprep.subr.mxu0 0.0
    %249 = vmatpush2.msra.mxu0 0.0
    %250 = vmatprep.subr.mxu0 0.0
    %251 = vmatpush2.msra.mxu0 0.0
    %252 = vmatprep.subr.mxu0 0.0
    %253 = vmatpush2.msra.mxu0 0.0
    %254 = vmatprep.mubr.f32.mxu0 0.0
    %255 = vmatmul.mubr.f32.gmra.mxu0 %v182
    %v256 = vpop.f32.mrf.mxu0
    %v257 = vadd.f32 0.0, %v256
    %v258 = vpop.f32.mrf.mxu0
    %259 = vmatprep.mubr.f32.mxu0 0.0
    %260 = vmatmul.mubr.f32.gmra.mxu0 %v184
    %v261 = vpop.f32.mrf.mxu0
    %v262 = vadd.f32 0.0, %v261
    %v263 = vpop.f32.mrf.mxu0
    %264 = vmatprep.mubr.f32.mxu0 0.0
    %265 = vmatmul.mubr.f32.gmra.mxu0 %v186
    %v266 = vpop.f32.mrf.mxu0
    %v267 = vadd.f32 0.0, %v266
    %v268 = vpop.f32.mrf.mxu0
    %269 = vmatprep.mubr.f32.mxu0 0.0
    %270 = vmatmul.mubr.f32.gmra.mxu0 %v188
    %v271 = vpop.f32.mrf.mxu0
    %v272 = vadd.f32 0.0, %v271
    %v273 = vpop.f32.mrf.mxu0
    %274 = vdwg.mxu0
    %v275 = vsel %vm181, %v152, 0
    %v277 = vsel %vm181, %v153, 0
    %v279 = vsel %vm181, %v154, 0
    %v281 = vsel %vm181, %v155, 0
    %283 = vmatprep.subr.mxu0 0.0
    %284 = vmatpush1.msra.mxu0 0.0
    %285 = vmatprep.subr.mxu0 0.0
    %286 = vmatpush1.msra.mxu0 0.0
    %287 = vmatprep.subr.mxu0 0.0
    %288 = vmatpush1.msra.mxu0 0.0
    %289 = vmatprep.subr.mxu0 0.0
    %290 = vmatpush1.msra.mxu0 0.0
    %291 = vmatprep.subr.mxu0 0.0
    %292 = vmatpush1.msra.mxu0 0.0
    %293 = vmatprep.subr.mxu0 0.0
    %294 = vmatpush1.msra.mxu0 0.0
    %295 = vmatprep.subr.mxu0 0.0
    %296 = vmatpush1.msra.mxu0 0.0
    %297 = vmatprep.subr.mxu0 0.0
    %298 = vmatpush1.msra.mxu0 0.0
    %299 = vmatprep.subr.mxu0 0.0
    %300 = vmatpush1.msra.mxu0 0.0
    %301 = vmatprep.subr.mxu0 0.0
    %302 = vmatpush1.msra.mxu0 0.0
    %303 = vmatprep.subr.mxu0 0.0
    %304 = vmatpush1.msra.mxu0 %v161
    %305 = vmatprep.subr.mxu0 0.0
    %306 = vmatpush1.msra.mxu0 %v160
    %307 = vmatprep.subr.mxu0 0.0
    %308 = vmatpush1.msra.mxu0 %v159
    %309 = vmatprep.subr.mxu0 0.0
    %310 = vmatpush1.msra.mxu0 %v158
    %311 = vmatprep.subr.mxu0 0.0
    %312 = vmatpush1.msra.mxu0 %v157
    %313 = vmatprep.subr.mxu0 0.0
    %314 = vmatpush1.msra.mxu0 %v156
    %315 = vmatprep.subr.mxu0 0.0
    %316 = vmatpush2.msra.mxu0 0.0
    %317 = vmatprep.subr.mxu0 0.0
    %318 = vmatpush2.msra.mxu0 0.0
    %319 = vmatprep.subr.mxu0 0.0
    %320 = vmatpush2.msra.mxu0 0.0
    %321 = vmatprep.subr.mxu0 0.0
    %322 = vmatpush2.msra.mxu0 0.0
    %323 = vmatprep.subr.mxu0 0.0
    %324 = vmatpush2.msra.mxu0 0.0
    %325 = vmatprep.subr.mxu0 0.0
    %326 = vmatpush2.msra.mxu0 0.0
    %327 = vmatprep.subr.mxu0 0.0
    %328 = vmatpush2.msra.mxu0 0.0
    %329 = vmatprep.subr.mxu0 0.0
    %330 = vmatpush2.msra.mxu0 0.0
    %331 = vmatprep.subr.mxu0 0.0
    %332 = vmatpush2.msra.mxu0 0.0
    %333 = vmatprep.subr.mxu0 0.0
    %334 = vmatpush2.msra.mxu0 0.0
    %335 = vmatprep.subr.mxu0 0.0
    %336 = vmatpush2.msra.mxu0 0.0
    %337 = vmatprep.subr.mxu0 0.0
    %338 = vmatpush2.msra.mxu0 0.0
    %339 = vmatprep.subr.mxu0 0.0
    %340 = vmatpush2.msra.mxu0 0.0
    %341 = vmatprep.subr.mxu0 0.0
    %342 = vmatpush2.msra.mxu0 0.0
    %343 = vmatprep.subr.mxu0 0.0
    %344 = vmatpush2.msra.mxu0 0.0
    %345 = vmatprep.subr.mxu0 0.0
    %346 = vmatpush2.msra.mxu0 0.0
    %347 = vmatprep.mubr.f32.mxu0 0.0
    %348 = vmatmul.mubr.f32.gmra.mxu0 %v275
    %v349 = vpop.f32.mrf.mxu0
    %v350 = vadd.f32 %v257, %v349
    %v351 = vpop.f32.mrf.mxu0
    %352 = vmatprep.mubr.f32.mxu0 0.0
    %353 = vmatmul.mubr.f32.gmra.mxu0 %v277
    %v354 = vpop.f32.mrf.mxu0
    %v355 = vadd.f32 %v262, %v354
    %v356 = vpop.f32.mrf.mxu0
    %357 = vmatprep.mubr.f32.mxu0 0.0
    %358 = vmatmul.mubr.f32.gmra.mxu0 %v279
    %v359 = vpop.f32.mrf.mxu0
    %v360 = vadd.f32 %v267, %v359
    %v361 = vpop.f32.mrf.mxu0
    %362 = vmatprep.mubr.f32.mxu0 0.0
    %363 = vmatmul.mubr.f32.gmra.mxu0 %v281
    %v364 = vpop.f32.mrf.mxu0
    %v365 = vadd.f32 %v272, %v364
    %v366 = vpop.f32.mrf.mxu0
    %367 = vdwg.mxu0
    %s368 = scalar_lea.vmem %s1, 96
    %v369 = vld [vmem:[%s368] sm:$0xff]
    %v370 = vld [vmem:[%s368 + $0x8] sm:$0xff]
    %v371 = vld [vmem:[%s368 + $0x10] sm:$0xff]
    %v372 = vld [vmem:[%s368 + $0x18] sm:$0xff]
    %v373 = vld [vmem:[%s368 + $0x20] sm:$0xff]
    %v374 = vld [vmem:[%s368 + $0x28] sm:$0xff]
    %375 = vrot.lane.b32.xlu0 %v152, 122
    %v376 = vpop.permute.xlu0 %375
    %377 = vrot.lane.b32.xlu0 %v153, 122
    %v378 = vpop.permute.xlu0 %377
    %379 = vrot.lane.b32.xlu0 %v154, 122
    %v380 = vpop.permute.xlu0 %379
    %381 = vrot.lane.b32.xlu0 %v155, 122
    %v382 = vpop.permute.xlu0 %381
    %v383 = vsel %vm181, %v376, 0
    %v385 = vsel %vm181, %v378, 0
    %v387 = vsel %vm181, %v380, 0
    %v389 = vsel %vm181, %v382, 0
    %391 = vmatprep.subr.mxu0 0.0
    %392 = vmatpush1.msra.mxu0 0.0
    %393 = vmatprep.subr.mxu0 0.0
    %394 = vmatpush1.msra.mxu0 0.0
    %395 = vmatprep.subr.mxu0 0.0
    %396 = vmatpush1.msra.mxu0 0.0
    %397 = vmatprep.subr.mxu0 0.0
    %398 = vmatpush1.msra.mxu0 0.0
    %399 = vmatprep.subr.mxu0 0.0
    %400 = vmatpush1.msra.mxu0 0.0
    %401 = vmatprep.subr.mxu0 0.0
    %402 = vmatpush1.msra.mxu0 0.0
    %403 = vmatprep.subr.mxu0 0.0
    %404 = vmatpush1.msra.mxu0 0.0
    %405 = vmatprep.subr.mxu0 0.0
    %406 = vmatpush1.msra.mxu0 0.0
    %407 = vmatprep.subr.mxu0 0.0
    %408 = vmatpush1.msra.mxu0 0.0
    %409 = vmatprep.subr.mxu0 0.0
    %410 = vmatpush1.msra.mxu0 0.0
    %411 = vmatprep.subr.mxu0 0.0
    %412 = vmatpush1.msra.mxu0 %v374
    %413 = vmatprep.subr.mxu0 0.0
    %414 = vmatpush1.msra.mxu0 %v373
    %415 = vmatprep.subr.mxu0 0.0
    %416 = vmatpush1.msra.mxu0 %v372
    %417 = vmatprep.subr.mxu0 0.0
    %418 = vmatpush1.msra.mxu0 %v371
    %419 = vmatprep.subr.mxu0 0.0
    %420 = vmatpush1.msra.mxu0 %v370
    %421 = vmatprep.subr.mxu0 0.0
    %422 = vmatpush1.msra.mxu0 %v369
    %423 = vmatprep.subr.mxu0 0.0
    %424 = vmatpush2.msra.mxu0 0.0
    %425 = vmatprep.subr.mxu0 0.0
    %426 = vmatpush2.msra.mxu0 0.0
    %427 = vmatprep.subr.mxu0 0.0
    %428 = vmatpush2.msra.mxu0 0.0
    %429 = vmatprep.subr.mxu0 0.0
    %430 = vmatpush2.msra.mxu0 0.0
    %431 = vmatprep.subr.mxu0 0.0
    %432 = vmatpush2.msra.mxu0 0.0
    %433 = vmatprep.subr.mxu0 0.0
    %434 = vmatpush2.msra.mxu0 0.0
    %435 = vmatprep.subr.mxu0 0.0
    %436 = vmatpush2.msra.mxu0 0.0
    %437 = vmatprep.subr.mxu0 0.0
    %438 = vmatpush2.msra.mxu0 0.0
    %439 = vmatprep.subr.mxu0 0.0
    %440 = vmatpush2.msra.mxu0 0.0
    %441 = vmatprep.subr.mxu0 0.0
    %442 = vmatpush2.msra.mxu0 0.0
    %443 = vmatprep.subr.mxu0 0.0
    %444 = vmatpush2.msra.mxu0 0.0
    %445 = vmatprep.subr.mxu0 0.0
    %446 = vmatpush2.msra.mxu0 0.0
    %447 = vmatprep.subr.mxu0 0.0
    %448 = vmatpush2.msra.mxu0 0.0
    %449 = vmatprep.subr.mxu0 0.0
    %450 = vmatpush2.msra.mxu0 0.0
    %451 = vmatprep.subr.mxu0 0.0
    %452 = vmatpush2.msra.mxu0 0.0
    %453 = vmatprep.subr.mxu0 0.0
    %454 = vmatpush2.msra.mxu0 0.0
    %455 = vmatprep.mubr.f32.mxu0 0.0
    %456 = vmatmul.mubr.f32.gmra.mxu0 %v383
    %v457 = vpop.f32.mrf.mxu0
    %v458 = vadd.f32 0.0, %v457
    %v459 = vpop.f32.mrf.mxu0
    %460 = vmatprep.mubr.f32.mxu0 0.0
    %461 = vmatmul.mubr.f32.gmra.mxu0 %v385
    %v462 = vpop.f32.mrf.mxu0
    %v463 = vadd.f32 0.0, %v462
    %v464 = vpop.f32.mrf.mxu0
    %465 = vmatprep.mubr.f32.mxu0 0.0
    %466 = vmatmul.mubr.f32.gmra.mxu0 %v387
    %v467 = vpop.f32.mrf.mxu0
    %v468 = vadd.f32 0.0, %v467
    %v469 = vpop.f32.mrf.mxu0
    %470 = vmatprep.mubr.f32.mxu0 0.0
    %471 = vmatmul.mubr.f32.gmra.mxu0 %v389
    %v472 = vpop.f32.mrf.mxu0
    %v473 = vadd.f32 0.0, %v472
    %v474 = vpop.f32.mrf.mxu0
    %475 = vdwg.mxu0
    %v476 = vadd.f32 %v350, %v458
    %v477 = vadd.f32 %v355, %v463
    %v478 = vadd.f32 %v360, %v468
    %v479 = vadd.f32 %v365, %v473
    %v480 = vld [vmem:[#allocation2 + $0x1] sm:$0xff]
    %v481 = vld [vmem:[#allocation2 + $0x9] sm:$0xff]
    %v482 = vld [vmem:[#allocation2 + $0x11] sm:$0xff]
    %v483 = vld [vmem:[#allocation2 + $0x19] sm:$0xff]
    %s484 = scalar_lea.vmem %s1, 144
    %v485 = vld [vmem:[%s484] sm:$0xff]
    %v486 = vld [vmem:[%s484 + $0x8] sm:$0xff]
    %v487 = vld [vmem:[%s484 + $0x10] sm:$0xff]
    %v488 = vld [vmem:[%s484 + $0x18] sm:$0xff]
    %v489 = vld [vmem:[%s484 + $0x20] sm:$0xff]
    %v490 = vld [vmem:[%s484 + $0x28] sm:$0xff]
    %v492 = vsel %vm181, %v480, 0
    %v495 = vsel %vm181, %v481, 0
    %v498 = vsel %vm181, %v482, 0
    %v501 = vsel %vm181, %v483, 0
    %503 = vmatprep.subr.mxu0 0.0
    %504 = vmatpush1.msra.mxu0 0.0
    %505 = vmatprep.subr.mxu0 0.0
    %506 = vmatpush1.msra.mxu0 0.0
    %507 = vmatprep.subr.mxu0 0.0
    %508 = vmatpush1.msra.mxu0 0.0
    %509 = vmatprep.subr.mxu0 0.0
    %510 = vmatpush1.msra.mxu0 0.0
    %511 = vmatprep.subr.mxu0 0.0
    %512 = vmatpush1.msra.mxu0 0.0
    %513 = vmatprep.subr.mxu0 0.0
    %514 = vmatpush1.msra.mxu0 0.0
    %515 = vmatprep.subr.mxu0 0.0
    %516 = vmatpush1.msra.mxu0 0.0
    %517 = vmatprep.subr.mxu0 0.0
    %518 = vmatpush1.msra.mxu0 0.0
    %519 = vmatprep.subr.mxu0 0.0
    %520 = vmatpush1.msra.mxu0 0.0
    %521 = vmatprep.subr.mxu0 0.0
    %522 = vmatpush1.msra.mxu0 0.0
    %523 = vmatprep.subr.mxu0 0.0
    %524 = vmatpush1.msra.mxu0 %v490
    %525 = vmatprep.subr.mxu0 0.0
    %526 = vmatpush1.msra.mxu0 %v489
    %527 = vmatprep.subr.mxu0 0.0
    %528 = vmatpush1.msra.mxu0 %v488
    %529 = vmatprep.subr.mxu0 0.0
    %530 = vmatpush1.msra.mxu0 %v487
    %531 = vmatprep.subr.mxu0 0.0
    %532 = vmatpush1.msra.mxu0 %v486
    %533 = vmatprep.subr.mxu0 0.0
    %534 = vmatpush1.msra.mxu0 %v485
    %535 = vmatprep.subr.mxu0 0.0
    %536 = vmatpush2.msra.mxu0 0.0
    %537 = vmatprep.subr.mxu0 0.0
    %538 = vmatpush2.msra.mxu0 0.0
    %539 = vmatprep.subr.mxu0 0.0
    %540 = vmatpush2.msra.mxu0 0.0
    %541 = vmatprep.subr.mxu0 0.0
    %542 = vmatpush2.msra.mxu0 0.0
    %543 = vmatprep.subr.mxu0 0.0
    %544 = vmatpush2.msra.mxu0 0.0
    %545 = vmatprep.subr.mxu0 0.0
    %546 = vmatpush2.msra.mxu0 0.0
    %547 = vmatprep.subr.mxu0 0.0
    %548 = vmatpush2.msra.mxu0 0.0
    %549 = vmatprep.subr.mxu0 0.0
    %550 = vmatpush2.msra.mxu0 0.0
    %551 = vmatprep.subr.mxu0 0.0
    %552 = vmatpush2.msra.mxu0 0.0
    %553 = vmatprep.subr.mxu0 0.0
    %554 = vmatpush2.msra.mxu0 0.0
    %555 = vmatprep.subr.mxu0 0.0
    %556 = vmatpush2.msra.mxu0 0.0
    %557 = vmatprep.subr.mxu0 0.0
    %558 = vmatpush2.msra.mxu0 0.0
    %559 = vmatprep.subr.mxu0 0.0
    %560 = vmatpush2.msra.mxu0 0.0
    %561 = vmatprep.subr.mxu0 0.0
    %562 = vmatpush2.msra.mxu0 0.0
    %563 = vmatprep.subr.mxu0 0.0
    %564 = vmatpush2.msra.mxu0 0.0
    %565 = vmatprep.subr.mxu0 0.0
    %566 = vmatpush2.msra.mxu0 0.0
    %567 = vmatprep.mubr.f32.mxu0 0.0
    %568 = vmatmul.mubr.f32.gmra.mxu0 %v492
    %v569 = vpop.f32.mrf.mxu0
    %v570 = vadd.f32 0.0, %v569
    %v571 = vpop.f32.mrf.mxu0
    %572 = vmatprep.mubr.f32.mxu0 0.0
    %573 = vmatmul.mubr.f32.gmra.mxu0 %v495
    %v574 = vpop.f32.mrf.mxu0
    %v575 = vadd.f32 0.0, %v574
    %v576 = vpop.f32.mrf.mxu0
    %577 = vmatprep.mubr.f32.mxu0 0.0
    %578 = vmatmul.mubr.f32.gmra.mxu0 %v498
    %v579 = vpop.f32.mrf.mxu0
    %v580 = vadd.f32 0.0, %v579
    %v581 = vpop.f32.mrf.mxu0
    %582 = vmatprep.mubr.f32.mxu0 0.0
    %583 = vmatmul.mubr.f32.gmra.mxu0 %v501
    %v584 = vpop.f32.mrf.mxu0
    %v585 = vadd.f32 0.0, %v584
    %v586 = vpop.f32.mrf.mxu0
    %587 = vdwg.mxu0
    %v588 = vadd.f32 %v476, %v570
    %v589 = vadd.f32 %v477, %v575
    %v590 = vadd.f32 %v478, %v580
    %v591 = vadd.f32 %v479, %v585
    %s592 = scalar_lea.vmem %s1, 192
    %v593 = vld [vmem:[%s592] sm:$0xff]
    %v594 = vld [vmem:[%s592 + $0x8] sm:$0xff]
    %v595 = vld [vmem:[%s592 + $0x10] sm:$0xff]
    %v596 = vld [vmem:[%s592 + $0x18] sm:$0xff]
    %v597 = vld [vmem:[%s592 + $0x20] sm:$0xff]
    %v598 = vld [vmem:[%s592 + $0x28] sm:$0xff]
    %599 = vrot.lane.b32.xlu0 %v480, 125
    %v600 = vpop.permute.xlu0 %599
    %601 = vrot.lane.b32.xlu0 %v481, 125
    %v602 = vpop.permute.xlu0 %601
    %603 = vrot.lane.b32.xlu0 %v482, 125
    %v604 = vpop.permute.xlu0 %603
    %605 = vrot.lane.b32.xlu0 %v483, 125
    %v606 = vpop.permute.xlu0 %605
    %v607 = vsel %vm181, %v600, 0
    %v609 = vsel %vm181, %v602, 0
    %v611 = vsel %vm181, %v604, 0
    %v613 = vsel %vm181, %v606, 0
    %615 = vmatprep.subr.mxu0 0.0
    %616 = vmatpush1.msra.mxu0 0.0
    %617 = vmatprep.subr.mxu0 0.0
    %618 = vmatpush1.msra.mxu0 0.0
    %619 = vmatprep.subr.mxu0 0.0
    %620 = vmatpush1.msra.mxu0 0.0
    %621 = vmatprep.subr.mxu0 0.0
    %622 = vmatpush1.msra.mxu0 0.0
    %623 = vmatprep.subr.mxu0 0.0
    %624 = vmatpush1.msra.mxu0 0.0
    %625 = vmatprep.subr.mxu0 0.0
    %626 = vmatpush1.msra.mxu0 0.0
    %627 = vmatprep.subr.mxu0 0.0
    %628 = vmatpush1.msra.mxu0 0.0
    %629 = vmatprep.subr.mxu0 0.0
    %630 = vmatpush1.msra.mxu0 0.0
    %631 = vmatprep.subr.mxu0 0.0
    %632 = vmatpush1.msra.mxu0 0.0
    %633 = vmatprep.subr.mxu0 0.0
    %634 = vmatpush1.msra.mxu0 0.0
    %635 = vmatprep.subr.mxu0 0.0
    %636 = vmatpush1.msra.mxu0 %v598
    %637 = vmatprep.subr.mxu0 0.0
    %638 = vmatpush1.msra.mxu0 %v597
    %639 = vmatprep.subr.mxu0 0.0
    %640 = vmatpush1.msra.mxu0 %v596
    %641 = vmatprep.subr.mxu0 0.0
    %642 = vmatpush1.msra.mxu0 %v595
    %643 = vmatprep.subr.mxu0 0.0
    %644 = vmatpush1.msra.mxu0 %v594
    %645 = vmatprep.subr.mxu0 0.0
    %646 = vmatpush1.msra.mxu0 %v593
    %647 = vmatprep.subr.mxu0 0.0
    %648 = vmatpush2.msra.mxu0 0.0
    %649 = vmatprep.subr.mxu0 0.0
    %650 = vmatpush2.msra.mxu0 0.0
    %651 = vmatprep.subr.mxu0 0.0
    %652 = vmatpush2.msra.mxu0 0.0
    %653 = vmatprep.subr.mxu0 0.0
    %654 = vmatpush2.msra.mxu0 0.0
    %655 = vmatprep.subr.mxu0 0.0
    %656 = vmatpush2.msra.mxu0 0.0
    %657 = vmatprep.subr.mxu0 0.0
    %658 = vmatpush2.msra.mxu0 0.0
    %659 = vmatprep.subr.mxu0 0.0
    %660 = vmatpush2.msra.mxu0 0.0
    %661 = vmatprep.subr.mxu0 0.0
    %662 = vmatpush2.msra.mxu0 0.0
    %663 = vmatprep.subr.mxu0 0.0
    %664 = vmatpush2.msra.mxu0 0.0
    %665 = vmatprep.subr.mxu0 0.0
    %666 = vmatpush2.msra.mxu0 0.0
    %667 = vmatprep.subr.mxu0 0.0
    %668 = vmatpush2.msra.mxu0 0.0
    %669 = vmatprep.subr.mxu0 0.0
    %670 = vmatpush2.msra.mxu0 0.0
    %671 = vmatprep.subr.mxu0 0.0
    %672 = vmatpush2.msra.mxu0 0.0
    %673 = vmatprep.subr.mxu0 0.0
    %674 = vmatpush2.msra.mxu0 0.0
    %675 = vmatprep.subr.mxu0 0.0
    %676 = vmatpush2.msra.mxu0 0.0
    %677 = vmatprep.subr.mxu0 0.0
    %678 = vmatpush2.msra.mxu0 0.0
    %679 = vmatprep.mubr.f32.mxu0 0.0
    %680 = vmatmul.mubr.f32.gmra.mxu0 %v607
    %v681 = vpop.f32.mrf.mxu0
    %v682 = vadd.f32 0.0, %v681
    %v683 = vpop.f32.mrf.mxu0
    %684 = vmatprep.mubr.f32.mxu0 0.0
    %685 = vmatmul.mubr.f32.gmra.mxu0 %v609
    %v686 = vpop.f32.mrf.mxu0
    %v687 = vadd.f32 0.0, %v686
    %v688 = vpop.f32.mrf.mxu0
    %689 = vmatprep.mubr.f32.mxu0 0.0
    %690 = vmatmul.mubr.f32.gmra.mxu0 %v611
    %v691 = vpop.f32.mrf.mxu0
    %v692 = vadd.f32 0.0, %v691
    %v693 = vpop.f32.mrf.mxu0
    %694 = vmatprep.mubr.f32.mxu0 0.0
    %695 = vmatmul.mubr.f32.gmra.mxu0 %v613
    %v696 = vpop.f32.mrf.mxu0
    %v697 = vadd.f32 0.0, %v696
    %v698 = vpop.f32.mrf.mxu0
    %699 = vdwg.mxu0
    %v700 = vadd.f32 %v588, %v682
    %v701 = vadd.f32 %v589, %v687
    %v702 = vadd.f32 %v590, %v692
    %v703 = vadd.f32 %v591, %v697
    %s704 = scalar_lea.vmem %s1, 240
    %v705 = vld [vmem:[%s704] sm:$0xff]
    %v706 = vld [vmem:[%s704 + $0x8] sm:$0xff]
    %v707 = vld [vmem:[%s704 + $0x10] sm:$0xff]
    %v708 = vld [vmem:[%s704 + $0x18] sm:$0xff]
    %v709 = vld [vmem:[%s704 + $0x20] sm:$0xff]
    %v710 = vld [vmem:[%s704 + $0x28] sm:$0xff]
    %711 = vrot.lane.b32.xlu0 %v480, 122
    %v712 = vpop.permute.xlu0 %711
    %713 = vrot.lane.b32.xlu0 %v481, 122
    %v714 = vpop.permute.xlu0 %713
    %715 = vrot.lane.b32.xlu0 %v482, 122
    %v716 = vpop.permute.xlu0 %715
    %717 = vrot.lane.b32.xlu0 %v483, 122
    %v718 = vpop.permute.xlu0 %717
    %v719 = vsel %vm181, %v712, 0
    %v721 = vsel %vm181, %v714, 0
    %v723 = vsel %vm181, %v716, 0
    %v725 = vsel %vm181, %v718, 0
    %727 = vmatprep.subr.mxu0 0.0
    %728 = vmatpush1.msra.mxu0 0.0
    %729 = vmatprep.subr.mxu0 0.0
    %730 = vmatpush1.msra.mxu0 0.0
    %731 = vmatprep.subr.mxu0 0.0
    %732 = vmatpush1.msra.mxu0 0.0
    %733 = vmatprep.subr.mxu0 0.0
    %734 = vmatpush1.msra.mxu0 0.0
    %735 = vmatprep.subr.mxu0 0.0
    %736 = vmatpush1.msra.mxu0 0.0
    %737 = vmatprep.subr.mxu0 0.0
    %738 = vmatpush1.msra.mxu0 0.0
    %739 = vmatprep.subr.mxu0 0.0
    %740 = vmatpush1.msra.mxu0 0.0
    %741 = vmatprep.subr.mxu0 0.0
    %742 = vmatpush1.msra.mxu0 0.0
    %743 = vmatprep.subr.mxu0 0.0
    %744 = vmatpush1.msra.mxu0 0.0
    %745 = vmatprep.subr.mxu0 0.0
    %746 = vmatpush1.msra.mxu0 0.0
    %747 = vmatprep.subr.mxu0 0.0
    %748 = vmatpush1.msra.mxu0 %v710
    %749 = vmatprep.subr.mxu0 0.0
    %750 = vmatpush1.msra.mxu0 %v709
    %751 = vmatprep.subr.mxu0 0.0
    %752 = vmatpush1.msra.mxu0 %v708
    %753 = vmatprep.subr.mxu0 0.0
    %754 = vmatpush1.msra.mxu0 %v707
    %755 = vmatprep.subr.mxu0 0.0
    %756 = vmatpush1.msra.mxu0 %v706
    %757 = vmatprep.subr.mxu0 0.0
    %758 = vmatpush1.msra.mxu0 %v705
    %759 = vmatprep.subr.mxu0 0.0
    %760 = vmatpush2.msra.mxu0 0.0
    %761 = vmatprep.subr.mxu0 0.0
    %762 = vmatpush2.msra.mxu0 0.0
    %763 = vmatprep.subr.mxu0 0.0
    %764 = vmatpush2.msra.mxu0 0.0
    %765 = vmatprep.subr.mxu0 0.0
    %766 = vmatpush2.msra.mxu0 0.0
    %767 = vmatprep.subr.mxu0 0.0
    %768 = vmatpush2.msra.mxu0 0.0
    %769 = vmatprep.subr.mxu0 0.0
    %770 = vmatpush2.msra.mxu0 0.0
    %771 = vmatprep.subr.mxu0 0.0
    %772 = vmatpush2.msra.mxu0 0.0
    %773 = vmatprep.subr.mxu0 0.0
    %774 = vmatpush2.msra.mxu0 0.0
    %775 = vmatprep.subr.mxu0 0.0
    %776 = vmatpush2.msra.mxu0 0.0
    %777 = vmatprep.subr.mxu0 0.0
    %778 = vmatpush2.msra.mxu0 0.0
    %779 = vmatprep.subr.mxu0 0.0
    %780 = vmatpush2.msra.mxu0 0.0
    %781 = vmatprep.subr.mxu0 0.0
    %782 = vmatpush2.msra.mxu0 0.0
    %783 = vmatprep.subr.mxu0 0.0
    %784 = vmatpush2.msra.mxu0 0.0
    %785 = vmatprep.subr.mxu0 0.0
    %786 = vmatpush2.msra.mxu0 0.0
    %787 = vmatprep.subr.mxu0 0.0
    %788 = vmatpush2.msra.mxu0 0.0
    %789 = vmatprep.subr.mxu0 0.0
    %790 = vmatpush2.msra.mxu0 0.0
    %791 = vmatprep.mubr.f32.mxu0 0.0
    %792 = vmatmul.mubr.f32.gmra.mxu0 %v719
    %v793 = vpop.f32.mrf.mxu0
    %v794 = vadd.f32 0.0, %v793
    %v795 = vpop.f32.mrf.mxu0
    %796 = vmatprep.mubr.f32.mxu0 0.0
    %797 = vmatmul.mubr.f32.gmra.mxu0 %v721
    %v798 = vpop.f32.mrf.mxu0
    %v799 = vadd.f32 0.0, %v798
    %v800 = vpop.f32.mrf.mxu0
    %801 = vmatprep.mubr.f32.mxu0 0.0
    %802 = vmatmul.mubr.f32.gmra.mxu0 %v723
    %v803 = vpop.f32.mrf.mxu0
    %v804 = vadd.f32 0.0, %v803
    %v805 = vpop.f32.mrf.mxu0
    %806 = vmatprep.mubr.f32.mxu0 0.0
    %807 = vmatmul.mubr.f32.gmra.mxu0 %v725
    %v808 = vpop.f32.mrf.mxu0
    %v809 = vadd.f32 0.0, %v808
    %v810 = vpop.f32.mrf.mxu0
    %811 = vdwg.mxu0
    %v812 = vadd.f32 %v700, %v794
    %v813 = vadd.f32 %v701, %v799
    %v814 = vadd.f32 %v702, %v804
    %v815 = vadd.f32 %v703, %v809
    %v816 = vld [vmem:[#allocation2 + $0x2] sm:$0xff]
    %v817 = vld [vmem:[#allocation2 + $0xa] sm:$0xff]
    %v818 = vld [vmem:[#allocation2 + $0x12] sm:$0xff]
    %v819 = vld [vmem:[#allocation2 + $0x1a] sm:$0xff]
    %v820 = vsel %vm144, 0.0, %v816
    %v821 = vsel %vm145, 0.0, %v817
    %v822 = vsel %vm146, 0.0, %v818
    %v823 = vsel %vm147, 0.0, %v819
    %s824 = scalar_lea.vmem %s1, 288
    %v825 = vld [vmem:[%s824] sm:$0xff]
    %v826 = vld [vmem:[%s824 + $0x8] sm:$0xff]
    %v827 = vld [vmem:[%s824 + $0x10] sm:$0xff]
    %v828 = vld [vmem:[%s824 + $0x18] sm:$0xff]
    %v829 = vld [vmem:[%s824 + $0x20] sm:$0xff]
    %v830 = vld [vmem:[%s824 + $0x28] sm:$0xff]
    %v832 = vsel %vm181, %v820, 0
    %v835 = vsel %vm181, %v821, 0
    %v838 = vsel %vm181, %v822, 0
    %v841 = vsel %vm181, %v823, 0
    %843 = vmatprep.subr.mxu0 0.0
    %844 = vmatpush1.msra.mxu0 0.0
    %845 = vmatprep.subr.mxu0 0.0
    %846 = vmatpush1.msra.mxu0 0.0
    %847 = vmatprep.subr.mxu0 0.0
    %848 = vmatpush1.msra.mxu0 0.0
    %849 = vmatprep.subr.mxu0 0.0
    %850 = vmatpush1.msra.mxu0 0.0
    %851 = vmatprep.subr.mxu0 0.0
    %852 = vmatpush1.msra.mxu0 0.0
    %853 = vmatprep.subr.mxu0 0.0
    %854 = vmatpush1.msra.mxu0 0.0
    %855 = vmatprep.subr.mxu0 0.0
    %856 = vmatpush1.msra.mxu0 0.0
    %857 = vmatprep.subr.mxu0 0.0
    %858 = vmatpush1.msra.mxu0 0.0
    %859 = vmatprep.subr.mxu0 0.0
    %860 = vmatpush1.msra.mxu0 0.0
    %861 = vmatprep.subr.mxu0 0.0
    %862 = vmatpush1.msra.mxu0 0.0
    %863 = vmatprep.subr.mxu0 0.0
    %864 = vmatpush1.msra.mxu0 %v830
    %865 = vmatprep.subr.mxu0 0.0
    %866 = vmatpush1.msra.mxu0 %v829
    %867 = vmatprep.subr.mxu0 0.0
    %868 = vmatpush1.msra.mxu0 %v828
    %869 = vmatprep.subr.mxu0 0.0
    %870 = vmatpush1.msra.mxu0 %v827
    %871 = vmatprep.subr.mxu0 0.0
    %872 = vmatpush1.msra.mxu0 %v826
    %873 = vmatprep.subr.mxu0 0.0
    %874 = vmatpush1.msra.mxu0 %v825
    %875 = vmatprep.subr.mxu0 0.0
    %876 = vmatpush2.msra.mxu0 0.0
    %877 = vmatprep.subr.mxu0 0.0
    %878 = vmatpush2.msra.mxu0 0.0
    %879 = vmatprep.subr.mxu0 0.0
    %880 = vmatpush2.msra.mxu0 0.0
    %881 = vmatprep.subr.mxu0 0.0
    %882 = vmatpush2.msra.mxu0 0.0
    %883 = vmatprep.subr.mxu0 0.0
    %884 = vmatpush2.msra.mxu0 0.0
    %885 = vmatprep.subr.mxu0 0.0
    %886 = vmatpush2.msra.mxu0 0.0
    %887 = vmatprep.subr.mxu0 0.0
    %888 = vmatpush2.msra.mxu0 0.0
    %889 = vmatprep.subr.mxu0 0.0
    %890 = vmatpush2.msra.mxu0 0.0
    %891 = vmatprep.subr.mxu0 0.0
    %892 = vmatpush2.msra.mxu0 0.0
    %893 = vmatprep.subr.mxu0 0.0
    %894 = vmatpush2.msra.mxu0 0.0
    %895 = vmatprep.subr.mxu0 0.0
    %896 = vmatpush2.msra.mxu0 0.0
    %897 = vmatprep.subr.mxu0 0.0
    %898 = vmatpush2.msra.mxu0 0.0
    %899 = vmatprep.subr.mxu0 0.0
    %900 = vmatpush2.msra.mxu0 0.0
    %901 = vmatprep.subr.mxu0 0.0
    %902 = vmatpush2.msra.mxu0 0.0
    %903 = vmatprep.subr.mxu0 0.0
    %904 = vmatpush2.msra.mxu0 0.0
    %905 = vmatprep.subr.mxu0 0.0
    %906 = vmatpush2.msra.mxu0 0.0
    %907 = vmatprep.mubr.f32.mxu0 0.0
    %908 = vmatmul.mubr.f32.gmra.mxu0 %v832
    %v909 = vpop.f32.mrf.mxu0
    %v910 = vadd.f32 0.0, %v909
    %v911 = vpop.f32.mrf.mxu0
    %912 = vmatprep.mubr.f32.mxu0 0.0
    %913 = vmatmul.mubr.f32.gmra.mxu0 %v835
    %v914 = vpop.f32.mrf.mxu0
    %v915 = vadd.f32 0.0, %v914
    %v916 = vpop.f32.mrf.mxu0
    %917 = vmatprep.mubr.f32.mxu0 0.0
    %918 = vmatmul.mubr.f32.gmra.mxu0 %v838
    %v919 = vpop.f32.mrf.mxu0
    %v920 = vadd.f32 0.0, %v919
    %v921 = vpop.f32.mrf.mxu0
    %922 = vmatprep.mubr.f32.mxu0 0.0
    %923 = vmatmul.mubr.f32.gmra.mxu0 %v841
    %v924 = vpop.f32.mrf.mxu0
    %v925 = vadd.f32 0.0, %v924
    %v926 = vpop.f32.mrf.mxu0
    %927 = vdwg.mxu0
    %v928 = vadd.f32 %v812, %v910
    %v929 = vadd.f32 %v813, %v915
    %v930 = vadd.f32 %v814, %v920
    %v931 = vadd.f32 %v815, %v925
    %s932 = scalar_lea.vmem %s1, 336
    %v933 = vld [vmem:[%s932] sm:$0xff]
    %v934 = vld [vmem:[%s932 + $0x8] sm:$0xff]
    %v935 = vld [vmem:[%s932 + $0x10] sm:$0xff]
    %v936 = vld [vmem:[%s932 + $0x18] sm:$0xff]
    %v937 = vld [vmem:[%s932 + $0x20] sm:$0xff]
    %v938 = vld [vmem:[%s932 + $0x28] sm:$0xff]
    %939 = vrot.lane.b32.xlu0 %v820, 125
    %v940 = vpop.permute.xlu0 %939
    %941 = vrot.lane.b32.xlu0 %v821, 125
    %v942 = vpop.permute.xlu0 %941
    %943 = vrot.lane.b32.xlu0 %v822, 125
    %v944 = vpop.permute.xlu0 %943
    %945 = vrot.lane.b32.xlu0 %v823, 125
    %v946 = vpop.permute.xlu0 %945
    %v947 = vsel %vm181, %v940, 0
    %v949 = vsel %vm181, %v942, 0
    %v951 = vsel %vm181, %v944, 0
    %v953 = vsel %vm181, %v946, 0
    %955 = vmatprep.subr.mxu0 0.0
    %956 = vmatpush1.msra.mxu0 0.0
    %957 = vmatprep.subr.mxu0 0.0
    %958 = vmatpush1.msra.mxu0 0.0
    %959 = vmatprep.subr.mxu0 0.0
    %960 = vmatpush1.msra.mxu0 0.0
    %961 = vmatprep.subr.mxu0 0.0
    %962 = vmatpush1.msra.mxu0 0.0
    %963 = vmatprep.subr.mxu0 0.0
    %964 = vmatpush1.msra.mxu0 0.0
    %965 = vmatprep.subr.mxu0 0.0
    %966 = vmatpush1.msra.mxu0 0.0
    %967 = vmatprep.subr.mxu0 0.0
    %968 = vmatpush1.msra.mxu0 0.0
    %969 = vmatprep.subr.mxu0 0.0
    %970 = vmatpush1.msra.mxu0 0.0
    %971 = vmatprep.subr.mxu0 0.0
    %972 = vmatpush1.msra.mxu0 0.0
    %973 = vmatprep.subr.mxu0 0.0
    %974 = vmatpush1.msra.mxu0 0.0
    %975 = vmatprep.subr.mxu0 0.0
    %976 = vmatpush1.msra.mxu0 %v938
    %977 = vmatprep.subr.mxu0 0.0
    %978 = vmatpush1.msra.mxu0 %v937
    %979 = vmatprep.subr.mxu0 0.0
    %980 = vmatpush1.msra.mxu0 %v936
    %981 = vmatprep.subr.mxu0 0.0
    %982 = vmatpush1.msra.mxu0 %v935
    %983 = vmatprep.subr.mxu0 0.0
    %984 = vmatpush1.msra.mxu0 %v934
    %985 = vmatprep.subr.mxu0 0.0
    %986 = vmatpush1.msra.mxu0 %v933
    %987 = vmatprep.subr.mxu0 0.0
    %988 = vmatpush2.msra.mxu0 0.0
    %989 = vmatprep.subr.mxu0 0.0
    %990 = vmatpush2.msra.mxu0 0.0
    %991 = vmatprep.subr.mxu0 0.0
    %992 = vmatpush2.msra.mxu0 0.0
    %993 = vmatprep.subr.mxu0 0.0
    %994 = vmatpush2.msra.mxu0 0.0
    %995 = vmatprep.subr.mxu0 0.0
    %996 = vmatpush2.msra.mxu0 0.0
    %997 = vmatprep.subr.mxu0 0.0
    %998 = vmatpush2.msra.mxu0 0.0
    %999 = vmatprep.subr.mxu0 0.0
    %1000 = vmatpush2.msra.mxu0 0.0
    %1001 = vmatprep.subr.mxu0 0.0
    %1002 = vmatpush2.msra.mxu0 0.0
    %1003 = vmatprep.subr.mxu0 0.0
    %1004 = vmatpush2.msra.mxu0 0.0
    %1005 = vmatprep.subr.mxu0 0.0
    %1006 = vmatpush2.msra.mxu0 0.0
    %1007 = vmatprep.subr.mxu0 0.0
    %1008 = vmatpush2.msra.mxu0 0.0
    %1009 = vmatprep.subr.mxu0 0.0
    %1010 = vmatpush2.msra.mxu0 0.0
    %1011 = vmatprep.subr.mxu0 0.0
    %1012 = vmatpush2.msra.mxu0 0.0
    %1013 = vmatprep.subr.mxu0 0.0
    %1014 = vmatpush2.msra.mxu0 0.0
    %1015 = vmatprep.subr.mxu0 0.0
    %1016 = vmatpush2.msra.mxu0 0.0
    %1017 = vmatprep.subr.mxu0 0.0
    %1018 = vmatpush2.msra.mxu0 0.0
    %1019 = vmatprep.mubr.f32.mxu0 0.0
    %1020 = vmatmul.mubr.f32.gmra.mxu0 %v947
    %v1021 = vpop.f32.mrf.mxu0
    %v1022 = vadd.f32 0.0, %v1021
    %v1023 = vpop.f32.mrf.mxu0
    %1024 = vmatprep.mubr.f32.mxu0 0.0
    %1025 = vmatmul.mubr.f32.gmra.mxu0 %v949
    %v1026 = vpop.f32.mrf.mxu0
    %v1027 = vadd.f32 0.0, %v1026
    %v1028 = vpop.f32.mrf.mxu0
    %1029 = vmatprep.mubr.f32.mxu0 0.0
    %1030 = vmatmul.mubr.f32.gmra.mxu0 %v951
    %v1031 = vpop.f32.mrf.mxu0
    %v1032 = vadd.f32 0.0, %v1031
    %v1033 = vpop.f32.mrf.mxu0
    %1034 = vmatprep.mubr.f32.mxu0 0.0
    %1035 = vmatmul.mubr.f32.gmra.mxu0 %v953
    %v1036 = vpop.f32.mrf.mxu0
    %v1037 = vadd.f32 0.0, %v1036
    %v1038 = vpop.f32.mrf.mxu0
    %1039 = vdwg.mxu0
    %v1040 = vadd.f32 %v928, %v1022
    %v1041 = vadd.f32 %v929, %v1027
    %v1042 = vadd.f32 %v930, %v1032
    %v1043 = vadd.f32 %v931, %v1037
    %s1044 = scalar_lea.vmem %s1, 384
    %v1045 = vld [vmem:[%s1044] sm:$0xff]
    %v1046 = vld [vmem:[%s1044 + $0x8] sm:$0xff]
    %v1047 = vld [vmem:[%s1044 + $0x10] sm:$0xff]
    %v1048 = vld [vmem:[%s1044 + $0x18] sm:$0xff]
    %v1049 = vld [vmem:[%s1044 + $0x20] sm:$0xff]
    %v1050 = vld [vmem:[%s1044 + $0x28] sm:$0xff]
    %1051 = vrot.lane.b32.xlu0 %v820, 122
    %v1052 = vpop.permute.xlu0 %1051
    %1053 = vrot.lane.b32.xlu0 %v821, 122
    %v1054 = vpop.permute.xlu0 %1053
    %1055 = vrot.lane.b32.xlu0 %v822, 122
    %v1056 = vpop.permute.xlu0 %1055
    %1057 = vrot.lane.b32.xlu0 %v823, 122
    %v1058 = vpop.permute.xlu0 %1057
    %v1059 = vsel %vm181, %v1052, 0
    %v1061 = vsel %vm181, %v1054, 0
    %v1063 = vsel %vm181, %v1056, 0
    %v1065 = vsel %vm181, %v1058, 0
    %1067 = vmatprep.subr.mxu0 0.0
    %1068 = vmatpush1.msra.mxu0 0.0
    %1069 = vmatprep.subr.mxu0 0.0
    %1070 = vmatpush1.msra.mxu0 0.0
    %1071 = vmatprep.subr.mxu0 0.0
    %1072 = vmatpush1.msra.mxu0 0.0
    %1073 = vmatprep.subr.mxu0 0.0
    %1074 = vmatpush1.msra.mxu0 0.0
    %1075 = vmatprep.subr.mxu0 0.0
    %1076 = vmatpush1.msra.mxu0 0.0
    %1077 = vmatprep.subr.mxu0 0.0
    %1078 = vmatpush1.msra.mxu0 0.0
    %1079 = vmatprep.subr.mxu0 0.0
    %1080 = vmatpush1.msra.mxu0 0.0
    %1081 = vmatprep.subr.mxu0 0.0
    %1082 = vmatpush1.msra.mxu0 0.0
    %1083 = vmatprep.subr.mxu0 0.0
    %1084 = vmatpush1.msra.mxu0 0.0
    %1085 = vmatprep.subr.mxu0 0.0
    %1086 = vmatpush1.msra.mxu0 0.0
    %1087 = vmatprep.subr.mxu0 0.0
    %1088 = vmatpush1.msra.mxu0 %v1050
    %1089 = vmatprep.subr.mxu0 0.0
    %1090 = vmatpush1.msra.mxu0 %v1049
    %1091 = vmatprep.subr.mxu0 0.0
    %1092 = vmatpush1.msra.mxu0 %v1048
    %1093 = vmatprep.subr.mxu0 0.0
    %1094 = vmatpush1.msra.mxu0 %v1047
    %1095 = vmatprep.subr.mxu0 0.0
    %1096 = vmatpush1.msra.mxu0 %v1046
    %1097 = vmatprep.subr.mxu0 0.0
    %1098 = vmatpush1.msra.mxu0 %v1045
    %1099 = vmatprep.subr.mxu0 0.0
    %1100 = vmatpush2.msra.mxu0 0.0
    %1101 = vmatprep.subr.mxu0 0.0
    %1102 = vmatpush2.msra.mxu0 0.0
    %1103 = vmatprep.subr.mxu0 0.0
    %1104 = vmatpush2.msra.mxu0 0.0
    %1105 = vmatprep.subr.mxu0 0.0
    %1106 = vmatpush2.msra.mxu0 0.0
    %1107 = vmatprep.subr.mxu0 0.0
    %1108 = vmatpush2.msra.mxu0 0.0
    %1109 = vmatprep.subr.mxu0 0.0
    %1110 = vmatpush2.msra.mxu0 0.0
    %1111 = vmatprep.subr.mxu0 0.0
    %1112 = vmatpush2.msra.mxu0 0.0
    %1113 = vmatprep.subr.mxu0 0.0
    %1114 = vmatpush2.msra.mxu0 0.0
    %1115 = vmatprep.subr.mxu0 0.0
    %1116 = vmatpush2.msra.mxu0 0.0
    %1117 = vmatprep.subr.mxu0 0.0
    %1118 = vmatpush2.msra.mxu0 0.0
    %1119 = vmatprep.subr.mxu0 0.0
    %1120 = vmatpush2.msra.mxu0 0.0
    %1121 = vmatprep.subr.mxu0 0.0
    %1122 = vmatpush2.msra.mxu0 0.0
    %1123 = vmatprep.subr.mxu0 0.0
    %1124 = vmatpush2.msra.mxu0 0.0
    %1125 = vmatprep.subr.mxu0 0.0
    %1126 = vmatpush2.msra.mxu0 0.0
    %1127 = vmatprep.subr.mxu0 0.0
    %1128 = vmatpush2.msra.mxu0 0.0
    %1129 = vmatprep.subr.mxu0 0.0
    %1130 = vmatpush2.msra.mxu0 0.0
    %1131 = vmatprep.mubr.f32.mxu0 0.0
    %1132 = vmatmul.mubr.f32.gmra.mxu0 %v1059
    %v1133 = vpop.f32.mrf.mxu0
    %v1134 = vadd.f32 0.0, %v1133
    %v1135 = vpop.f32.mrf.mxu0
    %1136 = vmatprep.mubr.f32.mxu0 0.0
    %1137 = vmatmul.mubr.f32.gmra.mxu0 %v1061
    %v1138 = vpop.f32.mrf.mxu0
    %v1139 = vadd.f32 0.0, %v1138
    %v1140 = vpop.f32.mrf.mxu0
    %1141 = vmatprep.mubr.f32.mxu0 0.0
    %1142 = vmatmul.mubr.f32.gmra.mxu0 %v1063
    %v1143 = vpop.f32.mrf.mxu0
    %v1144 = vadd.f32 0.0, %v1143
    %v1145 = vpop.f32.mrf.mxu0
    %1146 = vmatprep.mubr.f32.mxu0 0.0
    %1147 = vmatmul.mubr.f32.gmra.mxu0 %v1065
    %v1148 = vpop.f32.mrf.mxu0
    %v1149 = vadd.f32 0.0, %v1148
    %v1150 = vpop.f32.mrf.mxu0
    %1151 = vdwg.mxu0
    %v1152 = vadd.f32 %v1040, %v1134
    %v1153 = vadd.f32 %v1041, %v1139
    %v1154 = vadd.f32 %v1042, %v1144
    %v1155 = vadd.f32 %v1043, %v1149
    %v1156 = vld [vmem:[%s5] sm:$0x1]
    %v1157 = vld [vmem:[%s5 + $0x1] sm:$0x1]
    %v1158 = vld [vmem:[%s5 + $0x2] sm:$0x1]
    %v1159 = vlaneseq
    %v1160 = vshrl.u32 %v1159, 7
    %v1161 = vsub.s32 0, %v1160
    %v1162 = vrot.slane %v1156, %v1161
    %v1163 = vadd.f32 %v1152, %v1162
    %v1164 = vadd.f32 %v1153, %v1162
    %v1165 = vadd.f32 %v1154, %v1162
    %v1166 = vadd.f32 %v1155, %v1162
    %vm1167 = vcmask 523264
    %v1168 = vsel %vm1167, %v1163, 0.0
    %1169 = vadd.xlane.f32.xlu0 %v1168
    %v1170 = vpop.xlane.xlu0 %1169
    %v1171 = vsel %vm1167, %v1164, 0.0
    %1172 = vadd.xlane.f32.xlu0 %v1171
    %v1173 = vpop.xlane.xlu0 %1172
    %v1174 = vadd.f32 %v1170, %v1173
    %v1175 = vrot.slane %v1174, 4
    %v1176 = vadd.f32 %v1174, %v1175
    %v1177 = vrot.slane %v1176, 2
    %v1178 = vadd.f32 %v1176, %v1177
    %v1179 = vrot.slane %v1178, 1
    %v1180 = vadd.f32 %v1178, %v1179
    %v1181 = vmul.f32 %v1180, 0.0009765625
    %v1182 = vmul.f32 %v1163, %v1163
    %v1183 = vmul.f32 %v1164, %v1164
    %v1184 = vsel %vm1167, %v1182, 0.0
    %1185 = vadd.xlane.f32.xlu0 %v1184
    %v1186 = vpop.xlane.xlu0 %1185
    %v1187 = vsel %vm1167, %v1183, 0.0
    %1188 = vadd.xlane.f32.xlu0 %v1187
    %v1189 = vpop.xlane.xlu0 %1188
    %v1190 = vadd.f32 %v1186, %v1189
    %v1191 = vrot.slane %v1190, 4
    %v1192 = vadd.f32 %v1190, %v1191
    %v1193 = vrot.slane %v1192, 2
    %v1194 = vadd.f32 %v1192, %v1193
    %v1195 = vrot.slane %v1194, 1
    %v1196 = vadd.f32 %v1194, %v1195
    %v1197 = vmul.f32 %v1196, 0.0009765625
    %v1198 = vmul.f32 %v1181, %v1181
    %v1199 = vsub.f32 %v1197, %v1198
    %v1200 = vadd.f32 %v1199, 1e-05
    %v1201 = vrsqrt.pop %v1200
    %v1202 = vmul.f32 %v1157, %v1201
    %v1203 = vmul.f32 %v1181, %v1202
    %v1204 = vsub.f32 %v1158, %v1203
    %v1205 = vlaneseq
    %v1206 = vshrl.u32 %v1205, 7
    %v1207 = vsub.s32 0, %v1206
    %v1208 = vrot.slane %v1202, %v1207
    %v1209 = vmul.f32 %v1163, %v1208
    %v1210 = vmul.f32 %v1164, %v1208
    %v1211 = vlaneseq
    %v1212 = vshrl.u32 %v1211, 7
    %v1213 = vsub.s32 0, %v1212
    %v1214 = vrot.slane %v1204, %v1213
    %v1215 = vadd.f32 %v1209, %v1214
    %v1216 = vadd.f32 %v1210, %v1214
    %v1217 = vmax.f32 %v1215, 0.0
    %v1218 = vmax.f32 %v1216, 0.0
    %v1219 = vsel %vm1167, %v1165, 0.0
    %1220 = vadd.xlane.f32.xlu0 %v1219
    %v1221 = vpop.xlane.xlu0 %1220
    %v1222 = vsel %vm1167, %v1166, 0.0
    %1223 = vadd.xlane.f32.xlu0 %v1222
    %v1224 = vpop.xlane.xlu0 %1223
    %v1225 = vadd.f32 %v1221, %v1224
    %v1226 = vrot.slane %v1225, 4
    %v1227 = vadd.f32 %v1225, %v1226
    %v1228 = vrot.slane %v1227, 2
    %v1229 = vadd.f32 %v1227, %v1228
    %v1230 = vrot.slane %v1229, 1
    %v1231 = vadd.f32 %v1229, %v1230
    %v1232 = vmul.f32 %v1231, 0.0009765625
    %v1233 = vmul.f32 %v1165, %v1165
    %v1234 = vmul.f32 %v1166, %v1166
    %v1235 = vsel %vm1167, %v1233, 0.0
    %1236 = vadd.xlane.f32.xlu0 %v1235
    %v1237 = vpop.xlane.xlu0 %1236
    %v1238 = vsel %vm1167, %v1234, 0.0
    %1239 = vadd.xlane.f32.xlu0 %v1238
    %v1240 = vpop.xlane.xlu0 %1239
    %v1241 = vadd.f32 %v1237, %v1240
    %v1242 = vrot.slane %v1241, 4
    %v1243 = vadd.f32 %v1241, %v1242
    %v1244 = vrot.slane %v1243, 2
    %v1245 = vadd.f32 %v1243, %v1244
    %v1246 = vrot.slane %v1245, 1
    %v1247 = vadd.f32 %v1245, %v1246
    %v1248 = vmul.f32 %v1247, 0.0009765625
    %v1249 = vmul.f32 %v1232, %v1232
    %v1250 = vsub.f32 %v1248, %v1249
    %v1251 = vadd.f32 %v1250, 1e-05
    %v1252 = vrsqrt.pop %v1251
    %v1253 = vmul.f32 %v1157, %v1252
    %v1254 = vmul.f32 %v1232, %v1253
    %v1255 = vsub.f32 %v1158, %v1254
    %v1256 = vlaneseq
    %v1257 = vshrl.u32 %v1256, 7
    %v1258 = vsub.s32 0, %v1257
    %v1259 = vrot.slane %v1253, %v1258
    %v1260 = vmul.f32 %v1165, %v1259
    %v1261 = vmul.f32 %v1166, %v1259
    %v1262 = vlaneseq
    %v1263 = vshrl.u32 %v1262, 7
    %v1264 = vsub.s32 0, %v1263
    %v1265 = vrot.slane %v1255, %v1264
    %v1266 = vadd.f32 %v1260, %v1265
    %v1267 = vadd.f32 %v1261, %v1265
    %v1268 = vmax.f32 %v1266, 0.0
    %v1269 = vmax.f32 %v1267, 0.0
    %1272 = vrot.lane.b32.xlu0 %v1217, 4
    %v1273 = vpop.permute.xlu0 %1272
    %1274 = vrot.lane.b32.xlu0 %v1218, 4
    %v1275 = vpop.permute.xlu0 %1274
    %vm1278 = vcmask 556064
    %1279 = vst.msk [vmem:[#allocation3 + $0x1] sm:$0xff] %vm1278, %v1273
    %1280 = vst.msk [vmem:[#allocation3 + $0x9] sm:$0xff] %vm1278, %v1275
    %1283 = vrot.lane.b32.xlu0 %v1268, 4
    %v1284 = vpop.permute.xlu0 %1283
    %1285 = vrot.lane.b32.xlu0 %v1269, 4
    %v1286 = vpop.permute.xlu0 %1285
    %1289 = vst.msk [vmem:[#allocation3 + $0x11] sm:$0xff] %vm1278, %v1284
    %1290 = vst.msk [vmem:[#allocation3 + $0x19] sm:$0xff] %vm1278, %v1286
    %v1291 = vld [vmem:[#allocation3] sm:$0xff]
    %v1292 = vld [vmem:[#allocation3 + $0x8] sm:$0xff]
    %v1293 = vld [vmem:[#allocation3 + $0x10] sm:$0xff]
    %v1294 = vld [vmem:[#allocation3 + $0x18] sm:$0xff]
    %v1295 = vsel %vm140, 0.0, %v1291
    %v1296 = vsel %vm141, 0.0, %v1292
    %v1297 = vsel %vm142, 0.0, %v1293
    %v1298 = vsel %vm143, 0.0, %v1294
    %v1299 = vld [vmem:[%s2] sm:$0xff]
    %v1300 = vld [vmem:[%s2 + $0x8] sm:$0xff]
    %v1301 = vld [vmem:[%s2 + $0x10] sm:$0xff]
    %v1302 = vld [vmem:[%s2 + $0x18] sm:$0xff]
    %v1303 = vld [vmem:[%s2 + $0x20] sm:$0xff]
    %v1304 = vld [vmem:[%s2 + $0x28] sm:$0xff]
    %v1305 = vld [vmem:[%s2 + $0x30] sm:$0xff]
    %v1306 = vld [vmem:[%s2 + $0x38] sm:$0xff]
    %s1307 = scalar_lea.vmem %s2, 64
    %v1308 = vld [vmem:[%s1307] sm:$0xff]
    %v1309 = vld [vmem:[%s1307 + $0x8] sm:$0xff]
    %v1310 = vld [vmem:[%s1307 + $0x10] sm:$0xff]
    %v1311 = vld [vmem:[%s1307 + $0x18] sm:$0xff]
    %v1312 = vld [vmem:[%s1307 + $0x20] sm:$0xff]
    %v1313 = vld [vmem:[%s1307 + $0x28] sm:$0xff]
    %v1314 = vld [vmem:[%s1307 + $0x30] sm:$0xff]
    %v1315 = vld [vmem:[%s1307 + $0x38] sm:$0xff]
    %1320 = vrot.lane.b32.xlu0 %v1295, 124
    %v1321 = vpop.permute.xlu0 %1320
    %1322 = vrot.lane.b32.xlu0 %v1296, 124
    %v1323 = vpop.permute.xlu0 %1322
    %1324 = vrot.lane.b32.xlu0 %v1297, 124
    %v1325 = vpop.permute.xlu0 %1324
    %1326 = vrot.lane.b32.xlu0 %v1298, 124
    %v1327 = vpop.permute.xlu0 %1326
    %v1328 = vsel %vm1167, %v1321, 0
    %v1330 = vsel %vm1167, %v1323, 0
    %v1332 = vsel %vm1167, %v1325, 0
    %v1334 = vsel %vm1167, %v1327, 0
    %1336 = vmatprep.subr.mxu0 0.0
    %1337 = vmatpush1.msra.mxu0 0.0
    %1338 = vmatprep.subr.mxu0 0.0
    %1339 = vmatpush1.msra.mxu0 0.0
    %1340 = vmatprep.subr.mxu0 0.0
    %1341 = vmatpush1.msra.mxu0 0.0
    %1342 = vmatprep.subr.mxu0 0.0
    %1343 = vmatpush1.msra.mxu0 0.0
    %1344 = vmatprep.subr.mxu0 0.0
    %1345 = vmatpush1.msra.mxu0 0.0
    %1346 = vmatprep.subr.mxu0 0.0
    %1347 = vmatpush1.msra.mxu0 0.0
    %1348 = vmatprep.subr.mxu0 0.0
    %1349 = vmatpush1.msra.mxu0 0.0
    %1350 = vmatprep.subr.mxu0 0.0
    %1351 = vmatpush1.msra.mxu0 0.0
    %1352 = vmatprep.subr.mxu0 0.0
    %1353 = vmatpush1.msra.mxu0 %v1315
    %1354 = vmatprep.subr.mxu0 0.0
    %1355 = vmatpush1.msra.mxu0 %v1314
    %1356 = vmatprep.subr.mxu0 0.0
    %1357 = vmatpush1.msra.mxu0 %v1313
    %1358 = vmatprep.subr.mxu0 0.0
    %1359 = vmatpush1.msra.mxu0 %v1312
    %1360 = vmatprep.subr.mxu0 0.0
    %1361 = vmatpush1.msra.mxu0 %v1311
    %1362 = vmatprep.subr.mxu0 0.0
    %1363 = vmatpush1.msra.mxu0 %v1310
    %1364 = vmatprep.subr.mxu0 0.0
    %1365 = vmatpush1.msra.mxu0 %v1309
    %1366 = vmatprep.subr.mxu0 0.0
    %1367 = vmatpush1.msra.mxu0 %v1308
    %1368 = vmatprep.subr.mxu0 0.0
    %1369 = vmatpush2.msra.mxu0 0.0
    %1370 = vmatprep.subr.mxu0 0.0
    %1371 = vmatpush2.msra.mxu0 0.0
    %1372 = vmatprep.subr.mxu0 0.0
    %1373 = vmatpush2.msra.mxu0 0.0
    %1374 = vmatprep.subr.mxu0 0.0
    %1375 = vmatpush2.msra.mxu0 0.0
    %1376 = vmatprep.subr.mxu0 0.0
    %1377 = vmatpush2.msra.mxu0 0.0
    %1378 = vmatprep.subr.mxu0 0.0
    %1379 = vmatpush2.msra.mxu0 0.0
    %1380 = vmatprep.subr.mxu0 0.0
    %1381 = vmatpush2.msra.mxu0 0.0
    %1382 = vmatprep.subr.mxu0 0.0
    %1383 = vmatpush2.msra.mxu0 0.0
    %1384 = vmatprep.subr.mxu0 0.0
    %1385 = vmatpush2.msra.mxu0 0.0
    %1386 = vmatprep.subr.mxu0 0.0
    %1387 = vmatpush2.msra.mxu0 0.0
    %1388 = vmatprep.subr.mxu0 0.0
    %1389 = vmatpush2.msra.mxu0 0.0
    %1390 = vmatprep.subr.mxu0 0.0
    %1391 = vmatpush2.msra.mxu0 0.0
    %1392 = vmatprep.subr.mxu0 0.0
    %1393 = vmatpush2.msra.mxu0 0.0
    %1394 = vmatprep.subr.mxu0 0.0
    %1395 = vmatpush2.msra.mxu0 0.0
    %1396 = vmatprep.subr.mxu0 0.0
    %1397 = vmatpush2.msra.mxu0 0.0
    %1398 = vmatprep.subr.mxu0 0.0
    %1399 = vmatpush2.msra.mxu0 0.0
    %1400 = vmatprep.mubr.f32.mxu0 0.0
    %1401 = vmatmul.mubr.f32.gmra.mxu0 %v1328
    %v1402 = vpop.f32.mrf.mxu0
    %v1403 = vadd.f32 0.0, %v1402
    %v1404 = vpop.f32.mrf.mxu0
    %1405 = vmatprep.mubr.f32.mxu0 0.0
    %1406 = vmatmul.mubr.f32.gmra.mxu0 %v1330
    %v1407 = vpop.f32.mrf.mxu0
    %v1408 = vadd.f32 0.0, %v1407
    %v1409 = vpop.f32.mrf.mxu0
    %1410 = vmatprep.mubr.f32.mxu0 0.0
    %1411 = vmatmul.mubr.f32.gmra.mxu0 %v1332
    %v1412 = vpop.f32.mrf.mxu0
    %v1413 = vadd.f32 0.0, %v1412
    %v1414 = vpop.f32.mrf.mxu0
    %1415 = vmatprep.mubr.f32.mxu0 0.0
    %1416 = vmatmul.mubr.f32.gmra.mxu0 %v1334
    %v1417 = vpop.f32.mrf.mxu0
    %v1418 = vadd.f32 0.0, %v1417
    %v1419 = vpop.f32.mrf.mxu0
    %1420 = vdwg.mxu0
    %v1421 = vsel %vm1167, %v1295, 0
    %v1423 = vsel %vm1167, %v1296, 0
    %v1425 = vsel %vm1167, %v1297, 0
    %v1427 = vsel %vm1167, %v1298, 0
    %1429 = vmatprep.subr.mxu0 0.0
    %1430 = vmatpush1.msra.mxu0 0.0
    %1431 = vmatprep.subr.mxu0 0.0
    %1432 = vmatpush1.msra.mxu0 0.0
    %1433 = vmatprep.subr.mxu0 0.0
    %1434 = vmatpush1.msra.mxu0 0.0
    %1435 = vmatprep.subr.mxu0 0.0
    %1436 = vmatpush1.msra.mxu0 0.0
    %1437 = vmatprep.subr.mxu0 0.0
    %1438 = vmatpush1.msra.mxu0 0.0
    %1439 = vmatprep.subr.mxu0 0.0
    %1440 = vmatpush1.msra.mxu0 0.0
    %1441 = vmatprep.subr.mxu0 0.0
    %1442 = vmatpush1.msra.mxu0 0.0
    %1443 = vmatprep.subr.mxu0 0.0
    %1444 = vmatpush1.msra.mxu0 0.0
    %1445 = vmatprep.subr.mxu0 0.0
    %1446 = vmatpush1.msra.mxu0 %v1306
    %1447 = vmatprep.subr.mxu0 0.0
    %1448 = vmatpush1.msra.mxu0 %v1305
    %1449 = vmatprep.subr.mxu0 0.0
    %1450 = vmatpush1.msra.mxu0 %v1304
    %1451 = vmatprep.subr.mxu0 0.0
    %1452 = vmatpush1.msra.mxu0 %v1303
    %1453 = vmatprep.subr.mxu0 0.0
    %1454 = vmatpush1.msra.mxu0 %v1302
    %1455 = vmatprep.subr.mxu0 0.0
    %1456 = vmatpush1.msra.mxu0 %v1301
    %1457 = vmatprep.subr.mxu0 0.0
    %1458 = vmatpush1.msra.mxu0 %v1300
    %1459 = vmatprep.subr.mxu0 0.0
    %1460 = vmatpush1.msra.mxu0 %v1299
    %1461 = vmatprep.subr.mxu0 0.0
    %1462 = vmatpush2.msra.mxu0 0.0
    %1463 = vmatprep.subr.mxu0 0.0
    %1464 = vmatpush2.msra.mxu0 0.0
    %1465 = vmatprep.subr.mxu0 0.0
    %1466 = vmatpush2.msra.mxu0 0.0
    %1467 = vmatprep.subr.mxu0 0.0
    %1468 = vmatpush2.msra.mxu0 0.0
    %1469 = vmatprep.subr.mxu0 0.0
    %1470 = vmatpush2.msra.mxu0 0.0
    %1471 = vmatprep.subr.mxu0 0.0
    %1472 = vmatpush2.msra.mxu0 0.0
    %1473 = vmatprep.subr.mxu0 0.0
    %1474 = vmatpush2.msra.mxu0 0.0
    %1475 = vmatprep.subr.mxu0 0.0
    %1476 = vmatpush2.msra.mxu0 0.0
    %1477 = vmatprep.subr.mxu0 0.0
    %1478 = vmatpush2.msra.mxu0 0.0
    %1479 = vmatprep.subr.mxu0 0.0
    %1480 = vmatpush2.msra.mxu0 0.0
    %1481 = vmatprep.subr.mxu0 0.0
    %1482 = vmatpush2.msra.mxu0 0.0
    %1483 = vmatprep.subr.mxu0 0.0
    %1484 = vmatpush2.msra.mxu0 0.0
    %1485 = vmatprep.subr.mxu0 0.0
    %1486 = vmatpush2.msra.mxu0 0.0
    %1487 = vmatprep.subr.mxu0 0.0
    %1488 = vmatpush2.msra.mxu0 0.0
    %1489 = vmatprep.subr.mxu0 0.0
    %1490 = vmatpush2.msra.mxu0 0.0
    %1491 = vmatprep.subr.mxu0 0.0
    %1492 = vmatpush2.msra.mxu0 0.0
    %1493 = vmatprep.mubr.f32.mxu0 0.0
    %1494 = vmatmul.mubr.f32.gmra.mxu0 %v1421
    %v1495 = vpop.f32.mrf.mxu0
    %v1496 = vadd.f32 %v1403, %v1495
    %v1497 = vpop.f32.mrf.mxu0
    %1498 = vmatprep.mubr.f32.mxu0 0.0
    %1499 = vmatmul.mubr.f32.gmra.mxu0 %v1423
    %v1500 = vpop.f32.mrf.mxu0
    %v1501 = vadd.f32 %v1408, %v1500
    %v1502 = vpop.f32.mrf.mxu0
    %1503 = vmatprep.mubr.f32.mxu0 0.0
    %1504 = vmatmul.mubr.f32.gmra.mxu0 %v1425
    %v1505 = vpop.f32.mrf.mxu0
    %v1506 = vadd.f32 %v1413, %v1505
    %v1507 = vpop.f32.mrf.mxu0
    %1508 = vmatprep.mubr.f32.mxu0 0.0
    %1509 = vmatmul.mubr.f32.gmra.mxu0 %v1427
    %v1510 = vpop.f32.mrf.mxu0
    %v1511 = vadd.f32 %v1418, %v1510
    %v1512 = vpop.f32.mrf.mxu0
    %1513 = vdwg.mxu0
    %s1514 = scalar_lea.vmem %s2, 128
    %v1515 = vld [vmem:[%s1514] sm:$0xff]
    %v1516 = vld [vmem:[%s1514 + $0x8] sm:$0xff]
    %v1517 = vld [vmem:[%s1514 + $0x10] sm:$0xff]
    %v1518 = vld [vmem:[%s1514 + $0x18] sm:$0xff]
    %v1519 = vld [vmem:[%s1514 + $0x20] sm:$0xff]
    %v1520 = vld [vmem:[%s1514 + $0x28] sm:$0xff]
    %v1521 = vld [vmem:[%s1514 + $0x30] sm:$0xff]
    %v1522 = vld [vmem:[%s1514 + $0x38] sm:$0xff]
    %1523 = vrot.lane.b32.xlu0 %v1295, 120
    %v1524 = vpop.permute.xlu0 %1523
    %1525 = vrot.lane.b32.xlu0 %v1296, 120
    %v1526 = vpop.permute.xlu0 %1525
    %1527 = vrot.lane.b32.xlu0 %v1297, 120
    %v1528 = vpop.permute.xlu0 %1527
    %1529 = vrot.lane.b32.xlu0 %v1298, 120
    %v1530 = vpop.permute.xlu0 %1529
    %v1531 = vsel %vm1167, %v1524, 0
    %v1533 = vsel %vm1167, %v1526, 0
    %v1535 = vsel %vm1167, %v1528, 0
    %v1537 = vsel %vm1167, %v1530, 0
    %1539 = vmatprep.subr.mxu0 0.0
    %1540 = vmatpush1.msra.mxu0 0.0
    %1541 = vmatprep.subr.mxu0 0.0
    %1542 = vmatpush1.msra.mxu0 0.0
    %1543 = vmatprep.subr.mxu0 0.0
    %1544 = vmatpush1.msra.mxu0 0.0
    %1545 = vmatprep.subr.mxu0 0.0
    %1546 = vmatpush1.msra.mxu0 0.0
    %1547 = vmatprep.subr.mxu0 0.0
    %1548 = vmatpush1.msra.mxu0 0.0
    %1549 = vmatprep.subr.mxu0 0.0
    %1550 = vmatpush1.msra.mxu0 0.0
    %1551 = vmatprep.subr.mxu0 0.0
    %1552 = vmatpush1.msra.mxu0 0.0
    %1553 = vmatprep.subr.mxu0 0.0
    %1554 = vmatpush1.msra.mxu0 0.0
    %1555 = vmatprep.subr.mxu0 0.0
    %1556 = vmatpush1.msra.mxu0 %v1522
    %1557 = vmatprep.subr.mxu0 0.0
    %1558 = vmatpush1.msra.mxu0 %v1521
    %1559 = vmatprep.subr.mxu0 0.0
    %1560 = vmatpush1.msra.mxu0 %v1520
    %1561 = vmatprep.subr.mxu0 0.0
    %1562 = vmatpush1.msra.mxu0 %v1519
    %1563 = vmatprep.subr.mxu0 0.0
    %1564 = vmatpush1.msra.mxu0 %v1518
    %1565 = vmatprep.subr.mxu0 0.0
    %1566 = vmatpush1.msra.mxu0 %v1517
    %1567 = vmatprep.subr.mxu0 0.0
    %1568 = vmatpush1.msra.mxu0 %v1516
    %1569 = vmatprep.subr.mxu0 0.0
    %1570 = vmatpush1.msra.mxu0 %v1515
    %1571 = vmatprep.subr.mxu0 0.0
    %1572 = vmatpush2.msra.mxu0 0.0
    %1573 = vmatprep.subr.mxu0 0.0
    %1574 = vmatpush2.msra.mxu0 0.0
    %1575 = vmatprep.subr.mxu0 0.0
    %1576 = vmatpush2.msra.mxu0 0.0
    %1577 = vmatprep.subr.mxu0 0.0
    %1578 = vmatpush2.msra.mxu0 0.0
    %1579 = vmatprep.subr.mxu0 0.0
    %1580 = vmatpush2.msra.mxu0 0.0
    %1581 = vmatprep.subr.mxu0 0.0
    %1582 = vmatpush2.msra.mxu0 0.0
    %1583 = vmatprep.subr.mxu0 0.0
    %1584 = vmatpush2.msra.mxu0 0.0
    %1585 = vmatprep.subr.mxu0 0.0
    %1586 = vmatpush2.msra.mxu0 0.0
    %1587 = vmatprep.subr.mxu0 0.0
    %1588 = vmatpush2.msra.mxu0 0.0
    %1589 = vmatprep.subr.mxu0 0.0
    %1590 = vmatpush2.msra.mxu0 0.0
    %1591 = vmatprep.subr.mxu0 0.0
    %1592 = vmatpush2.msra.mxu0 0.0
    %1593 = vmatprep.subr.mxu0 0.0
    %1594 = vmatpush2.msra.mxu0 0.0
    %1595 = vmatprep.subr.mxu0 0.0
    %1596 = vmatpush2.msra.mxu0 0.0
    %1597 = vmatprep.subr.mxu0 0.0
    %1598 = vmatpush2.msra.mxu0 0.0
    %1599 = vmatprep.subr.mxu0 0.0
    %1600 = vmatpush2.msra.mxu0 0.0
    %1601 = vmatprep.subr.mxu0 0.0
    %1602 = vmatpush2.msra.mxu0 0.0
    %1603 = vmatprep.mubr.f32.mxu0 0.0
    %1604 = vmatmul.mubr.f32.gmra.mxu0 %v1531
    %v1605 = vpop.f32.mrf.mxu0
    %v1606 = vadd.f32 0.0, %v1605
    %v1607 = vpop.f32.mrf.mxu0
    %1608 = vmatprep.mubr.f32.mxu0 0.0
    %1609 = vmatmul.mubr.f32.gmra.mxu0 %v1533
    %v1610 = vpop.f32.mrf.mxu0
    %v1611 = vadd.f32 0.0, %v1610
    %v1612 = vpop.f32.mrf.mxu0
    %1613 = vmatprep.mubr.f32.mxu0 0.0
    %1614 = vmatmul.mubr.f32.gmra.mxu0 %v1535
    %v1615 = vpop.f32.mrf.mxu0
    %v1616 = vadd.f32 0.0, %v1615
    %v1617 = vpop.f32.mrf.mxu0
    %1618 = vmatprep.mubr.f32.mxu0 0.0
    %1619 = vmatmul.mubr.f32.gmra.mxu0 %v1537
    %v1620 = vpop.f32.mrf.mxu0
    %v1621 = vadd.f32 0.0, %v1620
    %v1622 = vpop.f32.mrf.mxu0
    %1623 = vdwg.mxu0
    %v1624 = vadd.f32 %v1496, %v1606
    %v1625 = vadd.f32 %v1501, %v1611
    %v1626 = vadd.f32 %v1506, %v1616
    %v1627 = vadd.f32 %v1511, %v1621
    %v1628 = vld [vmem:[#allocation3 + $0x1] sm:$0xff]
    %v1629 = vld [vmem:[#allocation3 + $0x9] sm:$0xff]
    %v1630 = vld [vmem:[#allocation3 + $0x11] sm:$0xff]
    %v1631 = vld [vmem:[#allocation3 + $0x19] sm:$0xff]
    %s1632 = scalar_lea.vmem %s2, 192
    %v1633 = vld [vmem:[%s1632] sm:$0xff]
    %v1634 = vld [vmem:[%s1632 + $0x8] sm:$0xff]
    %v1635 = vld [vmem:[%s1632 + $0x10] sm:$0xff]
    %v1636 = vld [vmem:[%s1632 + $0x18] sm:$0xff]
    %v1637 = vld [vmem:[%s1632 + $0x20] sm:$0xff]
    %v1638 = vld [vmem:[%s1632 + $0x28] sm:$0xff]
    %v1639 = vld [vmem:[%s1632 + $0x30] sm:$0xff]
    %v1640 = vld [vmem:[%s1632 + $0x38] sm:$0xff]
    %v1642 = vsel %vm1167, %v1628, 0
    %v1645 = vsel %vm1167, %v1629, 0
    %v1648 = vsel %vm1167, %v1630, 0
    %v1651 = vsel %vm1167, %v1631, 0
    %1653 = vmatprep.subr.mxu0 0.0
    %1654 = vmatpush1.msra.mxu0 0.0
    %1655 = vmatprep.subr.mxu0 0.0
    %1656 = vmatpush1.msra.mxu0 0.0
    %1657 = vmatprep.subr.mxu0 0.0
    %1658 = vmatpush1.msra.mxu0 0.0
    %1659 = vmatprep.subr.mxu0 0.0
    %1660 = vmatpush1.msra.mxu0 0.0
    %1661 = vmatprep.subr.mxu0 0.0
    %1662 = vmatpush1.msra.mxu0 0.0
    %1663 = vmatprep.subr.mxu0 0.0
    %1664 = vmatpush1.msra.mxu0 0.0
    %1665 = vmatprep.subr.mxu0 0.0
    %1666 = vmatpush1.msra.mxu0 0.0
    %1667 = vmatprep.subr.mxu0 0.0
    %1668 = vmatpush1.msra.mxu0 0.0
    %1669 = vmatprep.subr.mxu0 0.0
    %1670 = vmatpush1.msra.mxu0 %v1640
    %1671 = vmatprep.subr.mxu0 0.0
    %1672 = vmatpush1.msra.mxu0 %v1639
    %1673 = vmatprep.subr.mxu0 0.0
    %1674 = vmatpush1.msra.mxu0 %v1638
    %1675 = vmatprep.subr.mxu0 0.0
    %1676 = vmatpush1.msra.mxu0 %v1637
    %1677 = vmatprep.subr.mxu0 0.0
    %1678 = vmatpush1.msra.mxu0 %v1636
    %1679 = vmatprep.subr.mxu0 0.0
    %1680 = vmatpush1.msra.mxu0 %v1635
    %1681 = vmatprep.subr.mxu0 0.0
    %1682 = vmatpush1.msra.mxu0 %v1634
    %1683 = vmatprep.subr.mxu0 0.0
    %1684 = vmatpush1.msra.mxu0 %v1633
    %1685 = vmatprep.subr.mxu0 0.0
    %1686 = vmatpush2.msra.mxu0 0.0
    %1687 = vmatprep.subr.mxu0 0.0
    %1688 = vmatpush2.msra.mxu0 0.0
    %1689 = vmatprep.subr.mxu0 0.0
    %1690 = vmatpush2.msra.mxu0 0.0
    %1691 = vmatprep.subr.mxu0 0.0
    %1692 = vmatpush2.msra.mxu0 0.0
    %1693 = vmatprep.subr.mxu0 0.0
    %1694 = vmatpush2.msra.mxu0 0.0
    %1695 = vmatprep.subr.mxu0 0.0
    %1696 = vmatpush2.msra.mxu0 0.0
    %1697 = vmatprep.subr.mxu0 0.0
    %1698 = vmatpush2.msra.mxu0 0.0
    %1699 = vmatprep.subr.mxu0 0.0
    %1700 = vmatpush2.msra.mxu0 0.0
    %1701 = vmatprep.subr.mxu0 0.0
    %1702 = vmatpush2.msra.mxu0 0.0
    %1703 = vmatprep.subr.mxu0 0.0
    %1704 = vmatpush2.msra.mxu0 0.0
    %1705 = vmatprep.subr.mxu0 0.0
    %1706 = vmatpush2.msra.mxu0 0.0
    %1707 = vmatprep.subr.mxu0 0.0
    %1708 = vmatpush2.msra.mxu0 0.0
    %1709 = vmatprep.subr.mxu0 0.0
    %1710 = vmatpush2.msra.mxu0 0.0
    %1711 = vmatprep.subr.mxu0 0.0
    %1712 = vmatpush2.msra.mxu0 0.0
    %1713 = vmatprep.subr.mxu0 0.0
    %1714 = vmatpush2.msra.mxu0 0.0
    %1715 = vmatprep.subr.mxu0 0.0
    %1716 = vmatpush2.msra.mxu0 0.0
    %1717 = vmatprep.mubr.f32.mxu0 0.0
    %1718 = vmatmul.mubr.f32.gmra.mxu0 %v1642
    %v1719 = vpop.f32.mrf.mxu0
    %v1720 = vadd.f32 0.0, %v1719
    %v1721 = vpop.f32.mrf.mxu0
    %1722 = vmatprep.mubr.f32.mxu0 0.0
    %1723 = vmatmul.mubr.f32.gmra.mxu0 %v1645
    %v1724 = vpop.f32.mrf.mxu0
    %v1725 = vadd.f32 0.0, %v1724
    %v1726 = vpop.f32.mrf.mxu0
    %1727 = vmatprep.mubr.f32.mxu0 0.0
    %1728 = vmatmul.mubr.f32.gmra.mxu0 %v1648
    %v1729 = vpop.f32.mrf.mxu0
    %v1730 = vadd.f32 0.0, %v1729
    %v1731 = vpop.f32.mrf.mxu0
    %1732 = vmatprep.mubr.f32.mxu0 0.0
    %1733 = vmatmul.mubr.f32.gmra.mxu0 %v1651
    %v1734 = vpop.f32.mrf.mxu0
    %v1735 = vadd.f32 0.0, %v1734
    %v1736 = vpop.f32.mrf.mxu0
    %1737 = vdwg.mxu0
    %v1738 = vadd.f32 %v1624, %v1720
    %v1739 = vadd.f32 %v1625, %v1725
    %v1740 = vadd.f32 %v1626, %v1730
    %v1741 = vadd.f32 %v1627, %v1735
    %s1742 = scalar_lea.vmem %s2, 256
    %v1743 = vld [vmem:[%s1742] sm:$0xff]
    %v1744 = vld [vmem:[%s1742 + $0x8] sm:$0xff]
    %v1745 = vld [vmem:[%s1742 + $0x10] sm:$0xff]
    %v1746 = vld [vmem:[%s1742 + $0x18] sm:$0xff]
    %v1747 = vld [vmem:[%s1742 + $0x20] sm:$0xff]
    %v1748 = vld [vmem:[%s1742 + $0x28] sm:$0xff]
    %v1749 = vld [vmem:[%s1742 + $0x30] sm:$0xff]
    %v1750 = vld [vmem:[%s1742 + $0x38] sm:$0xff]
    %1751 = vrot.lane.b32.xlu0 %v1628, 124
    %v1752 = vpop.permute.xlu0 %1751
    %1753 = vrot.lane.b32.xlu0 %v1629, 124
    %v1754 = vpop.permute.xlu0 %1753
    %1755 = vrot.lane.b32.xlu0 %v1630, 124
    %v1756 = vpop.permute.xlu0 %1755
    %1757 = vrot.lane.b32.xlu0 %v1631, 124
    %v1758 = vpop.permute.xlu0 %1757
    %v1759 = vsel %vm1167, %v1752, 0
    %v1761 = vsel %vm1167, %v1754, 0
    %v1763 = vsel %vm1167, %v1756, 0
    %v1765 = vsel %vm1167, %v1758, 0
    %1767 = vmatprep.subr.mxu0 0.0
    %1768 = vmatpush1.msra.mxu0 0.0
    %1769 = vmatprep.subr.mxu0 0.0
    %1770 = vmatpush1.msra.mxu0 0.0
    %1771 = vmatprep.subr.mxu0 0.0
    %1772 = vmatpush1.msra.mxu0 0.0
    %1773 = vmatprep.subr.mxu0 0.0
    %1774 = vmatpush1.msra.mxu0 0.0
    %1775 = vmatprep.subr.mxu0 0.0
    %1776 = vmatpush1.msra.mxu0 0.0
    %1777 = vmatprep.subr.mxu0 0.0
    %1778 = vmatpush1.msra.mxu0 0.0
    %1779 = vmatprep.subr.mxu0 0.0
    %1780 = vmatpush1.msra.mxu0 0.0
    %1781 = vmatprep.subr.mxu0 0.0
    %1782 = vmatpush1.msra.mxu0 0.0
    %1783 = vmatprep.subr.mxu0 0.0
    %1784 = vmatpush1.msra.mxu0 %v1750
    %1785 = vmatprep.subr.mxu0 0.0
    %1786 = vmatpush1.msra.mxu0 %v1749
    %1787 = vmatprep.subr.mxu0 0.0
    %1788 = vmatpush1.msra.mxu0 %v1748
    %1789 = vmatprep.subr.mxu0 0.0
    %1790 = vmatpush1.msra.mxu0 %v1747
    %1791 = vmatprep.subr.mxu0 0.0
    %1792 = vmatpush1.msra.mxu0 %v1746
    %1793 = vmatprep.subr.mxu0 0.0
    %1794 = vmatpush1.msra.mxu0 %v1745
    %1795 = vmatprep.subr.mxu0 0.0
    %1796 = vmatpush1.msra.mxu0 %v1744
    %1797 = vmatprep.subr.mxu0 0.0
    %1798 = vmatpush1.msra.mxu0 %v1743
    %1799 = vmatprep.subr.mxu0 0.0
    %1800 = vmatpush2.msra.mxu0 0.0
    %1801 = vmatprep.subr.mxu0 0.0
    %1802 = vmatpush2.msra.mxu0 0.0
    %1803 = vmatprep.subr.mxu0 0.0
    %1804 = vmatpush2.msra.mxu0 0.0
    %1805 = vmatprep.subr.mxu0 0.0
    %1806 = vmatpush2.msra.mxu0 0.0
    %1807 = vmatprep.subr.mxu0 0.0
    %1808 = vmatpush2.msra.mxu0 0.0
    %1809 = vmatprep.subr.mxu0 0.0
    %1810 = vmatpush2.msra.mxu0 0.0
    %1811 = vmatprep.subr.mxu0 0.0
    %1812 = vmatpush2.msra.mxu0 0.0
    %1813 = vmatprep.subr.mxu0 0.0
    %1814 = vmatpush2.msra.mxu0 0.0
    %1815 = vmatprep.subr.mxu0 0.0
    %1816 = vmatpush2.msra.mxu0 0.0
    %1817 = vmatprep.subr.mxu0 0.0
    %1818 = vmatpush2.msra.mxu0 0.0
    %1819 = vmatprep.subr.mxu0 0.0
    %1820 = vmatpush2.msra.mxu0 0.0
    %1821 = vmatprep.subr.mxu0 0.0
    %1822 = vmatpush2.msra.mxu0 0.0
    %1823 = vmatprep.subr.mxu0 0.0
    %1824 = vmatpush2.msra.mxu0 0.0
    %1825 = vmatprep.subr.mxu0 0.0
    %1826 = vmatpush2.msra.mxu0 0.0
    %1827 = vmatprep.subr.mxu0 0.0
    %1828 = vmatpush2.msra.mxu0 0.0
    %1829 = vmatprep.subr.mxu0 0.0
    %1830 = vmatpush2.msra.mxu0 0.0
    %1831 = vmatprep.mubr.f32.mxu0 0.0
    %1832 = vmatmul.mubr.f32.gmra.mxu0 %v1759
    %v1833 = vpop.f32.mrf.mxu0
    %v1834 = vadd.f32 0.0, %v1833
    %v1835 = vpop.f32.mrf.mxu0
    %1836 = vmatprep.mubr.f32.mxu0 0.0
    %1837 = vmatmul.mubr.f32.gmra.mxu0 %v1761
    %v1838 = vpop.f32.mrf.mxu0
    %v1839 = vadd.f32 0.0, %v1838
    %v1840 = vpop.f32.mrf.mxu0
    %1841 = vmatprep.mubr.f32.mxu0 0.0
    %1842 = vmatmul.mubr.f32.gmra.mxu0 %v1763
    %v1843 = vpop.f32.mrf.mxu0
    %v1844 = vadd.f32 0.0, %v1843
    %v1845 = vpop.f32.mrf.mxu0
    %1846 = vmatprep.mubr.f32.mxu0 0.0
    %1847 = vmatmul.mubr.f32.gmra.mxu0 %v1765
    %v1848 = vpop.f32.mrf.mxu0
    %v1849 = vadd.f32 0.0, %v1848
    %v1850 = vpop.f32.mrf.mxu0
    %1851 = vdwg.mxu0
    %v1852 = vadd.f32 %v1738, %v1834
    %v1853 = vadd.f32 %v1739, %v1839
    %v1854 = vadd.f32 %v1740, %v1844
    %v1855 = vadd.f32 %v1741, %v1849
    %s1856 = scalar_lea.vmem %s2, 320
    %v1857 = vld [vmem:[%s1856] sm:$0xff]
    %v1858 = vld [vmem:[%s1856 + $0x8] sm:$0xff]
    %v1859 = vld [vmem:[%s1856 + $0x10] sm:$0xff]
    %v1860 = vld [vmem:[%s1856 + $0x18] sm:$0xff]
    %v1861 = vld [vmem:[%s1856 + $0x20] sm:$0xff]
    %v1862 = vld [vmem:[%s1856 + $0x28] sm:$0xff]
    %v1863 = vld [vmem:[%s1856 + $0x30] sm:$0xff]
    %v1864 = vld [vmem:[%s1856 + $0x38] sm:$0xff]
    %1865 = vrot.lane.b32.xlu0 %v1628, 120
    %v1866 = vpop.permute.xlu0 %1865
    %1867 = vrot.lane.b32.xlu0 %v1629, 120
    %v1868 = vpop.permute.xlu0 %1867
    %1869 = vrot.lane.b32.xlu0 %v1630, 120
    %v1870 = vpop.permute.xlu0 %1869
    %1871 = vrot.lane.b32.xlu0 %v1631, 120
    %v1872 = vpop.permute.xlu0 %1871
    %v1873 = vsel %vm1167, %v1866, 0
    %v1875 = vsel %vm1167, %v1868, 0
    %v1877 = vsel %vm1167, %v1870, 0
    %v1879 = vsel %vm1167, %v1872, 0
    %1881 = vmatprep.subr.mxu0 0.0
    %1882 = vmatpush1.msra.mxu0 0.0
    %1883 = vmatprep.subr.mxu0 0.0
    %1884 = vmatpush1.msra.mxu0 0.0
    %1885 = vmatprep.subr.mxu0 0.0
    %1886 = vmatpush1.msra.mxu0 0.0
    %1887 = vmatprep.subr.mxu0 0.0
    %1888 = vmatpush1.msra.mxu0 0.0
    %1889 = vmatprep.subr.mxu0 0.0
    %1890 = vmatpush1.msra.mxu0 0.0
    %1891 = vmatprep.subr.mxu0 0.0
    %1892 = vmatpush1.msra.mxu0 0.0
    %1893 = vmatprep.subr.mxu0 0.0
    %1894 = vmatpush1.msra.mxu0 0.0
    %1895 = vmatprep.subr.mxu0 0.0
    %1896 = vmatpush1.msra.mxu0 0.0
    %1897 = vmatprep.subr.mxu0 0.0
    %1898 = vmatpush1.msra.mxu0 %v1864
    %1899 = vmatprep.subr.mxu0 0.0
    %1900 = vmatpush1.msra.mxu0 %v1863
    %1901 = vmatprep.subr.mxu0 0.0
    %1902 = vmatpush1.msra.mxu0 %v1862
    %1903 = vmatprep.subr.mxu0 0.0
    %1904 = vmatpush1.msra.mxu0 %v1861
    %1905 = vmatprep.subr.mxu0 0.0
    %1906 = vmatpush1.msra.mxu0 %v1860
    %1907 = vmatprep.subr.mxu0 0.0
    %1908 = vmatpush1.msra.mxu0 %v1859
    %1909 = vmatprep.subr.mxu0 0.0
    %1910 = vmatpush1.msra.mxu0 %v1858
    %1911 = vmatprep.subr.mxu0 0.0
    %1912 = vmatpush1.msra.mxu0 %v1857
    %1913 = vmatprep.subr.mxu0 0.0
    %1914 = vmatpush2.msra.mxu0 0.0
    %1915 = vmatprep.subr.mxu0 0.0
    %1916 = vmatpush2.msra.mxu0 0.0
    %1917 = vmatprep.subr.mxu0 0.0
    %1918 = vmatpush2.msra.mxu0 0.0
    %1919 = vmatprep.subr.mxu0 0.0
    %1920 = vmatpush2.msra.mxu0 0.0
    %1921 = vmatprep.subr.mxu0 0.0
    %1922 = vmatpush2.msra.mxu0 0.0
    %1923 = vmatprep.subr.mxu0 0.0
    %1924 = vmatpush2.msra.mxu0 0.0
    %1925 = vmatprep.subr.mxu0 0.0
    %1926 = vmatpush2.msra.mxu0 0.0
    %1927 = vmatprep.subr.mxu0 0.0
    %1928 = vmatpush2.msra.mxu0 0.0
    %1929 = vmatprep.subr.mxu0 0.0
    %1930 = vmatpush2.msra.mxu0 0.0
    %1931 = vmatprep.subr.mxu0 0.0
    %1932 = vmatpush2.msra.mxu0 0.0
    %1933 = vmatprep.subr.mxu0 0.0
    %1934 = vmatpush2.msra.mxu0 0.0
    %1935 = vmatprep.subr.mxu0 0.0
    %1936 = vmatpush2.msra.mxu0 0.0
    %1937 = vmatprep.subr.mxu0 0.0
    %1938 = vmatpush2.msra.mxu0 0.0
    %1939 = vmatprep.subr.mxu0 0.0
    %1940 = vmatpush2.msra.mxu0 0.0
    %1941 = vmatprep.subr.mxu0 0.0
    %1942 = vmatpush2.msra.mxu0 0.0
    %1943 = vmatprep.subr.mxu0 0.0
    %1944 = vmatpush2.msra.mxu0 0.0
    %1945 = vmatprep.mubr.f32.mxu0 0.0
    %1946 = vmatmul.mubr.f32.gmra.mxu0 %v1873
    %v1947 = vpop.f32.mrf.mxu0
    %v1948 = vadd.f32 0.0, %v1947
    %v1949 = vpop.f32.mrf.mxu0
    %1950 = vmatprep.mubr.f32.mxu0 0.0
    %1951 = vmatmul.mubr.f32.gmra.mxu0 %v1875
    %v1952 = vpop.f32.mrf.mxu0
    %v1953 = vadd.f32 0.0, %v1952
    %v1954 = vpop.f32.mrf.mxu0
    %1955 = vmatprep.mubr.f32.mxu0 0.0
    %1956 = vmatmul.mubr.f32.gmra.mxu0 %v1877
    %v1957 = vpop.f32.mrf.mxu0
    %v1958 = vadd.f32 0.0, %v1957
    %v1959 = vpop.f32.mrf.mxu0
    %1960 = vmatprep.mubr.f32.mxu0 0.0
    %1961 = vmatmul.mubr.f32.gmra.mxu0 %v1879
    %v1962 = vpop.f32.mrf.mxu0
    %v1963 = vadd.f32 0.0, %v1962
    %v1964 = vpop.f32.mrf.mxu0
    %1965 = vdwg.mxu0
    %v1966 = vadd.f32 %v1852, %v1948
    %v1967 = vadd.f32 %v1853, %v1953
    %v1968 = vadd.f32 %v1854, %v1958
    %v1969 = vadd.f32 %v1855, %v1963
    %v1970 = vld [vmem:[#allocation3 + $0x2] sm:$0xff]
    %v1971 = vld [vmem:[#allocation3 + $0xa] sm:$0xff]
    %v1972 = vld [vmem:[#allocation3 + $0x12] sm:$0xff]
    %v1973 = vld [vmem:[#allocation3 + $0x1a] sm:$0xff]
    %v1974 = vsel %vm144, 0.0, %v1970
    %v1975 = vsel %vm145, 0.0, %v1971
    %v1976 = vsel %vm146, 0.0, %v1972
    %v1977 = vsel %vm147, 0.0, %v1973
    %s1978 = scalar_lea.vmem %s2, 384
    %v1979 = vld [vmem:[%s1978] sm:$0xff]
    %v1980 = vld [vmem:[%s1978 + $0x8] sm:$0xff]
    %v1981 = vld [vmem:[%s1978 + $0x10] sm:$0xff]
    %v1982 = vld [vmem:[%s1978 + $0x18] sm:$0xff]
    %v1983 = vld [vmem:[%s1978 + $0x20] sm:$0xff]
    %v1984 = vld [vmem:[%s1978 + $0x28] sm:$0xff]
    %v1985 = vld [vmem:[%s1978 + $0x30] sm:$0xff]
    %v1986 = vld [vmem:[%s1978 + $0x38] sm:$0xff]
    %v1988 = vsel %vm1167, %v1974, 0
    %v1991 = vsel %vm1167, %v1975, 0
    %v1994 = vsel %vm1167, %v1976, 0
    %v1997 = vsel %vm1167, %v1977, 0
    %1999 = vmatprep.subr.mxu0 0.0
    %2000 = vmatpush1.msra.mxu0 0.0
    %2001 = vmatprep.subr.mxu0 0.0
    %2002 = vmatpush1.msra.mxu0 0.0
    %2003 = vmatprep.subr.mxu0 0.0
    %2004 = vmatpush1.msra.mxu0 0.0
    %2005 = vmatprep.subr.mxu0 0.0
    %2006 = vmatpush1.msra.mxu0 0.0
    %2007 = vmatprep.subr.mxu0 0.0
    %2008 = vmatpush1.msra.mxu0 0.0
    %2009 = vmatprep.subr.mxu0 0.0
    %2010 = vmatpush1.msra.mxu0 0.0
    %2011 = vmatprep.subr.mxu0 0.0
    %2012 = vmatpush1.msra.mxu0 0.0
    %2013 = vmatprep.subr.mxu0 0.0
    %2014 = vmatpush1.msra.mxu0 0.0
    %2015 = vmatprep.subr.mxu0 0.0
    %2016 = vmatpush1.msra.mxu0 %v1986
    %2017 = vmatprep.subr.mxu0 0.0
    %2018 = vmatpush1.msra.mxu0 %v1985
    %2019 = vmatprep.subr.mxu0 0.0
    %2020 = vmatpush1.msra.mxu0 %v1984
    %2021 = vmatprep.subr.mxu0 0.0
    %2022 = vmatpush1.msra.mxu0 %v1983
    %2023 = vmatprep.subr.mxu0 0.0
    %2024 = vmatpush1.msra.mxu0 %v1982
    %2025 = vmatprep.subr.mxu0 0.0
    %2026 = vmatpush1.msra.mxu0 %v1981
    %2027 = vmatprep.subr.mxu0 0.0
    %2028 = vmatpush1.msra.mxu0 %v1980
    %2029 = vmatprep.subr.mxu0 0.0
    %2030 = vmatpush1.msra.mxu0 %v1979
    %2031 = vmatprep.subr.mxu0 0.0
    %2032 = vmatpush2.msra.mxu0 0.0
    %2033 = vmatprep.subr.mxu0 0.0
    %2034 = vmatpush2.msra.mxu0 0.0
    %2035 = vmatprep.subr.mxu0 0.0
    %2036 = vmatpush2.msra.mxu0 0.0
    %2037 = vmatprep.subr.mxu0 0.0
    %2038 = vmatpush2.msra.mxu0 0.0
    %2039 = vmatprep.subr.mxu0 0.0
    %2040 = vmatpush2.msra.mxu0 0.0
    %2041 = vmatprep.subr.mxu0 0.0
    %2042 = vmatpush2.msra.mxu0 0.0
    %2043 = vmatprep.subr.mxu0 0.0
    %2044 = vmatpush2.msra.mxu0 0.0
    %2045 = vmatprep.subr.mxu0 0.0
    %2046 = vmatpush2.msra.mxu0 0.0
    %2047 = vmatprep.subr.mxu0 0.0
    %2048 = vmatpush2.msra.mxu0 0.0
    %2049 = vmatprep.subr.mxu0 0.0
    %2050 = vmatpush2.msra.mxu0 0.0
    %2051 = vmatprep.subr.mxu0 0.0
    %2052 = vmatpush2.msra.mxu0 0.0
    %2053 = vmatprep.subr.mxu0 0.0
    %2054 = vmatpush2.msra.mxu0 0.0
    %2055 = vmatprep.subr.mxu0 0.0
    %2056 = vmatpush2.msra.mxu0 0.0
    %2057 = vmatprep.subr.mxu0 0.0
    %2058 = vmatpush2.msra.mxu0 0.0
    %2059 = vmatprep.subr.mxu0 0.0
    %2060 = vmatpush2.msra.mxu0 0.0
    %2061 = vmatprep.subr.mxu0 0.0
    %2062 = vmatpush2.msra.mxu0 0.0
    %2063 = vmatprep.mubr.f32.mxu0 0.0
    %2064 = vmatmul.mubr.f32.gmra.mxu0 %v1988
    %v2065 = vpop.f32.mrf.mxu0
    %v2066 = vadd.f32 0.0, %v2065
    %v2067 = vpop.f32.mrf.mxu0
    %2068 = vmatprep.mubr.f32.mxu0 0.0
    %2069 = vmatmul.mubr.f32.gmra.mxu0 %v1991
    %v2070 = vpop.f32.mrf.mxu0
    %v2071 = vadd.f32 0.0, %v2070
    %v2072 = vpop.f32.mrf.mxu0
    %2073 = vmatprep.mubr.f32.mxu0 0.0
    %2074 = vmatmul.mubr.f32.gmra.mxu0 %v1994
    %v2075 = vpop.f32.mrf.mxu0
    %v2076 = vadd.f32 0.0, %v2075
    %v2077 = vpop.f32.mrf.mxu0
    %2078 = vmatprep.mubr.f32.mxu0 0.0
    %2079 = vmatmul.mubr.f32.gmra.mxu0 %v1997
    %v2080 = vpop.f32.mrf.mxu0
    %v2081 = vadd.f32 0.0, %v2080
    %v2082 = vpop.f32.mrf.mxu0
    %2083 = vdwg.mxu0
    %v2084 = vadd.f32 %v1966, %v2066
    %v2085 = vadd.f32 %v1967, %v2071
    %v2086 = vadd.f32 %v1968, %v2076
    %v2087 = vadd.f32 %v1969, %v2081
    %s2088 = scalar_lea.vmem %s2, 448
    %v2089 = vld [vmem:[%s2088] sm:$0xff]
    %v2090 = vld [vmem:[%s2088 + $0x8] sm:$0xff]
    %v2091 = vld [vmem:[%s2088 + $0x10] sm:$0xff]
    %v2092 = vld [vmem:[%s2088 + $0x18] sm:$0xff]
    %v2093 = vld [vmem:[%s2088 + $0x20] sm:$0xff]
    %v2094 = vld [vmem:[%s2088 + $0x28] sm:$0xff]
    %v2095 = vld [vmem:[%s2088 + $0x30] sm:$0xff]
    %v2096 = vld [vmem:[%s2088 + $0x38] sm:$0xff]
    %2097 = vrot.lane.b32.xlu0 %v1974, 124
    %v2098 = vpop.permute.xlu0 %2097
    %2099 = vrot.lane.b32.xlu0 %v1975, 124
    %v2100 = vpop.permute.xlu0 %2099
    %2101 = vrot.lane.b32.xlu0 %v1976, 124
    %v2102 = vpop.permute.xlu0 %2101
    %2103 = vrot.lane.b32.xlu0 %v1977, 124
    %v2104 = vpop.permute.xlu0 %2103
    %v2105 = vsel %vm1167, %v2098, 0
    %v2107 = vsel %vm1167, %v2100, 0
    %v2109 = vsel %vm1167, %v2102, 0
    %v2111 = vsel %vm1167, %v2104, 0
    %2113 = vmatprep.subr.mxu0 0.0
    %2114 = vmatpush1.msra.mxu0 0.0
    %2115 = vmatprep.subr.mxu0 0.0
    %2116 = vmatpush1.msra.mxu0 0.0
    %2117 = vmatprep.subr.mxu0 0.0
    %2118 = vmatpush1.msra.mxu0 0.0
    %2119 = vmatprep.subr.mxu0 0.0
    %2120 = vmatpush1.msra.mxu0 0.0
    %2121 = vmatprep.subr.mxu0 0.0
    %2122 = vmatpush1.msra.mxu0 0.0
    %2123 = vmatprep.subr.mxu0 0.0
    %2124 = vmatpush1.msra.mxu0 0.0
    %2125 = vmatprep.subr.mxu0 0.0
    %2126 = vmatpush1.msra.mxu0 0.0
    %2127 = vmatprep.subr.mxu0 0.0
    %2128 = vmatpush1.msra.mxu0 0.0
    %2129 = vmatprep.subr.mxu0 0.0
    %2130 = vmatpush1.msra.mxu0 %v2096
    %2131 = vmatprep.subr.mxu0 0.0
    %2132 = vmatpush1.msra.mxu0 %v2095
    %2133 = vmatprep.subr.mxu0 0.0
    %2134 = vmatpush1.msra.mxu0 %v2094
    %2135 = vmatprep.subr.mxu0 0.0
    %2136 = vmatpush1.msra.mxu0 %v2093
    %2137 = vmatprep.subr.mxu0 0.0
    %2138 = vmatpush1.msra.mxu0 %v2092
    %2139 = vmatprep.subr.mxu0 0.0
    %2140 = vmatpush1.msra.mxu0 %v2091
    %2141 = vmatprep.subr.mxu0 0.0
    %2142 = vmatpush1.msra.mxu0 %v2090
    %2143 = vmatprep.subr.mxu0 0.0
    %2144 = vmatpush1.msra.mxu0 %v2089
    %2145 = vmatprep.subr.mxu0 0.0
    %2146 = vmatpush2.msra.mxu0 0.0
    %2147 = vmatprep.subr.mxu0 0.0
    %2148 = vmatpush2.msra.mxu0 0.0
    %2149 = vmatprep.subr.mxu0 0.0
    %2150 = vmatpush2.msra.mxu0 0.0
    %2151 = vmatprep.subr.mxu0 0.0
    %2152 = vmatpush2.msra.mxu0 0.0
    %2153 = vmatprep.subr.mxu0 0.0
    %2154 = vmatpush2.msra.mxu0 0.0
    %2155 = vmatprep.subr.mxu0 0.0
    %2156 = vmatpush2.msra.mxu0 0.0
    %2157 = vmatprep.subr.mxu0 0.0
    %2158 = vmatpush2.msra.mxu0 0.0
    %2159 = vmatprep.subr.mxu0 0.0
    %2160 = vmatpush2.msra.mxu0 0.0
    %2161 = vmatprep.subr.mxu0 0.0
    %2162 = vmatpush2.msra.mxu0 0.0
    %2163 = vmatprep.subr.mxu0 0.0
    %2164 = vmatpush2.msra.mxu0 0.0
    %2165 = vmatprep.subr.mxu0 0.0
    %2166 = vmatpush2.msra.mxu0 0.0
    %2167 = vmatprep.subr.mxu0 0.0
    %2168 = vmatpush2.msra.mxu0 0.0
    %2169 = vmatprep.subr.mxu0 0.0
    %2170 = vmatpush2.msra.mxu0 0.0
    %2171 = vmatprep.subr.mxu0 0.0
    %2172 = vmatpush2.msra.mxu0 0.0
    %2173 = vmatprep.subr.mxu0 0.0
    %2174 = vmatpush2.msra.mxu0 0.0
    %2175 = vmatprep.subr.mxu0 0.0
    %2176 = vmatpush2.msra.mxu0 0.0
    %2177 = vmatprep.mubr.f32.mxu0 0.0
    %2178 = vmatmul.mubr.f32.gmra.mxu0 %v2105
    %v2179 = vpop.f32.mrf.mxu0
    %v2180 = vadd.f32 0.0, %v2179
    %v2181 = vpop.f32.mrf.mxu0
    %2182 = vmatprep.mubr.f32.mxu0 0.0
    %2183 = vmatmul.mubr.f32.gmra.mxu0 %v2107
    %v2184 = vpop.f32.mrf.mxu0
    %v2185 = vadd.f32 0.0, %v2184
    %v2186 = vpop.f32.mrf.mxu0
    %2187 = vmatprep.mubr.f32.mxu0 0.0
    %2188 = vmatmul.mubr.f32.gmra.mxu0 %v2109
    %v2189 = vpop.f32.mrf.mxu0
    %v2190 = vadd.f32 0.0, %v2189
    %v2191 = vpop.f32.mrf.mxu0
    %2192 = vmatprep.mubr.f32.mxu0 0.0
    %2193 = vmatmul.mubr.f32.gmra.mxu0 %v2111
    %v2194 = vpop.f32.mrf.mxu0
    %v2195 = vadd.f32 0.0, %v2194
    %v2196 = vpop.f32.mrf.mxu0
    %2197 = vdwg.mxu0
    %v2198 = vadd.f32 %v2084, %v2180
    %v2199 = vadd.f32 %v2085, %v2185
    %v2200 = vadd.f32 %v2086, %v2190
    %v2201 = vadd.f32 %v2087, %v2195
    %s2202 = scalar_lea.vmem %s2, 512
    %v2203 = vld [vmem:[%s2202] sm:$0xff]
    %v2204 = vld [vmem:[%s2202 + $0x8] sm:$0xff]
    %v2205 = vld [vmem:[%s2202 + $0x10] sm:$0xff]
    %v2206 = vld [vmem:[%s2202 + $0x18] sm:$0xff]
    %v2207 = vld [vmem:[%s2202 + $0x20] sm:$0xff]
    %v2208 = vld [vmem:[%s2202 + $0x28] sm:$0xff]
    %v2209 = vld [vmem:[%s2202 + $0x30] sm:$0xff]
    %v2210 = vld [vmem:[%s2202 + $0x38] sm:$0xff]
    %2211 = vrot.lane.b32.xlu0 %v1974, 120
    %v2212 = vpop.permute.xlu0 %2211
    %2213 = vrot.lane.b32.xlu0 %v1975, 120
    %v2214 = vpop.permute.xlu0 %2213
    %2215 = vrot.lane.b32.xlu0 %v1976, 120
    %v2216 = vpop.permute.xlu0 %2215
    %2217 = vrot.lane.b32.xlu0 %v1977, 120
    %v2218 = vpop.permute.xlu0 %2217
    %v2219 = vsel %vm1167, %v2212, 0
    %v2221 = vsel %vm1167, %v2214, 0
    %v2223 = vsel %vm1167, %v2216, 0
    %v2225 = vsel %vm1167, %v2218, 0
    %2227 = vmatprep.subr.mxu0 0.0
    %2228 = vmatpush1.msra.mxu0 0.0
    %2229 = vmatprep.subr.mxu0 0.0
    %2230 = vmatpush1.msra.mxu0 0.0
    %2231 = vmatprep.subr.mxu0 0.0
    %2232 = vmatpush1.msra.mxu0 0.0
    %2233 = vmatprep.subr.mxu0 0.0
    %2234 = vmatpush1.msra.mxu0 0.0
    %2235 = vmatprep.subr.mxu0 0.0
    %2236 = vmatpush1.msra.mxu0 0.0
    %2237 = vmatprep.subr.mxu0 0.0
    %2238 = vmatpush1.msra.mxu0 0.0
    %2239 = vmatprep.subr.mxu0 0.0
    %2240 = vmatpush1.msra.mxu0 0.0
    %2241 = vmatprep.subr.mxu0 0.0
    %2242 = vmatpush1.msra.mxu0 0.0
    %2243 = vmatprep.subr.mxu0 0.0
    %2244 = vmatpush1.msra.mxu0 %v2210
    %2245 = vmatprep.subr.mxu0 0.0
    %2246 = vmatpush1.msra.mxu0 %v2209
    %2247 = vmatprep.subr.mxu0 0.0
    %2248 = vmatpush1.msra.mxu0 %v2208
    %2249 = vmatprep.subr.mxu0 0.0
    %2250 = vmatpush1.msra.mxu0 %v2207
    %2251 = vmatprep.subr.mxu0 0.0
    %2252 = vmatpush1.msra.mxu0 %v2206
    %2253 = vmatprep.subr.mxu0 0.0
    %2254 = vmatpush1.msra.mxu0 %v2205
    %2255 = vmatprep.subr.mxu0 0.0
    %2256 = vmatpush1.msra.mxu0 %v2204
    %2257 = vmatprep.subr.mxu0 0.0
    %2258 = vmatpush1.msra.mxu0 %v2203
    %2259 = vmatprep.subr.mxu0 0.0
    %2260 = vmatpush2.msra.mxu0 0.0
    %2261 = vmatprep.subr.mxu0 0.0
    %2262 = vmatpush2.msra.mxu0 0.0
    %2263 = vmatprep.subr.mxu0 0.0
    %2264 = vmatpush2.msra.mxu0 0.0
    %2265 = vmatprep.subr.mxu0 0.0
    %2266 = vmatpush2.msra.mxu0 0.0
    %2267 = vmatprep.subr.mxu0 0.0
    %2268 = vmatpush2.msra.mxu0 0.0
    %2269 = vmatprep.subr.mxu0 0.0
    %2270 = vmatpush2.msra.mxu0 0.0
    %2271 = vmatprep.subr.mxu0 0.0
    %2272 = vmatpush2.msra.mxu0 0.0
    %2273 = vmatprep.subr.mxu0 0.0
    %2274 = vmatpush2.msra.mxu0 0.0
    %2275 = vmatprep.subr.mxu0 0.0
    %2276 = vmatpush2.msra.mxu0 0.0
    %2277 = vmatprep.subr.mxu0 0.0
    %2278 = vmatpush2.msra.mxu0 0.0
    %2279 = vmatprep.subr.mxu0 0.0
    %2280 = vmatpush2.msra.mxu0 0.0
    %2281 = vmatprep.subr.mxu0 0.0
    %2282 = vmatpush2.msra.mxu0 0.0
    %2283 = vmatprep.subr.mxu0 0.0
    %2284 = vmatpush2.msra.mxu0 0.0
    %2285 = vmatprep.subr.mxu0 0.0
    %2286 = vmatpush2.msra.mxu0 0.0
    %2287 = vmatprep.subr.mxu0 0.0
    %2288 = vmatpush2.msra.mxu0 0.0
    %2289 = vmatprep.subr.mxu0 0.0
    %2290 = vmatpush2.msra.mxu0 0.0
    %2291 = vmatprep.mubr.f32.mxu0 0.0
    %2292 = vmatmul.mubr.f32.gmra.mxu0 %v2219
    %v2293 = vpop.f32.mrf.mxu0
    %v2294 = vadd.f32 0.0, %v2293
    %v2295 = vpop.f32.mrf.mxu0
    %2296 = vmatprep.mubr.f32.mxu0 0.0
    %2297 = vmatmul.mubr.f32.gmra.mxu0 %v2221
    %v2298 = vpop.f32.mrf.mxu0
    %v2299 = vadd.f32 0.0, %v2298
    %v2300 = vpop.f32.mrf.mxu0
    %2301 = vmatprep.mubr.f32.mxu0 0.0
    %2302 = vmatmul.mubr.f32.gmra.mxu0 %v2223
    %v2303 = vpop.f32.mrf.mxu0
    %v2304 = vadd.f32 0.0, %v2303
    %v2305 = vpop.f32.mrf.mxu0
    %2306 = vmatprep.mubr.f32.mxu0 0.0
    %2307 = vmatmul.mubr.f32.gmra.mxu0 %v2225
    %v2308 = vpop.f32.mrf.mxu0
    %v2309 = vadd.f32 0.0, %v2308
    %v2310 = vpop.f32.mrf.mxu0
    %2311 = vdwg.mxu0
    %v2312 = vadd.f32 %v2198, %v2294
    %v2313 = vadd.f32 %v2199, %v2299
    %v2314 = vadd.f32 %v2200, %v2304
    %v2315 = vadd.f32 %v2201, %v2309
    %v2316 = vld [vmem:[%s6] sm:$0x1]
    %v2317 = vld [vmem:[%s6 + $0x1] sm:$0x1]
    %v2318 = vld [vmem:[%s6 + $0x2] sm:$0x1]
    %v2319 = vlaneseq
    %v2320 = vshrl.u32 %v2319, 7
    %v2321 = vsub.s32 0, %v2320
    %v2322 = vrot.slane %v2316, %v2321
    %v2323 = vadd.f32 %v2312, %v2322
    %v2324 = vadd.f32 %v2313, %v2322
    %v2325 = vadd.f32 %v2314, %v2322
    %v2326 = vadd.f32 %v2315, %v2322
    %2327 = vadd.xlane.f32.xlu0 %v2323
    %v2328 = vpop.xlane.xlu0 %2327
    %2329 = vadd.xlane.f32.xlu0 %v2324
    %v2330 = vpop.xlane.xlu0 %2329
    %v2331 = vadd.f32 %v2328, %v2330
    %v2332 = vrot.slane %v2331, 4
    %v2333 = vadd.f32 %v2331, %v2332
    %v2334 = vrot.slane %v2333, 2
    %v2335 = vadd.f32 %v2333, %v2334
    %v2336 = vrot.slane %v2335, 1
    %v2337 = vadd.f32 %v2335, %v2336
    %v2338 = vmul.f32 %v2337, 0.00048828125
    %v2339 = vmul.f32 %v2323, %v2323
    %v2340 = vmul.f32 %v2324, %v2324
    %2341 = vadd.xlane.f32.xlu0 %v2339
    %v2342 = vpop.xlane.xlu0 %2341
    %2343 = vadd.xlane.f32.xlu0 %v2340
    %v2344 = vpop.xlane.xlu0 %2343
    %v2345 = vadd.f32 %v2342, %v2344
    %v2346 = vrot.slane %v2345, 4
    %v2347 = vadd.f32 %v2345, %v2346
    %v2348 = vrot.slane %v2347, 2
    %v2349 = vadd.f32 %v2347, %v2348
    %v2350 = vrot.slane %v2349, 1
    %v2351 = vadd.f32 %v2349, %v2350
    %v2352 = vmul.f32 %v2351, 0.00048828125
    %v2353 = vmul.f32 %v2338, %v2338
    %v2354 = vsub.f32 %v2352, %v2353
    %v2355 = vadd.f32 %v2354, 1e-05
    %v2356 = vrsqrt.pop %v2355
    %v2357 = vmul.f32 %v2317, %v2356
    %v2358 = vmul.f32 %v2338, %v2357
    %v2359 = vsub.f32 %v2318, %v2358
    %v2360 = vlaneseq
    %v2361 = vshrl.u32 %v2360, 7
    %v2362 = vsub.s32 0, %v2361
    %v2363 = vrot.slane %v2357, %v2362
    %v2364 = vmul.f32 %v2323, %v2363
    %v2365 = vmul.f32 %v2324, %v2363
    %v2366 = vlaneseq
    %v2367 = vshrl.u32 %v2366, 7
    %v2368 = vsub.s32 0, %v2367
    %v2369 = vrot.slane %v2359, %v2368
    %v2370 = vadd.f32 %v2364, %v2369
    %v2371 = vadd.f32 %v2365, %v2369
    %v2372 = vmax.f32 %v2370, 0.0
    %v2373 = vmax.f32 %v2371, 0.0
    %2374 = vadd.xlane.f32.xlu0 %v2325
    %v2375 = vpop.xlane.xlu0 %2374
    %2376 = vadd.xlane.f32.xlu0 %v2326
    %v2377 = vpop.xlane.xlu0 %2376
    %v2378 = vadd.f32 %v2375, %v2377
    %v2379 = vrot.slane %v2378, 4
    %v2380 = vadd.f32 %v2378, %v2379
    %v2381 = vrot.slane %v2380, 2
    %v2382 = vadd.f32 %v2380, %v2381
    %v2383 = vrot.slane %v2382, 1
    %v2384 = vadd.f32 %v2382, %v2383
    %v2385 = vmul.f32 %v2384, 0.00048828125
    %v2386 = vmul.f32 %v2325, %v2325
    %v2387 = vmul.f32 %v2326, %v2326
    %2388 = vadd.xlane.f32.xlu0 %v2386
    %v2389 = vpop.xlane.xlu0 %2388
    %2390 = vadd.xlane.f32.xlu0 %v2387
    %v2391 = vpop.xlane.xlu0 %2390
    %v2392 = vadd.f32 %v2389, %v2391
    %v2393 = vrot.slane %v2392, 4
    %v2394 = vadd.f32 %v2392, %v2393
    %v2395 = vrot.slane %v2394, 2
    %v2396 = vadd.f32 %v2394, %v2395
    %v2397 = vrot.slane %v2396, 1
    %v2398 = vadd.f32 %v2396, %v2397
    %v2399 = vmul.f32 %v2398, 0.00048828125
    %v2400 = vmul.f32 %v2385, %v2385
    %v2401 = vsub.f32 %v2399, %v2400
    %v2402 = vadd.f32 %v2401, 1e-05
    %v2403 = vrsqrt.pop %v2402
    %v2404 = vmul.f32 %v2317, %v2403
    %v2405 = vmul.f32 %v2385, %v2404
    %v2406 = vsub.f32 %v2318, %v2405
    %v2407 = vlaneseq
    %v2408 = vshrl.u32 %v2407, 7
    %v2409 = vsub.s32 0, %v2408
    %v2410 = vrot.slane %v2404, %v2409
    %v2411 = vmul.f32 %v2325, %v2410
    %v2412 = vmul.f32 %v2326, %v2410
    %v2413 = vlaneseq
    %v2414 = vshrl.u32 %v2413, 7
    %v2415 = vsub.s32 0, %v2414
    %v2416 = vrot.slane %v2406, %v2415
    %v2417 = vadd.f32 %v2411, %v2416
    %v2418 = vadd.f32 %v2412, %v2416
    %v2419 = vmax.f32 %v2417, 0.0
    %v2420 = vmax.f32 %v2418, 0.0
    %2421 = vst [vmem:[#allocation6] sm:$0xff] %v2372
    %2422 = vst [vmem:[#allocation6 + $0x8] sm:$0xff] %v2373
    %2423 = vst [vmem:[#allocation6 + $0x10] sm:$0xff] %v2419
    %2424 = vst [vmem:[#allocation6 + $0x18] sm:$0xff] %v2420
    %v2425 = vld [vmem:[#allocation6] ss:$2 sm:$0xff]
    %s2426 = scalar_lea.vmem [#allocation6], 16
    %v2427 = vld [vmem:[%s2426] ss:$2 sm:$0xff]
    %s2428 = scalar_lea.vmem [#allocation6], 1
    %v2429 = vld [vmem:[%s2428] ss:$2 sm:$0xff]
    %s2430 = scalar_lea.vmem [#allocation6], 17
    %v2431 = vld [vmem:[%s2430] ss:$2 sm:$0xff]
    %v2432 = vmax.f32 %v2425, %v2429
    %v2433 = vmax.f32 %v2427, %v2431
    %2436 = vrot.lane.b32.xlu0 %v2432, 120
    %v2437 = vpop.permute.xlu0 %2436
    %2438 = vrot.lane.b32.xlu0 %v2433, 120
    %v2439 = vpop.permute.xlu0 %2438
    %v2442 = vmax.f32 %v2432, %v2437
    %v2443 = vmax.f32 %v2433, %v2439
    %2446 = vrot.lane.b32.xlu0 %v2442, 8
    %v2447 = vpop.permute.xlu0 %2446
    %2448 = vrot.lane.b32.xlu0 %v2443, 8
    %v2449 = vpop.permute.xlu0 %2448
    %vm2452 = vcmask 130112
    %2453 = vst.msk [vmem:[#allocation4 + $0x1] sm:$0xff] %vm2452, %v2447
    %2454 = vst.msk [vmem:[#allocation4 + $0x9] sm:$0xff] %vm2452, %v2449
    %vm2455 = vcmask 195712
    %2456 = vst.msk [vmem:[#allocation4 + $0x1] sm:$0xff] %vm2455, %v2442
    %2457 = vst.msk [vmem:[#allocation4 + $0x9] sm:$0xff] %vm2455, %v2443
    %2458 = vrot.lane.b32.xlu0 %v2442, 120
    %v2459 = vpop.permute.xlu0 %2458
    %2460 = vrot.lane.b32.xlu0 %v2443, 120
    %v2461 = vpop.permute.xlu0 %2460
    %vm2464 = vcmask 261312
    %2465 = vst.msk [vmem:[#allocation4 + $0x1] sm:$0xff] %vm2464, %v2459
    %2466 = vst.msk [vmem:[#allocation4 + $0x9] sm:$0xff] %vm2464, %v2461
    %2467 = vrot.lane.b32.xlu0 %v2442, 112
    %v2468 = vpop.permute.xlu0 %2467
    %2469 = vrot.lane.b32.xlu0 %v2443, 112
    %v2470 = vpop.permute.xlu0 %2469
    %vm2473 = vcmask 326912
    %2474 = vst.msk [vmem:[#allocation4 + $0x1] sm:$0xff] %vm2473, %v2468
    %2475 = vst.msk [vmem:[#allocation4 + $0x9] sm:$0xff] %vm2473, %v2470
    %2476 = vrot.lane.b32.xlu0 %v2442, 104
    %v2477 = vpop.permute.xlu0 %2476
    %2478 = vrot.lane.b32.xlu0 %v2443, 104
    %v2479 = vpop.permute.xlu0 %2478
    %vm2482 = vcmask 392512
    %2483 = vst.msk [vmem:[#allocation4 + $0x1] sm:$0xff] %vm2482, %v2477
    %2484 = vst.msk [vmem:[#allocation4 + $0x9] sm:$0xff] %vm2482, %v2479
    %2485 = vrot.lane.b32.xlu0 %v2442, 96
    %v2486 = vpop.permute.xlu0 %2485
    %2487 = vrot.lane.b32.xlu0 %v2443, 96
    %v2488 = vpop.permute.xlu0 %2487
    %vm2491 = vcmask 458112
    %2492 = vst.msk [vmem:[#allocation4 + $0x1] sm:$0xff] %vm2491, %v2486
    %2493 = vst.msk [vmem:[#allocation4 + $0x9] sm:$0xff] %vm2491, %v2488
    %2494 = vrot.lane.b32.xlu0 %v2442, 88
    %v2495 = vpop.permute.xlu0 %2494
    %2496 = vrot.lane.b32.xlu0 %v2443, 88
    %v2497 = vpop.permute.xlu0 %2496
    %vm2500 = vcmask 523712
    %2501 = vst.msk [vmem:[#allocation4 + $0x1] sm:$0xff] %vm2500, %v2495
    %2502 = vst.msk [vmem:[#allocation4 + $0x9] sm:$0xff] %vm2500, %v2497
    %2503 = vrot.lane.b32.xlu0 %v2442, 80
    %v2504 = vpop.permute.xlu0 %2503
    %2505 = vrot.lane.b32.xlu0 %v2443, 80
    %v2506 = vpop.permute.xlu0 %2505
    %vm2509 = vcmask 589312
    %2510 = vst.msk [vmem:[#allocation4 + $0x1] sm:$0xff] %vm2509, %v2504
    %2511 = vst.msk [vmem:[#allocation4 + $0x9] sm:$0xff] %vm2509, %v2506
    %vm2512 = vcmp.lt.s32.totalorder %v88, 0
    %v2513 = vsub.s32 0, %v88
    %v2514 = vsel %vm2512, %v2513, %v88
    %v2515 = vshrl.u32 %v2514, 3
    %v2516 = vand.u32 %v2514, 7
    %v2517 = vsub.s32 0, %v2516
    %v2518 = vsel %vm2512, %v2517, %v2516
    %vm2519 = vcmp.lt.s32.totalorder %v89, 0
    %v2520 = vsub.s32 0, %v89
    %v2521 = vsel %vm2519, %v2520, %v89
    %v2522 = vshrl.u32 %v2521, 3
    %v2523 = vand.u32 %v2521, 7
    %v2524 = vsub.s32 0, %v2523
    %v2525 = vsel %vm2519, %v2524, %v2523
    %vm2526 = vcmp.ne.s32.totalorder %v2518, 0
    %vm2527 = vcmp.ne.s32.totalorder %v2525, 0
    %vm2528 = vcmp.lt.s32.totalorder %v2518, 0
    %vm2529 = vcmp.lt.s32.totalorder %v2525, 0
    %vm2530 = vmand %vm2528, %vm2526
    %vm2531 = vmand %vm2529, %vm2527
    %v2532 = vadd.s32 %v2518, 8
    %v2533 = vadd.s32 %v2525, 8
    %v2534 = vsel %vm2530, %v2532, %v2518
    %v2535 = vsel %vm2531, %v2533, %v2525
    %vm2536 = vcmp.eq.s32.totalorder %v2534, 0
    %vm2537 = vcmp.eq.s32.totalorder %v2535, 0
    %vm2538 = vcmp.eq.s32.totalorder %v2534, 7
    %vm2539 = vcmp.eq.s32.totalorder %v2535, 7
    %v2540 = vld [vmem:[#allocation4] sm:$0xff]
    %v2541 = vld [vmem:[#allocation4 + $0x8] sm:$0xff]
    %v2542 = vsel %vm2536, 0.0, %v2540
    %v2543 = vsel %vm2537, 0.0, %v2541
    %v2544 = vld [vmem:[%s3] sm:$0xff]
    %v2545 = vld [vmem:[%s3 + $0x8] sm:$0xff]
    %v2546 = vld [vmem:[%s3 + $0x10] sm:$0xff]
    %v2547 = vld [vmem:[%s3 + $0x18] sm:$0xff]
    %v2548 = vld [vmem:[%s3 + $0x20] sm:$0xff]
    %v2549 = vld [vmem:[%s3 + $0x28] sm:$0xff]
    %v2550 = vld [vmem:[%s3 + $0x30] sm:$0xff]
    %v2551 = vld [vmem:[%s3 + $0x38] sm:$0xff]
    %s2552 = scalar_lea.vmem %s3, 64
    %v2553 = vld [vmem:[%s2552] sm:$0xff]
    %v2554 = vld [vmem:[%s2552 + $0x8] sm:$0xff]
    %v2555 = vld [vmem:[%s2552 + $0x10] sm:$0xff]
    %v2556 = vld [vmem:[%s2552 + $0x18] sm:$0xff]
    %v2557 = vld [vmem:[%s2552 + $0x20] sm:$0xff]
    %v2558 = vld [vmem:[%s2552 + $0x28] sm:$0xff]
    %v2559 = vld [vmem:[%s2552 + $0x30] sm:$0xff]
    %v2560 = vld [vmem:[%s2552 + $0x38] sm:$0xff]
    %2563 = vrot.lane.b32.xlu0 %v2542, 120
    %v2564 = vpop.permute.xlu0 %2563
    %2565 = vrot.lane.b32.xlu0 %v2543, 120
    %v2566 = vpop.permute.xlu0 %2565
    %v2567 = vsel %vm1167, %v2564, 0
    %v2569 = vsel %vm1167, %v2566, 0
    %2571 = vmatprep.subr.mxu0 0.0
    %2572 = vmatpush1.msra.mxu0 0.0
    %2573 = vmatprep.subr.mxu0 0.0
    %2574 = vmatpush1.msra.mxu0 0.0
    %2575 = vmatprep.subr.mxu0 0.0
    %2576 = vmatpush1.msra.mxu0 0.0
    %2577 = vmatprep.subr.mxu0 0.0
    %2578 = vmatpush1.msra.mxu0 0.0
    %2579 = vmatprep.subr.mxu0 0.0
    %2580 = vmatpush1.msra.mxu0 0.0
    %2581 = vmatprep.subr.mxu0 0.0
    %2582 = vmatpush1.msra.mxu0 0.0
    %2583 = vmatprep.subr.mxu0 0.0
    %2584 = vmatpush1.msra.mxu0 0.0
    %2585 = vmatprep.subr.mxu0 0.0
    %2586 = vmatpush1.msra.mxu0 0.0
    %2587 = vmatprep.subr.mxu0 0.0
    %2588 = vmatpush1.msra.mxu0 %v2560
    %2589 = vmatprep.subr.mxu0 0.0
    %2590 = vmatpush1.msra.mxu0 %v2559
    %2591 = vmatprep.subr.mxu0 0.0
    %2592 = vmatpush1.msra.mxu0 %v2558
    %2593 = vmatprep.subr.mxu0 0.0
    %2594 = vmatpush1.msra.mxu0 %v2557
    %2595 = vmatprep.subr.mxu0 0.0
    %2596 = vmatpush1.msra.mxu0 %v2556
    %2597 = vmatprep.subr.mxu0 0.0
    %2598 = vmatpush1.msra.mxu0 %v2555
    %2599 = vmatprep.subr.mxu0 0.0
    %2600 = vmatpush1.msra.mxu0 %v2554
    %2601 = vmatprep.subr.mxu0 0.0
    %2602 = vmatpush1.msra.mxu0 %v2553
    %2603 = vmatprep.subr.mxu0 0.0
    %2604 = vmatpush2.msra.mxu0 0.0
    %2605 = vmatprep.subr.mxu0 0.0
    %2606 = vmatpush2.msra.mxu0 0.0
    %2607 = vmatprep.subr.mxu0 0.0
    %2608 = vmatpush2.msra.mxu0 0.0
    %2609 = vmatprep.subr.mxu0 0.0
    %2610 = vmatpush2.msra.mxu0 0.0
    %2611 = vmatprep.subr.mxu0 0.0
    %2612 = vmatpush2.msra.mxu0 0.0
    %2613 = vmatprep.subr.mxu0 0.0
    %2614 = vmatpush2.msra.mxu0 0.0
    %2615 = vmatprep.subr.mxu0 0.0
    %2616 = vmatpush2.msra.mxu0 0.0
    %2617 = vmatprep.subr.mxu0 0.0
    %2618 = vmatpush2.msra.mxu0 0.0
    %2619 = vmatprep.subr.mxu0 0.0
    %2620 = vmatpush2.msra.mxu0 0.0
    %2621 = vmatprep.subr.mxu0 0.0
    %2622 = vmatpush2.msra.mxu0 0.0
    %2623 = vmatprep.subr.mxu0 0.0
    %2624 = vmatpush2.msra.mxu0 0.0
    %2625 = vmatprep.subr.mxu0 0.0
    %2626 = vmatpush2.msra.mxu0 0.0
    %2627 = vmatprep.subr.mxu0 0.0
    %2628 = vmatpush2.msra.mxu0 0.0
    %2629 = vmatprep.subr.mxu0 0.0
    %2630 = vmatpush2.msra.mxu0 0.0
    %2631 = vmatprep.subr.mxu0 0.0
    %2632 = vmatpush2.msra.mxu0 0.0
    %2633 = vmatprep.subr.mxu0 0.0
    %2634 = vmatpush2.msra.mxu0 0.0
    %2635 = vmatprep.mubr.f32.mxu0 0.0
    %2636 = vmatmul.mubr.f32.gmra.mxu0 %v2567
    %v2637 = vpop.f32.mrf.mxu0
    %v2638 = vadd.f32 0.0, %v2637
    %v2639 = vpop.f32.mrf.mxu0
    %2640 = vmatprep.mubr.f32.mxu0 0.0
    %2641 = vmatmul.mubr.f32.gmra.mxu0 %v2569
    %v2642 = vpop.f32.mrf.mxu0
    %v2643 = vadd.f32 0.0, %v2642
    %v2644 = vpop.f32.mrf.mxu0
    %2645 = vdwg.mxu0
    %v2646 = vsel %vm1167, %v2542, 0
    %v2648 = vsel %vm1167, %v2543, 0
    %2650 = vmatprep.subr.mxu0 0.0
    %2651 = vmatpush1.msra.mxu0 0.0
    %2652 = vmatprep.subr.mxu0 0.0
    %2653 = vmatpush1.msra.mxu0 0.0
    %2654 = vmatprep.subr.mxu0 0.0
    %2655 = vmatpush1.msra.mxu0 0.0
    %2656 = vmatprep.subr.mxu0 0.0
    %2657 = vmatpush1.msra.mxu0 0.0
    %2658 = vmatprep.subr.mxu0 0.0
    %2659 = vmatpush1.msra.mxu0 0.0
    %2660 = vmatprep.subr.mxu0 0.0
    %2661 = vmatpush1.msra.mxu0 0.0
    %2662 = vmatprep.subr.mxu0 0.0
    %2663 = vmatpush1.msra.mxu0 0.0
    %2664 = vmatprep.subr.mxu0 0.0
    %2665 = vmatpush1.msra.mxu0 0.0
    %2666 = vmatprep.subr.mxu0 0.0
    %2667 = vmatpush1.msra.mxu0 %v2551
    %2668 = vmatprep.subr.mxu0 0.0
    %2669 = vmatpush1.msra.mxu0 %v2550
    %2670 = vmatprep.subr.mxu0 0.0
    %2671 = vmatpush1.msra.mxu0 %v2549
    %2672 = vmatprep.subr.mxu0 0.0
    %2673 = vmatpush1.msra.mxu0 %v2548
    %2674 = vmatprep.subr.mxu0 0.0
    %2675 = vmatpush1.msra.mxu0 %v2547
    %2676 = vmatprep.subr.mxu0 0.0
    %2677 = vmatpush1.msra.mxu0 %v2546
    %2678 = vmatprep.subr.mxu0 0.0
    %2679 = vmatpush1.msra.mxu0 %v2545
    %2680 = vmatprep.subr.mxu0 0.0
    %2681 = vmatpush1.msra.mxu0 %v2544
    %2682 = vmatprep.subr.mxu0 0.0
    %2683 = vmatpush2.msra.mxu0 0.0
    %2684 = vmatprep.subr.mxu0 0.0
    %2685 = vmatpush2.msra.mxu0 0.0
    %2686 = vmatprep.subr.mxu0 0.0
    %2687 = vmatpush2.msra.mxu0 0.0
    %2688 = vmatprep.subr.mxu0 0.0
    %2689 = vmatpush2.msra.mxu0 0.0
    %2690 = vmatprep.subr.mxu0 0.0
    %2691 = vmatpush2.msra.mxu0 0.0
    %2692 = vmatprep.subr.mxu0 0.0
    %2693 = vmatpush2.msra.mxu0 0.0
    %2694 = vmatprep.subr.mxu0 0.0
    %2695 = vmatpush2.msra.mxu0 0.0
    %2696 = vmatprep.subr.mxu0 0.0
    %2697 = vmatpush2.msra.mxu0 0.0
    %2698 = vmatprep.subr.mxu0 0.0
    %2699 = vmatpush2.msra.mxu0 0.0
    %2700 = vmatprep.subr.mxu0 0.0
    %2701 = vmatpush2.msra.mxu0 0.0
    %2702 = vmatprep.subr.mxu0 0.0
    %2703 = vmatpush2.msra.mxu0 0.0
    %2704 = vmatprep.subr.mxu0 0.0
    %2705 = vmatpush2.msra.mxu0 0.0
    %2706 = vmatprep.subr.mxu0 0.0
    %2707 = vmatpush2.msra.mxu0 0.0
    %2708 = vmatprep.subr.mxu0 0.0
    %2709 = vmatpush2.msra.mxu0 0.0
    %2710 = vmatprep.subr.mxu0 0.0
    %2711 = vmatpush2.msra.mxu0 0.0
    %2712 = vmatprep.subr.mxu0 0.0
    %2713 = vmatpush2.msra.mxu0 0.0
    %2714 = vmatprep.mubr.f32.mxu0 0.0
    %2715 = vmatmul.mubr.f32.gmra.mxu0 %v2646
    %v2716 = vpop.f32.mrf.mxu0
    %v2717 = vadd.f32 %v2638, %v2716
    %v2718 = vpop.f32.mrf.mxu0
    %2719 = vmatprep.mubr.f32.mxu0 0.0
    %2720 = vmatmul.mubr.f32.gmra.mxu0 %v2648
    %v2721 = vpop.f32.mrf.mxu0
    %v2722 = vadd.f32 %v2643, %v2721
    %v2723 = vpop.f32.mrf.mxu0
    %2724 = vdwg.mxu0
    %s2725 = scalar_lea.vmem %s3, 128
    %v2726 = vld [vmem:[%s2725] sm:$0xff]
    %v2727 = vld [vmem:[%s2725 + $0x8] sm:$0xff]
    %v2728 = vld [vmem:[%s2725 + $0x10] sm:$0xff]
    %v2729 = vld [vmem:[%s2725 + $0x18] sm:$0xff]
    %v2730 = vld [vmem:[%s2725 + $0x20] sm:$0xff]
    %v2731 = vld [vmem:[%s2725 + $0x28] sm:$0xff]
    %v2732 = vld [vmem:[%s2725 + $0x30] sm:$0xff]
    %v2733 = vld [vmem:[%s2725 + $0x38] sm:$0xff]
    %2734 = vrot.lane.b32.xlu0 %v2542, 112
    %v2735 = vpop.permute.xlu0 %2734
    %2736 = vrot.lane.b32.xlu0 %v2543, 112
    %v2737 = vpop.permute.xlu0 %2736
    %v2738 = vsel %vm1167, %v2735, 0
    %v2740 = vsel %vm1167, %v2737, 0
    %2742 = vmatprep.subr.mxu0 0.0
    %2743 = vmatpush1.msra.mxu0 0.0
    %2744 = vmatprep.subr.mxu0 0.0
    %2745 = vmatpush1.msra.mxu0 0.0
    %2746 = vmatprep.subr.mxu0 0.0
    %2747 = vmatpush1.msra.mxu0 0.0
    %2748 = vmatprep.subr.mxu0 0.0
    %2749 = vmatpush1.msra.mxu0 0.0
    %2750 = vmatprep.subr.mxu0 0.0
    %2751 = vmatpush1.msra.mxu0 0.0
    %2752 = vmatprep.subr.mxu0 0.0
    %2753 = vmatpush1.msra.mxu0 0.0
    %2754 = vmatprep.subr.mxu0 0.0
    %2755 = vmatpush1.msra.mxu0 0.0
    %2756 = vmatprep.subr.mxu0 0.0
    %2757 = vmatpush1.msra.mxu0 0.0
    %2758 = vmatprep.subr.mxu0 0.0
    %2759 = vmatpush1.msra.mxu0 %v2733
    %2760 = vmatprep.subr.mxu0 0.0
    %2761 = vmatpush1.msra.mxu0 %v2732
    %2762 = vmatprep.subr.mxu0 0.0
    %2763 = vmatpush1.msra.mxu0 %v2731
    %2764 = vmatprep.subr.mxu0 0.0
    %2765 = vmatpush1.msra.mxu0 %v2730
    %2766 = vmatprep.subr.mxu0 0.0
    %2767 = vmatpush1.msra.mxu0 %v2729
    %2768 = vmatprep.subr.mxu0 0.0
    %2769 = vmatpush1.msra.mxu0 %v2728
    %2770 = vmatprep.subr.mxu0 0.0
    %2771 = vmatpush1.msra.mxu0 %v2727
    %2772 = vmatprep.subr.mxu0 0.0
    %2773 = vmatpush1.msra.mxu0 %v2726
    %2774 = vmatprep.subr.mxu0 0.0
    %2775 = vmatpush2.msra.mxu0 0.0
    %2776 = vmatprep.subr.mxu0 0.0
    %2777 = vmatpush2.msra.mxu0 0.0
    %2778 = vmatprep.subr.mxu0 0.0
    %2779 = vmatpush2.msra.mxu0 0.0
    %2780 = vmatprep.subr.mxu0 0.0
    %2781 = vmatpush2.msra.mxu0 0.0
    %2782 = vmatprep.subr.mxu0 0.0
    %2783 = vmatpush2.msra.mxu0 0.0
    %2784 = vmatprep.subr.mxu0 0.0
    %2785 = vmatpush2.msra.mxu0 0.0
    %2786 = vmatprep.subr.mxu0 0.0
    %2787 = vmatpush2.msra.mxu0 0.0
    %2788 = vmatprep.subr.mxu0 0.0
    %2789 = vmatpush2.msra.mxu0 0.0
    %2790 = vmatprep.subr.mxu0 0.0
    %2791 = vmatpush2.msra.mxu0 0.0
    %2792 = vmatprep.subr.mxu0 0.0
    %2793 = vmatpush2.msra.mxu0 0.0
    %2794 = vmatprep.subr.mxu0 0.0
    %2795 = vmatpush2.msra.mxu0 0.0
    %2796 = vmatprep.subr.mxu0 0.0
    %2797 = vmatpush2.msra.mxu0 0.0
    %2798 = vmatprep.subr.mxu0 0.0
    %2799 = vmatpush2.msra.mxu0 0.0
    %2800 = vmatprep.subr.mxu0 0.0
    %2801 = vmatpush2.msra.mxu0 0.0
    %2802 = vmatprep.subr.mxu0 0.0
    %2803 = vmatpush2.msra.mxu0 0.0
    %2804 = vmatprep.subr.mxu0 0.0
    %2805 = vmatpush2.msra.mxu0 0.0
    %2806 = vmatprep.mubr.f32.mxu0 0.0
    %2807 = vmatmul.mubr.f32.gmra.mxu0 %v2738
    %v2808 = vpop.f32.mrf.mxu0
    %v2809 = vadd.f32 0.0, %v2808
    %v2810 = vpop.f32.mrf.mxu0
    %2811 = vmatprep.mubr.f32.mxu0 0.0
    %2812 = vmatmul.mubr.f32.gmra.mxu0 %v2740
    %v2813 = vpop.f32.mrf.mxu0
    %v2814 = vadd.f32 0.0, %v2813
    %v2815 = vpop.f32.mrf.mxu0
    %2816 = vdwg.mxu0
    %v2817 = vadd.f32 %v2717, %v2809
    %v2818 = vadd.f32 %v2722, %v2814
    %v2819 = vld [vmem:[#allocation4 + $0x1] sm:$0xff]
    %v2820 = vld [vmem:[#allocation4 + $0x9] sm:$0xff]
    %s2821 = scalar_lea.vmem %s3, 192
    %v2822 = vld [vmem:[%s2821] sm:$0xff]
    %v2823 = vld [vmem:[%s2821 + $0x8] sm:$0xff]
    %v2824 = vld [vmem:[%s2821 + $0x10] sm:$0xff]
    %v2825 = vld [vmem:[%s2821 + $0x18] sm:$0xff]
    %v2826 = vld [vmem:[%s2821 + $0x20] sm:$0xff]
    %v2827 = vld [vmem:[%s2821 + $0x28] sm:$0xff]
    %v2828 = vld [vmem:[%s2821 + $0x30] sm:$0xff]
    %v2829 = vld [vmem:[%s2821 + $0x38] sm:$0xff]
    %v2831 = vsel %vm1167, %v2819, 0
    %v2834 = vsel %vm1167, %v2820, 0
    %2836 = vmatprep.subr.mxu0 0.0
    %2837 = vmatpush1.msra.mxu0 0.0
    %2838 = vmatprep.subr.mxu0 0.0
    %2839 = vmatpush1.msra.mxu0 0.0
    %2840 = vmatprep.subr.mxu0 0.0
    %2841 = vmatpush1.msra.mxu0 0.0
    %2842 = vmatprep.subr.mxu0 0.0
    %2843 = vmatpush1.msra.mxu0 0.0
    %2844 = vmatprep.subr.mxu0 0.0
    %2845 = vmatpush1.msra.mxu0 0.0
    %2846 = vmatprep.subr.mxu0 0.0
    %2847 = vmatpush1.msra.mxu0 0.0
    %2848 = vmatprep.subr.mxu0 0.0
    %2849 = vmatpush1.msra.mxu0 0.0
    %2850 = vmatprep.subr.mxu0 0.0
    %2851 = vmatpush1.msra.mxu0 0.0
    %2852 = vmatprep.subr.mxu0 0.0
    %2853 = vmatpush1.msra.mxu0 %v2829
    %2854 = vmatprep.subr.mxu0 0.0
    %2855 = vmatpush1.msra.mxu0 %v2828
    %2856 = vmatprep.subr.mxu0 0.0
    %2857 = vmatpush1.msra.mxu0 %v2827
    %2858 = vmatprep.subr.mxu0 0.0
    %2859 = vmatpush1.msra.mxu0 %v2826
    %2860 = vmatprep.subr.mxu0 0.0
    %2861 = vmatpush1.msra.mxu0 %v2825
    %2862 = vmatprep.subr.mxu0 0.0
    %2863 = vmatpush1.msra.mxu0 %v2824
    %2864 = vmatprep.subr.mxu0 0.0
    %2865 = vmatpush1.msra.mxu0 %v2823
    %2866 = vmatprep.subr.mxu0 0.0
    %2867 = vmatpush1.msra.mxu0 %v2822
    %2868 = vmatprep.subr.mxu0 0.0
    %2869 = vmatpush2.msra.mxu0 0.0
    %2870 = vmatprep.subr.mxu0 0.0
    %2871 = vmatpush2.msra.mxu0 0.0
    %2872 = vmatprep.subr.mxu0 0.0
    %2873 = vmatpush2.msra.mxu0 0.0
    %2874 = vmatprep.subr.mxu0 0.0
    %2875 = vmatpush2.msra.mxu0 0.0
    %2876 = vmatprep.subr.mxu0 0.0
    %2877 = vmatpush2.msra.mxu0 0.0
    %2878 = vmatprep.subr.mxu0 0.0
    %2879 = vmatpush2.msra.mxu0 0.0
    %2880 = vmatprep.subr.mxu0 0.0
    %2881 = vmatpush2.msra.mxu0 0.0
    %2882 = vmatprep.subr.mxu0 0.0
    %2883 = vmatpush2.msra.mxu0 0.0
    %2884 = vmatprep.subr.mxu0 0.0
    %2885 = vmatpush2.msra.mxu0 0.0
    %2886 = vmatprep.subr.mxu0 0.0
    %2887 = vmatpush2.msra.mxu0 0.0
    %2888 = vmatprep.subr.mxu0 0.0
    %2889 = vmatpush2.msra.mxu0 0.0
    %2890 = vmatprep.subr.mxu0 0.0
    %2891 = vmatpush2.msra.mxu0 0.0
    %2892 = vmatprep.subr.mxu0 0.0
    %2893 = vmatpush2.msra.mxu0 0.0
    %2894 = vmatprep.subr.mxu0 0.0
    %2895 = vmatpush2.msra.mxu0 0.0
    %2896 = vmatprep.subr.mxu0 0.0
    %2897 = vmatpush2.msra.mxu0 0.0
    %2898 = vmatprep.subr.mxu0 0.0
    %2899 = vmatpush2.msra.mxu0 0.0
    %2900 = vmatprep.mubr.f32.mxu0 0.0
    %2901 = vmatmul.mubr.f32.gmra.mxu0 %v2831
    %v2902 = vpop.f32.mrf.mxu0
    %v2903 = vadd.f32 0.0, %v2902
    %v2904 = vpop.f32.mrf.mxu0
    %2905 = vmatprep.mubr.f32.mxu0 0.0
    %2906 = vmatmul.mubr.f32.gmra.mxu0 %v2834
    %v2907 = vpop.f32.mrf.mxu0
    %v2908 = vadd.f32 0.0, %v2907
    %v2909 = vpop.f32.mrf.mxu0
    %2910 = vdwg.mxu0
    %v2911 = vadd.f32 %v2817, %v2903
    %v2912 = vadd.f32 %v2818, %v2908
    %s2913 = scalar_lea.vmem %s3, 256
    %v2914 = vld [vmem:[%s2913] sm:$0xff]
    %v2915 = vld [vmem:[%s2913 + $0x8] sm:$0xff]
    %v2916 = vld [vmem:[%s2913 + $0x10] sm:$0xff]
    %v2917 = vld [vmem:[%s2913 + $0x18] sm:$0xff]
    %v2918 = vld [vmem:[%s2913 + $0x20] sm:$0xff]
    %v2919 = vld [vmem:[%s2913 + $0x28] sm:$0xff]
    %v2920 = vld [vmem:[%s2913 + $0x30] sm:$0xff]
    %v2921 = vld [vmem:[%s2913 + $0x38] sm:$0xff]
    %2922 = vrot.lane.b32.xlu0 %v2819, 120
    %v2923 = vpop.permute.xlu0 %2922
    %2924 = vrot.lane.b32.xlu0 %v2820, 120
    %v2925 = vpop.permute.xlu0 %2924
    %v2926 = vsel %vm1167, %v2923, 0
    %v2928 = vsel %vm1167, %v2925, 0
    %2930 = vmatprep.subr.mxu0 0.0
    %2931 = vmatpush1.msra.mxu0 0.0
    %2932 = vmatprep.subr.mxu0 0.0
    %2933 = vmatpush1.msra.mxu0 0.0
    %2934 = vmatprep.subr.mxu0 0.0
    %2935 = vmatpush1.msra.mxu0 0.0
    %2936 = vmatprep.subr.mxu0 0.0
    %2937 = vmatpush1.msra.mxu0 0.0
    %2938 = vmatprep.subr.mxu0 0.0
    %2939 = vmatpush1.msra.mxu0 0.0
    %2940 = vmatprep.subr.mxu0 0.0
    %2941 = vmatpush1.msra.mxu0 0.0
    %2942 = vmatprep.subr.mxu0 0.0
    %2943 = vmatpush1.msra.mxu0 0.0
    %2944 = vmatprep.subr.mxu0 0.0
    %2945 = vmatpush1.msra.mxu0 0.0
    %2946 = vmatprep.subr.mxu0 0.0
    %2947 = vmatpush1.msra.mxu0 %v2921
    %2948 = vmatprep.subr.mxu0 0.0
    %2949 = vmatpush1.msra.mxu0 %v2920
    %2950 = vmatprep.subr.mxu0 0.0
    %2951 = vmatpush1.msra.mxu0 %v2919
    %2952 = vmatprep.subr.mxu0 0.0
    %2953 = vmatpush1.msra.mxu0 %v2918
    %2954 = vmatprep.subr.mxu0 0.0
    %2955 = vmatpush1.msra.mxu0 %v2917
    %2956 = vmatprep.subr.mxu0 0.0
    %2957 = vmatpush1.msra.mxu0 %v2916
    %2958 = vmatprep.subr.mxu0 0.0
    %2959 = vmatpush1.msra.mxu0 %v2915
    %2960 = vmatprep.subr.mxu0 0.0
    %2961 = vmatpush1.msra.mxu0 %v2914
    %2962 = vmatprep.subr.mxu0 0.0
    %2963 = vmatpush2.msra.mxu0 0.0
    %2964 = vmatprep.subr.mxu0 0.0
    %2965 = vmatpush2.msra.mxu0 0.0
    %2966 = vmatprep.subr.mxu0 0.0
    %2967 = vmatpush2.msra.mxu0 0.0
    %2968 = vmatprep.subr.mxu0 0.0
    %2969 = vmatpush2.msra.mxu0 0.0
    %2970 = vmatprep.subr.mxu0 0.0
    %2971 = vmatpush2.msra.mxu0 0.0
    %2972 = vmatprep.subr.mxu0 0.0
    %2973 = vmatpush2.msra.mxu0 0.0
    %2974 = vmatprep.subr.mxu0 0.0
    %2975 = vmatpush2.msra.mxu0 0.0
    %2976 = vmatprep.subr.mxu0 0.0
    %2977 = vmatpush2.msra.mxu0 0.0
    %2978 = vmatprep.subr.mxu0 0.0
    %2979 = vmatpush2.msra.mxu0 0.0
    %2980 = vmatprep.subr.mxu0 0.0
    %2981 = vmatpush2.msra.mxu0 0.0
    %2982 = vmatprep.subr.mxu0 0.0
    %2983 = vmatpush2.msra.mxu0 0.0
    %2984 = vmatprep.subr.mxu0 0.0
    %2985 = vmatpush2.msra.mxu0 0.0
    %2986 = vmatprep.subr.mxu0 0.0
    %2987 = vmatpush2.msra.mxu0 0.0
    %2988 = vmatprep.subr.mxu0 0.0
    %2989 = vmatpush2.msra.mxu0 0.0
    %2990 = vmatprep.subr.mxu0 0.0
    %2991 = vmatpush2.msra.mxu0 0.0
    %2992 = vmatprep.subr.mxu0 0.0
    %2993 = vmatpush2.msra.mxu0 0.0
    %2994 = vmatprep.mubr.f32.mxu0 0.0
    %2995 = vmatmul.mubr.f32.gmra.mxu0 %v2926
    %v2996 = vpop.f32.mrf.mxu0
    %v2997 = vadd.f32 0.0, %v2996
    %v2998 = vpop.f32.mrf.mxu0
    %2999 = vmatprep.mubr.f32.mxu0 0.0
    %3000 = vmatmul.mubr.f32.gmra.mxu0 %v2928
    %v3001 = vpop.f32.mrf.mxu0
    %v3002 = vadd.f32 0.0, %v3001
    %v3003 = vpop.f32.mrf.mxu0
    %3004 = vdwg.mxu0
    %v3005 = vadd.f32 %v2911, %v2997
    %v3006 = vadd.f32 %v2912, %v3002
    %s3007 = scalar_lea.vmem %s3, 320
    %v3008 = vld [vmem:[%s3007] sm:$0xff]
    %v3009 = vld [vmem:[%s3007 + $0x8] sm:$0xff]
    %v3010 = vld [vmem:[%s3007 + $0x10] sm:$0xff]
    %v3011 = vld [vmem:[%s3007 + $0x18] sm:$0xff]
    %v3012 = vld [vmem:[%s3007 + $0x20] sm:$0xff]
    %v3013 = vld [vmem:[%s3007 + $0x28] sm:$0xff]
    %v3014 = vld [vmem:[%s3007 + $0x30] sm:$0xff]
    %v3015 = vld [vmem:[%s3007 + $0x38] sm:$0xff]
    %3016 = vrot.lane.b32.xlu0 %v2819, 112
    %v3017 = vpop.permute.xlu0 %3016
    %3018 = vrot.lane.b32.xlu0 %v2820, 112
    %v3019 = vpop.permute.xlu0 %3018
    %v3020 = vsel %vm1167, %v3017, 0
    %v3022 = vsel %vm1167, %v3019, 0
    %3024 = vmatprep.subr.mxu0 0.0
    %3025 = vmatpush1.msra.mxu0 0.0
    %3026 = vmatprep.subr.mxu0 0.0
    %3027 = vmatpush1.msra.mxu0 0.0
    %3028 = vmatprep.subr.mxu0 0.0
    %3029 = vmatpush1.msra.mxu0 0.0
    %3030 = vmatprep.subr.mxu0 0.0
    %3031 = vmatpush1.msra.mxu0 0.0
    %3032 = vmatprep.subr.mxu0 0.0
    %3033 = vmatpush1.msra.mxu0 0.0
    %3034 = vmatprep.subr.mxu0 0.0
    %3035 = vmatpush1.msra.mxu0 0.0
    %3036 = vmatprep.subr.mxu0 0.0
    %3037 = vmatpush1.msra.mxu0 0.0
    %3038 = vmatprep.subr.mxu0 0.0
    %3039 = vmatpush1.msra.mxu0 0.0
    %3040 = vmatprep.subr.mxu0 0.0
    %3041 = vmatpush1.msra.mxu0 %v3015
    %3042 = vmatprep.subr.mxu0 0.0
    %3043 = vmatpush1.msra.mxu0 %v3014
    %3044 = vmatprep.subr.mxu0 0.0
    %3045 = vmatpush1.msra.mxu0 %v3013
    %3046 = vmatprep.subr.mxu0 0.0
    %3047 = vmatpush1.msra.mxu0 %v3012
    %3048 = vmatprep.subr.mxu0 0.0
    %3049 = vmatpush1.msra.mxu0 %v3011
    %3050 = vmatprep.subr.mxu0 0.0
    %3051 = vmatpush1.msra.mxu0 %v3010
    %3052 = vmatprep.subr.mxu0 0.0
    %3053 = vmatpush1.msra.mxu0 %v3009
    %3054 = vmatprep.subr.mxu0 0.0
    %3055 = vmatpush1.msra.mxu0 %v3008
    %3056 = vmatprep.subr.mxu0 0.0
    %3057 = vmatpush2.msra.mxu0 0.0
    %3058 = vmatprep.subr.mxu0 0.0
    %3059 = vmatpush2.msra.mxu0 0.0
    %3060 = vmatprep.subr.mxu0 0.0
    %3061 = vmatpush2.msra.mxu0 0.0
    %3062 = vmatprep.subr.mxu0 0.0
    %3063 = vmatpush2.msra.mxu0 0.0
    %3064 = vmatprep.subr.mxu0 0.0
    %3065 = vmatpush2.msra.mxu0 0.0
    %3066 = vmatprep.subr.mxu0 0.0
    %3067 = vmatpush2.msra.mxu0 0.0
    %3068 = vmatprep.subr.mxu0 0.0
    %3069 = vmatpush2.msra.mxu0 0.0
    %3070 = vmatprep.subr.mxu0 0.0
    %3071 = vmatpush2.msra.mxu0 0.0
    %3072 = vmatprep.subr.mxu0 0.0
    %3073 = vmatpush2.msra.mxu0 0.0
    %3074 = vmatprep.subr.mxu0 0.0
    %3075 = vmatpush2.msra.mxu0 0.0
    %3076 = vmatprep.subr.mxu0 0.0
    %3077 = vmatpush2.msra.mxu0 0.0
    %3078 = vmatprep.subr.mxu0 0.0
    %3079 = vmatpush2.msra.mxu0 0.0
    %3080 = vmatprep.subr.mxu0 0.0
    %3081 = vmatpush2.msra.mxu0 0.0
    %3082 = vmatprep.subr.mxu0 0.0
    %3083 = vmatpush2.msra.mxu0 0.0
    %3084 = vmatprep.subr.mxu0 0.0
    %3085 = vmatpush2.msra.mxu0 0.0
    %3086 = vmatprep.subr.mxu0 0.0
    %3087 = vmatpush2.msra.mxu0 0.0
    %3088 = vmatprep.mubr.f32.mxu0 0.0
    %3089 = vmatmul.mubr.f32.gmra.mxu0 %v3020
    %v3090 = vpop.f32.mrf.mxu0
    %v3091 = vadd.f32 0.0, %v3090
    %v3092 = vpop.f32.mrf.mxu0
    %3093 = vmatprep.mubr.f32.mxu0 0.0
    %3094 = vmatmul.mubr.f32.gmra.mxu0 %v3022
    %v3095 = vpop.f32.mrf.mxu0
    %v3096 = vadd.f32 0.0, %v3095
    %v3097 = vpop.f32.mrf.mxu0
    %3098 = vdwg.mxu0
    %v3099 = vadd.f32 %v3005, %v3091
    %v3100 = vadd.f32 %v3006, %v3096
    %v3101 = vld [vmem:[#allocation4 + $0x2] sm:$0xff]
    %v3102 = vld [vmem:[#allocation4 + $0xa] sm:$0xff]
    %v3103 = vsel %vm2538, 0.0, %v3101
    %v3104 = vsel %vm2539, 0.0, %v3102
    %s3105 = scalar_lea.vmem %s3, 384
    %v3106 = vld [vmem:[%s3105] sm:$0xff]
    %v3107 = vld [vmem:[%s3105 + $0x8] sm:$0xff]
    %v3108 = vld [vmem:[%s3105 + $0x10] sm:$0xff]
    %v3109 = vld [vmem:[%s3105 + $0x18] sm:$0xff]
    %v3110 = vld [vmem:[%s3105 + $0x20] sm:$0xff]
    %v3111 = vld [vmem:[%s3105 + $0x28] sm:$0xff]
    %v3112 = vld [vmem:[%s3105 + $0x30] sm:$0xff]
    %v3113 = vld [vmem:[%s3105 + $0x38] sm:$0xff]
    %v3115 = vsel %vm1167, %v3103, 0
    %v3118 = vsel %vm1167, %v3104, 0
    %3120 = vmatprep.subr.mxu0 0.0
    %3121 = vmatpush1.msra.mxu0 0.0
    %3122 = vmatprep.subr.mxu0 0.0
    %3123 = vmatpush1.msra.mxu0 0.0
    %3124 = vmatprep.subr.mxu0 0.0
    %3125 = vmatpush1.msra.mxu0 0.0
    %3126 = vmatprep.subr.mxu0 0.0
    %3127 = vmatpush1.msra.mxu0 0.0
    %3128 = vmatprep.subr.mxu0 0.0
    %3129 = vmatpush1.msra.mxu0 0.0
    %3130 = vmatprep.subr.mxu0 0.0
    %3131 = vmatpush1.msra.mxu0 0.0
    %3132 = vmatprep.subr.mxu0 0.0
    %3133 = vmatpush1.msra.mxu0 0.0
    %3134 = vmatprep.subr.mxu0 0.0
    %3135 = vmatpush1.msra.mxu0 0.0
    %3136 = vmatprep.subr.mxu0 0.0
    %3137 = vmatpush1.msra.mxu0 %v3113
    %3138 = vmatprep.subr.mxu0 0.0
    %3139 = vmatpush1.msra.mxu0 %v3112
    %3140 = vmatprep.subr.mxu0 0.0
    %3141 = vmatpush1.msra.mxu0 %v3111
    %3142 = vmatprep.subr.mxu0 0.0
    %3143 = vmatpush1.msra.mxu0 %v3110
    %3144 = vmatprep.subr.mxu0 0.0
    %3145 = vmatpush1.msra.mxu0 %v3109
    %3146 = vmatprep.subr.mxu0 0.0
    %3147 = vmatpush1.msra.mxu0 %v3108
    %3148 = vmatprep.subr.mxu0 0.0
    %3149 = vmatpush1.msra.mxu0 %v3107
    %3150 = vmatprep.subr.mxu0 0.0
    %3151 = vmatpush1.msra.mxu0 %v3106
    %3152 = vmatprep.subr.mxu0 0.0
    %3153 = vmatpush2.msra.mxu0 0.0
    %3154 = vmatprep.subr.mxu0 0.0
    %3155 = vmatpush2.msra.mxu0 0.0
    %3156 = vmatprep.subr.mxu0 0.0
    %3157 = vmatpush2.msra.mxu0 0.0
    %3158 = vmatprep.subr.mxu0 0.0
    %3159 = vmatpush2.msra.mxu0 0.0
    %3160 = vmatprep.subr.mxu0 0.0
    %3161 = vmatpush2.msra.mxu0 0.0
    %3162 = vmatprep.subr.mxu0 0.0
    %3163 = vmatpush2.msra.mxu0 0.0
    %3164 = vmatprep.subr.mxu0 0.0
    %3165 = vmatpush2.msra.mxu0 0.0
    %3166 = vmatprep.subr.mxu0 0.0
    %3167 = vmatpush2.msra.mxu0 0.0
    %3168 = vmatprep.subr.mxu0 0.0
    %3169 = vmatpush2.msra.mxu0 0.0
    %3170 = vmatprep.subr.mxu0 0.0
    %3171 = vmatpush2.msra.mxu0 0.0
    %3172 = vmatprep.subr.mxu0 0.0
    %3173 = vmatpush2.msra.mxu0 0.0
    %3174 = vmatprep.subr.mxu0 0.0
    %3175 = vmatpush2.msra.mxu0 0.0
    %3176 = vmatprep.subr.mxu0 0.0
    %3177 = vmatpush2.msra.mxu0 0.0
    %3178 = vmatprep.subr.mxu0 0.0
    %3179 = vmatpush2.msra.mxu0 0.0
    %3180 = vmatprep.subr.mxu0 0.0
    %3181 = vmatpush2.msra.mxu0 0.0
    %3182 = vmatprep.subr.mxu0 0.0
    %3183 = vmatpush2.msra.mxu0 0.0
    %3184 = vmatprep.mubr.f32.mxu0 0.0
    %3185 = vmatmul.mubr.f32.gmra.mxu0 %v3115
    %v3186 = vpop.f32.mrf.mxu0
    %v3187 = vadd.f32 0.0, %v3186
    %v3188 = vpop.f32.mrf.mxu0
    %3189 = vmatprep.mubr.f32.mxu0 0.0
    %3190 = vmatmul.mubr.f32.gmra.mxu0 %v3118
    %v3191 = vpop.f32.mrf.mxu0
    %v3192 = vadd.f32 0.0, %v3191
    %v3193 = vpop.f32.mrf.mxu0
    %3194 = vdwg.mxu0
    %v3195 = vadd.f32 %v3099, %v3187
    %v3196 = vadd.f32 %v3100, %v3192
    %s3197 = scalar_lea.vmem %s3, 448
    %v3198 = vld [vmem:[%s3197] sm:$0xff]
    %v3199 = vld [vmem:[%s3197 + $0x8] sm:$0xff]
    %v3200 = vld [vmem:[%s3197 + $0x10] sm:$0xff]
    %v3201 = vld [vmem:[%s3197 + $0x18] sm:$0xff]
    %v3202 = vld [vmem:[%s3197 + $0x20] sm:$0xff]
    %v3203 = vld [vmem:[%s3197 + $0x28] sm:$0xff]
    %v3204 = vld [vmem:[%s3197 + $0x30] sm:$0xff]
    %v3205 = vld [vmem:[%s3197 + $0x38] sm:$0xff]
    %3206 = vrot.lane.b32.xlu0 %v3103, 120
    %v3207 = vpop.permute.xlu0 %3206
    %3208 = vrot.lane.b32.xlu0 %v3104, 120
    %v3209 = vpop.permute.xlu0 %3208
    %v3210 = vsel %vm1167, %v3207, 0
    %v3212 = vsel %vm1167, %v3209, 0
    %3214 = vmatprep.subr.mxu0 0.0
    %3215 = vmatpush1.msra.mxu0 0.0
    %3216 = vmatprep.subr.mxu0 0.0
    %3217 = vmatpush1.msra.mxu0 0.0
    %3218 = vmatprep.subr.mxu0 0.0
    %3219 = vmatpush1.msra.mxu0 0.0
    %3220 = vmatprep.subr.mxu0 0.0
    %3221 = vmatpush1.msra.mxu0 0.0
    %3222 = vmatprep.subr.mxu0 0.0
    %3223 = vmatpush1.msra.mxu0 0.0
    %3224 = vmatprep.subr.mxu0 0.0
    %3225 = vmatpush1.msra.mxu0 0.0
    %3226 = vmatprep.subr.mxu0 0.0
    %3227 = vmatpush1.msra.mxu0 0.0
    %3228 = vmatprep.subr.mxu0 0.0
    %3229 = vmatpush1.msra.mxu0 0.0
    %3230 = vmatprep.subr.mxu0 0.0
    %3231 = vmatpush1.msra.mxu0 %v3205
    %3232 = vmatprep.subr.mxu0 0.0
    %3233 = vmatpush1.msra.mxu0 %v3204
    %3234 = vmatprep.subr.mxu0 0.0
    %3235 = vmatpush1.msra.mxu0 %v3203
    %3236 = vmatprep.subr.mxu0 0.0
    %3237 = vmatpush1.msra.mxu0 %v3202
    %3238 = vmatprep.subr.mxu0 0.0
    %3239 = vmatpush1.msra.mxu0 %v3201
    %3240 = vmatprep.subr.mxu0 0.0
    %3241 = vmatpush1.msra.mxu0 %v3200
    %3242 = vmatprep.subr.mxu0 0.0
    %3243 = vmatpush1.msra.mxu0 %v3199
    %3244 = vmatprep.subr.mxu0 0.0
    %3245 = vmatpush1.msra.mxu0 %v3198
    %3246 = vmatprep.subr.mxu0 0.0
    %3247 = vmatpush2.msra.mxu0 0.0
    %3248 = vmatprep.subr.mxu0 0.0
    %3249 = vmatpush2.msra.mxu0 0.0
    %3250 = vmatprep.subr.mxu0 0.0
    %3251 = vmatpush2.msra.mxu0 0.0
    %3252 = vmatprep.subr.mxu0 0.0
    %3253 = vmatpush2.msra.mxu0 0.0
    %3254 = vmatprep.subr.mxu0 0.0
    %3255 = vmatpush2.msra.mxu0 0.0
    %3256 = vmatprep.subr.mxu0 0.0
    %3257 = vmatpush2.msra.mxu0 0.0
    %3258 = vmatprep.subr.mxu0 0.0
    %3259 = vmatpush2.msra.mxu0 0.0
    %3260 = vmatprep.subr.mxu0 0.0
    %3261 = vmatpush2.msra.mxu0 0.0
    %3262 = vmatprep.subr.mxu0 0.0
    %3263 = vmatpush2.msra.mxu0 0.0
    %3264 = vmatprep.subr.mxu0 0.0
    %3265 = vmatpush2.msra.mxu0 0.0
    %3266 = vmatprep.subr.mxu0 0.0
    %3267 = vmatpush2.msra.mxu0 0.0
    %3268 = vmatprep.subr.mxu0 0.0
    %3269 = vmatpush2.msra.mxu0 0.0
    %3270 = vmatprep.subr.mxu0 0.0
    %3271 = vmatpush2.msra.mxu0 0.0
    %3272 = vmatprep.subr.mxu0 0.0
    %3273 = vmatpush2.msra.mxu0 0.0
    %3274 = vmatprep.subr.mxu0 0.0
    %3275 = vmatpush2.msra.mxu0 0.0
    %3276 = vmatprep.subr.mxu0 0.0
    %3277 = vmatpush2.msra.mxu0 0.0
    %3278 = vmatprep.mubr.f32.mxu0 0.0
    %3279 = vmatmul.mubr.f32.gmra.mxu0 %v3210
    %v3280 = vpop.f32.mrf.mxu0
    %v3281 = vadd.f32 0.0, %v3280
    %v3282 = vpop.f32.mrf.mxu0
    %3283 = vmatprep.mubr.f32.mxu0 0.0
    %3284 = vmatmul.mubr.f32.gmra.mxu0 %v3212
    %v3285 = vpop.f32.mrf.mxu0
    %v3286 = vadd.f32 0.0, %v3285
    %v3287 = vpop.f32.mrf.mxu0
    %3288 = vdwg.mxu0
    %v3289 = vadd.f32 %v3195, %v3281
    %v3290 = vadd.f32 %v3196, %v3286
    %s3291 = scalar_lea.vmem %s3, 512
    %v3292 = vld [vmem:[%s3291] sm:$0xff]
    %v3293 = vld [vmem:[%s3291 + $0x8] sm:$0xff]
    %v3294 = vld [vmem:[%s3291 + $0x10] sm:$0xff]
    %v3295 = vld [vmem:[%s3291 + $0x18] sm:$0xff]
    %v3296 = vld [vmem:[%s3291 + $0x20] sm:$0xff]
    %v3297 = vld [vmem:[%s3291 + $0x28] sm:$0xff]
    %v3298 = vld [vmem:[%s3291 + $0x30] sm:$0xff]
    %v3299 = vld [vmem:[%s3291 + $0x38] sm:$0xff]
    %3300 = vrot.lane.b32.xlu0 %v3103, 112
    %v3301 = vpop.permute.xlu0 %3300
    %3302 = vrot.lane.b32.xlu0 %v3104, 112
    %v3303 = vpop.permute.xlu0 %3302
    %v3304 = vsel %vm1167, %v3301, 0
    %v3306 = vsel %vm1167, %v3303, 0
    %3308 = vmatprep.subr.mxu0 0.0
    %3309 = vmatpush1.msra.mxu0 0.0
    %3310 = vmatprep.subr.mxu0 0.0
    %3311 = vmatpush1.msra.mxu0 0.0
    %3312 = vmatprep.subr.mxu0 0.0
    %3313 = vmatpush1.msra.mxu0 0.0
    %3314 = vmatprep.subr.mxu0 0.0
    %3315 = vmatpush1.msra.mxu0 0.0
    %3316 = vmatprep.subr.mxu0 0.0
    %3317 = vmatpush1.msra.mxu0 0.0
    %3318 = vmatprep.subr.mxu0 0.0
    %3319 = vmatpush1.msra.mxu0 0.0
    %3320 = vmatprep.subr.mxu0 0.0
    %3321 = vmatpush1.msra.mxu0 0.0
    %3322 = vmatprep.subr.mxu0 0.0
    %3323 = vmatpush1.msra.mxu0 0.0
    %3324 = vmatprep.subr.mxu0 0.0
    %3325 = vmatpush1.msra.mxu0 %v3299
    %3326 = vmatprep.subr.mxu0 0.0
    %3327 = vmatpush1.msra.mxu0 %v3298
    %3328 = vmatprep.subr.mxu0 0.0
    %3329 = vmatpush1.msra.mxu0 %v3297
    %3330 = vmatprep.subr.mxu0 0.0
    %3331 = vmatpush1.msra.mxu0 %v3296
    %3332 = vmatprep.subr.mxu0 0.0
    %3333 = vmatpush1.msra.mxu0 %v3295
    %3334 = vmatprep.subr.mxu0 0.0
    %3335 = vmatpush1.msra.mxu0 %v3294
    %3336 = vmatprep.subr.mxu0 0.0
    %3337 = vmatpush1.msra.mxu0 %v3293
    %3338 = vmatprep.subr.mxu0 0.0
    %3339 = vmatpush1.msra.mxu0 %v3292
    %3340 = vmatprep.subr.mxu0 0.0
    %3341 = vmatpush2.msra.mxu0 0.0
    %3342 = vmatprep.subr.mxu0 0.0
    %3343 = vmatpush2.msra.mxu0 0.0
    %3344 = vmatprep.subr.mxu0 0.0
    %3345 = vmatpush2.msra.mxu0 0.0
    %3346 = vmatprep.subr.mxu0 0.0
    %3347 = vmatpush2.msra.mxu0 0.0
    %3348 = vmatprep.subr.mxu0 0.0
    %3349 = vmatpush2.msra.mxu0 0.0
    %3350 = vmatprep.subr.mxu0 0.0
    %3351 = vmatpush2.msra.mxu0 0.0
    %3352 = vmatprep.subr.mxu0 0.0
    %3353 = vmatpush2.msra.mxu0 0.0
    %3354 = vmatprep.subr.mxu0 0.0
    %3355 = vmatpush2.msra.mxu0 0.0
    %3356 = vmatprep.subr.mxu0 0.0
    %3357 = vmatpush2.msra.mxu0 0.0
    %3358 = vmatprep.subr.mxu0 0.0
    %3359 = vmatpush2.msra.mxu0 0.0
    %3360 = vmatprep.subr.mxu0 0.0
    %3361 = vmatpush2.msra.mxu0 0.0
    %3362 = vmatprep.subr.mxu0 0.0
    %3363 = vmatpush2.msra.mxu0 0.0
    %3364 = vmatprep.subr.mxu0 0.0
    %3365 = vmatpush2.msra.mxu0 0.0
    %3366 = vmatprep.subr.mxu0 0.0
    %3367 = vmatpush2.msra.mxu0 0.0
    %3368 = vmatprep.subr.mxu0 0.0
    %3369 = vmatpush2.msra.mxu0 0.0
    %3370 = vmatprep.subr.mxu0 0.0
    %3371 = vmatpush2.msra.mxu0 0.0
    %3372 = vmatprep.mubr.f32.mxu0 0.0
    %3373 = vmatmul.mubr.f32.gmra.mxu0 %v3304
    %v3374 = vpop.f32.mrf.mxu0
    %v3375 = vadd.f32 0.0, %v3374
    %v3376 = vpop.f32.mrf.mxu0
    %3377 = vmatprep.mubr.f32.mxu0 0.0
    %3378 = vmatmul.mubr.f32.gmra.mxu0 %v3306
    %v3379 = vpop.f32.mrf.mxu0
    %v3380 = vadd.f32 0.0, %v3379
    %v3381 = vpop.f32.mrf.mxu0
    %3382 = vdwg.mxu0
    %v3383 = vadd.f32 %v3289, %v3375
    %v3384 = vadd.f32 %v3290, %v3380
    %v3385 = vld [vmem:[%s7] sm:$0x1]
    %v3386 = vld [vmem:[%s7 + $0x1] sm:$0x1]
    %v3387 = vld [vmem:[%s7 + $0x2] sm:$0x1]
    %v3388 = vlaneseq
    %v3389 = vshrl.u32 %v3388, 7
    %v3390 = vsub.s32 0, %v3389
    %v3391 = vrot.slane %v3385, %v3390
    %v3392 = vadd.f32 %v3383, %v3391
    %v3393 = vadd.f32 %v3384, %v3391
    %3394 = vadd.xlane.f32.xlu0 %v3392
    %v3395 = vpop.xlane.xlu0 %3394
    %v3396 = vrot.slane %v3395, 4
    %v3397 = vadd.f32 %v3395, %v3396
    %v3398 = vrot.slane %v3397, 2
    %v3399 = vadd.f32 %v3397, %v3398
    %v3400 = vrot.slane %v3399, 1
    %v3401 = vadd.f32 %v3399, %v3400
    %v3402 = vmul.f32 %v3401, 0.0009765625
    %v3403 = vmul.f32 %v3392, %v3392
    %3404 = vadd.xlane.f32.xlu0 %v3403
    %v3405 = vpop.xlane.xlu0 %3404
    %v3406 = vrot.slane %v3405, 4
    %v3407 = vadd.f32 %v3405, %v3406
    %v3408 = vrot.slane %v3407, 2
    %v3409 = vadd.f32 %v3407, %v3408
    %v3410 = vrot.slane %v3409, 1
    %v3411 = vadd.f32 %v3409, %v3410
    %v3412 = vmul.f32 %v3411, 0.0009765625
    %v3413 = vmul.f32 %v3402, %v3402
    %v3414 = vsub.f32 %v3412, %v3413
    %v3415 = vadd.f32 %v3414, 1e-05
    %v3416 = vrsqrt.pop %v3415
    %v3417 = vmul.f32 %v3386, %v3416
    %v3418 = vmul.f32 %v3402, %v3417
    %v3419 = vsub.f32 %v3387, %v3418
    %v3420 = vlaneseq
    %v3421 = vshrl.u32 %v3420, 7
    %v3422 = vsub.s32 0, %v3421
    %v3423 = vrot.slane %v3417, %v3422
    %v3424 = vmul.f32 %v3392, %v3423
    %v3425 = vlaneseq
    %v3426 = vshrl.u32 %v3425, 7
    %v3427 = vsub.s32 0, %v3426
    %v3428 = vrot.slane %v3419, %v3427
    %v3429 = vadd.f32 %v3424, %v3428
    %v3430 = vmax.f32 %v3429, 0.0
    %3431 = vadd.xlane.f32.xlu0 %v3393
    %v3432 = vpop.xlane.xlu0 %3431
    %v3433 = vrot.slane %v3432, 4
    %v3434 = vadd.f32 %v3432, %v3433
    %v3435 = vrot.slane %v3434, 2
    %v3436 = vadd.f32 %v3434, %v3435
    %v3437 = vrot.slane %v3436, 1
    %v3438 = vadd.f32 %v3436, %v3437
    %v3439 = vmul.f32 %v3438, 0.0009765625
    %v3440 = vmul.f32 %v3393, %v3393
    %3441 = vadd.xlane.f32.xlu0 %v3440
    %v3442 = vpop.xlane.xlu0 %3441
    %v3443 = vrot.slane %v3442, 4
    %v3444 = vadd.f32 %v3442, %v3443
    %v3445 = vrot.slane %v3444, 2
    %v3446 = vadd.f32 %v3444, %v3445
    %v3447 = vrot.slane %v3446, 1
    %v3448 = vadd.f32 %v3446, %v3447
    %v3449 = vmul.f32 %v3448, 0.0009765625
    %v3450 = vmul.f32 %v3439, %v3439
    %v3451 = vsub.f32 %v3449, %v3450
    %v3452 = vadd.f32 %v3451, 1e-05
    %v3453 = vrsqrt.pop %v3452
    %v3454 = vmul.f32 %v3386, %v3453
    %v3455 = vmul.f32 %v3439, %v3454
    %v3456 = vsub.f32 %v3387, %v3455
    %v3457 = vlaneseq
    %v3458 = vshrl.u32 %v3457, 7
    %v3459 = vsub.s32 0, %v3458
    %v3460 = vrot.slane %v3454, %v3459
    %v3461 = vmul.f32 %v3393, %v3460
    %v3462 = vlaneseq
    %v3463 = vshrl.u32 %v3462, 7
    %v3464 = vsub.s32 0, %v3463
    %v3465 = vrot.slane %v3456, %v3464
    %v3466 = vadd.f32 %v3461, %v3465
    %v3467 = vmax.f32 %v3466, 0.0
    %3468 = vst [vmem:[#allocation7] sm:$0xff] %v3430
    %3469 = vst [vmem:[#allocation7 + $0x8] sm:$0xff] %v3467
    %v3470 = vld [vmem:[#allocation7] ss:$2 sm:$0xff]
    %s3471 = scalar_lea.vmem [#allocation7], 1
    %v3472 = vld [vmem:[%s3471] ss:$2 sm:$0xff]
    %v3473 = vmax.f32 %v3470, %v3472
    %3475 = vrot.lane.b32.xlu0 %v3473, 112
    %v3476 = vpop.permute.xlu0 %3475
    %v3478 = vmax.f32 %v3473, %v3476
    %3480 = vrot.lane.b32.xlu0 %v3478, 16
    %v3481 = vpop.permute.xlu0 %3480
    %vm3483 = vcmask 261248
    %3484 = vst.msk [vmem:[#allocation5 + $0x1] sm:$0xff] %vm3483, %v3481
    %vm3485 = vcmask 392448
    %3486 = vst.msk [vmem:[#allocation5 + $0x1] sm:$0xff] %vm3485, %v3478
    %3487 = vrot.lane.b32.xlu0 %v3478, 112
    %v3488 = vpop.permute.xlu0 %3487
    %vm3490 = vcmask 523648
    %3491 = vst.msk [vmem:[#allocation5 + $0x1] sm:$0xff] %vm3490, %v3488
    %3492 = vrot.lane.b32.xlu0 %v3478, 96
    %v3493 = vpop.permute.xlu0 %3492
    %vm3495 = vcmask 654848
    %3496 = vst.msk [vmem:[#allocation5 + $0x1] sm:$0xff] %vm3495, %v3493
    %vm3497 = vcmp.lt.s32.totalorder %v88, 0
    %v3498 = vsub.s32 0, %v88
    %v3499 = vsel %vm3497, %v3498, %v88
    %v3500 = vshrl.u32 %v3499, 2
    %v3501 = vand.u32 %v3499, 3
    %v3502 = vsub.s32 0, %v3501
    %v3503 = vsel %vm3497, %v3502, %v3501
    %vm3504 = vcmp.ne.s32.totalorder %v3503, 0
    %vm3505 = vcmp.lt.s32.totalorder %v3503, 0
    %vm3506 = vmand %vm3505, %vm3504
    %v3507 = vadd.s32 %v3503, 4
    %v3508 = vsel %vm3506, %v3507, %v3503
    %vm3509 = vcmp.eq.s32.totalorder %v3508, 0
    %vm3510 = vcmp.eq.s32.totalorder %v3508, 3
    %v3511 = vld [vmem:[#allocation5] sm:$0xff]
    %v3512 = vsel %vm3509, 0.0, %v3511
    %v3513 = vld [vmem:[%s4] sm:$0xff]
    %v3514 = vld [vmem:[%s4 + $0x8] sm:$0xff]
    %v3515 = vld [vmem:[%s4 + $0x10] sm:$0xff]
    %v3516 = vld [vmem:[%s4 + $0x18] sm:$0xff]
    %v3517 = vld [vmem:[%s4 + $0x20] sm:$0xff]
    %v3518 = vld [vmem:[%s4 + $0x28] sm:$0xff]
    %v3519 = vld [vmem:[%s4 + $0x30] sm:$0xff]
    %v3520 = vld [vmem:[%s4 + $0x38] sm:$0xff]
    %s3521 = scalar_lea.vmem %s4, 64
    %v3522 = vld [vmem:[%s3521] sm:$0xff]
    %v3523 = vld [vmem:[%s3521 + $0x8] sm:$0xff]
    %v3524 = vld [vmem:[%s3521 + $0x10] sm:$0xff]
    %v3525 = vld [vmem:[%s3521 + $0x18] sm:$0xff]
    %v3526 = vld [vmem:[%s3521 + $0x20] sm:$0xff]
    %v3527 = vld [vmem:[%s3521 + $0x28] sm:$0xff]
    %v3528 = vld [vmem:[%s3521 + $0x30] sm:$0xff]
    %v3529 = vld [vmem:[%s3521 + $0x38] sm:$0xff]
    %3531 = vrot.lane.b32.xlu0 %v3512, 112
    %v3532 = vpop.permute.xlu0 %3531
    %v3533 = vsel %vm1167, %v3532, 0
    %3535 = vmatprep.subr.mxu0 0.0
    %3536 = vmatpush1.msra.mxu0 0.0
    %3537 = vmatprep.subr.mxu0 0.0
    %3538 = vmatpush1.msra.mxu0 0.0
    %3539 = vmatprep.subr.mxu0 0.0
    %3540 = vmatpush1.msra.mxu0 0.0
    %3541 = vmatprep.subr.mxu0 0.0
    %3542 = vmatpush1.msra.mxu0 0.0
    %3543 = vmatprep.subr.mxu0 0.0
    %3544 = vmatpush1.msra.mxu0 0.0
    %3545 = vmatprep.subr.mxu0 0.0
    %3546 = vmatpush1.msra.mxu0 0.0
    %3547 = vmatprep.subr.mxu0 0.0
    %3548 = vmatpush1.msra.mxu0 0.0
    %3549 = vmatprep.subr.mxu0 0.0
    %3550 = vmatpush1.msra.mxu0 0.0
    %3551 = vmatprep.subr.mxu0 0.0
    %3552 = vmatpush1.msra.mxu0 %v3529
    %3553 = vmatprep.subr.mxu0 0.0
    %3554 = vmatpush1.msra.mxu0 %v3528
    %3555 = vmatprep.subr.mxu0 0.0
    %3556 = vmatpush1.msra.mxu0 %v3527
    %3557 = vmatprep.subr.mxu0 0.0
    %3558 = vmatpush1.msra.mxu0 %v3526
    %3559 = vmatprep.subr.mxu0 0.0
    %3560 = vmatpush1.msra.mxu0 %v3525
    %3561 = vmatprep.subr.mxu0 0.0
    %3562 = vmatpush1.msra.mxu0 %v3524
    %3563 = vmatprep.subr.mxu0 0.0
    %3564 = vmatpush1.msra.mxu0 %v3523
    %3565 = vmatprep.subr.mxu0 0.0
    %3566 = vmatpush1.msra.mxu0 %v3522
    %3567 = vmatprep.subr.mxu0 0.0
    %3568 = vmatpush2.msra.mxu0 0.0
    %3569 = vmatprep.subr.mxu0 0.0
    %3570 = vmatpush2.msra.mxu0 0.0
    %3571 = vmatprep.subr.mxu0 0.0
    %3572 = vmatpush2.msra.mxu0 0.0
    %3573 = vmatprep.subr.mxu0 0.0
    %3574 = vmatpush2.msra.mxu0 0.0
    %3575 = vmatprep.subr.mxu0 0.0
    %3576 = vmatpush2.msra.mxu0 0.0
    %3577 = vmatprep.subr.mxu0 0.0
    %3578 = vmatpush2.msra.mxu0 0.0
    %3579 = vmatprep.subr.mxu0 0.0
    %3580 = vmatpush2.msra.mxu0 0.0
    %3581 = vmatprep.subr.mxu0 0.0
    %3582 = vmatpush2.msra.mxu0 0.0
    %3583 = vmatprep.subr.mxu0 0.0
    %3584 = vmatpush2.msra.mxu0 0.0
    %3585 = vmatprep.subr.mxu0 0.0
    %3586 = vmatpush2.msra.mxu0 0.0
    %3587 = vmatprep.subr.mxu0 0.0
    %3588 = vmatpush2.msra.mxu0 0.0
    %3589 = vmatprep.subr.mxu0 0.0
    %3590 = vmatpush2.msra.mxu0 0.0
    %3591 = vmatprep.subr.mxu0 0.0
    %3592 = vmatpush2.msra.mxu0 0.0
    %3593 = vmatprep.subr.mxu0 0.0
    %3594 = vmatpush2.msra.mxu0 0.0
    %3595 = vmatprep.subr.mxu0 0.0
    %3596 = vmatpush2.msra.mxu0 0.0
    %3597 = vmatprep.subr.mxu0 0.0
    %3598 = vmatpush2.msra.mxu0 0.0
    %3599 = vmatprep.mubr.f32.mxu0 0.0
    %3600 = vmatmul.mubr.f32.gmra.mxu0 %v3533
    %v3601 = vpop.f32.mrf.mxu0
    %v3602 = vadd.f32 0.0, %v3601
    %v3603 = vpop.f32.mrf.mxu0
    %3604 = vdwg.mxu0
    %v3605 = vsel %vm1167, %v3512, 0
    %3607 = vmatprep.subr.mxu0 0.0
    %3608 = vmatpush1.msra.mxu0 0.0
    %3609 = vmatprep.subr.mxu0 0.0
    %3610 = vmatpush1.msra.mxu0 0.0
    %3611 = vmatprep.subr.mxu0 0.0
    %3612 = vmatpush1.msra.mxu0 0.0
    %3613 = vmatprep.subr.mxu0 0.0
    %3614 = vmatpush1.msra.mxu0 0.0
    %3615 = vmatprep.subr.mxu0 0.0
    %3616 = vmatpush1.msra.mxu0 0.0
    %3617 = vmatprep.subr.mxu0 0.0
    %3618 = vmatpush1.msra.mxu0 0.0
    %3619 = vmatprep.subr.mxu0 0.0
    %3620 = vmatpush1.msra.mxu0 0.0
    %3621 = vmatprep.subr.mxu0 0.0
    %3622 = vmatpush1.msra.mxu0 0.0
    %3623 = vmatprep.subr.mxu0 0.0
    %3624 = vmatpush1.msra.mxu0 %v3520
    %3625 = vmatprep.subr.mxu0 0.0
    %3626 = vmatpush1.msra.mxu0 %v3519
    %3627 = vmatprep.subr.mxu0 0.0
    %3628 = vmatpush1.msra.mxu0 %v3518
    %3629 = vmatprep.subr.mxu0 0.0
    %3630 = vmatpush1.msra.mxu0 %v3517
    %3631 = vmatprep.subr.mxu0 0.0
    %3632 = vmatpush1.msra.mxu0 %v3516
    %3633 = vmatprep.subr.mxu0 0.0
    %3634 = vmatpush1.msra.mxu0 %v3515
    %3635 = vmatprep.subr.mxu0 0.0
    %3636 = vmatpush1.msra.mxu0 %v3514
    %3637 = vmatprep.subr.mxu0 0.0
    %3638 = vmatpush1.msra.mxu0 %v3513
    %3639 = vmatprep.subr.mxu0 0.0
    %3640 = vmatpush2.msra.mxu0 0.0
    %3641 = vmatprep.subr.mxu0 0.0
    %3642 = vmatpush2.msra.mxu0 0.0
    %3643 = vmatprep.subr.mxu0 0.0
    %3644 = vmatpush2.msra.mxu0 0.0
    %3645 = vmatprep.subr.mxu0 0.0
    %3646 = vmatpush2.msra.mxu0 0.0
    %3647 = vmatprep.subr.mxu0 0.0
    %3648 = vmatpush2.msra.mxu0 0.0
    %3649 = vmatprep.subr.mxu0 0.0
    %3650 = vmatpush2.msra.mxu0 0.0
    %3651 = vmatprep.subr.mxu0 0.0
    %3652 = vmatpush2.msra.mxu0 0.0
    %3653 = vmatprep.subr.mxu0 0.0
    %3654 = vmatpush2.msra.mxu0 0.0
    %3655 = vmatprep.subr.mxu0 0.0
    %3656 = vmatpush2.msra.mxu0 0.0
    %3657 = vmatprep.subr.mxu0 0.0
    %3658 = vmatpush2.msra.mxu0 0.0
    %3659 = vmatprep.subr.mxu0 0.0
    %3660 = vmatpush2.msra.mxu0 0.0
    %3661 = vmatprep.subr.mxu0 0.0
    %3662 = vmatpush2.msra.mxu0 0.0
    %3663 = vmatprep.subr.mxu0 0.0
    %3664 = vmatpush2.msra.mxu0 0.0
    %3665 = vmatprep.subr.mxu0 0.0
    %3666 = vmatpush2.msra.mxu0 0.0
    %3667 = vmatprep.subr.mxu0 0.0
    %3668 = vmatpush2.msra.mxu0 0.0
    %3669 = vmatprep.subr.mxu0 0.0
    %3670 = vmatpush2.msra.mxu0 0.0
    %3671 = vmatprep.mubr.f32.mxu0 0.0
    %3672 = vmatmul.mubr.f32.gmra.mxu0 %v3605
    %v3673 = vpop.f32.mrf.mxu0
    %v3674 = vadd.f32 %v3602, %v3673
    %v3675 = vpop.f32.mrf.mxu0
    %3676 = vdwg.mxu0
    %s3677 = scalar_lea.vmem %s4, 128
    %v3678 = vld [vmem:[%s3677] sm:$0xff]
    %v3679 = vld [vmem:[%s3677 + $0x8] sm:$0xff]
    %v3680 = vld [vmem:[%s3677 + $0x10] sm:$0xff]
    %v3681 = vld [vmem:[%s3677 + $0x18] sm:$0xff]
    %v3682 = vld [vmem:[%s3677 + $0x20] sm:$0xff]
    %v3683 = vld [vmem:[%s3677 + $0x28] sm:$0xff]
    %v3684 = vld [vmem:[%s3677 + $0x30] sm:$0xff]
    %v3685 = vld [vmem:[%s3677 + $0x38] sm:$0xff]
    %3686 = vrot.lane.b32.xlu0 %v3512, 96
    %v3687 = vpop.permute.xlu0 %3686
    %v3688 = vsel %vm1167, %v3687, 0
    %3690 = vmatprep.subr.mxu0 0.0
    %3691 = vmatpush1.msra.mxu0 0.0
    %3692 = vmatprep.subr.mxu0 0.0
    %3693 = vmatpush1.msra.mxu0 0.0
    %3694 = vmatprep.subr.mxu0 0.0
    %3695 = vmatpush1.msra.mxu0 0.0
    %3696 = vmatprep.subr.mxu0 0.0
    %3697 = vmatpush1.msra.mxu0 0.0
    %3698 = vmatprep.subr.mxu0 0.0
    %3699 = vmatpush1.msra.mxu0 0.0
    %3700 = vmatprep.subr.mxu0 0.0
    %3701 = vmatpush1.msra.mxu0 0.0
    %3702 = vmatprep.subr.mxu0 0.0
    %3703 = vmatpush1.msra.mxu0 0.0
    %3704 = vmatprep.subr.mxu0 0.0
    %3705 = vmatpush1.msra.mxu0 0.0
    %3706 = vmatprep.subr.mxu0 0.0
    %3707 = vmatpush1.msra.mxu0 %v3685
    %3708 = vmatprep.subr.mxu0 0.0
    %3709 = vmatpush1.msra.mxu0 %v3684
    %3710 = vmatprep.subr.mxu0 0.0
    %3711 = vmatpush1.msra.mxu0 %v3683
    %3712 = vmatprep.subr.mxu0 0.0
    %3713 = vmatpush1.msra.mxu0 %v3682
    %3714 = vmatprep.subr.mxu0 0.0
    %3715 = vmatpush1.msra.mxu0 %v3681
    %3716 = vmatprep.subr.mxu0 0.0
    %3717 = vmatpush1.msra.mxu0 %v3680
    %3718 = vmatprep.subr.mxu0 0.0
    %3719 = vmatpush1.msra.mxu0 %v3679
    %3720 = vmatprep.subr.mxu0 0.0
    %3721 = vmatpush1.msra.mxu0 %v3678
    %3722 = vmatprep.subr.mxu0 0.0
    %3723 = vmatpush2.msra.mxu0 0.0
    %3724 = vmatprep.subr.mxu0 0.0
    %3725 = vmatpush2.msra.mxu0 0.0
    %3726 = vmatprep.subr.mxu0 0.0
    %3727 = vmatpush2.msra.mxu0 0.0
    %3728 = vmatprep.subr.mxu0 0.0
    %3729 = vmatpush2.msra.mxu0 0.0
    %3730 = vmatprep.subr.mxu0 0.0
    %3731 = vmatpush2.msra.mxu0 0.0
    %3732 = vmatprep.subr.mxu0 0.0
    %3733 = vmatpush2.msra.mxu0 0.0
    %3734 = vmatprep.subr.mxu0 0.0
    %3735 = vmatpush2.msra.mxu0 0.0
    %3736 = vmatprep.subr.mxu0 0.0
    %3737 = vmatpush2.msra.mxu0 0.0
    %3738 = vmatprep.subr.mxu0 0.0
    %3739 = vmatpush2.msra.mxu0 0.0
    %3740 = vmatprep.subr.mxu0 0.0
    %3741 = vmatpush2.msra.mxu0 0.0
    %3742 = vmatprep.subr.mxu0 0.0
    %3743 = vmatpush2.msra.mxu0 0.0
    %3744 = vmatprep.subr.mxu0 0.0
    %3745 = vmatpush2.msra.mxu0 0.0
    %3746 = vmatprep.subr.mxu0 0.0
    %3747 = vmatpush2.msra.mxu0 0.0
    %3748 = vmatprep.subr.mxu0 0.0
    %3749 = vmatpush2.msra.mxu0 0.0
    %3750 = vmatprep.subr.mxu0 0.0
    %3751 = vmatpush2.msra.mxu0 0.0
    %3752 = vmatprep.subr.mxu0 0.0
    %3753 = vmatpush2.msra.mxu0 0.0
    %3754 = vmatprep.mubr.f32.mxu0 0.0
    %3755 = vmatmul.mubr.f32.gmra.mxu0 %v3688
    %v3756 = vpop.f32.mrf.mxu0
    %v3757 = vadd.f32 0.0, %v3756
    %v3758 = vpop.f32.mrf.mxu0
    %3759 = vdwg.mxu0
    %v3760 = vadd.f32 %v3674, %v3757
    %v3761 = vld [vmem:[#allocation5 + $0x1] sm:$0xff]
    %s3762 = scalar_lea.vmem %s4, 192
    %v3763 = vld [vmem:[%s3762] sm:$0xff]
    %v3764 = vld [vmem:[%s3762 + $0x8] sm:$0xff]
    %v3765 = vld [vmem:[%s3762 + $0x10] sm:$0xff]
    %v3766 = vld [vmem:[%s3762 + $0x18] sm:$0xff]
    %v3767 = vld [vmem:[%s3762 + $0x20] sm:$0xff]
    %v3768 = vld [vmem:[%s3762 + $0x28] sm:$0xff]
    %v3769 = vld [vmem:[%s3762 + $0x30] sm:$0xff]
    %v3770 = vld [vmem:[%s3762 + $0x38] sm:$0xff]
    %v3772 = vsel %vm1167, %v3761, 0
    %3774 = vmatprep.subr.mxu0 0.0
    %3775 = vmatpush1.msra.mxu0 0.0
    %3776 = vmatprep.subr.mxu0 0.0
    %3777 = vmatpush1.msra.mxu0 0.0
    %3778 = vmatprep.subr.mxu0 0.0
    %3779 = vmatpush1.msra.mxu0 0.0
    %3780 = vmatprep.subr.mxu0 0.0
    %3781 = vmatpush1.msra.mxu0 0.0
    %3782 = vmatprep.subr.mxu0 0.0
    %3783 = vmatpush1.msra.mxu0 0.0
    %3784 = vmatprep.subr.mxu0 0.0
    %3785 = vmatpush1.msra.mxu0 0.0
    %3786 = vmatprep.subr.mxu0 0.0
    %3787 = vmatpush1.msra.mxu0 0.0
    %3788 = vmatprep.subr.mxu0 0.0
    %3789 = vmatpush1.msra.mxu0 0.0
    %3790 = vmatprep.subr.mxu0 0.0
    %3791 = vmatpush1.msra.mxu0 %v3770
    %3792 = vmatprep.subr.mxu0 0.0
    %3793 = vmatpush1.msra.mxu0 %v3769
    %3794 = vmatprep.subr.mxu0 0.0
    %3795 = vmatpush1.msra.mxu0 %v3768
    %3796 = vmatprep.subr.mxu0 0.0
    %3797 = vmatpush1.msra.mxu0 %v3767
    %3798 = vmatprep.subr.mxu0 0.0
    %3799 = vmatpush1.msra.mxu0 %v3766
    %3800 = vmatprep.subr.mxu0 0.0
    %3801 = vmatpush1.msra.mxu0 %v3765
    %3802 = vmatprep.subr.mxu0 0.0
    %3803 = vmatpush1.msra.mxu0 %v3764
    %3804 = vmatprep.subr.mxu0 0.0
    %3805 = vmatpush1.msra.mxu0 %v3763
    %3806 = vmatprep.subr.mxu0 0.0
    %3807 = vmatpush2.msra.mxu0 0.0
    %3808 = vmatprep.subr.mxu0 0.0
    %3809 = vmatpush2.msra.mxu0 0.0
    %3810 = vmatprep.subr.mxu0 0.0
    %3811 = vmatpush2.msra.mxu0 0.0
    %3812 = vmatprep.subr.mxu0 0.0
    %3813 = vmatpush2.msra.mxu0 0.0
    %3814 = vmatprep.subr.mxu0 0.0
    %3815 = vmatpush2.msra.mxu0 0.0
    %3816 = vmatprep.subr.mxu0 0.0
    %3817 = vmatpush2.msra.mxu0 0.0
    %3818 = vmatprep.subr.mxu0 0.0
    %3819 = vmatpush2.msra.mxu0 0.0
    %3820 = vmatprep.subr.mxu0 0.0
    %3821 = vmatpush2.msra.mxu0 0.0
    %3822 = vmatprep.subr.mxu0 0.0
    %3823 = vmatpush2.msra.mxu0 0.0
    %3824 = vmatprep.subr.mxu0 0.0
    %3825 = vmatpush2.msra.mxu0 0.0
    %3826 = vmatprep.subr.mxu0 0.0
    %3827 = vmatpush2.msra.mxu0 0.0
    %3828 = vmatprep.subr.mxu0 0.0
    %3829 = vmatpush2.msra.mxu0 0.0
    %3830 = vmatprep.subr.mxu0 0.0
    %3831 = vmatpush2.msra.mxu0 0.0
    %3832 = vmatprep.subr.mxu0 0.0
    %3833 = vmatpush2.msra.mxu0 0.0
    %3834 = vmatprep.subr.mxu0 0.0
    %3835 = vmatpush2.msra.mxu0 0.0
    %3836 = vmatprep.subr.mxu0 0.0
    %3837 = vmatpush2.msra.mxu0 0.0
    %3838 = vmatprep.mubr.f32.mxu0 0.0
    %3839 = vmatmul.mubr.f32.gmra.mxu0 %v3772
    %v3840 = vpop.f32.mrf.mxu0
    %v3841 = vadd.f32 0.0, %v3840
    %v3842 = vpop.f32.mrf.mxu0
    %3843 = vdwg.mxu0
    %v3844 = vadd.f32 %v3760, %v3841
    %s3845 = scalar_lea.vmem %s4, 256
    %v3846 = vld [vmem:[%s3845] sm:$0xff]
    %v3847 = vld [vmem:[%s3845 + $0x8] sm:$0xff]
    %v3848 = vld [vmem:[%s3845 + $0x10] sm:$0xff]
    %v3849 = vld [vmem:[%s3845 + $0x18] sm:$0xff]
    %v3850 = vld [vmem:[%s3845 + $0x20] sm:$0xff]
    %v3851 = vld [vmem:[%s3845 + $0x28] sm:$0xff]
    %v3852 = vld [vmem:[%s3845 + $0x30] sm:$0xff]
    %v3853 = vld [vmem:[%s3845 + $0x38] sm:$0xff]
    %3854 = vrot.lane.b32.xlu0 %v3761, 112
    %v3855 = vpop.permute.xlu0 %3854
    %v3856 = vsel %vm1167, %v3855, 0
    %3858 = vmatprep.subr.mxu0 0.0
    %3859 = vmatpush1.msra.mxu0 0.0
    %3860 = vmatprep.subr.mxu0 0.0
    %3861 = vmatpush1.msra.mxu0 0.0
    %3862 = vmatprep.subr.mxu0 0.0
    %3863 = vmatpush1.msra.mxu0 0.0
    %3864 = vmatprep.subr.mxu0 0.0
    %3865 = vmatpush1.msra.mxu0 0.0
    %3866 = vmatprep.subr.mxu0 0.0
    %3867 = vmatpush1.msra.mxu0 0.0
    %3868 = vmatprep.subr.mxu0 0.0
    %3869 = vmatpush1.msra.mxu0 0.0
    %3870 = vmatprep.subr.mxu0 0.0
    %3871 = vmatpush1.msra.mxu0 0.0
    %3872 = vmatprep.subr.mxu0 0.0
    %3873 = vmatpush1.msra.mxu0 0.0
    %3874 = vmatprep.subr.mxu0 0.0
    %3875 = vmatpush1.msra.mxu0 %v3853
    %3876 = vmatprep.subr.mxu0 0.0
    %3877 = vmatpush1.msra.mxu0 %v3852
    %3878 = vmatprep.subr.mxu0 0.0
    %3879 = vmatpush1.msra.mxu0 %v3851
    %3880 = vmatprep.subr.mxu0 0.0
    %3881 = vmatpush1.msra.mxu0 %v3850
    %3882 = vmatprep.subr.mxu0 0.0
    %3883 = vmatpush1.msra.mxu0 %v3849
    %3884 = vmatprep.subr.mxu0 0.0
    %3885 = vmatpush1.msra.mxu0 %v3848
    %3886 = vmatprep.subr.mxu0 0.0
    %3887 = vmatpush1.msra.mxu0 %v3847
    %3888 = vmatprep.subr.mxu0 0.0
    %3889 = vmatpush1.msra.mxu0 %v3846
    %3890 = vmatprep.subr.mxu0 0.0
    %3891 = vmatpush2.msra.mxu0 0.0
    %3892 = vmatprep.subr.mxu0 0.0
    %3893 = vmatpush2.msra.mxu0 0.0
    %3894 = vmatprep.subr.mxu0 0.0
    %3895 = vmatpush2.msra.mxu0 0.0
    %3896 = vmatprep.subr.mxu0 0.0
    %3897 = vmatpush2.msra.mxu0 0.0
    %3898 = vmatprep.subr.mxu0 0.0
    %3899 = vmatpush2.msra.mxu0 0.0
    %3900 = vmatprep.subr.mxu0 0.0
    %3901 = vmatpush2.msra.mxu0 0.0
    %3902 = vmatprep.subr.mxu0 0.0
    %3903 = vmatpush2.msra.mxu0 0.0
    %3904 = vmatprep.subr.mxu0 0.0
    %3905 = vmatpush2.msra.mxu0 0.0
    %3906 = vmatprep.subr.mxu0 0.0
    %3907 = vmatpush2.msra.mxu0 0.0
    %3908 = vmatprep.subr.mxu0 0.0
    %3909 = vmatpush2.msra.mxu0 0.0
    %3910 = vmatprep.subr.mxu0 0.0
    %3911 = vmatpush2.msra.mxu0 0.0
    %3912 = vmatprep.subr.mxu0 0.0
    %3913 = vmatpush2.msra.mxu0 0.0
    %3914 = vmatprep.subr.mxu0 0.0
    %3915 = vmatpush2.msra.mxu0 0.0
    %3916 = vmatprep.subr.mxu0 0.0
    %3917 = vmatpush2.msra.mxu0 0.0
    %3918 = vmatprep.subr.mxu0 0.0
    %3919 = vmatpush2.msra.mxu0 0.0
    %3920 = vmatprep.subr.mxu0 0.0
    %3921 = vmatpush2.msra.mxu0 0.0
    %3922 = vmatprep.mubr.f32.mxu0 0.0
    %3923 = vmatmul.mubr.f32.gmra.mxu0 %v3856
    %v3924 = vpop.f32.mrf.mxu0
    %v3925 = vadd.f32 0.0, %v3924
    %v3926 = vpop.f32.mrf.mxu0
    %3927 = vdwg.mxu0
    %v3928 = vadd.f32 %v3844, %v3925
    %s3929 = scalar_lea.vmem %s4, 320
    %v3930 = vld [vmem:[%s3929] sm:$0xff]
    %v3931 = vld [vmem:[%s3929 + $0x8] sm:$0xff]
    %v3932 = vld [vmem:[%s3929 + $0x10] sm:$0xff]
    %v3933 = vld [vmem:[%s3929 + $0x18] sm:$0xff]
    %v3934 = vld [vmem:[%s3929 + $0x20] sm:$0xff]
    %v3935 = vld [vmem:[%s3929 + $0x28] sm:$0xff]
    %v3936 = vld [vmem:[%s3929 + $0x30] sm:$0xff]
    %v3937 = vld [vmem:[%s3929 + $0x38] sm:$0xff]
    %3938 = vrot.lane.b32.xlu0 %v3761, 96
    %v3939 = vpop.permute.xlu0 %3938
    %v3940 = vsel %vm1167, %v3939, 0
    %3942 = vmatprep.subr.mxu0 0.0
    %3943 = vmatpush1.msra.mxu0 0.0
    %3944 = vmatprep.subr.mxu0 0.0
    %3945 = vmatpush1.msra.mxu0 0.0
    %3946 = vmatprep.subr.mxu0 0.0
    %3947 = vmatpush1.msra.mxu0 0.0
    %3948 = vmatprep.subr.mxu0 0.0
    %3949 = vmatpush1.msra.mxu0 0.0
    %3950 = vmatprep.subr.mxu0 0.0
    %3951 = vmatpush1.msra.mxu0 0.0
    %3952 = vmatprep.subr.mxu0 0.0
    %3953 = vmatpush1.msra.mxu0 0.0
    %3954 = vmatprep.subr.mxu0 0.0
    %3955 = vmatpush1.msra.mxu0 0.0
    %3956 = vmatprep.subr.mxu0 0.0
    %3957 = vmatpush1.msra.mxu0 0.0
    %3958 = vmatprep.subr.mxu0 0.0
    %3959 = vmatpush1.msra.mxu0 %v3937
    %3960 = vmatprep.subr.mxu0 0.0
    %3961 = vmatpush1.msra.mxu0 %v3936
    %3962 = vmatprep.subr.mxu0 0.0
    %3963 = vmatpush1.msra.mxu0 %v3935
    %3964 = vmatprep.subr.mxu0 0.0
    %3965 = vmatpush1.msra.mxu0 %v3934
    %3966 = vmatprep.subr.mxu0 0.0
    %3967 = vmatpush1.msra.mxu0 %v3933
    %3968 = vmatprep.subr.mxu0 0.0
    %3969 = vmatpush1.msra.mxu0 %v3932
    %3970 = vmatprep.subr.mxu0 0.0
    %3971 = vmatpush1.msra.mxu0 %v3931
    %3972 = vmatprep.subr.mxu0 0.0
    %3973 = vmatpush1.msra.mxu0 %v3930
    %3974 = vmatprep.subr.mxu0 0.0
    %3975 = vmatpush2.msra.mxu0 0.0
    %3976 = vmatprep.subr.mxu0 0.0
    %3977 = vmatpush2.msra.mxu0 0.0
    %3978 = vmatprep.subr.mxu0 0.0
    %3979 = vmatpush2.msra.mxu0 0.0
    %3980 = vmatprep.subr.mxu0 0.0
    %3981 = vmatpush2.msra.mxu0 0.0
    %3982 = vmatprep.subr.mxu0 0.0
    %3983 = vmatpush2.msra.mxu0 0.0
    %3984 = vmatprep.subr.mxu0 0.0
    %3985 = vmatpush2.msra.mxu0 0.0
    %3986 = vmatprep.subr.mxu0 0.0
    %3987 = vmatpush2.msra.mxu0 0.0
    %3988 = vmatprep.subr.mxu0 0.0
    %3989 = vmatpush2.msra.mxu0 0.0
    %3990 = vmatprep.subr.mxu0 0.0
    %3991 = vmatpush2.msra.mxu0 0.0
    %3992 = vmatprep.subr.mxu0 0.0
    %3993 = vmatpush2.msra.mxu0 0.0
    %3994 = vmatprep.subr.mxu0 0.0
    %3995 = vmatpush2.msra.mxu0 0.0
    %3996 = vmatprep.subr.mxu0 0.0
    %3997 = vmatpush2.msra.mxu0 0.0
    %3998 = vmatprep.subr.mxu0 0.0
    %3999 = vmatpush2.msra.mxu0 0.0
    %4000 = vmatprep.subr.mxu0 0.0
    %4001 = vmatpush2.msra.mxu0 0.0
    %4002 = vmatprep.subr.mxu0 0.0
    %4003 = vmatpush2.msra.mxu0 0.0
    %4004 = vmatprep.subr.mxu0 0.0
    %4005 = vmatpush2.msra.mxu0 0.0
    %4006 = vmatprep.mubr.f32.mxu0 0.0
    %4007 = vmatmul.mubr.f32.gmra.mxu0 %v3940
    %v4008 = vpop.f32.mrf.mxu0
    %v4009 = vadd.f32 0.0, %v4008
    %v4010 = vpop.f32.mrf.mxu0
    %4011 = vdwg.mxu0
    %v4012 = vadd.f32 %v3928, %v4009
    %v4013 = vld [vmem:[#allocation5 + $0x2] sm:$0xff]
    %v4014 = vsel %vm3510, 0.0, %v4013
    %s4015 = scalar_lea.vmem %s4, 384
    %v4016 = vld [vmem:[%s4015] sm:$0xff]
    %v4017 = vld [vmem:[%s4015 + $0x8] sm:$0xff]
    %v4018 = vld [vmem:[%s4015 + $0x10] sm:$0xff]
    %v4019 = vld [vmem:[%s4015 + $0x18] sm:$0xff]
    %v4020 = vld [vmem:[%s4015 + $0x20] sm:$0xff]
    %v4021 = vld [vmem:[%s4015 + $0x28] sm:$0xff]
    %v4022 = vld [vmem:[%s4015 + $0x30] sm:$0xff]
    %v4023 = vld [vmem:[%s4015 + $0x38] sm:$0xff]
    %v4025 = vsel %vm1167, %v4014, 0
    %4027 = vmatprep.subr.mxu0 0.0
    %4028 = vmatpush1.msra.mxu0 0.0
    %4029 = vmatprep.subr.mxu0 0.0
    %4030 = vmatpush1.msra.mxu0 0.0
    %4031 = vmatprep.subr.mxu0 0.0
    %4032 = vmatpush1.msra.mxu0 0.0
    %4033 = vmatprep.subr.mxu0 0.0
    %4034 = vmatpush1.msra.mxu0 0.0
    %4035 = vmatprep.subr.mxu0 0.0
    %4036 = vmatpush1.msra.mxu0 0.0
    %4037 = vmatprep.subr.mxu0 0.0
    %4038 = vmatpush1.msra.mxu0 0.0
    %4039 = vmatprep.subr.mxu0 0.0
    %4040 = vmatpush1.msra.mxu0 0.0
    %4041 = vmatprep.subr.mxu0 0.0
    %4042 = vmatpush1.msra.mxu0 0.0
    %4043 = vmatprep.subr.mxu0 0.0
    %4044 = vmatpush1.msra.mxu0 %v4023
    %4045 = vmatprep.subr.mxu0 0.0
    %4046 = vmatpush1.msra.mxu0 %v4022
    %4047 = vmatprep.subr.mxu0 0.0
    %4048 = vmatpush1.msra.mxu0 %v4021
    %4049 = vmatprep.subr.mxu0 0.0
    %4050 = vmatpush1.msra.mxu0 %v4020
    %4051 = vmatprep.subr.mxu0 0.0
    %4052 = vmatpush1.msra.mxu0 %v4019
    %4053 = vmatprep.subr.mxu0 0.0
    %4054 = vmatpush1.msra.mxu0 %v4018
    %4055 = vmatprep.subr.mxu0 0.0
    %4056 = vmatpush1.msra.mxu0 %v4017
    %4057 = vmatprep.subr.mxu0 0.0
    %4058 = vmatpush1.msra.mxu0 %v4016
    %4059 = vmatprep.subr.mxu0 0.0
    %4060 = vmatpush2.msra.mxu0 0.0
    %4061 = vmatprep.subr.mxu0 0.0
    %4062 = vmatpush2.msra.mxu0 0.0
    %4063 = vmatprep.subr.mxu0 0.0
    %4064 = vmatpush2.msra.mxu0 0.0
    %4065 = vmatprep.subr.mxu0 0.0
    %4066 = vmatpush2.msra.mxu0 0.0
    %4067 = vmatprep.subr.mxu0 0.0
    %4068 = vmatpush2.msra.mxu0 0.0
    %4069 = vmatprep.subr.mxu0 0.0
    %4070 = vmatpush2.msra.mxu0 0.0
    %4071 = vmatprep.subr.mxu0 0.0
    %4072 = vmatpush2.msra.mxu0 0.0
    %4073 = vmatprep.subr.mxu0 0.0
    %4074 = vmatpush2.msra.mxu0 0.0
    %4075 = vmatprep.subr.mxu0 0.0
    %4076 = vmatpush2.msra.mxu0 0.0
    %4077 = vmatprep.subr.mxu0 0.0
    %4078 = vmatpush2.msra.mxu0 0.0
    %4079 = vmatprep.subr.mxu0 0.0
    %4080 = vmatpush2.msra.mxu0 0.0
    %4081 = vmatprep.subr.mxu0 0.0
    %4082 = vmatpush2.msra.mxu0 0.0
    %4083 = vmatprep.subr.mxu0 0.0
    %4084 = vmatpush2.msra.mxu0 0.0
    %4085 = vmatprep.subr.mxu0 0.0
    %4086 = vmatpush2.msra.mxu0 0.0
    %4087 = vmatprep.subr.mxu0 0.0
    %4088 = vmatpush2.msra.mxu0 0.0
    %4089 = vmatprep.subr.mxu0 0.0
    %4090 = vmatpush2.msra.mxu0 0.0
    %4091 = vmatprep.mubr.f32.mxu0 0.0
    %4092 = vmatmul.mubr.f32.gmra.mxu0 %v4025
    %v4093 = vpop.f32.mrf.mxu0
    %v4094 = vadd.f32 0.0, %v4093
    %v4095 = vpop.f32.mrf.mxu0
    %4096 = vdwg.mxu0
    %v4097 = vadd.f32 %v4012, %v4094
    %s4098 = scalar_lea.vmem %s4, 448
    %v4099 = vld [vmem:[%s4098] sm:$0xff]
    %v4100 = vld [vmem:[%s4098 + $0x8] sm:$0xff]
    %v4101 = vld [vmem:[%s4098 + $0x10] sm:$0xff]
    %v4102 = vld [vmem:[%s4098 + $0x18] sm:$0xff]
    %v4103 = vld [vmem:[%s4098 + $0x20] sm:$0xff]
    %v4104 = vld [vmem:[%s4098 + $0x28] sm:$0xff]
    %v4105 = vld [vmem:[%s4098 + $0x30] sm:$0xff]
    %v4106 = vld [vmem:[%s4098 + $0x38] sm:$0xff]
    %4107 = vrot.lane.b32.xlu0 %v4014, 112
    %v4108 = vpop.permute.xlu0 %4107
    %v4109 = vsel %vm1167, %v4108, 0
    %4111 = vmatprep.subr.mxu0 0.0
    %4112 = vmatpush1.msra.mxu0 0.0
    %4113 = vmatprep.subr.mxu0 0.0
    %4114 = vmatpush1.msra.mxu0 0.0
    %4115 = vmatprep.subr.mxu0 0.0
    %4116 = vmatpush1.msra.mxu0 0.0
    %4117 = vmatprep.subr.mxu0 0.0
    %4118 = vmatpush1.msra.mxu0 0.0
    %4119 = vmatprep.subr.mxu0 0.0
    %4120 = vmatpush1.msra.mxu0 0.0
    %4121 = vmatprep.subr.mxu0 0.0
    %4122 = vmatpush1.msra.mxu0 0.0
    %4123 = vmatprep.subr.mxu0 0.0
    %4124 = vmatpush1.msra.mxu0 0.0
    %4125 = vmatprep.subr.mxu0 0.0
    %4126 = vmatpush1.msra.mxu0 0.0
    %4127 = vmatprep.subr.mxu0 0.0
    %4128 = vmatpush1.msra.mxu0 %v4106
    %4129 = vmatprep.subr.mxu0 0.0
    %4130 = vmatpush1.msra.mxu0 %v4105
    %4131 = vmatprep.subr.mxu0 0.0
    %4132 = vmatpush1.msra.mxu0 %v4104
    %4133 = vmatprep.subr.mxu0 0.0
    %4134 = vmatpush1.msra.mxu0 %v4103
    %4135 = vmatprep.subr.mxu0 0.0
    %4136 = vmatpush1.msra.mxu0 %v4102
    %4137 = vmatprep.subr.mxu0 0.0
    %4138 = vmatpush1.msra.mxu0 %v4101
    %4139 = vmatprep.subr.mxu0 0.0
    %4140 = vmatpush1.msra.mxu0 %v4100
    %4141 = vmatprep.subr.mxu0 0.0
    %4142 = vmatpush1.msra.mxu0 %v4099
    %4143 = vmatprep.subr.mxu0 0.0
    %4144 = vmatpush2.msra.mxu0 0.0
    %4145 = vmatprep.subr.mxu0 0.0
    %4146 = vmatpush2.msra.mxu0 0.0
    %4147 = vmatprep.subr.mxu0 0.0
    %4148 = vmatpush2.msra.mxu0 0.0
    %4149 = vmatprep.subr.mxu0 0.0
    %4150 = vmatpush2.msra.mxu0 0.0
    %4151 = vmatprep.subr.mxu0 0.0
    %4152 = vmatpush2.msra.mxu0 0.0
    %4153 = vmatprep.subr.mxu0 0.0
    %4154 = vmatpush2.msra.mxu0 0.0
    %4155 = vmatprep.subr.mxu0 0.0
    %4156 = vmatpush2.msra.mxu0 0.0
    %4157 = vmatprep.subr.mxu0 0.0
    %4158 = vmatpush2.msra.mxu0 0.0
    %4159 = vmatprep.subr.mxu0 0.0
    %4160 = vmatpush2.msra.mxu0 0.0
    %4161 = vmatprep.subr.mxu0 0.0
    %4162 = vmatpush2.msra.mxu0 0.0
    %4163 = vmatprep.subr.mxu0 0.0
    %4164 = vmatpush2.msra.mxu0 0.0
    %4165 = vmatprep.subr.mxu0 0.0
    %4166 = vmatpush2.msra.mxu0 0.0
    %4167 = vmatprep.subr.mxu0 0.0
    %4168 = vmatpush2.msra.mxu0 0.0
    %4169 = vmatprep.subr.mxu0 0.0
    %4170 = vmatpush2.msra.mxu0 0.0
    %4171 = vmatprep.subr.mxu0 0.0
    %4172 = vmatpush2.msra.mxu0 0.0
    %4173 = vmatprep.subr.mxu0 0.0
    %4174 = vmatpush2.msra.mxu0 0.0
    %4175 = vmatprep.mubr.f32.mxu0 0.0
    %4176 = vmatmul.mubr.f32.gmra.mxu0 %v4109
    %v4177 = vpop.f32.mrf.mxu0
    %v4178 = vadd.f32 0.0, %v4177
    %v4179 = vpop.f32.mrf.mxu0
    %4180 = vdwg.mxu0
    %v4181 = vadd.f32 %v4097, %v4178
    %s4182 = scalar_lea.vmem %s4, 512
    %v4183 = vld [vmem:[%s4182] sm:$0xff]
    %v4184 = vld [vmem:[%s4182 + $0x8] sm:$0xff]
    %v4185 = vld [vmem:[%s4182 + $0x10] sm:$0xff]
    %v4186 = vld [vmem:[%s4182 + $0x18] sm:$0xff]
    %v4187 = vld [vmem:[%s4182 + $0x20] sm:$0xff]
    %v4188 = vld [vmem:[%s4182 + $0x28] sm:$0xff]
    %v4189 = vld [vmem:[%s4182 + $0x30] sm:$0xff]
    %v4190 = vld [vmem:[%s4182 + $0x38] sm:$0xff]
    %4191 = vrot.lane.b32.xlu0 %v4014, 96
    %v4192 = vpop.permute.xlu0 %4191
    %v4193 = vsel %vm1167, %v4192, 0
    %4195 = vmatprep.subr.mxu0 0.0
    %4196 = vmatpush1.msra.mxu0 0.0
    %4197 = vmatprep.subr.mxu0 0.0
    %4198 = vmatpush1.msra.mxu0 0.0
    %4199 = vmatprep.subr.mxu0 0.0
    %4200 = vmatpush1.msra.mxu0 0.0
    %4201 = vmatprep.subr.mxu0 0.0
    %4202 = vmatpush1.msra.mxu0 0.0
    %4203 = vmatprep.subr.mxu0 0.0
    %4204 = vmatpush1.msra.mxu0 0.0
    %4205 = vmatprep.subr.mxu0 0.0
    %4206 = vmatpush1.msra.mxu0 0.0
    %4207 = vmatprep.subr.mxu0 0.0
    %4208 = vmatpush1.msra.mxu0 0.0
    %4209 = vmatprep.subr.mxu0 0.0
    %4210 = vmatpush1.msra.mxu0 0.0
    %4211 = vmatprep.subr.mxu0 0.0
    %4212 = vmatpush1.msra.mxu0 %v4190
    %4213 = vmatprep.subr.mxu0 0.0
    %4214 = vmatpush1.msra.mxu0 %v4189
    %4215 = vmatprep.subr.mxu0 0.0
    %4216 = vmatpush1.msra.mxu0 %v4188
    %4217 = vmatprep.subr.mxu0 0.0
    %4218 = vmatpush1.msra.mxu0 %v4187
    %4219 = vmatprep.subr.mxu0 0.0
    %4220 = vmatpush1.msra.mxu0 %v4186
    %4221 = vmatprep.subr.mxu0 0.0
    %4222 = vmatpush1.msra.mxu0 %v4185
    %4223 = vmatprep.subr.mxu0 0.0
    %4224 = vmatpush1.msra.mxu0 %v4184
    %4225 = vmatprep.subr.mxu0 0.0
    %4226 = vmatpush1.msra.mxu0 %v4183
    %4227 = vmatprep.subr.mxu0 0.0
    %4228 = vmatpush2.msra.mxu0 0.0
    %4229 = vmatprep.subr.mxu0 0.0
    %4230 = vmatpush2.msra.mxu0 0.0
    %4231 = vmatprep.subr.mxu0 0.0
    %4232 = vmatpush2.msra.mxu0 0.0
    %4233 = vmatprep.subr.mxu0 0.0
    %4234 = vmatpush2.msra.mxu0 0.0
    %4235 = vmatprep.subr.mxu0 0.0
    %4236 = vmatpush2.msra.mxu0 0.0
    %4237 = vmatprep.subr.mxu0 0.0
    %4238 = vmatpush2.msra.mxu0 0.0
    %4239 = vmatprep.subr.mxu0 0.0
    %4240 = vmatpush2.msra.mxu0 0.0
    %4241 = vmatprep.subr.mxu0 0.0
    %4242 = vmatpush2.msra.mxu0 0.0
    %4243 = vmatprep.subr.mxu0 0.0
    %4244 = vmatpush2.msra.mxu0 0.0
    %4245 = vmatprep.subr.mxu0 0.0
    %4246 = vmatpush2.msra.mxu0 0.0
    %4247 = vmatprep.subr.mxu0 0.0
    %4248 = vmatpush2.msra.mxu0 0.0
    %4249 = vmatprep.subr.mxu0 0.0
    %4250 = vmatpush2.msra.mxu0 0.0
    %4251 = vmatprep.subr.mxu0 0.0
    %4252 = vmatpush2.msra.mxu0 0.0
    %4253 = vmatprep.subr.mxu0 0.0
    %4254 = vmatpush2.msra.mxu0 0.0
    %4255 = vmatprep.subr.mxu0 0.0
    %4256 = vmatpush2.msra.mxu0 0.0
    %4257 = vmatprep.subr.mxu0 0.0
    %4258 = vmatpush2.msra.mxu0 0.0
    %4259 = vmatprep.mubr.f32.mxu0 0.0
    %4260 = vmatmul.mubr.f32.gmra.mxu0 %v4193
    %v4261 = vpop.f32.mrf.mxu0
    %v4262 = vadd.f32 0.0, %v4261
    %v4263 = vpop.f32.mrf.mxu0
    %4264 = vdwg.mxu0
    %v4265 = vadd.f32 %v4181, %v4262
    %v4266 = vld [vmem:[%s8] sm:$0x1]
    %v4267 = vld [vmem:[%s8 + $0x1] sm:$0x1]
    %v4268 = vld [vmem:[%s8 + $0x2] sm:$0x1]
    %v4269 = vlaneseq
    %v4270 = vshrl.u32 %v4269, 7
    %v4271 = vsub.s32 0, %v4270
    %v4272 = vrot.slane %v4266, %v4271
    %v4273 = vadd.f32 %v4265, %v4272
    %vm4274 = vcmask 1043456
    %v4275 = vsel %vm4274, %v4273, 0.0
    %4276 = vadd.xlane.f32.xlu0 %v4275
    %v4277 = vpop.xlane.xlu0 %4276
    %v4278 = vsel %vm4274, %v4277, 0.0
    %v4279 = vrot.slane %v4278, 4
    %v4280 = vadd.f32 %v4278, %v4279
    %v4281 = vrot.slane %v4280, 2
    %v4282 = vadd.f32 %v4280, %v4281
    %v4283 = vrot.slane %v4282, 1
    %v4284 = vadd.f32 %v4282, %v4283
    %v4285 = vmul.f32 %v4284, 0.001953125
    %v4286 = vmul.f32 %v4273, %v4273
    %v4287 = vsel %vm4274, %v4286, 0.0
    %4288 = vadd.xlane.f32.xlu0 %v4287
    %v4289 = vpop.xlane.xlu0 %4288
    %v4290 = vsel %vm4274, %v4289, 0.0
    %v4291 = vrot.slane %v4290, 4
    %v4292 = vadd.f32 %v4290, %v4291
    %v4293 = vrot.slane %v4292, 2
    %v4294 = vadd.f32 %v4292, %v4293
    %v4295 = vrot.slane %v4294, 1
    %v4296 = vadd.f32 %v4294, %v4295
    %v4297 = vmul.f32 %v4296, 0.001953125
    %v4298 = vmul.f32 %v4285, %v4285
    %v4299 = vsub.f32 %v4297, %v4298
    %v4300 = vadd.f32 %v4299, 1e-05
    %v4301 = vrsqrt.pop %v4300
    %v4302 = vmul.f32 %v4267, %v4301
    %v4303 = vmul.f32 %v4285, %v4302
    %v4304 = vsub.f32 %v4268, %v4303
    %v4305 = vlaneseq
    %v4306 = vshrl.u32 %v4305, 7
    %v4307 = vsub.s32 0, %v4306
    %v4308 = vrot.slane %v4302, %v4307
    %v4309 = vmul.f32 %v4273, %v4308
    %v4310 = vlaneseq
    %v4311 = vshrl.u32 %v4310, 7
    %v4312 = vsub.s32 0, %v4311
    %v4313 = vrot.slane %v4304, %v4312
    %v4314 = vadd.f32 %v4309, %v4313
    %v4315 = vmax.f32 %v4314, 0.0
    %vm4316 = vcmask 1047556
    %v4317 = vsel %vm4316, %v4273, 0.0
    %4318 = vadd.xlane.f32.xlu0 %v4317
    %v4319 = vpop.xlane.xlu0 %4318
    %v4321 = vrot.slane %v4319, 4
    %v4323 = vsel %vm4274, %v4321, 0.0
    %v4324 = vrot.slane %v4323, 4
    %v4325 = vadd.f32 %v4323, %v4324
    %v4326 = vrot.slane %v4325, 2
    %v4327 = vadd.f32 %v4325, %v4326
    %v4328 = vrot.slane %v4327, 1
    %v4329 = vadd.f32 %v4327, %v4328
    %v4330 = vmul.f32 %v4329, 0.001953125
    %v4331 = vsel %vm4316, %v4286, 0.0
    %4332 = vadd.xlane.f32.xlu0 %v4331
    %v4333 = vpop.xlane.xlu0 %4332
    %v4335 = vrot.slane %v4333, 4
    %v4337 = vsel %vm4274, %v4335, 0.0
    %v4338 = vrot.slane %v4337, 4
    %v4339 = vadd.f32 %v4337, %v4338
    %v4340 = vrot.slane %v4339, 2
    %v4341 = vadd.f32 %v4339, %v4340
    %v4342 = vrot.slane %v4341, 1
    %v4343 = vadd.f32 %v4341, %v4342
    %v4344 = vmul.f32 %v4343, 0.001953125
    %v4345 = vmul.f32 %v4330, %v4330
    %v4346 = vsub.f32 %v4344, %v4345
    %v4347 = vadd.f32 %v4346, 1e-05
    %v4348 = vrsqrt.pop %v4347
    %v4349 = vmul.f32 %v4267, %v4348
    %v4350 = vmul.f32 %v4330, %v4349
    %v4351 = vsub.f32 %v4268, %v4350
    %v4352 = vlaneseq
    %v4353 = vshrl.u32 %v4352, 7
    %v4354 = vsub.s32 0, %v4353
    %v4355 = vrot.slane %v4349, %v4354
    %v4356 = vmul.f32 %v4273, %v4355
    %v4357 = vlaneseq
    %v4358 = vshrl.u32 %v4357, 7
    %v4359 = vsub.s32 0, %v4358
    %v4360 = vrot.slane %v4351, %v4359
    %v4361 = vadd.f32 %v4356, %v4360
    %v4362 = vmax.f32 %v4361, 0.0
    %4364 = vrot.lane.b32.xlu0 %v4315, 96
    %v4365 = vpop.permute.xlu0 %4364
    %v4367 = vmax.f32 %v4315, %v4365
    %4368 = vrot.lane.b32.xlu0 %v4315, 64
    %v4369 = vpop.permute.xlu0 %4368
    %v4371 = vmax.f32 %v4367, %v4369
    %4372 = vrot.lane.b32.xlu0 %v4315, 32
    %v4373 = vpop.permute.xlu0 %4372
    %v4375 = vmax.f32 %v4371, %v4373
    %vm4376 = vcmask 257024
    %v4377 = vsel %vm4376, %v4375, -inf
    %v4378 = vrot.slane %v4377, 4
    %v4379 = vmax.f32 %v4377, %v4378
    %v4380 = vrot.slane %v4379, 2
    %v4381 = vmax.f32 %v4379, %v4380
    %v4382 = vrot.slane %v4381, 1
    %v4383 = vmax.f32 %v4381, %v4382
    %v4384 = vld [vmem:[%s9] sm:$0xff]
    %v4385 = vld [vmem:[%s9 + $0x8] sm:$0xff]
    %v4386 = vld [vmem:[%s9 + $0x10] sm:$0xff]
    %v4387 = vld [vmem:[%s9 + $0x18] sm:$0xff]
    %v4388 = vld [vmem:[%s10] sm:$0x1]
    %vm4389 = vcmask 261120
    %v4391 = vsel %vm4389, %v4383, 0
    %4393 = vmatprep.subr.mxu0 0.0
    %4394 = vmatpush1.msra.mxu0 0.0
    %4395 = vmatprep.subr.mxu0 0.0
    %4396 = vmatpush1.msra.mxu0 0.0
    %4397 = vmatprep.subr.mxu0 0.0
    %4398 = vmatpush1.msra.mxu0 0.0
    %4399 = vmatprep.subr.mxu0 0.0
    %4400 = vmatpush1.msra.mxu0 0.0
    %4401 = vmatprep.subr.mxu0 0.0
    %4402 = vmatpush1.msra.mxu0 0.0
    %4403 = vmatprep.subr.mxu0 0.0
    %4404 = vmatpush1.msra.mxu0 0.0
    %4405 = vmatprep.subr.mxu0 0.0
    %4406 = vmatpush1.msra.mxu0 0.0
    %4407 = vmatprep.subr.mxu0 0.0
    %4408 = vmatpush1.msra.mxu0 0.0
    %4409 = vmatprep.subr.mxu0 0.0
    %4410 = vmatpush1.msra.mxu0 0.0
    %4411 = vmatprep.subr.mxu0 0.0
    %4412 = vmatpush1.msra.mxu0 0.0
    %4413 = vmatprep.subr.mxu0 0.0
    %4414 = vmatpush1.msra.mxu0 0.0
    %4415 = vmatprep.subr.mxu0 0.0
    %4416 = vmatpush1.msra.mxu0 0.0
    %4417 = vmatprep.subr.mxu0 0.0
    %4418 = vmatpush1.msra.mxu0 %v4387
    %4419 = vmatprep.subr.mxu0 0.0
    %4420 = vmatpush1.msra.mxu0 %v4386
    %4421 = vmatprep.subr.mxu0 0.0
    %4422 = vmatpush1.msra.mxu0 %v4385
    %4423 = vmatprep.subr.mxu0 0.0
    %4424 = vmatpush1.msra.mxu0 %v4384
    %4425 = vmatprep.subr.mxu0 0.0
    %4426 = vmatpush2.msra.mxu0 0.0
    %4427 = vmatprep.subr.mxu0 0.0
    %4428 = vmatpush2.msra.mxu0 0.0
    %4429 = vmatprep.subr.mxu0 0.0
    %4430 = vmatpush2.msra.mxu0 0.0
    %4431 = vmatprep.subr.mxu0 0.0
    %4432 = vmatpush2.msra.mxu0 0.0
    %4433 = vmatprep.subr.mxu0 0.0
    %4434 = vmatpush2.msra.mxu0 0.0
    %4435 = vmatprep.subr.mxu0 0.0
    %4436 = vmatpush2.msra.mxu0 0.0
    %4437 = vmatprep.subr.mxu0 0.0
    %4438 = vmatpush2.msra.mxu0 0.0
    %4439 = vmatprep.subr.mxu0 0.0
    %4440 = vmatpush2.msra.mxu0 0.0
    %4441 = vmatprep.subr.mxu0 0.0
    %4442 = vmatpush2.msra.mxu0 0.0
    %4443 = vmatprep.subr.mxu0 0.0
    %4444 = vmatpush2.msra.mxu0 0.0
    %4445 = vmatprep.subr.mxu0 0.0
    %4446 = vmatpush2.msra.mxu0 0.0
    %4447 = vmatprep.subr.mxu0 0.0
    %4448 = vmatpush2.msra.mxu0 0.0
    %4449 = vmatprep.subr.mxu0 0.0
    %4450 = vmatpush2.msra.mxu0 0.0
    %4451 = vmatprep.subr.mxu0 0.0
    %4452 = vmatpush2.msra.mxu0 0.0
    %4453 = vmatprep.subr.mxu0 0.0
    %4454 = vmatpush2.msra.mxu0 0.0
    %4455 = vmatprep.subr.mxu0 0.0
    %4456 = vmatpush2.msra.mxu0 0.0
    %4457 = vmatprep.mubr.f32.mxu0 0.0
    %4458 = vmatmul.mubr.f32.gmra.mxu0 %v4391
    %v4459 = vpop.f32.mrf.mxu0
    %v4460 = vadd.f32 %v4388, %v4459
    %v4461 = vpop.f32.mrf.mxu0
    %4462 = vdwg.mxu0
    %vm4463 = vcmask 73728
    %4464 = vst.msk [vmem:[#allocation8] sm:$0x1] %vm4463, %v4460
    %4466 = vrot.lane.b32.xlu0 %v4362, 96
    %v4467 = vpop.permute.xlu0 %4466
    %v4469 = vmax.f32 %v4362, %v4467
    %4470 = vrot.lane.b32.xlu0 %v4362, 64
    %v4471 = vpop.permute.xlu0 %4470
    %v4473 = vmax.f32 %v4469, %v4471
    %4474 = vrot.lane.b32.xlu0 %v4362, 32
    %v4475 = vpop.permute.xlu0 %4474
    %v4477 = vmax.f32 %v4473, %v4475
    %vm4478 = vcmask 261124
    %v4479 = vsel %vm4478, %v4477, -inf
    %v4480 = vrot.slane %v4479, 4
    %v4481 = vmax.f32 %v4479, %v4480
    %v4482 = vrot.slane %v4481, 2
    %v4483 = vmax.f32 %v4481, %v4482
    %v4484 = vrot.slane %v4483, 1
    %v4485 = vmax.f32 %v4483, %v4484
    %v4486 = vld [vmem:[%s9] sm:$0xff]
    %v4487 = vld [vmem:[%s9 + $0x8] sm:$0xff]
    %v4488 = vld [vmem:[%s9 + $0x10] sm:$0xff]
    %v4489 = vld [vmem:[%s9 + $0x18] sm:$0xff]
    %v4490 = vld [vmem:[%s10] sm:$0x1]
    %v4492 = vsel %vm4389, %v4485, 0
    %4494 = vmatprep.subr.mxu0 0.0
    %4495 = vmatpush1.msra.mxu0 0.0
    %4496 = vmatprep.subr.mxu0 0.0
    %4497 = vmatpush1.msra.mxu0 0.0
    %4498 = vmatprep.subr.mxu0 0.0
    %4499 = vmatpush1.msra.mxu0 0.0
    %4500 = vmatprep.subr.mxu0 0.0
    %4501 = vmatpush1.msra.mxu0 0.0
    %4502 = vmatprep.subr.mxu0 0.0
    %4503 = vmatpush1.msra.mxu0 0.0
    %4504 = vmatprep.subr.mxu0 0.0
    %4505 = vmatpush1.msra.mxu0 0.0
    %4506 = vmatprep.subr.mxu0 0.0
    %4507 = vmatpush1.msra.mxu0 0.0
    %4508 = vmatprep.subr.mxu0 0.0
    %4509 = vmatpush1.msra.mxu0 0.0
    %4510 = vmatprep.subr.mxu0 0.0
    %4511 = vmatpush1.msra.mxu0 0.0
    %4512 = vmatprep.subr.mxu0 0.0
    %4513 = vmatpush1.msra.mxu0 0.0
    %4514 = vmatprep.subr.mxu0 0.0
    %4515 = vmatpush1.msra.mxu0 0.0
    %4516 = vmatprep.subr.mxu0 0.0
    %4517 = vmatpush1.msra.mxu0 0.0
    %4518 = vmatprep.subr.mxu0 0.0
    %4519 = vmatpush1.msra.mxu0 %v4489
    %4520 = vmatprep.subr.mxu0 0.0
    %4521 = vmatpush1.msra.mxu0 %v4488
    %4522 = vmatprep.subr.mxu0 0.0
    %4523 = vmatpush1.msra.mxu0 %v4487
    %4524 = vmatprep.subr.mxu0 0.0
    %4525 = vmatpush1.msra.mxu0 %v4486
    %4526 = vmatprep.subr.mxu0 0.0
    %4527 = vmatpush2.msra.mxu0 0.0
    %4528 = vmatprep.subr.mxu0 0.0
    %4529 = vmatpush2.msra.mxu0 0.0
    %4530 = vmatprep.subr.mxu0 0.0
    %4531 = vmatpush2.msra.mxu0 0.0
    %4532 = vmatprep.subr.mxu0 0.0
    %4533 = vmatpush2.msra.mxu0 0.0
    %4534 = vmatprep.subr.mxu0 0.0
    %4535 = vmatpush2.msra.mxu0 0.0
    %4536 = vmatprep.subr.mxu0 0.0
    %4537 = vmatpush2.msra.mxu0 0.0
    %4538 = vmatprep.subr.mxu0 0.0
    %4539 = vmatpush2.msra.mxu0 0.0
    %4540 = vmatprep.subr.mxu0 0.0
    %4541 = vmatpush2.msra.mxu0 0.0
    %4542 = vmatprep.subr.mxu0 0.0
    %4543 = vmatpush2.msra.mxu0 0.0
    %4544 = vmatprep.subr.mxu0 0.0
    %4545 = vmatpush2.msra.mxu0 0.0
    %4546 = vmatprep.subr.mxu0 0.0
    %4547 = vmatpush2.msra.mxu0 0.0
    %4548 = vmatprep.subr.mxu0 0.0
    %4549 = vmatpush2.msra.mxu0 0.0
    %4550 = vmatprep.subr.mxu0 0.0
    %4551 = vmatpush2.msra.mxu0 0.0
    %4552 = vmatprep.subr.mxu0 0.0
    %4553 = vmatpush2.msra.mxu0 0.0
    %4554 = vmatprep.subr.mxu0 0.0
    %4555 = vmatpush2.msra.mxu0 0.0
    %4556 = vmatprep.subr.mxu0 0.0
    %4557 = vmatpush2.msra.mxu0 0.0
    %4558 = vmatprep.mubr.f32.mxu0 0.0
    %4559 = vmatmul.mubr.f32.gmra.mxu0 %v4492
    %v4560 = vpop.f32.mrf.mxu0
    %v4561 = vadd.f32 %v4490, %v4560
    %v4562 = vpop.f32.mrf.mxu0
    %4563 = vdwg.mxu0
    %4564 = vst.msk [vmem:[#allocation8 + $0x1] sm:$0x1] %vm4463, %v4561
    // Predicated region
    $region46: #{cnn_ln_forward.1} parent=1 // pred_check
      _
    $region47: #{cnn_ln_forward.1} parent=1 // pred_check_branch
      %4566 = sbr.rel (0) target = $region49
    $region48: #{cnn_ln_forward.1} parent=1 // pred_region
      %s4568 = ssub.s32 32, 32
      %4569 = vsyncadd [#allocation9], %s4568
      %s4571 = sshll.u32 [#allocation8], 4
      %s4572 = int_to_ptr.vmem [resolvable:$true] %s4571
      %4574 = dma.vmem_to_hbm [thread:$0]  %s4572, 32, %s11, [#allocation9]
    $region49: #{cnn_ln_forward.1} parent=1 // pred_fallthru
      _
    // Predicated region
    $region50: #{cnn_ln_forward.1} parent=1 // pred_check
      _
    $region51: #{cnn_ln_forward.1} parent=1 // pred_check_branch
      %4576 = sbr.rel (0) target = $region53
    $region52: #{cnn_ln_forward.1} parent=1 // pred_region
      %4577 = dma.done [#allocation9], 32
    $region53: #{cnn_ln_forward.1} parent=1 // pred_fallthru
      _
    %4578 = vsyncpa [#allocation9], 1

</llo_original>
